<compile_context>
chip_gen: v5e
topology: v5e:2x2
jax: 0.10.0
libtpu: 0.0.40
codegen_flags: <defaults>
</compile_context>

<pallas_src>
import jax
import jax.numpy as jnp
from jax.experimental import pallas as pl
from jax.experimental.pallas import tpu as pltpu


_CONV_CFG = [  # (cout, kernel, stride, pad)
    (8, 5, 2, 2),
    (16, 3, 2, 1),
    (32, 3, 2, 1),
    (64, 3, 2, 1),
]
_HEAD_SIZES = [3, 6, 40, 32, 32]  # shape, scale, orientation, x_pos, y_pos
_NUM_HEADS = len(_HEAD_SIZES)
_HEAD_SLOT = 128                  # lane-aligned output slot per head


# ----------------------------------------------------------------------------
# Pallas kernels
# ----------------------------------------------------------------------------
def _conv_kernel(p_ref, w_ref, s_ref, o_ref):
    # (tm, K)bf16 @ (K, Cout)bf16 on the MXU with f32 accumulate,
    # folded conv-bias+BN shift and ReLU on the VPU, store bf16.
    y = jnp.dot(p_ref[...], w_ref[...], preferred_element_type=jnp.float32)
    y = jnp.maximum(y + s_ref[...], 0.0)
    o_ref[...] = y.astype(o_ref.dtype)


def _heads_kernel(x_ref, w1_ref, b1_ref, w2_ref, b2_ref, w3_ref, b3_ref, o_ref):
    # Fused 5-head MLP. x: (tn, 1024) bf16, w1: (1024, 2560) bf16.
    h1 = jnp.dot(x_ref[...], w1_ref[...], preferred_element_type=jnp.float32)
    h1 = jnp.maximum(h1 + b1_ref[...], 0.0)               # (tn, 2560) f32
    for i in range(_NUM_HEADS):                            # static unroll
        h1_i = h1[:, i * 512:(i + 1) * 512].astype(jnp.bfloat16)
        h2 = jnp.dot(h1_i, w2_ref[i], preferred_element_type=jnp.float32)
        h2 = jnp.maximum(h2 + b2_ref[i], 0.0)              # (tn, 128) f32
        logits = jnp.dot(h2.astype(jnp.bfloat16), w3_ref[i],
                         preferred_element_type=jnp.float32) + b3_ref[i]
        m = jnp.max(logits, axis=-1, keepdims=True)
        e = jnp.exp(logits - m)                            # pad cols -> exp(-huge)=0
        inv = pl.reciprocal(jnp.sum(e, axis=-1, keepdims=True), approx=True)
        o_ref[:, i * _HEAD_SLOT:(i + 1) * _HEAD_SLOT] = (e * inv).astype(o_ref.dtype)


# ----------------------------------------------------------------------------
# pallas_call wrappers
# ----------------------------------------------------------------------------
def _row_tile(rows, cap=512):
    """Largest multiple-of-16 divisor of rows that is <= cap (or rows itself)."""
    if rows <= cap:
        return rows
    for t in range(cap, 15, -16):
        if rows % t == 0:
            return t
    return rows


def conv_bn_relu(patches, w_folded, shift):
    """patches: (rows, K) bf16, w_folded: (K, Cout) bf16, shift: (1, Cout) f32."""
    rows, kk = patches.shape
    cout = w_folded.shape[1]
    tm = _row_tile(rows)
    grid = (rows // tm,)
    return pl.pallas_call(
        _conv_kernel,
        out_shape=jax.ShapeDtypeStruct((rows, cout), jnp.bfloat16),
        grid_spec=pltpu.PrefetchScalarGridSpec(
            num_scalar_prefetch=0,
            grid=grid,
            in_specs=[
                pl.BlockSpec((tm, kk), lambda i: (i, 0)),
                pl.BlockSpec((kk, cout), lambda i: (0, 0)),
                pl.BlockSpec((1, cout), lambda i: (0, 0)),
            ],
            out_specs=pl.BlockSpec((tm, cout), lambda i: (i, 0)),
        ),
        compiler_params=pltpu.CompilerParams(
            dimension_semantics=("parallel",)),
    )(patches, w_folded, shift)


def fused_heads(x, hp):
    """x: (N, 1024) bf16 -> (N, 5*128) f32 slab of per-head softmax probs."""
    n = x.shape[0]
    tn = n if n <= 256 else 256
    grid = (pl.cdiv(n, tn),)
    return pl.pallas_call(
        _heads_kernel,
        out_shape=jax.ShapeDtypeStruct((n, _NUM_HEADS * _HEAD_SLOT), jnp.float32),
        grid_spec=pltpu.PrefetchScalarGridSpec(
            num_scalar_prefetch=0,
            grid=grid,
            in_specs=[
                pl.BlockSpec((tn, 1024), lambda i: (i, 0)),
                pl.BlockSpec((1024, 512 * _NUM_HEADS), lambda i: (0, 0)),
                pl.BlockSpec((1, 512 * _NUM_HEADS), lambda i: (0, 0)),
                pl.BlockSpec((_NUM_HEADS, 512, 128), lambda i: (0, 0, 0)),
                pl.BlockSpec((_NUM_HEADS, 1, 128), lambda i: (0, 0, 0)),
                pl.BlockSpec((_NUM_HEADS, 128, 128), lambda i: (0, 0, 0)),
                pl.BlockSpec((_NUM_HEADS, 1, 128), lambda i: (0, 0, 0)),
            ],
            out_specs=pl.BlockSpec((tn, _NUM_HEADS * _HEAD_SLOT), lambda i: (i, 0)),
        ),
        compiler_params=pltpu.CompilerParams(
            dimension_semantics=("parallel",),
            vmem_limit_bytes=48 * 1024 * 1024),
    )(x, hp["w1"], hp["b1"], hp["w2"], hp["b2"], hp["w3"], hp["b3"])


# ----------------------------------------------------------------------------
# Plain-JAX glue
# ----------------------------------------------------------------------------
def im2col_nhwc(x, k, stride, pad):
    """x: (N, H, W, C) -> (N*Ho*Wo, KH*KW*C); column order (kh, kw, cin)."""
    n, h, w, c = x.shape
    xp = jnp.pad(x, ((0, 0), (pad, pad), (pad, pad), (0, 0)))
    ho = (h + 2 * pad - k) // stride + 1
    wo = (w + 2 * pad - k) // stride + 1
    cols = [xp[:, kh:kh + stride * ho:stride, kw:kw + stride * wo:stride, :]
            for kh in range(k) for kw in range(k)]
    p = jnp.stack(cols, axis=3)                      # (N, Ho, Wo, K*K, C)
    return p.reshape(n * ho * wo, k * k * c), ho, wo


def init_params(seed=0):
    key = jax.random.PRNGKey(seed)
    kit = iter(jax.random.split(key, 128))

    def nrm(shape, scale=0.05):
        return scale * jax.random.normal(next(kit), shape, jnp.float32)

    eps = 1e-5
    conv_params = []
    cin = 1
    for cout, k, _, _ in _CONV_CFG:
        w = nrm((cout, cin, k, k))                   # torch Conv2d weight (Cout,Cin,KH,KW)
        b = nrm((cout,))                             # Conv2d bias (default bias=True)
        gamma = 1.0 + nrm((cout,), 0.1)
        beta = nrm((cout,), 0.1)
        rmean = nrm((cout,), 0.1)
        rvar = 1.0 + 0.1 * jnp.abs(jax.random.normal(next(kit), (cout,), jnp.float32))
        inv_std = gamma / jnp.sqrt(rvar + eps)
        # Reorder to NHWC im2col column order (kh, kw, cin) and fold BN scale.
        w2d = w.transpose(2, 3, 1, 0).reshape(k * k * cin, cout)
        w_folded = (w2d * inv_std[None, :]).astype(jnp.bfloat16)
        shift = ((b - rmean) * inv_std + beta).reshape(1, cout).astype(jnp.float32)
        conv_params.append((w_folded, shift))
        cin = cout

    # Shared features are flattened in HWC order; torch Flatten of NCHW is CHW.
    # Permute W1 rows once at init so HWC-flattened features give identical math.
    hh, ww, cc = jnp.meshgrid(jnp.arange(4), jnp.arange(4), jnp.arange(64),
                              indexing="ij")
    perm = (cc * 16 + hh * 4 + ww).reshape(-1)       # hwc index -> chw index

    w1_l, b1_l, w2_l, b2_l, w3_l, b3_l = [], [], [], [], [], []
    for nk in _HEAD_SIZES:
        w1 = nrm((512, 1024)); b1 = nrm((512,))      # torch Linear (out, in)
        w2 = nrm((128, 512));  b2 = nrm((128,))
        w3 = nrm((nk, 128));   b3 = nrm((nk,))
        w1_l.append(w1.T[perm, :])                   # (1024, 512), rows in HWC order
        b1_l.append(b1)
        w2_l.append(w2.T)                            # (512, 128)
        b2_l.append(b2)
        # Pad third layer to 128 output columns: zero weights, -1e30 bias so the
        # in-kernel softmax over 128 lanes equals softmax over the real nk.
        w3p = jnp.zeros((128, 128), jnp.float32).at[:, :nk].set(w3.T)
        b3p = jnp.full((128,), -1e30, jnp.float32).at[:nk].set(b3)
        w3_l.append(w3p); b3_l.append(b3p)

    head_params = dict(
        w1=jnp.concatenate(w1_l, axis=1).astype(jnp.bfloat16),        # (1024, 2560)
        b1=jnp.concatenate(b1_l).reshape(1, -1).astype(jnp.float32),  # (1, 2560)
        w2=jnp.stack(w2_l).astype(jnp.bfloat16),                      # (5, 512, 128)
        b2=jnp.stack(b2_l).reshape(_NUM_HEADS, 1, 128).astype(jnp.float32),
        w3=jnp.stack(w3_l).astype(jnp.bfloat16),                      # (5, 128, 128)
        b3=jnp.stack(b3_l).reshape(_NUM_HEADS, 1, 128).astype(jnp.float32),
    )
    return conv_params, head_params


def forward(x, conv_params, head_params):
    """x: (N, 1, 64, 64) float32 NCHW; eval-mode forward (Dropout2d = identity)."""
    n = x.shape[0]
    h = jnp.transpose(x, (0, 2, 3, 1)).astype(jnp.bfloat16)   # NCHW -> NHWC once
    for (w_folded, shift), (cout, k, s, p) in zip(conv_params, _CONV_CFG):
        patches, ho, wo = im2col_nhwc(h, k, s, p)
        out = conv_bn_relu(patches, w_folded, shift)           # (rows, Cout) bf16
        h = out.reshape(n, ho, wo, cout)                       # stays NHWC (free)
    shared = h.reshape(n, -1)                                  # (N, 1024) bf16, HWC order
    probs = fused_heads(shared, head_params)                   # (N, 640) f32
    return tuple(probs[:, i * _HEAD_SLOT:i * _HEAD_SLOT + nk]
                 for i, nk in enumerate(_HEAD_SIZES))


if __name__ == "__main__":
    conv_params, head_params = init_params(0)
    x = jax.random.normal(jax.random.PRNGKey(0), (2, 1, 64, 64), jnp.float32)

    fwd = jax.jit(lambda xx: forward(xx, conv_params, head_params))
    outs = jax.block_until_ready(fwd(x))

    expected = [(2, 3), (2, 6), (2, 40), (2, 32), (2, 32)]
    ok = True
    for o, shp in zip(outs, expected):
        ok &= (o.shape == shp)
        ok &= bool(jnp.all(jnp.isfinite(o)))
        # softmax rows sum to 1 (bf16 matmuls + approx reciprocal -> loose tol)
        ok &= bool(jnp.allclose(jnp.sum(o, axis=-1), 1.0, atol=5e-3))
    print("KERNEL_OK" if ok else "KERNEL_FAIL")
</pallas_src>

<mosaic_0001>
module attributes {stable_mosaic.version = 11 : i64} {
  func.func @_conv_kernel(%arg0: i32, %arg1: memref<512x25xbf16, #tpu.memory_space<vmem>>, %arg2: memref<25x8xbf16, #tpu.memory_space<vmem>>, %arg3: memref<1x8xf32, #tpu.memory_space<vmem>>, %arg4: memref<512x8xbf16, #tpu.memory_space<vmem>>) attributes {dimension_semantics = [#tpu.dimension_semantics<parallel>], iteration_bounds = array<i64: 4>, scalar_prefetch = 0 : i64, scratch_operands = 0 : i64, tpu.core_type = #tpu.core_type<tc>, window_params = [{transform_indices = @transform_0, window_bounds = array<i64: 512, 25>}, {pipeline_mode = #tpu.pipeline_mode<synchronous>, transform_indices = @transform_1, window_bounds = array<i64: 25, 8>}, {pipeline_mode = #tpu.pipeline_mode<synchronous>, transform_indices = @transform_2, window_bounds = array<i64: 1, 8>}, {transform_indices = @transform_3, window_bounds = array<i64: 512, 8>}]} {
    %c0 = arith.constant 0 : index
    %c0_0 = arith.constant 0 : index
    %0 = vector.load %arg1[%c0, %c0_0] : memref<512x25xbf16, #tpu.memory_space<vmem>>, vector<512x25xbf16>
    %c0_1 = arith.constant 0 : index
    %c0_2 = arith.constant 0 : index
    %1 = vector.load %arg2[%c0_1, %c0_2] : memref<25x8xbf16, #tpu.memory_space<vmem>>, vector<25x8xbf16>
    %cst = arith.constant dense<0.000000e+00> : vector<512x8xf32>
    %2 = tpu.matmul %0, %1, %cst {dimension_numbers = #tpu.dot_dimension_numbers<[1], [0], [0], [1], [0, 0, 1, 1], [], []>} : vector<512x25xbf16>, vector<25x8xbf16>, vector<512x8xf32> -> vector<512x8xf32>
    %c0_3 = arith.constant 0 : index
    %c0_4 = arith.constant 0 : index
    %3 = vector.load %arg3[%c0_3, %c0_4] : memref<1x8xf32, #tpu.memory_space<vmem>>, vector<1x8xf32>
    %4 = vector.broadcast %3 : vector<1x8xf32> to vector<512x8xf32>
    %5 = arith.addf %2, %4 : vector<512x8xf32>
    %cst_5 = arith.constant 0.000000e+00 : f32
    %6 = vector.broadcast %cst_5 : f32 to vector<512x8xf32>
    %7 = arith.maximumf %5, %6 : vector<512x8xf32>
    %8 = arith.truncf %7 : vector<512x8xf32> to vector<512x8xbf16>
    %c0_6 = arith.constant 0 : index
    %c0_7 = arith.constant 0 : index
    %9 = vector.load %arg4[%c0_6, %c0_7] : memref<512x8xbf16, #tpu.memory_space<vmem>>, vector<512x8xbf16>
    tpu.vector_store %arg4[%c0_6, %c0_7], %8 {strides = array<i32>} : memref<512x8xbf16, #tpu.memory_space<vmem>>, vector<512x8xbf16>,
    return
  }
  func.func @transform_0(%arg0: i32) -> (i32, i32) {
    %c0_i32 = arith.constant 0 : i32
    %c0_i32_0 = arith.constant 0 : i32
    return %arg0, %c0_i32 : i32, i32
  }
  func.func @transform_1(%arg0: i32) -> (i32, i32) {
    %c0_i32 = arith.constant 0 : i32
    %c0_i32_0 = arith.constant 0 : i32
    %c0_i32_1 = arith.constant 0 : i32
    return %c0_i32, %c0_i32_0 : i32, i32
  }
  func.func @transform_2(%arg0: i32) -> (i32, i32) {
    %c0_i32 = arith.constant 0 : i32
    %c0_i32_0 = arith.constant 0 : i32
    %c0_i32_1 = arith.constant 0 : i32
    return %c0_i32, %c0_i32_0 : i32, i32
  }
  func.func @transform_3(%arg0: i32) -> (i32, i32) {
    %c0_i32 = arith.constant 0 : i32
    %c0_i32_0 = arith.constant 0 : i32
    return %arg0, %c0_i32 : i32, i32
  }
}

module attributes {stable_mosaic.version = 11 : i64} {
  func.func @_conv_kernel(%arg0: i32, %arg1: memref<512x72xbf16, #tpu.memory_space<vmem>>, %arg2: memref<72x16xbf16, #tpu.memory_space<vmem>>, %arg3: memref<1x16xf32, #tpu.memory_space<vmem>>, %arg4: memref<512x16xbf16, #tpu.memory_space<vmem>>) attributes {dimension_semantics = [#tpu.dimension_semantics<parallel>], iteration_bounds = array<i64: 1>, scalar_prefetch = 0 : i64, scratch_operands = 0 : i64, tpu.core_type = #tpu.core_type<tc>, window_params = [{transform_indices = @transform_0, window_bounds = array<i64: 512, 72>}, {pipeline_mode = #tpu.pipeline_mode<synchronous>, transform_indices = @transform_1, window_bounds = array<i64: 72, 16>}, {pipeline_mode = #tpu.pipeline_mode<synchronous>, transform_indices = @transform_2, window_bounds = array<i64: 1, 16>}, {transform_indices = @transform_3, window_bounds = array<i64: 512, 16>}]} {
    %c0 = arith.constant 0 : index
    %c0_0 = arith.constant 0 : index
    %0 = vector.load %arg1[%c0, %c0_0] : memref<512x72xbf16, #tpu.memory_space<vmem>>, vector<512x72xbf16>
    %c0_1 = arith.constant 0 : index
    %c0_2 = arith.constant 0 : index
    %1 = vector.load %arg2[%c0_1, %c0_2] : memref<72x16xbf16, #tpu.memory_space<vmem>>, vector<72x16xbf16>
    %cst = arith.constant dense<0.000000e+00> : vector<512x16xf32>
    %2 = tpu.matmul %0, %1, %cst {dimension_numbers = #tpu.dot_dimension_numbers<[1], [0], [0], [1], [0, 0, 1, 1], [], []>} : vector<512x72xbf16>, vector<72x16xbf16>, vector<512x16xf32> -> vector<512x16xf32>
    %c0_3 = arith.constant 0 : index
    %c0_4 = arith.constant 0 : index
    %3 = vector.load %arg3[%c0_3, %c0_4] : memref<1x16xf32, #tpu.memory_space<vmem>>, vector<1x16xf32>
    %4 = vector.broadcast %3 : vector<1x16xf32> to vector<512x16xf32>
    %5 = arith.addf %2, %4 : vector<512x16xf32>
    %cst_5 = arith.constant 0.000000e+00 : f32
    %6 = vector.broadcast %cst_5 : f32 to vector<512x16xf32>
    %7 = arith.maximumf %5, %6 : vector<512x16xf32>
    %8 = arith.truncf %7 : vector<512x16xf32> to vector<512x16xbf16>
    %c0_6 = arith.constant 0 : index
    %c0_7 = arith.constant 0 : index
    %9 = vector.load %arg4[%c0_6, %c0_7] : memref<512x16xbf16, #tpu.memory_space<vmem>>, vector<512x16xbf16>
    tpu.vector_store %arg4[%c0_6, %c0_7], %8 {strides = array<i32>} : memref<512x16xbf16, #tpu.memory_space<vmem>>, vector<512x16xbf16>,
    return
  }
  func.func @transform_0(%arg0: i32) -> (i32, i32) {
    %c0_i32 = arith.constant 0 : i32
    %c0_i32_0 = arith.constant 0 : i32
    return %arg0, %c0_i32 : i32, i32
  }
  func.func @transform_1(%arg0: i32) -> (i32, i32) {
    %c0_i32 = arith.constant 0 : i32
    %c0_i32_0 = arith.constant 0 : i32
    %c0_i32_1 = arith.constant 0 : i32
    return %c0_i32, %c0_i32_0 : i32, i32
  }
  func.func @transform_2(%arg0: i32) -> (i32, i32) {
    %c0_i32 = arith.constant 0 : i32
    %c0_i32_0 = arith.constant 0 : i32
    %c0_i32_1 = arith.constant 0 : i32
    return %c0_i32, %c0_i32_0 : i32, i32
  }
  func.func @transform_3(%arg0: i32) -> (i32, i32) {
    %c0_i32 = arith.constant 0 : i32
    %c0_i32_0 = arith.constant 0 : i32
    return %arg0, %c0_i32 : i32, i32
  }
}

module attributes {stable_mosaic.version = 11 : i64} {
  func.func @_conv_kernel(%arg0: i32, %arg1: memref<128x144xbf16, #tpu.memory_space<vmem>>, %arg2: memref<144x32xbf16, #tpu.memory_space<vmem>>, %arg3: memref<1x32xf32, #tpu.memory_space<vmem>>, %arg4: memref<128x32xbf16, #tpu.memory_space<vmem>>) attributes {dimension_semantics = [#tpu.dimension_semantics<parallel>], iteration_bounds = array<i64: 1>, scalar_prefetch = 0 : i64, scratch_operands = 0 : i64, tpu.core_type = #tpu.core_type<tc>, window_params = [{transform_indices = @transform_0, window_bounds = array<i64: 128, 144>}, {pipeline_mode = #tpu.pipeline_mode<synchronous>, transform_indices = @transform_1, window_bounds = array<i64: 144, 32>}, {pipeline_mode = #tpu.pipeline_mode<synchronous>, transform_indices = @transform_2, window_bounds = array<i64: 1, 32>}, {transform_indices = @transform_3, window_bounds = array<i64: 128, 32>}]} {
    %c0 = arith.constant 0 : index
    %c0_0 = arith.constant 0 : index
    %0 = vector.load %arg1[%c0, %c0_0] : memref<128x144xbf16, #tpu.memory_space<vmem>>, vector<128x144xbf16>
    %c0_1 = arith.constant 0 : index
    %c0_2 = arith.constant 0 : index
    %1 = vector.load %arg2[%c0_1, %c0_2] : memref<144x32xbf16, #tpu.memory_space<vmem>>, vector<144x32xbf16>
    %cst = arith.constant dense<0.000000e+00> : vector<128x32xf32>
    %2 = tpu.matmul %0, %1, %cst {dimension_numbers = #tpu.dot_dimension_numbers<[1], [0], [0], [1], [0, 0, 1, 1], [], []>} : vector<128x144xbf16>, vector<144x32xbf16>, vector<128x32xf32> -> vector<128x32xf32>
    %c0_3 = arith.constant 0 : index
    %c0_4 = arith.constant 0 : index
    %3 = vector.load %arg3[%c0_3, %c0_4] : memref<1x32xf32, #tpu.memory_space<vmem>>, vector<1x32xf32>
    %4 = vector.broadcast %3 : vector<1x32xf32> to vector<128x32xf32>
    %5 = arith.addf %2, %4 : vector<128x32xf32>
    %cst_5 = arith.constant 0.000000e+00 : f32
    %6 = vector.broadcast %cst_5 : f32 to vector<128x32xf32>
    %7 = arith.maximumf %5, %6 : vector<128x32xf32>
    %8 = arith.truncf %7 : vector<128x32xf32> to vector<128x32xbf16>
    %c0_6 = arith.constant 0 : index
    %c0_7 = arith.constant 0 : index
    %9 = vector.load %arg4[%c0_6, %c0_7] : memref<128x32xbf16, #tpu.memory_space<vmem>>, vector<128x32xbf16>
    tpu.vector_store %arg4[%c0_6, %c0_7], %8 {strides = array<i32>} : memref<128x32xbf16, #tpu.memory_space<vmem>>, vector<128x32xbf16>,
    return
  }
  func.func @transform_0(%arg0: i32) -> (i32, i32) {
    %c0_i32 = arith.constant 0 : i32
    %c0_i32_0 = arith.constant 0 : i32
    return %arg0, %c0_i32 : i32, i32
  }
  func.func @transform_1(%arg0: i32) -> (i32, i32) {
    %c0_i32 = arith.constant 0 : i32
    %c0_i32_0 = arith.constant 0 : i32
    %c0_i32_1 = arith.constant 0 : i32
    return %c0_i32, %c0_i32_0 : i32, i32
  }
  func.func @transform_2(%arg0: i32) -> (i32, i32) {
    %c0_i32 = arith.constant 0 : i32
    %c0_i32_0 = arith.constant 0 : i32
    %c0_i32_1 = arith.constant 0 : i32
    return %c0_i32, %c0_i32_0 : i32, i32
  }
  func.func @transform_3(%arg0: i32) -> (i32, i32) {
    %c0_i32 = arith.constant 0 : i32
    %c0_i32_0 = arith.constant 0 : i32
    return %arg0, %c0_i32 : i32, i32
  }
}

module attributes {stable_mosaic.version = 11 : i64} {
  func.func @_heads_kernel(%arg0: i32, %arg1: memref<2x1024xbf16, #tpu.memory_space<vmem>>, %arg2: memref<1024x2560xbf16, #tpu.memory_space<vmem>>, %arg3: memref<1x2560xf32, #tpu.memory_space<vmem>>, %arg4: memref<5x512x128xbf16, #tpu.memory_space<vmem>>, %arg5: memref<5x1x128xf32, #tpu.memory_space<vmem>>, %arg6: memref<5x128x128xbf16, #tpu.memory_space<vmem>>, %arg7: memref<5x1x128xf32, #tpu.memory_space<vmem>>, %arg8: memref<2x640xf32, #tpu.memory_space<vmem>>) attributes {dimension_semantics = [#tpu.dimension_semantics<parallel>], iteration_bounds = array<i64: 1>, scalar_prefetch = 0 : i64, scratch_operands = 0 : i64, tpu.core_type = #tpu.core_type<tc>, window_params = [{transform_indices = @transform_0, window_bounds = array<i64: 2, 1024>}, {pipeline_mode = #tpu.pipeline_mode<synchronous>, transform_indices = @transform_1, window_bounds = array<i64: 1024, 2560>}, {pipeline_mode = #tpu.pipeline_mode<synchronous>, transform_indices = @transform_2, window_bounds = array<i64: 1, 2560>}, {pipeline_mode = #tpu.pipeline_mode<synchronous>, transform_indices = @transform_3, window_bounds = array<i64: 5, 512, 128>}, {pipeline_mode = #tpu.pipeline_mode<synchronous>, transform_indices = @transform_4, window_bounds = array<i64: 5, 1, 128>}, {pipeline_mode = #tpu.pipeline_mode<synchronous>, transform_indices = @transform_5, window_bounds = array<i64: 5, 128, 128>}, {pipeline_mode = #tpu.pipeline_mode<synchronous>, transform_indices = @transform_6, window_bounds = array<i64: 5, 1, 128>}, {transform_indices = @transform_7, window_bounds = array<i64: 2, 640>}]} {
    %c0 = arith.constant 0 : index
    %c0_0 = arith.constant 0 : index
    %0 = vector.load %arg1[%c0, %c0_0] : memref<2x1024xbf16, #tpu.memory_space<vmem>>, vector<2x1024xbf16>
    %c0_1 = arith.constant 0 : index
    %c0_2 = arith.constant 0 : index
    %1 = vector.load %arg2[%c0_1, %c0_2] : memref<1024x2560xbf16, #tpu.memory_space<vmem>>, vector<1024x2560xbf16>
    %cst = arith.constant dense<0.000000e+00> : vector<2x2560xf32>
    %2 = tpu.matmul %0, %1, %cst {dimension_numbers = #tpu.dot_dimension_numbers<[1], [0], [0], [1], [0, 0, 1, 1], [], []>} : vector<2x1024xbf16>, vector<1024x2560xbf16>, vector<2x2560xf32> -> vector<2x2560xf32>
    %c0_3 = arith.constant 0 : index
    %c0_4 = arith.constant 0 : index
    %3 = vector.load %arg3[%c0_3, %c0_4] : memref<1x2560xf32, #tpu.memory_space<vmem>>, vector<1x2560xf32>
    %4 = vector.broadcast %3 : vector<1x2560xf32> to vector<2x2560xf32>
    %5 = arith.addf %2, %4 : vector<2x2560xf32>
    %cst_5 = arith.constant 0.000000e+00 : f32
    %6 = vector.broadcast %cst_5 : f32 to vector<2x2560xf32>
    %7 = arith.maximumf %5, %6 : vector<2x2560xf32>
    %8 = vector.extract_strided_slice %7 {offsets = [0, 0], sizes = [2, 512], strides = [1, 1]} : vector<2x2560xf32> to vector<2x512xf32>
    %9 = arith.truncf %8 : vector<2x512xf32> to vector<2x512xbf16>
    %c0_6 = arith.constant 0 : index
    %c0_7 = arith.constant 0 : index
    %c0_8 = arith.constant 0 : index
    %10 = vector.load %arg4[%c0_6, %c0_7, %c0_8] : memref<5x512x128xbf16, #tpu.memory_space<vmem>>, vector<1x512x128xbf16>
    %11 = vector.shape_cast %10 : vector<1x512x128xbf16> to vector<512x128xbf16>
    %cst_9 = arith.constant dense<0.000000e+00> : vector<2x128xf32>
    %12 = tpu.matmul %9, %11, %cst_9 {dimension_numbers = #tpu.dot_dimension_numbers<[1], [0], [0], [1], [0, 0, 1, 1], [], []>} : vector<2x512xbf16>, vector<512x128xbf16>, vector<2x128xf32> -> vector<2x128xf32>
    %c0_10 = arith.constant 0 : index
    %c0_11 = arith.constant 0 : index
    %c0_12 = arith.constant 0 : index
    %13 = vector.load %arg5[%c0_10, %c0_11, %c0_12] : memref<5x1x128xf32, #tpu.memory_space<vmem>>, vector<1x1x128xf32>
    %14 = vector.shape_cast %13 : vector<1x1x128xf32> to vector<1x128xf32>
    %15 = vector.broadcast %14 : vector<1x128xf32> to vector<2x128xf32>
    %16 = arith.addf %12, %15 : vector<2x128xf32>
    %cst_13 = arith.constant 0.000000e+00 : f32
    %17 = vector.broadcast %cst_13 : f32 to vector<2x128xf32>
    %18 = arith.maximumf %16, %17 : vector<2x128xf32>
    %19 = arith.truncf %18 : vector<2x128xf32> to vector<2x128xbf16>
    %c0_14 = arith.constant 0 : index
    %c0_15 = arith.constant 0 : index
    %c0_16 = arith.constant 0 : index
    %20 = vector.load %arg6[%c0_14, %c0_15, %c0_16] : memref<5x128x128xbf16, #tpu.memory_space<vmem>>, vector<1x128x128xbf16>
    %21 = vector.shape_cast %20 : vector<1x128x128xbf16> to vector<128x128xbf16>
    %cst_17 = arith.constant dense<0.000000e+00> : vector<2x128xf32>
    %22 = tpu.matmul %19, %21, %cst_17 {dimension_numbers = #tpu.dot_dimension_numbers<[1], [0], [0], [1], [0, 0, 1, 1], [], []>} : vector<2x128xbf16>, vector<128x128xbf16>, vector<2x128xf32> -> vector<2x128xf32>
    %c0_18 = arith.constant 0 : index
    %c0_19 = arith.constant 0 : index
    %c0_20 = arith.constant 0 : index
    %23 = vector.load %arg7[%c0_18, %c0_19, %c0_20] : memref<5x1x128xf32, #tpu.memory_space<vmem>>, vector<1x1x128xf32>
    %24 = vector.shape_cast %23 : vector<1x1x128xf32> to vector<1x128xf32>
    %25 = vector.broadcast %24 : vector<1x128xf32> to vector<2x128xf32>
    %26 = arith.addf %22, %25 : vector<2x128xf32>
    %cst_21 = arith.constant dense<0xFF800000> : vector<2xf32>
    %27 = vector.multi_reduction <maximumf>, %26, %cst_21 [1] : vector<2x128xf32> to vector<2xf32>
    %28 = vector.shape_cast %27 : vector<2xf32> to vector<2x1xf32>
    %29 = vector.broadcast %28 : vector<2x1xf32> to vector<2x128xf32>
    %30 = arith.subf %26, %29 : vector<2x128xf32>
    %31 = math.exp %30 : vector<2x128xf32>
    %cst_22 = arith.constant dense<0.000000e+00> : vector<2xf32>
    %32 = vector.multi_reduction <add>, %31, %cst_22 [1] : vector<2x128xf32> to vector<2xf32>
    %33 = vector.shape_cast %32 : vector<2xf32> to vector<2x1xf32>
    %34 = tpu.reciprocal %33 {approx = true} : vector<2x1xf32> -> vector<2x1xf32>
    %35 = vector.broadcast %34 : vector<2x1xf32> to vector<2x128xf32>
    %36 = arith.mulf %31, %35 : vector<2x128xf32>
    %c0_23 = arith.constant 0 : index
    %c0_24 = arith.constant 0 : index
    %37 = vector.load %arg8[%c0_23, %c0_24] : memref<2x640xf32, #tpu.memory_space<vmem>>, vector<2x128xf32>
    tpu.vector_store %arg8[%c0_23, %c0_24], %36 {strides = array<i32>} : memref<2x640xf32, #tpu.memory_space<vmem>>, vector<2x128xf32>,
    %38 = vector.extract_strided_slice %7 {offsets = [0, 512], sizes = [2, 512], strides = [1, 1]} : vector<2x2560xf32> to vector<2x512xf32>
    %39 = arith.truncf %38 : vector<2x512xf32> to vector<2x512xbf16>
    %c1 = arith.constant 1 : index
    %c0_25 = arith.constant 0 : index
    %c0_26 = arith.constant 0 : index
    %40 = vector.load %arg4[%c1, %c0_25, %c0_26] : memref<5x512x128xbf16, #tpu.memory_space<vmem>>, vector<1x512x128xbf16>
    %41 = vector.shape_cast %40 : vector<1x512x128xbf16> to vector<512x128xbf16>
    %cst_27 = arith.constant dense<0.000000e+00> : vector<2x128xf32>
    %42 = tpu.matmul %39, %41, %cst_27 {dimension_numbers = #tpu.dot_dimension_numbers<[1], [0], [0], [1], [0, 0, 1, 1], [], []>} : vector<2x512xbf16>, vector<512x128xbf16>, vector<2x128xf32> -> vector<2x128xf32>
    %c1_28 = arith.constant 1 : index
    %c0_29 = arith.constant 0 : index
    %c0_30 = arith.constant 0 : index
    %43 = vector.load %arg5[%c1_28, %c0_29, %c0_30] : memref<5x1x128xf32, #tpu.memory_space<vmem>>, vector<1x1x128xf32>
    %44 = vector.shape_cast %43 : vector<1x1x128xf32> to vector<1x128xf32>
    %45 = vector.broadcast %44 : vector<1x128xf32> to vector<2x128xf32>
    %46 = arith.addf %42, %45 : vector<2x128xf32>
    %cst_31 = arith.constant 0.000000e+00 : f32
    %47 = vector.broadcast %cst_31 : f32 to vector<2x128xf32>
    %48 = arith.maximumf %46, %47 : vector<2x128xf32>
    %49 = arith.truncf %48 : vector<2x128xf32> to vector<2x128xbf16>
    %c1_32 = arith.constant 1 : index
    %c0_33 = arith.constant 0 : index
    %c0_34 = arith.constant 0 : index
    %50 = vector.load %arg6[%c1_32, %c0_33, %c0_34] : memref<5x128x128xbf16, #tpu.memory_space<vmem>>, vector<1x128x128xbf16>
    %51 = vector.shape_cast %50 : vector<1x128x128xbf16> to vector<128x128xbf16>
    %cst_35 = arith.constant dense<0.000000e+00> : vector<2x128xf32>
    %52 = tpu.matmul %49, %51, %cst_35 {dimension_numbers = #tpu.dot_dimension_numbers<[1], [0], [0], [1], [0, 0, 1, 1], [], []>} : vector<2x128xbf16>, vector<128x128xbf16>, vector<2x128xf32> -> vector<2x128xf32>
    %c1_36 = arith.constant 1 : index
    %c0_37 = arith.constant 0 : index
    %c0_38 = arith.constant 0 : index
    %53 = vector.load %arg7[%c1_36, %c0_37, %c0_38] : memref<5x1x128xf32, #tpu.memory_space<vmem>>, vector<1x1x128xf32>
    %54 = vector.shape_cast %53 : vector<1x1x128xf32> to vector<1x128xf32>
    %55 = vector.broadcast %54 : vector<1x128xf32> to vector<2x128xf32>
    %56 = arith.addf %52, %55 : vector<2x128xf32>
    %cst_39 = arith.constant dense<0xFF800000> : vector<2xf32>
    %57 = vector.multi_reduction <maximumf>, %56, %cst_39 [1] : vector<2x128xf32> to vector<2xf32>
    %58 = vector.shape_cast %57 : vector<2xf32> to vector<2x1xf32>
    %59 = vector.broadcast %58 : vector<2x1xf32> to vector<2x128xf32>
    %60 = arith.subf %56, %59 : vector<2x128xf32>
    %61 = math.exp %60 : vector<2x128xf32>
    %cst_40 = arith.constant dense<0.000000e+00> : vector<2xf32>
    %62 = vector.multi_reduction <add>, %61, %cst_40 [1] : vector<2x128xf32> to vector<2xf32>
    %63 = vector.shape_cast %62 : vector<2xf32> to vector<2x1xf32>
    %64 = tpu.reciprocal %63 {approx = true} : vector<2x1xf32> -> vector<2x1xf32>
    %65 = vector.broadcast %64 : vector<2x1xf32> to vector<2x128xf32>
    %66 = arith.mulf %61, %65 : vector<2x128xf32>
    %c0_41 = arith.constant 0 : index
    %c128 = arith.constant 128 : index
    %67 = vector.load %arg8[%c0_41, %c128] : memref<2x640xf32, #tpu.memory_space<vmem>>, vector<2x128xf32>
    tpu.vector_store %arg8[%c0_41, %c128], %66 {strides = array<i32>} : memref<2x640xf32, #tpu.memory_space<vmem>>, vector<2x128xf32>,
    %68 = vector.extract_strided_slice %7 {offsets = [0, 1024], sizes = [2, 512], strides = [1, 1]} : vector<2x2560xf32> to vector<2x512xf32>
    %69 = arith.truncf %68 : vector<2x512xf32> to vector<2x512xbf16>
    %c2 = arith.constant 2 : index
    %c0_42 = arith.constant 0 : index
    %c0_43 = arith.constant 0 : index
    %70 = vector.load %arg4[%c2, %c0_42, %c0_43] : memref<5x512x128xbf16, #tpu.memory_space<vmem>>, vector<1x512x128xbf16>
    %71 = vector.shape_cast %70 : vector<1x512x128xbf16> to vector<512x128xbf16>
    %cst_44 = arith.constant dense<0.000000e+00> : vector<2x128xf32>
    %72 = tpu.matmul %69, %71, %cst_44 {dimension_numbers = #tpu.dot_dimension_numbers<[1], [0], [0], [1], [0, 0, 1, 1], [], []>} : vector<2x512xbf16>, vector<512x128xbf16>, vector<2x128xf32> -> vector<2x128xf32>
    %c2_45 = arith.constant 2 : index
    %c0_46 = arith.constant 0 : index
    %c0_47 = arith.constant 0 : index
    %73 = vector.load %arg5[%c2_45, %c0_46, %c0_47] : memref<5x1x128xf32, #tpu.memory_space<vmem>>, vector<1x1x128xf32>
    %74 = vector.shape_cast %73 : vector<1x1x128xf32> to vector<1x128xf32>
    %75 = vector.broadcast %74 : vector<1x128xf32> to vector<2x128xf32>
    %76 = arith.addf %72, %75 : vector<2x128xf32>
    %cst_48 = arith.constant 0.000000e+00 : f32
    %77 = vector.broadcast %cst_48 : f32 to vector<2x128xf32>
    %78 = arith.maximumf %76, %77 : vector<2x128xf32>
    %79 = arith.truncf %78 : vector<2x128xf32> to vector<2x128xbf16>
    %c2_49 = arith.constant 2 : index
    %c0_50 = arith.constant 0 : index
    %c0_51 = arith.constant 0 : index
    %80 = vector.load %arg6[%c2_49, %c0_50, %c0_51] : memref<5x128x128xbf16, #tpu.memory_space<vmem>>, vector<1x128x128xbf16>
    %81 = vector.shape_cast %80 : vector<1x128x128xbf16> to vector<128x128xbf16>
    %cst_52 = arith.constant dense<0.000000e+00> : vector<2x128xf32>
    %82 = tpu.matmul %79, %81, %cst_52 {dimension_numbers = #tpu.dot_dimension_numbers<[1], [0], [0], [1], [0, 0, 1, 1], [], []>} : vector<2x128xbf16>, vector<128x128xbf16>, vector<2x128xf32> -> vector<2x128xf32>
    %c2_53 = arith.constant 2 : index
    %c0_54 = arith.constant 0 : index
    %c0_55 = arith.constant 0 : index
    %83 = vector.load %arg7[%c2_53, %c0_54, %c0_55] : memref<5x1x128xf32, #tpu.memory_space<vmem>>, vector<1x1x128xf32>
    %84 = vector.shape_cast %83 : vector<1x1x128xf32> to vector<1x128xf32>
    %85 = vector.broadcast %84 : vector<1x128xf32> to vector<2x128xf32>
    %86 = arith.addf %82, %85 : vector<2x128xf32>
    %cst_56 = arith.constant dense<0xFF800000> : vector<2xf32>
    %87 = vector.multi_reduction <maximumf>, %86, %cst_56 [1] : vector<2x128xf32> to vector<2xf32>
    %88 = vector.shape_cast %87 : vector<2xf32> to vector<2x1xf32>
    %89 = vector.broadcast %88 : vector<2x1xf32> to vector<2x128xf32>
    %90 = arith.subf %86, %89 : vector<2x128xf32>
    %91 = math.exp %90 : vector<2x128xf32>
    %cst_57 = arith.constant dense<0.000000e+00> : vector<2xf32>
    %92 = vector.multi_reduction <add>, %91, %cst_57 [1] : vector<2x128xf32> to vector<2xf32>
    %93 = vector.shape_cast %92 : vector<2xf32> to vector<2x1xf32>
    %94 = tpu.reciprocal %93 {approx = true} : vector<2x1xf32> -> vector<2x1xf32>
    %95 = vector.broadcast %94 : vector<2x1xf32> to vector<2x128xf32>
    %96 = arith.mulf %91, %95 : vector<2x128xf32>
    %c0_58 = arith.constant 0 : index
    %c256 = arith.constant 256 : index
    %97 = vector.load %arg8[%c0_58, %c256] : memref<2x640xf32, #tpu.memory_space<vmem>>, vector<2x128xf32>
    tpu.vector_store %arg8[%c0_58, %c256], %96 {strides = array<i32>} : memref<2x640xf32, #tpu.memory_space<vmem>>, vector<2x128xf32>,
    %98 = vector.extract_strided_slice %7 {offsets = [0, 1536], sizes = [2, 512], strides = [1, 1]} : vector<2x2560xf32> to vector<2x512xf32>
    %99 = arith.truncf %98 : vector<2x512xf32> to vector<2x512xbf16>
    %c3 = arith.constant 3 : index
    %c0_59 = arith.constant 0 : index
    %c0_60 = arith.constant 0 : index
    %100 = vector.load %arg4[%c3, %c0_59, %c0_60] : memref<5x512x128xbf16, #tpu.memory_space<vmem>>, vector<1x512x128xbf16>
    %101 = vector.shape_cast %100 : vector<1x512x128xbf16> to vector<512x128xbf16>
    %cst_61 = arith.constant dense<0.000000e+00> : vector<2x128xf32>
    %102 = tpu.matmul %99, %101, %cst_61 {dimension_numbers = #tpu.dot_dimension_numbers<[1], [0], [0], [1], [0, 0, 1, 1], [], []>} : vector<2x512xbf16>, vector<512x128xbf16>, vector<2x128xf32> -> vector<2x128xf32>
    %c3_62 = arith.constant 3 : index
    %c0_63 = arith.constant 0 : index
    %c0_64 = arith.constant 0 : index
    %103 = vector.load %arg5[%c3_62, %c0_63, %c0_64] : memref<5x1x128xf32, #tpu.memory_space<vmem>>, vector<1x1x128xf32>
    %104 = vector.shape_cast %103 : vector<1x1x128xf32> to vector<1x128xf32>
    %105 = vector.broadcast %104 : vector<1x128xf32> to vector<2x128xf32>
    %106 = arith.addf %102, %105 : vector<2x128xf32>
    %cst_65 = arith.constant 0.000000e+00 : f32
    %107 = vector.broadcast %cst_65 : f32 to vector<2x128xf32>
    %108 = arith.maximumf %106, %107 : vector<2x128xf32>
    %109 = arith.truncf %108 : vector<2x128xf32> to vector<2x128xbf16>
    %c3_66 = arith.constant 3 : index
    %c0_67 = arith.constant 0 : index
    %c0_68 = arith.constant 0 : index
    %110 = vector.load %arg6[%c3_66, %c0_67, %c0_68] : memref<5x128x128xbf16, #tpu.memory_space<vmem>>, vector<1x128x128xbf16>
    %111 = vector.shape_cast %110 : vector<1x128x128xbf16> to vector<128x128xbf16>
    %cst_69 = arith.constant dense<0.000000e+00> : vector<2x128xf32>
    %112 = tpu.matmul %109, %111, %cst_69 {dimension_numbers = #tpu.dot_dimension_numbers<[1], [0], [0], [1], [0, 0, 1, 1], [], []>} : vector<2x128xbf16>, vector<128x128xbf16>, vector<2x128xf32> -> vector<2x128xf32>
    %c3_70 = arith.constant 3 : index
    %c0_71 = arith.constant 0 : index
    %c0_72 = arith.constant 0 : index
    %113 = vector.load %arg7[%c3_70, %c0_71, %c0_72] : memref<5x1x128xf32, #tpu.memory_space<vmem>>, vector<1x1x128xf32>
    %114 = vector.shape_cast %113 : vector<1x1x128xf32> to vector<1x128xf32>
    %115 = vector.broadcast %114 : vector<1x128xf32> to vector<2x128xf32>
    %116 = arith.addf %112, %115 : vector<2x128xf32>
    %cst_73 = arith.constant dense<0xFF800000> : vector<2xf32>
    %117 = vector.multi_reduction <maximumf>, %116, %cst_73 [1] : vector<2x128xf32> to vector<2xf32>
    %118 = vector.shape_cast %117 : vector<2xf32> to vector<2x1xf32>
    %119 = vector.broadcast %118 : vector<2x1xf32> to vector<2x128xf32>
    %120 = arith.subf %116, %119 : vector<2x128xf32>
    %121 = math.exp %120 : vector<2x128xf32>
    %cst_74 = arith.constant dense<0.000000e+00> : vector<2xf32>
    %122 = vector.multi_reduction <add>, %121, %cst_74 [1] : vector<2x128xf32> to vector<2xf32>
    %123 = vector.shape_cast %122 : vector<2xf32> to vector<2x1xf32>
    %124 = tpu.reciprocal %123 {approx = true} : vector<2x1xf32> -> vector<2x1xf32>
    %125 = vector.broadcast %124 : vector<2x1xf32> to vector<2x128xf32>
    %126 = arith.mulf %121, %125 : vector<2x128xf32>
    %c0_75 = arith.constant 0 : index
    %c384 = arith.constant 384 : index
    %127 = vector.load %arg8[%c0_75, %c384] : memref<2x640xf32, #tpu.memory_space<vmem>>, vector<2x128xf32>
    tpu.vector_store %arg8[%c0_75, %c384], %126 {strides = array<i32>} : memref<2x640xf32, #tpu.memory_space<vmem>>, vector<2x128xf32>,
    %128 = vector.extract_strided_slice %7 {offsets = [0, 2048], sizes = [2, 512], strides = [1, 1]} : vector<2x2560xf32> to vector<2x512xf32>
    %129 = arith.truncf %128 : vector<2x512xf32> to vector<2x512xbf16>
    %c4 = arith.constant 4 : index
    %c0_76 = arith.constant 0 : index
    %c0_77 = arith.constant 0 : index
    %130 = vector.load %arg4[%c4, %c0_76, %c0_77] : memref<5x512x128xbf16, #tpu.memory_space<vmem>>, vector<1x512x128xbf16>
    %131 = vector.shape_cast %130 : vector<1x512x128xbf16> to vector<512x128xbf16>
    %cst_78 = arith.constant dense<0.000000e+00> : vector<2x128xf32>
    %132 = tpu.matmul %129, %131, %cst_78 {dimension_numbers = #tpu.dot_dimension_numbers<[1], [0], [0], [1], [0, 0, 1, 1], [], []>} : vector<2x512xbf16>, vector<512x128xbf16>, vector<2x128xf32> -> vector<2x128xf32>
    %c4_79 = arith.constant 4 : index
    %c0_80 = arith.constant 0 : index
    %c0_81 = arith.constant 0 : index
    %133 = vector.load %arg5[%c4_79, %c0_80, %c0_81] : memref<5x1x128xf32, #tpu.memory_space<vmem>>, vector<1x1x128xf32>
    %134 = vector.shape_cast %133 : vector<1x1x128xf32> to vector<1x128xf32>
    %135 = vector.broadcast %134 : vector<1x128xf32> to vector<2x128xf32>
    %136 = arith.addf %132, %135 : vector<2x128xf32>
    %cst_82 = arith.constant 0.000000e+00 : f32
    %137 = vector.broadcast %cst_82 : f32 to vector<2x128xf32>
    %138 = arith.maximumf %136, %137 : vector<2x128xf32>
    %139 = arith.truncf %138 : vector<2x128xf32> to vector<2x128xbf16>
    %c4_83 = arith.constant 4 : index
    %c0_84 = arith.constant 0 : index
    %c0_85 = arith.constant 0 : index
    %140 = vector.load %arg6[%c4_83, %c0_84, %c0_85] : memref<5x128x128xbf16, #tpu.memory_space<vmem>>, vector<1x128x128xbf16>
    %141 = vector.shape_cast %140 : vector<1x128x128xbf16> to vector<128x128xbf16>
    %cst_86 = arith.constant dense<0.000000e+00> : vector<2x128xf32>
    %142 = tpu.matmul %139, %141, %cst_86 {dimension_numbers = #tpu.dot_dimension_numbers<[1], [0], [0], [1], [0, 0, 1, 1], [], []>} : vector<2x128xbf16>, vector<128x128xbf16>, vector<2x128xf32> -> vector<2x128xf32>
    %c4_87 = arith.constant 4 : index
    %c0_88 = arith.constant 0 : index
    %c0_89 = arith.constant 0 : index
    %143 = vector.load %arg7[%c4_87, %c0_88, %c0_89] : memref<5x1x128xf32, #tpu.memory_space<vmem>>, vector<1x1x128xf32>
    %144 = vector.shape_cast %143 : vector<1x1x128xf32> to vector<1x128xf32>
    %145 = vector.broadcast %144 : vector<1x128xf32> to vector<2x128xf32>
    %146 = arith.addf %142, %145 : vector<2x128xf32>
    %cst_90 = arith.constant dense<0xFF800000> : vector<2xf32>
    %147 = vector.multi_reduction <maximumf>, %146, %cst_90 [1] : vector<2x128xf32> to vector<2xf32>
    %148 = vector.shape_cast %147 : vector<2xf32> to vector<2x1xf32>
    %149 = vector.broadcast %148 : vector<2x1xf32> to vector<2x128xf32>
    %150 = arith.subf %146, %149 : vector<2x128xf32>
    %151 = math.exp %150 : vector<2x128xf32>
    %cst_91 = arith.constant dense<0.000000e+00> : vector<2xf32>
    %152 = vector.multi_reduction <add>, %151, %cst_91 [1] : vector<2x128xf32> to vector<2xf32>
    %153 = vector.shape_cast %152 : vector<2xf32> to vector<2x1xf32>
    %154 = tpu.reciprocal %153 {approx = true} : vector<2x1xf32> -> vector<2x1xf32>
    %155 = vector.broadcast %154 : vector<2x1xf32> to vector<2x128xf32>
    %156 = arith.mulf %151, %155 : vector<2x128xf32>
    %c0_92 = arith.constant 0 : index
    %c512 = arith.constant 512 : index
    %157 = vector.load %arg8[%c0_92, %c512] : memref<2x640xf32, #tpu.memory_space<vmem>>, vector<2x128xf32>
    tpu.vector_store %arg8[%c0_92, %c512], %156 {strides = array<i32>} : memref<2x640xf32, #tpu.memory_space<vmem>>, vector<2x128xf32>,
    return
  }
  func.func @transform_0(%arg0: i32) -> (i32, i32) {
    %c0_i32 = arith.constant 0 : i32
    %c0_i32_0 = arith.constant 0 : i32
    return %arg0, %c0_i32 : i32, i32
  }
  func.func @transform_1(%arg0: i32) -> (i32, i32) {
    %c0_i32 = arith.constant 0 : i32
    %c0_i32_0 = arith.constant 0 : i32
    %c0_i32_1 = arith.constant 0 : i32
    return %c0_i32, %c0_i32_0 : i32, i32
  }
  func.func @transform_2(%arg0: i32) -> (i32, i32) {
    %c0_i32 = arith.constant 0 : i32
    %c0_i32_0 = arith.constant 0 : i32
    %c0_i32_1 = arith.constant 0 : i32
    return %c0_i32, %c0_i32_0 : i32, i32
  }
  func.func @transform_3(%arg0: i32) -> (i32, i32, i32) {
    %c0_i32 = arith.constant 0 : i32
    %c0_i32_0 = arith.constant 0 : i32
    %c0_i32_1 = arith.constant 0 : i32
    %c0_i32_2 = arith.constant 0 : i32
    return %c0_i32, %c0_i32_0, %c0_i32_1 : i32, i32, i32
  }
  func.func @transform_4(%arg0: i32) -> (i32, i32, i32) {
    %c0_i32 = arith.constant 0 : i32
    %c0_i32_0 = arith.constant 0 : i32
    %c0_i32_1 = arith.constant 0 : i32
    %c0_i32_2 = arith.constant 0 : i32
    return %c0_i32, %c0_i32_0, %c0_i32_1 : i32, i32, i32
  }
  func.func @transform_5(%arg0: i32) -> (i32, i32, i32) {
    %c0_i32 = arith.constant 0 : i32
    %c0_i32_0 = arith.constant 0 : i32
    %c0_i32_1 = arith.constant 0 : i32
    %c0_i32_2 = arith.constant 0 : i32
    return %c0_i32, %c0_i32_0, %c0_i32_1 : i32, i32, i32
  }
  func.func @transform_6(%arg0: i32) -> (i32, i32, i32) {
    %c0_i32 = arith.constant 0 : i32
    %c0_i32_0 = arith.constant 0 : i32
    %c0_i32_1 = arith.constant 0 : i32
    %c0_i32_2 = arith.constant 0 : i32
    return %c0_i32, %c0_i32_0, %c0_i32_1 : i32, i32, i32
  }
  func.func @transform_7(%arg0: i32) -> (i32, i32) {
    %c0_i32 = arith.constant 0 : i32
    %c0_i32_0 = arith.constant 0 : i32
    return %arg0, %c0_i32 : i32, i32
  }
}

module attributes {stable_mosaic.version = 11 : i64} {
  func.func @_conv_kernel(%arg0: i32, %arg1: memref<32x288xbf16, #tpu.memory_space<vmem>>, %arg2: memref<288x64xbf16, #tpu.memory_space<vmem>>, %arg3: memref<1x64xf32, #tpu.memory_space<vmem>>, %arg4: memref<32x64xbf16, #tpu.memory_space<vmem>>) attributes {dimension_semantics = [#tpu.dimension_semantics<parallel>], iteration_bounds = array<i64: 1>, scalar_prefetch = 0 : i64, scratch_operands = 0 : i64, tpu.core_type = #tpu.core_type<tc>, window_params = [{transform_indices = @transform_0, window_bounds = array<i64: 32, 288>}, {pipeline_mode = #tpu.pipeline_mode<synchronous>, transform_indices = @transform_1, window_bounds = array<i64: 288, 64>}, {pipeline_mode = #tpu.pipeline_mode<synchronous>, transform_indices = @transform_2, window_bounds = array<i64: 1, 64>}, {transform_indices = @transform_3, window_bounds = array<i64: 32, 64>}]} {
    %c0 = arith.constant 0 : index
    %c0_0 = arith.constant 0 : index
    %0 = vector.load %arg1[%c0, %c0_0] : memref<32x288xbf16, #tpu.memory_space<vmem>>, vector<32x288xbf16>
    %c0_1 = arith.constant 0 : index
    %c0_2 = arith.constant 0 : index
    %1 = vector.load %arg2[%c0_1, %c0_2] : memref<288x64xbf16, #tpu.memory_space<vmem>>, vector<288x64xbf16>
    %cst = arith.constant dense<0.000000e+00> : vector<32x64xf32>
    %2 = tpu.matmul %0, %1, %cst {dimension_numbers = #tpu.dot_dimension_numbers<[1], [0], [0], [1], [0, 0, 1, 1], [], []>} : vector<32x288xbf16>, vector<288x64xbf16>, vector<32x64xf32> -> vector<32x64xf32>
    %c0_3 = arith.constant 0 : index
    %c0_4 = arith.constant 0 : index
    %3 = vector.load %arg3[%c0_3, %c0_4] : memref<1x64xf32, #tpu.memory_space<vmem>>, vector<1x64xf32>
    %4 = vector.broadcast %3 : vector<1x64xf32> to vector<32x64xf32>
    %5 = arith.addf %2, %4 : vector<32x64xf32>
    %cst_5 = arith.constant 0.000000e+00 : f32
    %6 = vector.broadcast %cst_5 : f32 to vector<32x64xf32>
    %7 = arith.maximumf %5, %6 : vector<32x64xf32>
    %8 = arith.truncf %7 : vector<32x64xf32> to vector<32x64xbf16>
    %c0_6 = arith.constant 0 : index
    %c0_7 = arith.constant 0 : index
    %9 = vector.load %arg4[%c0_6, %c0_7] : memref<32x64xbf16, #tpu.memory_space<vmem>>, vector<32x64xbf16>
    tpu.vector_store %arg4[%c0_6, %c0_7], %8 {strides = array<i32>} : memref<32x64xbf16, #tpu.memory_space<vmem>>, vector<32x64xbf16>,
    return
  }
  func.func @transform_0(%arg0: i32) -> (i32, i32) {
    %c0_i32 = arith.constant 0 : i32
    %c0_i32_0 = arith.constant 0 : i32
    return %arg0, %c0_i32 : i32, i32
  }
  func.func @transform_1(%arg0: i32) -> (i32, i32) {
    %c0_i32 = arith.constant 0 : i32
    %c0_i32_0 = arith.constant 0 : i32
    %c0_i32_1 = arith.constant 0 : i32
    return %c0_i32, %c0_i32_0 : i32, i32
  }
  func.func @transform_2(%arg0: i32) -> (i32, i32) {
    %c0_i32 = arith.constant 0 : i32
    %c0_i32_0 = arith.constant 0 : i32
    %c0_i32_1 = arith.constant 0 : i32
    return %c0_i32, %c0_i32_0 : i32, i32
  }
  func.func @transform_3(%arg0: i32) -> (i32, i32) {
    %c0_i32 = arith.constant 0 : i32
    %c0_i32_0 = arith.constant 0 : i32
    return %arg0, %c0_i32 : i32, i32
  }
}

</mosaic_0001>

<llo_original>
// kernel: _lambda_.5
$region0: #{_lambda_.5}
  #allocation0 [shape = 'u32[]', space=smem, size = 0x4, offset = 0x4, fixed_abs, tag = 'smem constant byte address 0x4 - core index']
  #allocation1 [shape = 'u32[72,128]{1,0:T(1,128)}', space=vmem, size = 0x9000, scoped, tag = 'internal scratch']
  %s0 = inlined_call_operand.vmem [shape: bf16[2048,25], index: 0, kind: input, shape index: {}]
  %s1 = inlined_call_operand.hbm [shape: bf16[25,8], index: 1, kind: input, shape index: {}]
  %s2 = inlined_call_operand.hbm [shape: f32[1,8], index: 2, kind: input, shape index: {}]
  %s3 = inlined_call_operand.vmem [shape: bf16[2048,8], index: 3, kind: output, shape index: {}]
  %s4 = sld [smem:[#allocation0]]
  $region53: #{_lambda_.5} parent=0
    _
  %s6 = ssub.s32 1, %s4
  %s7 = scalar_select 0, %s6, %s4
  $region1: #{_lambda_.5} parent=0
    #allocation2 [shape = 'u8[8192]{0}', space=vmem, size = 0x2000, scoped, tag = 'input window, operand 1, single buffered']
    #allocation3 [shape = 's32[2]{0}', space=sflag, size = 0x8, scoped, tag = 'scoped memory for _lambda_.5']
    #allocation4 [shape = 'u8[512]{0}', space=vmem, size = 0x400, scoped, tag = 'input window, operand 2, single buffered']
    #allocation5 [shape = 's32[1]{0}', space=sflag, size = 0x4, scoped, tag = 'scoped memory for _lambda_.5']
    %8 = vsyncpa [#allocation3], 0
    %9 = vsyncpa [#allocation5], 0
    loop: start=0, step=1, limit=6
    $region2: #{_lambda_.5} parent=1 // loop_pre_header
      _
    $region3: #{_lambda_.5} parent=1 // loop_header
      %s11 = sphi 0, %s15
      %p12 = scmp.ge.s32.totalorder %s11, 6
      %s21 = sphi 0, %s23
      %s24 = sphi 0, %s21
      %s25 = sphi 0, %s24
      %s41 = sphi 0, %s25
      %s45 = sphi 0, %s45
      %s47 = sphi 0, %s45
      %s48 = sphi 0, %s47
      %s62 = sphi 0, %s48
      %s66 = sphi 0, %s66
      %s68 = sphi 0, %s66
      %s69 = sphi 0, %s68
      %s83 = sphi 0, %s69
      %s89 = sphi 0, %s91
      %s92 = sphi 0, %s89
      %s93 = sphi 0, %s92
      %s109 = sphi 0, %s93
    $region4: #{_lambda_.5} parent=1 // loop_header_branch
      %14 = sbr.rel (%p12) target = $region8
    $region5: #{_lambda_.5} parent=1 // loop_body
      %s16 = ssub.s32 %s11, 1
      %s17 = ssub.s32 %s11, 2
      %s18 = sadd.s32 %s11, 1
      %s19 = ssub.s32 %s11, %s18
      %p20 = scmp.eq.s32.totalorder %s19, 0
      %s22 = sadd.s32 %s21, 1
      %s23 = scalar_select %p20, %s21, %s22
      %p26 = pneg %p20
      %p27 = scmp.eq.s32.totalorder %s11, 3
      %p28 = por %p26, %p27
      %p29 = scmp.ne.s32.totalorder %s21, %s24
      %p30 = scmp.eq.s32.totalorder %s11, 0
      %p31 = por %p29, %p30
      %p32 = scmp.ne.s32.totalorder %s21, %s24
      %p33 = scmp.eq.s32.totalorder %s16, 3
      %p34 = por %p32, %p33
      %p35 = scmp.ne.s32.totalorder %s24, %s25
      %p36 = scmp.eq.s32.totalorder %s16, 0
      %p37 = por %p35, %p36
      %p38 = scmp.ne.s32.totalorder %s24, %s25
      %p39 = scmp.eq.s32.totalorder %s17, 3
      %p40 = por %p38, %p39
      %p42 = scmp.ne.s32.totalorder %s25, %s41
      %p43 = scmp.eq.s32.totalorder %s17, 0
      %p44 = por %p42, %p43
      %s46 = sadd.s32 %s45, 1
      %p49 = scmp.eq.s32.totalorder %s11, 3
      %p50 = scmp.ne.s32.totalorder %s45, %s47
      %p51 = scmp.eq.s32.totalorder %s11, 0
      %p52 = por %p50, %p51
      %p53 = scmp.ne.s32.totalorder %s45, %s47
      %p54 = scmp.eq.s32.totalorder %s16, 3
      %p55 = por %p53, %p54
      %p56 = scmp.ne.s32.totalorder %s47, %s48
      %p57 = scmp.eq.s32.totalorder %s16, 0
      %p58 = por %p56, %p57
      %p59 = scmp.ne.s32.totalorder %s47, %s48
      %p60 = scmp.eq.s32.totalorder %s17, 3
      %p61 = por %p59, %p60
      %p63 = scmp.ne.s32.totalorder %s48, %s62
      %p64 = scmp.eq.s32.totalorder %s17, 0
      %p65 = por %p63, %p64
      %s67 = sadd.s32 %s66, 1
      %p70 = scmp.eq.s32.totalorder %s11, 3
      %p71 = scmp.ne.s32.totalorder %s66, %s68
      %p72 = scmp.eq.s32.totalorder %s11, 0
      %p73 = por %p71, %p72
      %p74 = scmp.ne.s32.totalorder %s66, %s68
      %p75 = scmp.eq.s32.totalorder %s16, 3
      %p76 = por %p74, %p75
      %p77 = scmp.ne.s32.totalorder %s68, %s69
      %p78 = scmp.eq.s32.totalorder %s16, 0
      %p79 = por %p77, %p78
      %p80 = scmp.ne.s32.totalorder %s68, %s69
      %p81 = scmp.eq.s32.totalorder %s17, 3
      %p82 = por %p80, %p81
      %p84 = scmp.ne.s32.totalorder %s69, %s83
      %p85 = scmp.eq.s32.totalorder %s17, 0
      %p86 = por %p84, %p85
      %s87 = ssub.s32 %s11, %s18
      %p88 = scmp.eq.s32.totalorder %s87, 0
      %s90 = sadd.s32 %s89, 1
      %s91 = scalar_select %p88, %s89, %s90
      %p94 = pneg %p88
      %p95 = scmp.eq.s32.totalorder %s11, 3
      %p96 = por %p94, %p95
      %p97 = scmp.ne.s32.totalorder %s89, %s92
      %p98 = scmp.eq.s32.totalorder %s11, 0
      %p99 = por %p97, %p98
      %p100 = scmp.ne.s32.totalorder %s89, %s92
      %p101 = scmp.eq.s32.totalorder %s16, 3
      %p102 = por %p100, %p101
      %p103 = scmp.ne.s32.totalorder %s92, %s93
      %p104 = scmp.eq.s32.totalorder %s16, 0
      %p105 = por %p103, %p104
      %p106 = scmp.ne.s32.totalorder %s92, %s93
      %p107 = scmp.eq.s32.totalorder %s17, 3
      %p108 = por %p106, %p107
      %p110 = scmp.ne.s32.totalorder %s93, %s109
      %p111 = scmp.eq.s32.totalorder %s17, 0
      %p112 = por %p110, %p111
      %p113 = scmp.le.s32.totalorder 1, %s11
      %p114 = scmp.lt.s32.totalorder %s11, 5
      %p115 = pnand %p113, %p114
      %p116 = pneg %p115
      // Predicated region
      $region9: #{_lambda_.5} parent=5 // pred_check
        _
      $region10: #{_lambda_.5} parent=5 // pred_check_branch
        %118 = sbr.rel (%p115) target = $region12
      $region11: #{_lambda_.5} parent=5 // pred_region
        %s119 = ssub.s32 %s11, 1
        // Predicated region
        $region13: #{_lambda_.5} parent=11 // pred_check
          %p120 = pneg %p58
        $region14: #{_lambda_.5} parent=11 // pred_check_branch
          %122 = sbr.rel (%p120) target = $region16
        $region15: #{_lambda_.5} parent=11 // pred_region
          %124 = vsyncadd [#allocation3], 0
          %s125 = sshll.u32 %s1, 4
          %s126 = int_to_ptr.hbm [resolvable:$true] %s125
          %s127 = sshll.u32 [#allocation2], 4
          %s128 = int_to_ptr.vmem [resolvable:$true] %s127
          %133 = dma.hbm_to_vmem [thread:$0]  %s126, 256, %s128, [#allocation3], 64, 64, 4
        $region16: #{_lambda_.5} parent=11 // pred_fallthru
          _
        // Predicated region
        $region17: #{_lambda_.5} parent=11 // pred_check
          %p134 = pneg %p79
        $region18: #{_lambda_.5} parent=11 // pred_check_branch
          %136 = sbr.rel (%p134) target = $region20
        $region19: #{_lambda_.5} parent=11 // pred_region
          %138 = vsyncadd [#allocation5], 0
          %s140 = sshll.u32 %s2, 4
          %s141 = int_to_ptr.hbm [resolvable:$true] %s140
          %s142 = sshll.u32 [#allocation4], 4
          %s143 = int_to_ptr.vmem [resolvable:$true] %s142
          %145 = dma.hbm_to_vmem [thread:$0]  %s141, 16, %s143, [#allocation5]
        $region20: #{_lambda_.5} parent=11 // pred_fallthru
          _
      $region12: #{_lambda_.5} parent=5 // pred_fallthru
        _
      %p146 = scmp.lt.s32.totalorder %s11, 4
      // Predicated region
      $region21: #{_lambda_.5} parent=5 // pred_check
        %p147 = pneg %p146
      $region22: #{_lambda_.5} parent=5 // pred_check_branch
        %149 = sbr.rel (%p147) target = $region24
      $region23: #{_lambda_.5} parent=5 // pred_region
        // Predicated region
        $region25: #{_lambda_.5} parent=23 // pred_check
          %p150 = pneg %p31
        $region26: #{_lambda_.5} parent=23 // pred_check_branch
          %152 = sbr.rel (%p150) target = $region28
        $region27: #{_lambda_.5} parent=23 // pred_region
          %s153 = smul.u32 64, %s11
          %p154 = scmp.lt.s32.totalorder %s153, 255
          %s155 = scalar_select %p154, %s153, 255
          %s156 = smul.addr %s155, 4
          %s157 = scalar_lea.vmem %s0, %s156
          %s158 = smul.u32 64, %s11
        $region28: #{_lambda_.5} parent=23 // pred_fallthru
          _
      $region24: #{_lambda_.5} parent=5 // pred_fallthru
        _
      %p159 = scmp.le.s32.totalorder 1, %s11
      %p160 = scmp.lt.s32.totalorder %s11, 5
      %p161 = pnand %p159, %p160
      %p162 = pneg %p161
      // Predicated region
      $region29: #{_lambda_.5} parent=5 // pred_check
        _
      $region30: #{_lambda_.5} parent=5 // pred_check_branch
        %164 = sbr.rel (%p161) target = $region32
      $region31: #{_lambda_.5} parent=5 // pred_region
        %s165 = ssub.s32 %s11, 1
        // Predicated region
        $region33: #{_lambda_.5} parent=31 // pred_check
          %p166 = pneg %p58
        $region34: #{_lambda_.5} parent=31 // pred_check_branch
          %168 = sbr.rel (%p166) target = $region36
        $region35: #{_lambda_.5} parent=31 // pred_region
          %170 = dma.done [#allocation3], 256
        $region36: #{_lambda_.5} parent=31 // pred_fallthru
          _
        // Predicated region
        $region37: #{_lambda_.5} parent=31 // pred_check
          %p171 = pneg %p79
        $region38: #{_lambda_.5} parent=31 // pred_check_branch
          %173 = sbr.rel (%p171) target = $region40
        $region39: #{_lambda_.5} parent=31 // pred_region
          %175 = dma.done [#allocation5], 16
        $region40: #{_lambda_.5} parent=31 // pred_fallthru
          _
        %s176 = smul.u32 64, %s16
        %p177 = scmp.lt.s32.totalorder %s176, 255
        %s178 = scalar_select %p177, %s176, 255
        %s179 = smul.addr %s178, 4
        %s180 = scalar_lea.vmem %s0, %s179
        %p181 = pneg %p37
        %p182 = pneg %p34
        %p183 = pneg %p58
        %p184 = pneg %p55
        %p185 = pneg %p79
        %p186 = pneg %p76
        %p187 = pneg %p105
        %p188 = pneg %p102
        %s189 = smul.u32 64, %s16
        %p190 = scmp.lt.s32.totalorder %s189, 255
        %s191 = scalar_select %p190, %s189, 255
        %s192 = smul.addr %s191, 4
        %s193 = scalar_lea.vmem %s3, %s192
        %s194 = smul.u32 64, %s16
        %p195 = scmp.lt.s32.totalorder %s194, 255
        %s196 = scalar_select %p195, %s194, 255
        %s197 = smul.addr %s196, 4
        %s198 = scalar_lea.vmem %s0, %s197
        %s199 = smul.u32 64, %s16
        %s200 = smul.u32 64, %s16
        %p201 = scmp.lt.s32.totalorder %s200, 255
        %s202 = scalar_select %p201, %s200, 255
        %s203 = smul.addr %s202, 4
        %s204 = scalar_lea.vmem %s3, %s203
        %s205 = smul.u32 64, %s16
        %v207 = vld [vmem:[%s198] sm:$0xf]
        %v208 = vld [vmem:[%s198 + $0x4] sm:$0xf]
        %v209 = vld [vmem:[%s198 + $0x8] sm:$0xf]
        %v210 = vld [vmem:[%s198 + $0xc] sm:$0xf]
        %v211 = vld [vmem:[%s198 + $0x10] sm:$0xf]
        %v212 = vld [vmem:[%s198 + $0x14] sm:$0xf]
        %v213 = vld [vmem:[%s198 + $0x18] sm:$0xf]
        %v214 = vld [vmem:[%s198 + $0x1c] sm:$0xf]
        %v215 = vld [vmem:[%s198 + $0x20] sm:$0xf]
        %v216 = vld [vmem:[%s198 + $0x24] sm:$0xf]
        %v217 = vld [vmem:[%s198 + $0x28] sm:$0xf]
        %v218 = vld [vmem:[%s198 + $0x2c] sm:$0xf]
        %v219 = vld [vmem:[%s198 + $0x30] sm:$0xf]
        %v220 = vld [vmem:[%s198 + $0x34] sm:$0xf]
        %v221 = vld [vmem:[%s198 + $0x38] sm:$0xf]
        %v222 = vld [vmem:[%s198 + $0x3c] sm:$0xf]
        %v223 = vld [vmem:[%s198 + $0x40] sm:$0xf]
        %v224 = vld [vmem:[%s198 + $0x44] sm:$0xf]
        %v225 = vld [vmem:[%s198 + $0x48] sm:$0xf]
        %v226 = vld [vmem:[%s198 + $0x4c] sm:$0xf]
        %v227 = vld [vmem:[%s198 + $0x50] sm:$0xf]
        %v228 = vld [vmem:[%s198 + $0x54] sm:$0xf]
        %v229 = vld [vmem:[%s198 + $0x58] sm:$0xf]
        %v230 = vld [vmem:[%s198 + $0x5c] sm:$0xf]
        %v231 = vld [vmem:[%s198 + $0x60] sm:$0xf]
        %v232 = vld [vmem:[%s198 + $0x64] sm:$0xf]
        %v233 = vld [vmem:[%s198 + $0x68] sm:$0xf]
        %v234 = vld [vmem:[%s198 + $0x6c] sm:$0xf]
        %v235 = vld [vmem:[%s198 + $0x70] sm:$0xf]
        %v236 = vld [vmem:[%s198 + $0x74] sm:$0xf]
        %v237 = vld [vmem:[%s198 + $0x78] sm:$0xf]
        %v238 = vld [vmem:[%s198 + $0x7c] sm:$0xf]
        %v239 = vld [vmem:[%s198 + $0x80] sm:$0xf]
        %v240 = vld [vmem:[%s198 + $0x84] sm:$0xf]
        %v241 = vld [vmem:[%s198 + $0x88] sm:$0xf]
        %v242 = vld [vmem:[%s198 + $0x8c] sm:$0xf]
        %v243 = vld [vmem:[%s198 + $0x90] sm:$0xf]
        %v244 = vld [vmem:[%s198 + $0x94] sm:$0xf]
        %v245 = vld [vmem:[%s198 + $0x98] sm:$0xf]
        %v246 = vld [vmem:[%s198 + $0x9c] sm:$0xf]
        %v247 = vld [vmem:[%s198 + $0xa0] sm:$0xf]
        %v248 = vld [vmem:[%s198 + $0xa4] sm:$0xf]
        %v249 = vld [vmem:[%s198 + $0xa8] sm:$0xf]
        %v250 = vld [vmem:[%s198 + $0xac] sm:$0xf]
        %v251 = vld [vmem:[%s198 + $0xb0] sm:$0xf]
        %v252 = vld [vmem:[%s198 + $0xb4] sm:$0xf]
        %v253 = vld [vmem:[%s198 + $0xb8] sm:$0xf]
        %v254 = vld [vmem:[%s198 + $0xbc] sm:$0xf]
        %v255 = vld [vmem:[%s198 + $0xc0] sm:$0xf]
        %v256 = vld [vmem:[%s198 + $0xc4] sm:$0xf]
        %v257 = vld [vmem:[%s198 + $0xc8] sm:$0xf]
        %v258 = vld [vmem:[%s198 + $0xcc] sm:$0xf]
        %v259 = vld [vmem:[%s198 + $0xd0] sm:$0xf]
        %v260 = vld [vmem:[%s198 + $0xd4] sm:$0xf]
        %v261 = vld [vmem:[%s198 + $0xd8] sm:$0xf]
        %v262 = vld [vmem:[%s198 + $0xdc] sm:$0xf]
        %v263 = vld [vmem:[%s198 + $0xe0] sm:$0xf]
        %v264 = vld [vmem:[%s198 + $0xe4] sm:$0xf]
        %v265 = vld [vmem:[%s198 + $0xe8] sm:$0xf]
        %v266 = vld [vmem:[%s198 + $0xec] sm:$0xf]
        %v267 = vld [vmem:[%s198 + $0xf0] sm:$0xf]
        %v268 = vld [vmem:[%s198 + $0xf4] sm:$0xf]
        %v269 = vld [vmem:[%s198 + $0xf8] sm:$0xf]
        %v270 = vld [vmem:[%s198 + $0xfc] sm:$0xf]
        %v271 = vld [vmem:[#allocation2] sm:$0xf]
        %v272 = vld [vmem:[#allocation2 + $0x4] sm:$0xf]
        %v273 = vld [vmem:[#allocation2 + $0x8] sm:$0xf]
        %v274 = vld [vmem:[#allocation2 + $0xc] sm:$0x1]
        %v275 = vld [vmem:[#allocation4] sm:$0x1]
        %v277 = vperm.slane %v275, 0
        %v343 = vunpack.c.l.b16 %v207
        %v344 = vunpack.c.l.b16 %v208
        %v345 = vunpack.c.l.b16 %v209
        %v346 = vunpack.c.l.b16 %v210
        %v347 = vunpack.c.l.b16 %v211
        %v348 = vunpack.c.l.b16 %v212
        %v349 = vunpack.c.l.b16 %v213
        %v350 = vunpack.c.l.b16 %v214
        %v351 = vunpack.c.l.b16 %v215
        %v352 = vunpack.c.l.b16 %v216
        %v353 = vunpack.c.l.b16 %v217
        %v354 = vunpack.c.l.b16 %v218
        %v355 = vunpack.c.l.b16 %v219
        %v356 = vunpack.c.l.b16 %v220
        %v357 = vunpack.c.l.b16 %v221
        %v358 = vunpack.c.l.b16 %v222
        %v359 = vunpack.c.l.b16 %v223
        %v360 = vunpack.c.l.b16 %v224
        %v361 = vunpack.c.l.b16 %v225
        %v362 = vunpack.c.l.b16 %v226
        %v363 = vunpack.c.l.b16 %v227
        %v364 = vunpack.c.l.b16 %v228
        %v365 = vunpack.c.l.b16 %v229
        %v366 = vunpack.c.l.b16 %v230
        %v367 = vunpack.c.l.b16 %v231
        %v368 = vunpack.c.l.b16 %v232
        %v369 = vunpack.c.l.b16 %v233
        %v370 = vunpack.c.l.b16 %v234
        %v371 = vunpack.c.l.b16 %v235
        %v372 = vunpack.c.l.b16 %v236
        %v373 = vunpack.c.l.b16 %v237
        %v374 = vunpack.c.l.b16 %v238
        %v375 = vunpack.c.l.b16 %v239
        %v376 = vunpack.c.l.b16 %v240
        %v377 = vunpack.c.l.b16 %v241
        %v378 = vunpack.c.l.b16 %v242
        %v379 = vunpack.c.l.b16 %v243
        %v380 = vunpack.c.l.b16 %v244
        %v381 = vunpack.c.l.b16 %v245
        %v382 = vunpack.c.l.b16 %v246
        %v383 = vunpack.c.l.b16 %v247
        %v384 = vunpack.c.l.b16 %v248
        %v385 = vunpack.c.l.b16 %v249
        %v386 = vunpack.c.l.b16 %v250
        %v387 = vunpack.c.l.b16 %v251
        %v388 = vunpack.c.l.b16 %v252
        %v389 = vunpack.c.l.b16 %v253
        %v390 = vunpack.c.l.b16 %v254
        %v391 = vunpack.c.l.b16 %v255
        %v392 = vunpack.c.l.b16 %v256
        %v393 = vunpack.c.l.b16 %v257
        %v394 = vunpack.c.l.b16 %v258
        %v395 = vunpack.c.l.b16 %v259
        %v396 = vunpack.c.l.b16 %v260
        %v397 = vunpack.c.l.b16 %v261
        %v398 = vunpack.c.l.b16 %v262
        %v399 = vunpack.c.l.b16 %v263
        %v400 = vunpack.c.l.b16 %v264
        %v401 = vunpack.c.l.b16 %v265
        %v402 = vunpack.c.l.b16 %v266
        %v403 = vunpack.c.l.b16 %v267
        %v404 = vunpack.c.l.b16 %v268
        %v405 = vunpack.c.l.b16 %v269
        %v406 = vunpack.c.l.b16 %v270
        %v407 = vpack.c.b16 %v344, %v343
        %v408 = vpack.c.b16 %v346, %v345
        %v409 = vpack.c.b16 %v348, %v347
        %v410 = vpack.c.b16 %v350, %v349
        %v411 = vpack.c.b16 %v352, %v351
        %v412 = vpack.c.b16 %v354, %v353
        %v413 = vpack.c.b16 %v356, %v355
        %v414 = vpack.c.b16 %v358, %v357
        %v415 = vpack.c.b16 %v360, %v359
        %v416 = vpack.c.b16 %v362, %v361
        %v417 = vpack.c.b16 %v364, %v363
        %v418 = vpack.c.b16 %v366, %v365
        %v419 = vpack.c.b16 %v368, %v367
        %v420 = vpack.c.b16 %v370, %v369
        %v421 = vpack.c.b16 %v372, %v371
        %v422 = vpack.c.b16 %v374, %v373
        %v423 = vpack.c.b16 %v376, %v375
        %v424 = vpack.c.b16 %v378, %v377
        %v425 = vpack.c.b16 %v380, %v379
        %v426 = vpack.c.b16 %v382, %v381
        %v427 = vpack.c.b16 %v384, %v383
        %v428 = vpack.c.b16 %v386, %v385
        %v429 = vpack.c.b16 %v388, %v387
        %v430 = vpack.c.b16 %v390, %v389
        %v431 = vpack.c.b16 %v392, %v391
        %v432 = vpack.c.b16 %v394, %v393
        %v433 = vpack.c.b16 %v396, %v395
        %v434 = vpack.c.b16 %v398, %v397
        %v435 = vpack.c.b16 %v400, %v399
        %v436 = vpack.c.b16 %v402, %v401
        %v437 = vpack.c.b16 %v404, %v403
        %v438 = vpack.c.b16 %v406, %v405
        %v443 = vunpack.c.l.b16 %v271
        %v444 = vunpack.c.l.b16 %v272
        %v445 = vunpack.c.l.b16 %v273
        %v446 = vunpack.c.l.b16 %v274
        %v447 = vpack.c.b16 %v444, %v443
        %v448 = vpack.c.b16 %v446, %v445
        %vm450 = vcmask 203776
        %v452 = vsel %vm450, %v407, 0
        %v455 = vsel %vm450, %v408, 0
        %v458 = vsel %vm450, %v409, 0
        %v461 = vsel %vm450, %v410, 0
        %v464 = vsel %vm450, %v411, 0
        %v467 = vsel %vm450, %v412, 0
        %v470 = vsel %vm450, %v413, 0
        %v473 = vsel %vm450, %v414, 0
        %v476 = vsel %vm450, %v415, 0
        %v479 = vsel %vm450, %v416, 0
        %v482 = vsel %vm450, %v417, 0
        %v485 = vsel %vm450, %v418, 0
        %v488 = vsel %vm450, %v419, 0
        %v491 = vsel %vm450, %v420, 0
        %v494 = vsel %vm450, %v421, 0
        %v497 = vsel %vm450, %v422, 0
        %v500 = vsel %vm450, %v423, 0
        %v503 = vsel %vm450, %v424, 0
        %v506 = vsel %vm450, %v425, 0
        %v509 = vsel %vm450, %v426, 0
        %v512 = vsel %vm450, %v427, 0
        %v515 = vsel %vm450, %v428, 0
        %v518 = vsel %vm450, %v429, 0
        %v521 = vsel %vm450, %v430, 0
        %v524 = vsel %vm450, %v431, 0
        %v527 = vsel %vm450, %v432, 0
        %v530 = vsel %vm450, %v433, 0
        %v533 = vsel %vm450, %v434, 0
        %v536 = vsel %vm450, %v435, 0
        %v539 = vsel %vm450, %v436, 0
        %v542 = vsel %vm450, %v437, 0
        %v545 = vsel %vm450, %v438, 0
        %vm547 = vcmask 1043456
        %vm548 = vcmask 1044480
        %v549 = vsel %vm547, 4294967295, 65535
        %v550 = vsel %vm548, %v549, 0
        %v552 = vand.u32 %v448, %v550
        %554 = vmatpush.bf16.msra.mxu0 0
        %555 = vmatpush.bf16.msra.mxu0 0
        %556 = vmatpush.bf16.msra.mxu0 0
        %557 = vmatpush.bf16.msra.mxu0 0
        %558 = vmatpush.bf16.msra.mxu0 0
        %559 = vmatpush.bf16.msra.mxu0 0
        %560 = vmatpush.bf16.msra.mxu0 %v552
        %561 = vmatpush.bf16.msra.mxu0 %v447
        %562 = vmatmul.bf16.gmra.mxu0 %v452
        %v563 = vpop.f32.mrf.mxu0
        %v564 = vadd.f32 %v277, %v563
        %v565 = vpop.f32.mrf.mxu0
        %v566 = vadd.f32 %v277, %v565
        %567 = vmatmul.bf16.gmra.mxu0 %v455
        %v568 = vpop.f32.mrf.mxu0
        %v569 = vadd.f32 %v277, %v568
        %v570 = vpop.f32.mrf.mxu0
        %v571 = vadd.f32 %v277, %v570
        %572 = vmatmul.bf16.gmra.mxu0 %v458
        %v573 = vpop.f32.mrf.mxu0
        %v574 = vadd.f32 %v277, %v573
        %v575 = vpop.f32.mrf.mxu0
        %v576 = vadd.f32 %v277, %v575
        %577 = vmatmul.bf16.gmra.mxu0 %v461
        %v578 = vpop.f32.mrf.mxu0
        %v579 = vadd.f32 %v277, %v578
        %v580 = vpop.f32.mrf.mxu0
        %v581 = vadd.f32 %v277, %v580
        %582 = vmatmul.bf16.gmra.mxu0 %v464
        %v583 = vpop.f32.mrf.mxu0
        %v584 = vadd.f32 %v277, %v583
        %v585 = vpop.f32.mrf.mxu0
        %v586 = vadd.f32 %v277, %v585
        %587 = vmatmul.bf16.gmra.mxu0 %v467
        %v588 = vpop.f32.mrf.mxu0
        %v589 = vadd.f32 %v277, %v588
        %v590 = vpop.f32.mrf.mxu0
        %v591 = vadd.f32 %v277, %v590
        %592 = vmatmul.bf16.gmra.mxu0 %v470
        %v593 = vpop.f32.mrf.mxu0
        %v594 = vadd.f32 %v277, %v593
        %v595 = vpop.f32.mrf.mxu0
        %v596 = vadd.f32 %v277, %v595
        %597 = vmatmul.bf16.gmra.mxu0 %v473
        %v598 = vpop.f32.mrf.mxu0
        %v599 = vadd.f32 %v277, %v598
        %v600 = vpop.f32.mrf.mxu0
        %v601 = vadd.f32 %v277, %v600
        %602 = vmatmul.bf16.gmra.mxu0 %v476
        %v603 = vpop.f32.mrf.mxu0
        %v604 = vadd.f32 %v277, %v603
        %v605 = vpop.f32.mrf.mxu0
        %v606 = vadd.f32 %v277, %v605
        %607 = vmatmul.bf16.gmra.mxu0 %v479
        %v608 = vpop.f32.mrf.mxu0
        %v609 = vadd.f32 %v277, %v608
        %v610 = vpop.f32.mrf.mxu0
        %v611 = vadd.f32 %v277, %v610
        %612 = vmatmul.bf16.gmra.mxu0 %v482
        %v613 = vpop.f32.mrf.mxu0
        %v614 = vadd.f32 %v277, %v613
        %v615 = vpop.f32.mrf.mxu0
        %v616 = vadd.f32 %v277, %v615
        %617 = vmatmul.bf16.gmra.mxu0 %v485
        %v618 = vpop.f32.mrf.mxu0
        %v619 = vadd.f32 %v277, %v618
        %v620 = vpop.f32.mrf.mxu0
        %v621 = vadd.f32 %v277, %v620
        %622 = vmatmul.bf16.gmra.mxu0 %v488
        %v623 = vpop.f32.mrf.mxu0
        %v624 = vadd.f32 %v277, %v623
        %v625 = vpop.f32.mrf.mxu0
        %v626 = vadd.f32 %v277, %v625
        %627 = vmatmul.bf16.gmra.mxu0 %v491
        %v628 = vpop.f32.mrf.mxu0
        %v629 = vadd.f32 %v277, %v628
        %v630 = vpop.f32.mrf.mxu0
        %v631 = vadd.f32 %v277, %v630
        %632 = vmatmul.bf16.gmra.mxu0 %v494
        %v633 = vpop.f32.mrf.mxu0
        %v634 = vadd.f32 %v277, %v633
        %v635 = vpop.f32.mrf.mxu0
        %v636 = vadd.f32 %v277, %v635
        %637 = vmatmul.bf16.gmra.mxu0 %v497
        %v638 = vpop.f32.mrf.mxu0
        %v639 = vadd.f32 %v277, %v638
        %v640 = vpop.f32.mrf.mxu0
        %v641 = vadd.f32 %v277, %v640
        %642 = vmatmul.bf16.gmra.mxu0 %v500
        %v643 = vpop.f32.mrf.mxu0
        %v644 = vadd.f32 %v277, %v643
        %v645 = vpop.f32.mrf.mxu0
        %v646 = vadd.f32 %v277, %v645
        %647 = vmatmul.bf16.gmra.mxu0 %v503
        %v648 = vpop.f32.mrf.mxu0
        %v649 = vadd.f32 %v277, %v648
        %v650 = vpop.f32.mrf.mxu0
        %v651 = vadd.f32 %v277, %v650
        %652 = vmatmul.bf16.gmra.mxu0 %v506
        %v653 = vpop.f32.mrf.mxu0
        %v654 = vadd.f32 %v277, %v653
        %v655 = vpop.f32.mrf.mxu0
        %v656 = vadd.f32 %v277, %v655
        %657 = vmatmul.bf16.gmra.mxu0 %v509
        %v658 = vpop.f32.mrf.mxu0
        %v659 = vadd.f32 %v277, %v658
        %v660 = vpop.f32.mrf.mxu0
        %v661 = vadd.f32 %v277, %v660
        %662 = vmatmul.bf16.gmra.mxu0 %v512
        %v663 = vpop.f32.mrf.mxu0
        %v664 = vadd.f32 %v277, %v663
        %v665 = vpop.f32.mrf.mxu0
        %v666 = vadd.f32 %v277, %v665
        %667 = vmatmul.bf16.gmra.mxu0 %v515
        %v668 = vpop.f32.mrf.mxu0
        %v669 = vadd.f32 %v277, %v668
        %v670 = vpop.f32.mrf.mxu0
        %v671 = vadd.f32 %v277, %v670
        %672 = vmatmul.bf16.gmra.mxu0 %v518
        %v673 = vpop.f32.mrf.mxu0
        %v674 = vadd.f32 %v277, %v673
        %v675 = vpop.f32.mrf.mxu0
        %v676 = vadd.f32 %v277, %v675
        %677 = vmatmul.bf16.gmra.mxu0 %v521
        %v678 = vpop.f32.mrf.mxu0
        %v679 = vadd.f32 %v277, %v678
        %v680 = vpop.f32.mrf.mxu0
        %v681 = vadd.f32 %v277, %v680
        %682 = vmatmul.bf16.gmra.mxu0 %v524
        %v683 = vpop.f32.mrf.mxu0
        %v684 = vadd.f32 %v277, %v683
        %v685 = vpop.f32.mrf.mxu0
        %v686 = vadd.f32 %v277, %v685
        %687 = vmatmul.bf16.gmra.mxu0 %v527
        %v688 = vpop.f32.mrf.mxu0
        %v689 = vadd.f32 %v277, %v688
        %v690 = vpop.f32.mrf.mxu0
        %v691 = vadd.f32 %v277, %v690
        %692 = vmatmul.bf16.gmra.mxu0 %v530
        %v693 = vpop.f32.mrf.mxu0
        %v694 = vadd.f32 %v277, %v693
        %v695 = vpop.f32.mrf.mxu0
        %v696 = vadd.f32 %v277, %v695
        %697 = vmatmul.bf16.gmra.mxu0 %v533
        %v698 = vpop.f32.mrf.mxu0
        %v699 = vadd.f32 %v277, %v698
        %v700 = vpop.f32.mrf.mxu0
        %v701 = vadd.f32 %v277, %v700
        %702 = vmatmul.bf16.gmra.mxu0 %v536
        %v703 = vpop.f32.mrf.mxu0
        %v704 = vadd.f32 %v277, %v703
        %v705 = vpop.f32.mrf.mxu0
        %v706 = vadd.f32 %v277, %v705
        %707 = vmatmul.bf16.gmra.mxu0 %v539
        %v708 = vpop.f32.mrf.mxu0
        %v709 = vadd.f32 %v277, %v708
        %v710 = vpop.f32.mrf.mxu0
        %v711 = vadd.f32 %v277, %v710
        %712 = vmatmul.bf16.gmra.mxu0 %v542
        %v713 = vpop.f32.mrf.mxu0
        %v714 = vadd.f32 %v277, %v713
        %v715 = vpop.f32.mrf.mxu0
        %v716 = vadd.f32 %v277, %v715
        %717 = vmatmul.bf16.gmra.mxu0 %v545
        %v718 = vpop.f32.mrf.mxu0
        %v719 = vadd.f32 %v277, %v718
        %v720 = vpop.f32.mrf.mxu0
        %v721 = vadd.f32 %v277, %v720
        %722 = vdwg.mxu0
        %v723 = vmax.f32 %v564, 0.0
        %v724 = vmax.f32 %v566, 0.0
        %v725 = vmax.f32 %v569, 0.0
        %v726 = vmax.f32 %v571, 0.0
        %v727 = vmax.f32 %v574, 0.0
        %v728 = vmax.f32 %v576, 0.0
        %v729 = vmax.f32 %v579, 0.0
        %v730 = vmax.f32 %v581, 0.0
        %v731 = vmax.f32 %v584, 0.0
        %v732 = vmax.f32 %v586, 0.0
        %v733 = vmax.f32 %v589, 0.0
        %v734 = vmax.f32 %v591, 0.0
        %v735 = vmax.f32 %v594, 0.0
        %v736 = vmax.f32 %v596, 0.0
        %v737 = vmax.f32 %v599, 0.0
        %v738 = vmax.f32 %v601, 0.0
        %v739 = vmax.f32 %v604, 0.0
        %v740 = vmax.f32 %v606, 0.0
        %v741 = vmax.f32 %v609, 0.0
        %v742 = vmax.f32 %v611, 0.0
        %v743 = vmax.f32 %v614, 0.0
        %v744 = vmax.f32 %v616, 0.0
        %v745 = vmax.f32 %v619, 0.0
        %v746 = vmax.f32 %v621, 0.0
        %v747 = vmax.f32 %v624, 0.0
        %v748 = vmax.f32 %v626, 0.0
        %v749 = vmax.f32 %v629, 0.0
        %v750 = vmax.f32 %v631, 0.0
        %v751 = vmax.f32 %v634, 0.0
        %v752 = vmax.f32 %v636, 0.0
        %v753 = vmax.f32 %v639, 0.0
        %v754 = vmax.f32 %v641, 0.0
        %v755 = vmax.f32 %v644, 0.0
        %v756 = vmax.f32 %v646, 0.0
        %v757 = vmax.f32 %v649, 0.0
        %v758 = vmax.f32 %v651, 0.0
        %v759 = vmax.f32 %v654, 0.0
        %v760 = vmax.f32 %v656, 0.0
        %v761 = vmax.f32 %v659, 0.0
        %v762 = vmax.f32 %v661, 0.0
        %v763 = vmax.f32 %v664, 0.0
        %v764 = vmax.f32 %v666, 0.0
        %v765 = vmax.f32 %v669, 0.0
        %v766 = vmax.f32 %v671, 0.0
        %v767 = vmax.f32 %v674, 0.0
        %v768 = vmax.f32 %v676, 0.0
        %v769 = vmax.f32 %v679, 0.0
        %v770 = vmax.f32 %v681, 0.0
        %v771 = vmax.f32 %v684, 0.0
        %v772 = vmax.f32 %v686, 0.0
        %v773 = vmax.f32 %v689, 0.0
        %v774 = vmax.f32 %v691, 0.0
        %v775 = vmax.f32 %v694, 0.0
        %v776 = vmax.f32 %v696, 0.0
        %v777 = vmax.f32 %v699, 0.0
        %v778 = vmax.f32 %v701, 0.0
        %v779 = vmax.f32 %v704, 0.0
        %v780 = vmax.f32 %v706, 0.0
        %v781 = vmax.f32 %v709, 0.0
        %v782 = vmax.f32 %v711, 0.0
        %v783 = vmax.f32 %v714, 0.0
        %v784 = vmax.f32 %v716, 0.0
        %v785 = vmax.f32 %v719, 0.0
        %v786 = vmax.f32 %v721, 0.0
        %v787 = vpack.c.bf16 %v723, %v723
        %v788 = vpack.c.bf16 %v724, %v724
        %v789 = vpack.c.bf16 %v725, %v725
        %v790 = vpack.c.bf16 %v726, %v726
        %v791 = vpack.c.bf16 %v727, %v727
        %v792 = vpack.c.bf16 %v728, %v728
        %v793 = vpack.c.bf16 %v729, %v729
        %v794 = vpack.c.bf16 %v730, %v730
        %v795 = vpack.c.bf16 %v731, %v731
        %v796 = vpack.c.bf16 %v732, %v732
        %v797 = vpack.c.bf16 %v733, %v733
        %v798 = vpack.c.bf16 %v734, %v734
        %v799 = vpack.c.bf16 %v735, %v735
        %v800 = vpack.c.bf16 %v736, %v736
        %v801 = vpack.c.bf16 %v737, %v737
        %v802 = vpack.c.bf16 %v738, %v738
        %v803 = vpack.c.bf16 %v739, %v739
        %v804 = vpack.c.bf16 %v740, %v740
        %v805 = vpack.c.bf16 %v741, %v741
        %v806 = vpack.c.bf16 %v742, %v742
        %v807 = vpack.c.bf16 %v743, %v743
        %v808 = vpack.c.bf16 %v744, %v744
        %v809 = vpack.c.bf16 %v745, %v745
        %v810 = vpack.c.bf16 %v746, %v746
        %v811 = vpack.c.bf16 %v747, %v747
        %v812 = vpack.c.bf16 %v748, %v748
        %v813 = vpack.c.bf16 %v749, %v749
        %v814 = vpack.c.bf16 %v750, %v750
        %v815 = vpack.c.bf16 %v751, %v751
        %v816 = vpack.c.bf16 %v752, %v752
        %v817 = vpack.c.bf16 %v753, %v753
        %v818 = vpack.c.bf16 %v754, %v754
        %v819 = vpack.c.bf16 %v755, %v755
        %v820 = vpack.c.bf16 %v756, %v756
        %v821 = vpack.c.bf16 %v757, %v757
        %v822 = vpack.c.bf16 %v758, %v758
        %v823 = vpack.c.bf16 %v759, %v759
        %v824 = vpack.c.bf16 %v760, %v760
        %v825 = vpack.c.bf16 %v761, %v761
        %v826 = vpack.c.bf16 %v762, %v762
        %v827 = vpack.c.bf16 %v763, %v763
        %v828 = vpack.c.bf16 %v764, %v764
        %v829 = vpack.c.bf16 %v765, %v765
        %v830 = vpack.c.bf16 %v766, %v766
        %v831 = vpack.c.bf16 %v767, %v767
        %v832 = vpack.c.bf16 %v768, %v768
        %v833 = vpack.c.bf16 %v769, %v769
        %v834 = vpack.c.bf16 %v770, %v770
        %v835 = vpack.c.bf16 %v771, %v771
        %v836 = vpack.c.bf16 %v772, %v772
        %v837 = vpack.c.bf16 %v773, %v773
        %v838 = vpack.c.bf16 %v774, %v774
        %v839 = vpack.c.bf16 %v775, %v775
        %v840 = vpack.c.bf16 %v776, %v776
        %v841 = vpack.c.bf16 %v777, %v777
        %v842 = vpack.c.bf16 %v778, %v778
        %v843 = vpack.c.bf16 %v779, %v779
        %v844 = vpack.c.bf16 %v780, %v780
        %v845 = vpack.c.bf16 %v781, %v781
        %v846 = vpack.c.bf16 %v782, %v782
        %v847 = vpack.c.bf16 %v783, %v783
        %v848 = vpack.c.bf16 %v784, %v784
        %v849 = vpack.c.bf16 %v785, %v785
        %v850 = vpack.c.bf16 %v786, %v786
        %vm851 = vcmask 60416
        %852 = vst.msk [vmem:[%s204] sm:$0xf] %vm851, %v787
        %853 = vst.msk [vmem:[%s204 + $0x4] sm:$0xf] %vm851, %v788
        %854 = vst.msk [vmem:[%s204 + $0x8] sm:$0xf] %vm851, %v789
        %855 = vst.msk [vmem:[%s204 + $0xc] sm:$0xf] %vm851, %v790
        %856 = vst.msk [vmem:[%s204 + $0x10] sm:$0xf] %vm851, %v791
        %857 = vst.msk [vmem:[%s204 + $0x14] sm:$0xf] %vm851, %v792
        %858 = vst.msk [vmem:[%s204 + $0x18] sm:$0xf] %vm851, %v793
        %859 = vst.msk [vmem:[%s204 + $0x1c] sm:$0xf] %vm851, %v794
        %860 = vst.msk [vmem:[%s204 + $0x20] sm:$0xf] %vm851, %v795
        %861 = vst.msk [vmem:[%s204 + $0x24] sm:$0xf] %vm851, %v796
        %862 = vst.msk [vmem:[%s204 + $0x28] sm:$0xf] %vm851, %v797
        %863 = vst.msk [vmem:[%s204 + $0x2c] sm:$0xf] %vm851, %v798
        %864 = vst.msk [vmem:[%s204 + $0x30] sm:$0xf] %vm851, %v799
        %865 = vst.msk [vmem:[%s204 + $0x34] sm:$0xf] %vm851, %v800
        %866 = vst.msk [vmem:[%s204 + $0x38] sm:$0xf] %vm851, %v801
        %867 = vst.msk [vmem:[%s204 + $0x3c] sm:$0xf] %vm851, %v802
        %868 = vst.msk [vmem:[%s204 + $0x40] sm:$0xf] %vm851, %v803
        %869 = vst.msk [vmem:[%s204 + $0x44] sm:$0xf] %vm851, %v804
        %870 = vst.msk [vmem:[%s204 + $0x48] sm:$0xf] %vm851, %v805
        %871 = vst.msk [vmem:[%s204 + $0x4c] sm:$0xf] %vm851, %v806
        %872 = vst.msk [vmem:[%s204 + $0x50] sm:$0xf] %vm851, %v807
        %873 = vst.msk [vmem:[%s204 + $0x54] sm:$0xf] %vm851, %v808
        %874 = vst.msk [vmem:[%s204 + $0x58] sm:$0xf] %vm851, %v809
        %875 = vst.msk [vmem:[%s204 + $0x5c] sm:$0xf] %vm851, %v810
        %876 = vst.msk [vmem:[%s204 + $0x60] sm:$0xf] %vm851, %v811
        %877 = vst.msk [vmem:[%s204 + $0x64] sm:$0xf] %vm851, %v812
        %878 = vst.msk [vmem:[%s204 + $0x68] sm:$0xf] %vm851, %v813
        %879 = vst.msk [vmem:[%s204 + $0x6c] sm:$0xf] %vm851, %v814
        %880 = vst.msk [vmem:[%s204 + $0x70] sm:$0xf] %vm851, %v815
        %881 = vst.msk [vmem:[%s204 + $0x74] sm:$0xf] %vm851, %v816
        %882 = vst.msk [vmem:[%s204 + $0x78] sm:$0xf] %vm851, %v817
        %883 = vst.msk [vmem:[%s204 + $0x7c] sm:$0xf] %vm851, %v818
        %884 = vst.msk [vmem:[%s204 + $0x80] sm:$0xf] %vm851, %v819
        %885 = vst.msk [vmem:[%s204 + $0x84] sm:$0xf] %vm851, %v820
        %886 = vst.msk [vmem:[%s204 + $0x88] sm:$0xf] %vm851, %v821
        %887 = vst.msk [vmem:[%s204 + $0x8c] sm:$0xf] %vm851, %v822
        %888 = vst.msk [vmem:[%s204 + $0x90] sm:$0xf] %vm851, %v823
        %889 = vst.msk [vmem:[%s204 + $0x94] sm:$0xf] %vm851, %v824
        %890 = vst.msk [vmem:[%s204 + $0x98] sm:$0xf] %vm851, %v825
        %891 = vst.msk [vmem:[%s204 + $0x9c] sm:$0xf] %vm851, %v826
        %892 = vst.msk [vmem:[%s204 + $0xa0] sm:$0xf] %vm851, %v827
        %893 = vst.msk [vmem:[%s204 + $0xa4] sm:$0xf] %vm851, %v828
        %894 = vst.msk [vmem:[%s204 + $0xa8] sm:$0xf] %vm851, %v829
        %895 = vst.msk [vmem:[%s204 + $0xac] sm:$0xf] %vm851, %v830
        %896 = vst.msk [vmem:[%s204 + $0xb0] sm:$0xf] %vm851, %v831
        %897 = vst.msk [vmem:[%s204 + $0xb4] sm:$0xf] %vm851, %v832
        %898 = vst.msk [vmem:[%s204 + $0xb8] sm:$0xf] %vm851, %v833
        %899 = vst.msk [vmem:[%s204 + $0xbc] sm:$0xf] %vm851, %v834
        %900 = vst.msk [vmem:[%s204 + $0xc0] sm:$0xf] %vm851, %v835
        %901 = vst.msk [vmem:[%s204 + $0xc4] sm:$0xf] %vm851, %v836
        %902 = vst.msk [vmem:[%s204 + $0xc8] sm:$0xf] %vm851, %v837
        %903 = vst.msk [vmem:[%s204 + $0xcc] sm:$0xf] %vm851, %v838
        %904 = vst.msk [vmem:[%s204 + $0xd0] sm:$0xf] %vm851, %v839
        %905 = vst.msk [vmem:[%s204 + $0xd4] sm:$0xf] %vm851, %v840
        %906 = vst.msk [vmem:[%s204 + $0xd8] sm:$0xf] %vm851, %v841
        %907 = vst.msk [vmem:[%s204 + $0xdc] sm:$0xf] %vm851, %v842
        %908 = vst.msk [vmem:[%s204 + $0xe0] sm:$0xf] %vm851, %v843
        %909 = vst.msk [vmem:[%s204 + $0xe4] sm:$0xf] %vm851, %v844
        %910 = vst.msk [vmem:[%s204 + $0xe8] sm:$0xf] %vm851, %v845
        %911 = vst.msk [vmem:[%s204 + $0xec] sm:$0xf] %vm851, %v846
        %912 = vst.msk [vmem:[%s204 + $0xf0] sm:$0xf] %vm851, %v847
        %913 = vst.msk [vmem:[%s204 + $0xf4] sm:$0xf] %vm851, %v848
        %914 = vst.msk [vmem:[%s204 + $0xf8] sm:$0xf] %vm851, %v849
        %915 = vst.msk [vmem:[%s204 + $0xfc] sm:$0xf] %vm851, %v850
        %s916 = smul.u32 64, %s16
        %p917 = scmp.lt.s32.totalorder %s916, 255
        %s918 = scalar_select %p917, %s916, 255
        %s919 = smul.addr %s918, 4
        %s920 = scalar_lea.vmem %s3, %s919
        // Predicated region
        $region41: #{_lambda_.5} parent=31 // pred_check
          %p921 = pneg %p102
        $region42: #{_lambda_.5} parent=31 // pred_check_branch
          %923 = sbr.rel (%p921) target = $region44
        $region43: #{_lambda_.5} parent=31 // pred_region
          %s924 = smul.u32 64, %s16
        $region44: #{_lambda_.5} parent=31 // pred_fallthru
          _
      $region32: #{_lambda_.5} parent=5 // pred_fallthru
        _
      %p925 = scmp.le.s32.totalorder 2, %s11
      // Predicated region
      $region45: #{_lambda_.5} parent=5 // pred_check
        %p926 = pneg %p925
      $region46: #{_lambda_.5} parent=5 // pred_check_branch
        %928 = sbr.rel (%p926) target = $region48
      $region47: #{_lambda_.5} parent=5 // pred_region
        %s929 = ssub.s32 %s11, 2
        // Predicated region
        $region49: #{_lambda_.5} parent=47 // pred_check
          %p930 = pneg %p108
        $region50: #{_lambda_.5} parent=47 // pred_check_branch
          %932 = sbr.rel (%p930) target = $region52
        $region51: #{_lambda_.5} parent=47 // pred_region
          %s933 = smul.u32 64, %s17
          %p934 = scmp.lt.s32.totalorder %s933, 255
          %s935 = scalar_select %p934, %s933, 255
          %s936 = smul.addr %s935, 4
          %s937 = scalar_lea.vmem %s3, %s936
        $region52: #{_lambda_.5} parent=47 // pred_fallthru
          _
      $region48: #{_lambda_.5} parent=5 // pred_fallthru
        _
    $region6: #{_lambda_.5} parent=1 // loop_footer
      %s15 = sadd.s32 1, %s11
    $region7: #{_lambda_.5} parent=1 // loop_footer_branch
      %10 = sbr.rel target = $region3
    $region8: #{_lambda_.5} parent=1 // loop_exit
      _
    %938 = vsyncpa [#allocation3], 1
    %s939 = scalar_lea.sflag [#allocation3], 1
    %940 = vsyncpa %s939, 1
    %941 = vsyncpa [#allocation5], 1

// kernel: _lambda_.6
$region0: #{_lambda_.6}
  #allocation0 [shape = 'u32[]', space=smem, size = 0x4, offset = 0x4, fixed_abs, tag = 'smem constant byte address 0x4 - core index']
  #allocation1 [shape = 'u32[72,128]{1,0:T(1,128)}', space=vmem, size = 0x9000, scoped, tag = 'internal scratch']
  %s0 = inlined_call_operand.vmem [shape: bf16[512,72], index: 0, kind: input, shape index: {}]
  %s1 = inlined_call_operand.vmem [shape: bf16[72,16], index: 1, kind: input, shape index: {}]
  %s2 = inlined_call_operand.vmem [shape: f32[1,16], index: 2, kind: input, shape index: {}]
  %s3 = inlined_call_operand.vmem [shape: bf16[512,16], index: 3, kind: output, shape index: {}]
  %s4 = sld [smem:[#allocation0]]
  $region22: #{_lambda_.6} parent=0
    _
  %s6 = ssub.s32 1, %s4
  %s7 = scalar_select 0, %s6, %s4
  // Predicated region
  $region2: #{_lambda_.6} parent=0 // pred_check
    _
  $region3: #{_lambda_.6} parent=0 // pred_check_branch
    %9 = sbr.rel (0) target = $region5
  $region4: #{_lambda_.6} parent=0 // pred_region
    _
  $region5: #{_lambda_.6} parent=0 // pred_fallthru
    _
  // Predicated region
  $region6: #{_lambda_.6} parent=0 // pred_check
    _
  $region7: #{_lambda_.6} parent=0 // pred_check_branch
    %11 = sbr.rel (0) target = $region9
  $region8: #{_lambda_.6} parent=0 // pred_region
    _
  $region9: #{_lambda_.6} parent=0 // pred_fallthru
    _
  // Predicated region
  $region10: #{_lambda_.6} parent=0 // pred_check
    _
  $region11: #{_lambda_.6} parent=0 // pred_check_branch
    %13 = sbr.rel (0) target = $region13
  $region12: #{_lambda_.6} parent=0 // pred_region
    _
  $region13: #{_lambda_.6} parent=0 // pred_fallthru
    _
  %v15 = vld [vmem:[%s0] sm:$0xf]
  %v16 = vld [vmem:[%s0 + $0x4] sm:$0xf]
  %v17 = vld [vmem:[%s0 + $0x8] sm:$0xf]
  %v18 = vld [vmem:[%s0 + $0xc] sm:$0xf]
  %v19 = vld [vmem:[%s0 + $0x10] sm:$0xf]
  %v20 = vld [vmem:[%s0 + $0x14] sm:$0xf]
  %v21 = vld [vmem:[%s0 + $0x18] sm:$0xf]
  %v22 = vld [vmem:[%s0 + $0x1c] sm:$0xf]
  %v23 = vld [vmem:[%s0 + $0x20] sm:$0xf]
  %v24 = vld [vmem:[%s0 + $0x24] sm:$0xf]
  %v25 = vld [vmem:[%s0 + $0x28] sm:$0xf]
  %v26 = vld [vmem:[%s0 + $0x2c] sm:$0xf]
  %v27 = vld [vmem:[%s0 + $0x30] sm:$0xf]
  %v28 = vld [vmem:[%s0 + $0x34] sm:$0xf]
  %v29 = vld [vmem:[%s0 + $0x38] sm:$0xf]
  %v30 = vld [vmem:[%s0 + $0x3c] sm:$0xf]
  %v31 = vld [vmem:[%s0 + $0x40] sm:$0xf]
  %v32 = vld [vmem:[%s0 + $0x44] sm:$0xf]
  %v33 = vld [vmem:[%s0 + $0x48] sm:$0xf]
  %v34 = vld [vmem:[%s0 + $0x4c] sm:$0xf]
  %v35 = vld [vmem:[%s0 + $0x50] sm:$0xf]
  %v36 = vld [vmem:[%s0 + $0x54] sm:$0xf]
  %v37 = vld [vmem:[%s0 + $0x58] sm:$0xf]
  %v38 = vld [vmem:[%s0 + $0x5c] sm:$0xf]
  %v39 = vld [vmem:[%s0 + $0x60] sm:$0xf]
  %v40 = vld [vmem:[%s0 + $0x64] sm:$0xf]
  %v41 = vld [vmem:[%s0 + $0x68] sm:$0xf]
  %v42 = vld [vmem:[%s0 + $0x6c] sm:$0xf]
  %v43 = vld [vmem:[%s0 + $0x70] sm:$0xf]
  %v44 = vld [vmem:[%s0 + $0x74] sm:$0xf]
  %v45 = vld [vmem:[%s0 + $0x78] sm:$0xf]
  %v46 = vld [vmem:[%s0 + $0x7c] sm:$0xf]
  %v47 = vld [vmem:[%s0 + $0x80] sm:$0xf]
  %v48 = vld [vmem:[%s0 + $0x84] sm:$0xf]
  %v49 = vld [vmem:[%s0 + $0x88] sm:$0xf]
  %v50 = vld [vmem:[%s0 + $0x8c] sm:$0xf]
  %v51 = vld [vmem:[%s0 + $0x90] sm:$0xf]
  %v52 = vld [vmem:[%s0 + $0x94] sm:$0xf]
  %v53 = vld [vmem:[%s0 + $0x98] sm:$0xf]
  %v54 = vld [vmem:[%s0 + $0x9c] sm:$0xf]
  %v55 = vld [vmem:[%s0 + $0xa0] sm:$0xf]
  %v56 = vld [vmem:[%s0 + $0xa4] sm:$0xf]
  %v57 = vld [vmem:[%s0 + $0xa8] sm:$0xf]
  %v58 = vld [vmem:[%s0 + $0xac] sm:$0xf]
  %v59 = vld [vmem:[%s0 + $0xb0] sm:$0xf]
  %v60 = vld [vmem:[%s0 + $0xb4] sm:$0xf]
  %v61 = vld [vmem:[%s0 + $0xb8] sm:$0xf]
  %v62 = vld [vmem:[%s0 + $0xbc] sm:$0xf]
  %v63 = vld [vmem:[%s0 + $0xc0] sm:$0xf]
  %v64 = vld [vmem:[%s0 + $0xc4] sm:$0xf]
  %v65 = vld [vmem:[%s0 + $0xc8] sm:$0xf]
  %v66 = vld [vmem:[%s0 + $0xcc] sm:$0xf]
  %v67 = vld [vmem:[%s0 + $0xd0] sm:$0xf]
  %v68 = vld [vmem:[%s0 + $0xd4] sm:$0xf]
  %v69 = vld [vmem:[%s0 + $0xd8] sm:$0xf]
  %v70 = vld [vmem:[%s0 + $0xdc] sm:$0xf]
  %v71 = vld [vmem:[%s0 + $0xe0] sm:$0xf]
  %v72 = vld [vmem:[%s0 + $0xe4] sm:$0xf]
  %v73 = vld [vmem:[%s0 + $0xe8] sm:$0xf]
  %v74 = vld [vmem:[%s0 + $0xec] sm:$0xf]
  %v75 = vld [vmem:[%s0 + $0xf0] sm:$0xf]
  %v76 = vld [vmem:[%s0 + $0xf4] sm:$0xf]
  %v77 = vld [vmem:[%s0 + $0xf8] sm:$0xf]
  %v78 = vld [vmem:[%s0 + $0xfc] sm:$0xf]
  %v79 = vld [vmem:[%s1] sm:$0xf]
  %v80 = vld [vmem:[%s1 + $0x4] sm:$0xf]
  %v81 = vld [vmem:[%s1 + $0x8] sm:$0xf]
  %v82 = vld [vmem:[%s1 + $0xc] sm:$0xf]
  %v83 = vld [vmem:[%s1 + $0x10] sm:$0xf]
  %v84 = vld [vmem:[%s1 + $0x14] sm:$0xf]
  %v85 = vld [vmem:[%s1 + $0x18] sm:$0xf]
  %v86 = vld [vmem:[%s1 + $0x1c] sm:$0xf]
  %v87 = vld [vmem:[%s1 + $0x20] sm:$0xf]
  %v88 = vld [vmem:[%s2] sm:$0x1]
  %v90 = vperm.slane %v88, 0
  %v156 = vunpack.c.l.b16 %v15
  %v157 = vunpack.c.l.b16 %v16
  %v158 = vunpack.c.l.b16 %v17
  %v159 = vunpack.c.l.b16 %v18
  %v160 = vunpack.c.l.b16 %v19
  %v161 = vunpack.c.l.b16 %v20
  %v162 = vunpack.c.l.b16 %v21
  %v163 = vunpack.c.l.b16 %v22
  %v164 = vunpack.c.l.b16 %v23
  %v165 = vunpack.c.l.b16 %v24
  %v166 = vunpack.c.l.b16 %v25
  %v167 = vunpack.c.l.b16 %v26
  %v168 = vunpack.c.l.b16 %v27
  %v169 = vunpack.c.l.b16 %v28
  %v170 = vunpack.c.l.b16 %v29
  %v171 = vunpack.c.l.b16 %v30
  %v172 = vunpack.c.l.b16 %v31
  %v173 = vunpack.c.l.b16 %v32
  %v174 = vunpack.c.l.b16 %v33
  %v175 = vunpack.c.l.b16 %v34
  %v176 = vunpack.c.l.b16 %v35
  %v177 = vunpack.c.l.b16 %v36
  %v178 = vunpack.c.l.b16 %v37
  %v179 = vunpack.c.l.b16 %v38
  %v180 = vunpack.c.l.b16 %v39
  %v181 = vunpack.c.l.b16 %v40
  %v182 = vunpack.c.l.b16 %v41
  %v183 = vunpack.c.l.b16 %v42
  %v184 = vunpack.c.l.b16 %v43
  %v185 = vunpack.c.l.b16 %v44
  %v186 = vunpack.c.l.b16 %v45
  %v187 = vunpack.c.l.b16 %v46
  %v188 = vunpack.c.l.b16 %v47
  %v189 = vunpack.c.l.b16 %v48
  %v190 = vunpack.c.l.b16 %v49
  %v191 = vunpack.c.l.b16 %v50
  %v192 = vunpack.c.l.b16 %v51
  %v193 = vunpack.c.l.b16 %v52
  %v194 = vunpack.c.l.b16 %v53
  %v195 = vunpack.c.l.b16 %v54
  %v196 = vunpack.c.l.b16 %v55
  %v197 = vunpack.c.l.b16 %v56
  %v198 = vunpack.c.l.b16 %v57
  %v199 = vunpack.c.l.b16 %v58
  %v200 = vunpack.c.l.b16 %v59
  %v201 = vunpack.c.l.b16 %v60
  %v202 = vunpack.c.l.b16 %v61
  %v203 = vunpack.c.l.b16 %v62
  %v204 = vunpack.c.l.b16 %v63
  %v205 = vunpack.c.l.b16 %v64
  %v206 = vunpack.c.l.b16 %v65
  %v207 = vunpack.c.l.b16 %v66
  %v208 = vunpack.c.l.b16 %v67
  %v209 = vunpack.c.l.b16 %v68
  %v210 = vunpack.c.l.b16 %v69
  %v211 = vunpack.c.l.b16 %v70
  %v212 = vunpack.c.l.b16 %v71
  %v213 = vunpack.c.l.b16 %v72
  %v214 = vunpack.c.l.b16 %v73
  %v215 = vunpack.c.l.b16 %v74
  %v216 = vunpack.c.l.b16 %v75
  %v217 = vunpack.c.l.b16 %v76
  %v218 = vunpack.c.l.b16 %v77
  %v219 = vunpack.c.l.b16 %v78
  %v220 = vpack.c.b16 %v157, %v156
  %v221 = vpack.c.b16 %v159, %v158
  %v222 = vpack.c.b16 %v161, %v160
  %v223 = vpack.c.b16 %v163, %v162
  %v224 = vpack.c.b16 %v165, %v164
  %v225 = vpack.c.b16 %v167, %v166
  %v226 = vpack.c.b16 %v169, %v168
  %v227 = vpack.c.b16 %v171, %v170
  %v228 = vpack.c.b16 %v173, %v172
  %v229 = vpack.c.b16 %v175, %v174
  %v230 = vpack.c.b16 %v177, %v176
  %v231 = vpack.c.b16 %v179, %v178
  %v232 = vpack.c.b16 %v181, %v180
  %v233 = vpack.c.b16 %v183, %v182
  %v234 = vpack.c.b16 %v185, %v184
  %v235 = vpack.c.b16 %v187, %v186
  %v236 = vpack.c.b16 %v189, %v188
  %v237 = vpack.c.b16 %v191, %v190
  %v238 = vpack.c.b16 %v193, %v192
  %v239 = vpack.c.b16 %v195, %v194
  %v240 = vpack.c.b16 %v197, %v196
  %v241 = vpack.c.b16 %v199, %v198
  %v242 = vpack.c.b16 %v201, %v200
  %v243 = vpack.c.b16 %v203, %v202
  %v244 = vpack.c.b16 %v205, %v204
  %v245 = vpack.c.b16 %v207, %v206
  %v246 = vpack.c.b16 %v209, %v208
  %v247 = vpack.c.b16 %v211, %v210
  %v248 = vpack.c.b16 %v213, %v212
  %v249 = vpack.c.b16 %v215, %v214
  %v250 = vpack.c.b16 %v217, %v216
  %v251 = vpack.c.b16 %v219, %v218
  %v261 = vunpack.c.l.b16 %v79
  %v262 = vunpack.c.l.b16 %v80
  %v263 = vunpack.c.l.b16 %v81
  %v264 = vunpack.c.l.b16 %v82
  %v265 = vunpack.c.l.b16 %v83
  %v266 = vunpack.c.l.b16 %v84
  %v267 = vunpack.c.l.b16 %v85
  %v268 = vunpack.c.l.b16 %v86
  %v269 = vunpack.c.l.b16 %v87
  %v270 = vpack.c.b16 %v262, %v261
  %v271 = vpack.c.b16 %v264, %v263
  %v272 = vpack.c.b16 %v266, %v265
  %v273 = vpack.c.b16 %v268, %v267
  %v274 = vpack.c.b16 %v269, %v269
  %vm279 = vcmask 588800
  %v281 = vsel %vm279, %v220, 0
  %v284 = vsel %vm279, %v221, 0
  %v287 = vsel %vm279, %v222, 0
  %v290 = vsel %vm279, %v223, 0
  %v293 = vsel %vm279, %v224, 0
  %v296 = vsel %vm279, %v225, 0
  %v299 = vsel %vm279, %v226, 0
  %v302 = vsel %vm279, %v227, 0
  %v305 = vsel %vm279, %v228, 0
  %v308 = vsel %vm279, %v229, 0
  %v311 = vsel %vm279, %v230, 0
  %v314 = vsel %vm279, %v231, 0
  %v317 = vsel %vm279, %v232, 0
  %v320 = vsel %vm279, %v233, 0
  %v323 = vsel %vm279, %v234, 0
  %v326 = vsel %vm279, %v235, 0
  %v329 = vsel %vm279, %v236, 0
  %v332 = vsel %vm279, %v237, 0
  %v335 = vsel %vm279, %v238, 0
  %v338 = vsel %vm279, %v239, 0
  %v341 = vsel %vm279, %v240, 0
  %v344 = vsel %vm279, %v241, 0
  %v347 = vsel %vm279, %v242, 0
  %v350 = vsel %vm279, %v243, 0
  %v353 = vsel %vm279, %v244, 0
  %v356 = vsel %vm279, %v245, 0
  %v359 = vsel %vm279, %v246, 0
  %v362 = vsel %vm279, %v247, 0
  %v365 = vsel %vm279, %v248, 0
  %v368 = vsel %vm279, %v249, 0
  %v371 = vsel %vm279, %v250, 0
  %v374 = vsel %vm279, %v251, 0
  %vm376 = vcmask 1043456
  %v378 = vsel %vm376, %v274, 0
  %380 = vmatpush.bf16.msra.mxu0 0
  %381 = vmatpush.bf16.msra.mxu0 0
  %382 = vmatpush.bf16.msra.mxu0 0
  %383 = vmatpush.bf16.msra.mxu0 %v378
  %384 = vmatpush.bf16.msra.mxu0 %v273
  %385 = vmatpush.bf16.msra.mxu0 %v272
  %386 = vmatpush.bf16.msra.mxu0 %v271
  %387 = vmatpush.bf16.msra.mxu0 %v270
  %388 = vmatmul.bf16.gmra.mxu0 %v281
  %v389 = vpop.f32.mrf.mxu0
  %v390 = vadd.f32 %v90, %v389
  %v391 = vpop.f32.mrf.mxu0
  %v392 = vadd.f32 %v90, %v391
  %393 = vmatmul.bf16.gmra.mxu0 %v284
  %v394 = vpop.f32.mrf.mxu0
  %v395 = vadd.f32 %v90, %v394
  %v396 = vpop.f32.mrf.mxu0
  %v397 = vadd.f32 %v90, %v396
  %398 = vmatmul.bf16.gmra.mxu0 %v287
  %v399 = vpop.f32.mrf.mxu0
  %v400 = vadd.f32 %v90, %v399
  %v401 = vpop.f32.mrf.mxu0
  %v402 = vadd.f32 %v90, %v401
  %403 = vmatmul.bf16.gmra.mxu0 %v290
  %v404 = vpop.f32.mrf.mxu0
  %v405 = vadd.f32 %v90, %v404
  %v406 = vpop.f32.mrf.mxu0
  %v407 = vadd.f32 %v90, %v406
  %408 = vmatmul.bf16.gmra.mxu0 %v293
  %v409 = vpop.f32.mrf.mxu0
  %v410 = vadd.f32 %v90, %v409
  %v411 = vpop.f32.mrf.mxu0
  %v412 = vadd.f32 %v90, %v411
  %413 = vmatmul.bf16.gmra.mxu0 %v296
  %v414 = vpop.f32.mrf.mxu0
  %v415 = vadd.f32 %v90, %v414
  %v416 = vpop.f32.mrf.mxu0
  %v417 = vadd.f32 %v90, %v416
  %418 = vmatmul.bf16.gmra.mxu0 %v299
  %v419 = vpop.f32.mrf.mxu0
  %v420 = vadd.f32 %v90, %v419
  %v421 = vpop.f32.mrf.mxu0
  %v422 = vadd.f32 %v90, %v421
  %423 = vmatmul.bf16.gmra.mxu0 %v302
  %v424 = vpop.f32.mrf.mxu0
  %v425 = vadd.f32 %v90, %v424
  %v426 = vpop.f32.mrf.mxu0
  %v427 = vadd.f32 %v90, %v426
  %428 = vmatmul.bf16.gmra.mxu0 %v305
  %v429 = vpop.f32.mrf.mxu0
  %v430 = vadd.f32 %v90, %v429
  %v431 = vpop.f32.mrf.mxu0
  %v432 = vadd.f32 %v90, %v431
  %433 = vmatmul.bf16.gmra.mxu0 %v308
  %v434 = vpop.f32.mrf.mxu0
  %v435 = vadd.f32 %v90, %v434
  %v436 = vpop.f32.mrf.mxu0
  %v437 = vadd.f32 %v90, %v436
  %438 = vmatmul.bf16.gmra.mxu0 %v311
  %v439 = vpop.f32.mrf.mxu0
  %v440 = vadd.f32 %v90, %v439
  %v441 = vpop.f32.mrf.mxu0
  %v442 = vadd.f32 %v90, %v441
  %443 = vmatmul.bf16.gmra.mxu0 %v314
  %v444 = vpop.f32.mrf.mxu0
  %v445 = vadd.f32 %v90, %v444
  %v446 = vpop.f32.mrf.mxu0
  %v447 = vadd.f32 %v90, %v446
  %448 = vmatmul.bf16.gmra.mxu0 %v317
  %v449 = vpop.f32.mrf.mxu0
  %v450 = vadd.f32 %v90, %v449
  %v451 = vpop.f32.mrf.mxu0
  %v452 = vadd.f32 %v90, %v451
  %453 = vmatmul.bf16.gmra.mxu0 %v320
  %v454 = vpop.f32.mrf.mxu0
  %v455 = vadd.f32 %v90, %v454
  %v456 = vpop.f32.mrf.mxu0
  %v457 = vadd.f32 %v90, %v456
  %458 = vmatmul.bf16.gmra.mxu0 %v323
  %v459 = vpop.f32.mrf.mxu0
  %v460 = vadd.f32 %v90, %v459
  %v461 = vpop.f32.mrf.mxu0
  %v462 = vadd.f32 %v90, %v461
  %463 = vmatmul.bf16.gmra.mxu0 %v326
  %v464 = vpop.f32.mrf.mxu0
  %v465 = vadd.f32 %v90, %v464
  %v466 = vpop.f32.mrf.mxu0
  %v467 = vadd.f32 %v90, %v466
  %468 = vmatmul.bf16.gmra.mxu0 %v329
  %v469 = vpop.f32.mrf.mxu0
  %v470 = vadd.f32 %v90, %v469
  %v471 = vpop.f32.mrf.mxu0
  %v472 = vadd.f32 %v90, %v471
  %473 = vmatmul.bf16.gmra.mxu0 %v332
  %v474 = vpop.f32.mrf.mxu0
  %v475 = vadd.f32 %v90, %v474
  %v476 = vpop.f32.mrf.mxu0
  %v477 = vadd.f32 %v90, %v476
  %478 = vmatmul.bf16.gmra.mxu0 %v335
  %v479 = vpop.f32.mrf.mxu0
  %v480 = vadd.f32 %v90, %v479
  %v481 = vpop.f32.mrf.mxu0
  %v482 = vadd.f32 %v90, %v481
  %483 = vmatmul.bf16.gmra.mxu0 %v338
  %v484 = vpop.f32.mrf.mxu0
  %v485 = vadd.f32 %v90, %v484
  %v486 = vpop.f32.mrf.mxu0
  %v487 = vadd.f32 %v90, %v486
  %488 = vmatmul.bf16.gmra.mxu0 %v341
  %v489 = vpop.f32.mrf.mxu0
  %v490 = vadd.f32 %v90, %v489
  %v491 = vpop.f32.mrf.mxu0
  %v492 = vadd.f32 %v90, %v491
  %493 = vmatmul.bf16.gmra.mxu0 %v344
  %v494 = vpop.f32.mrf.mxu0
  %v495 = vadd.f32 %v90, %v494
  %v496 = vpop.f32.mrf.mxu0
  %v497 = vadd.f32 %v90, %v496
  %498 = vmatmul.bf16.gmra.mxu0 %v347
  %v499 = vpop.f32.mrf.mxu0
  %v500 = vadd.f32 %v90, %v499
  %v501 = vpop.f32.mrf.mxu0
  %v502 = vadd.f32 %v90, %v501
  %503 = vmatmul.bf16.gmra.mxu0 %v350
  %v504 = vpop.f32.mrf.mxu0
  %v505 = vadd.f32 %v90, %v504
  %v506 = vpop.f32.mrf.mxu0
  %v507 = vadd.f32 %v90, %v506
  %508 = vmatmul.bf16.gmra.mxu0 %v353
  %v509 = vpop.f32.mrf.mxu0
  %v510 = vadd.f32 %v90, %v509
  %v511 = vpop.f32.mrf.mxu0
  %v512 = vadd.f32 %v90, %v511
  %513 = vmatmul.bf16.gmra.mxu0 %v356
  %v514 = vpop.f32.mrf.mxu0
  %v515 = vadd.f32 %v90, %v514
  %v516 = vpop.f32.mrf.mxu0
  %v517 = vadd.f32 %v90, %v516
  %518 = vmatmul.bf16.gmra.mxu0 %v359
  %v519 = vpop.f32.mrf.mxu0
  %v520 = vadd.f32 %v90, %v519
  %v521 = vpop.f32.mrf.mxu0
  %v522 = vadd.f32 %v90, %v521
  %523 = vmatmul.bf16.gmra.mxu0 %v362
  %v524 = vpop.f32.mrf.mxu0
  %v525 = vadd.f32 %v90, %v524
  %v526 = vpop.f32.mrf.mxu0
  %v527 = vadd.f32 %v90, %v526
  %528 = vmatmul.bf16.gmra.mxu0 %v365
  %v529 = vpop.f32.mrf.mxu0
  %v530 = vadd.f32 %v90, %v529
  %v531 = vpop.f32.mrf.mxu0
  %v532 = vadd.f32 %v90, %v531
  %533 = vmatmul.bf16.gmra.mxu0 %v368
  %v534 = vpop.f32.mrf.mxu0
  %v535 = vadd.f32 %v90, %v534
  %v536 = vpop.f32.mrf.mxu0
  %v537 = vadd.f32 %v90, %v536
  %538 = vmatmul.bf16.gmra.mxu0 %v371
  %v539 = vpop.f32.mrf.mxu0
  %v540 = vadd.f32 %v90, %v539
  %v541 = vpop.f32.mrf.mxu0
  %v542 = vadd.f32 %v90, %v541
  %543 = vmatmul.bf16.gmra.mxu0 %v374
  %v544 = vpop.f32.mrf.mxu0
  %v545 = vadd.f32 %v90, %v544
  %v546 = vpop.f32.mrf.mxu0
  %v547 = vadd.f32 %v90, %v546
  %548 = vdwg.mxu0
  %v549 = vmax.f32 %v390, 0.0
  %v550 = vmax.f32 %v392, 0.0
  %v551 = vmax.f32 %v395, 0.0
  %v552 = vmax.f32 %v397, 0.0
  %v553 = vmax.f32 %v400, 0.0
  %v554 = vmax.f32 %v402, 0.0
  %v555 = vmax.f32 %v405, 0.0
  %v556 = vmax.f32 %v407, 0.0
  %v557 = vmax.f32 %v410, 0.0
  %v558 = vmax.f32 %v412, 0.0
  %v559 = vmax.f32 %v415, 0.0
  %v560 = vmax.f32 %v417, 0.0
  %v561 = vmax.f32 %v420, 0.0
  %v562 = vmax.f32 %v422, 0.0
  %v563 = vmax.f32 %v425, 0.0
  %v564 = vmax.f32 %v427, 0.0
  %v565 = vmax.f32 %v430, 0.0
  %v566 = vmax.f32 %v432, 0.0
  %v567 = vmax.f32 %v435, 0.0
  %v568 = vmax.f32 %v437, 0.0
  %v569 = vmax.f32 %v440, 0.0
  %v570 = vmax.f32 %v442, 0.0
  %v571 = vmax.f32 %v445, 0.0
  %v572 = vmax.f32 %v447, 0.0
  %v573 = vmax.f32 %v450, 0.0
  %v574 = vmax.f32 %v452, 0.0
  %v575 = vmax.f32 %v455, 0.0
  %v576 = vmax.f32 %v457, 0.0
  %v577 = vmax.f32 %v460, 0.0
  %v578 = vmax.f32 %v462, 0.0
  %v579 = vmax.f32 %v465, 0.0
  %v580 = vmax.f32 %v467, 0.0
  %v581 = vmax.f32 %v470, 0.0
  %v582 = vmax.f32 %v472, 0.0
  %v583 = vmax.f32 %v475, 0.0
  %v584 = vmax.f32 %v477, 0.0
  %v585 = vmax.f32 %v480, 0.0
  %v586 = vmax.f32 %v482, 0.0
  %v587 = vmax.f32 %v485, 0.0
  %v588 = vmax.f32 %v487, 0.0
  %v589 = vmax.f32 %v490, 0.0
  %v590 = vmax.f32 %v492, 0.0
  %v591 = vmax.f32 %v495, 0.0
  %v592 = vmax.f32 %v497, 0.0
  %v593 = vmax.f32 %v500, 0.0
  %v594 = vmax.f32 %v502, 0.0
  %v595 = vmax.f32 %v505, 0.0
  %v596 = vmax.f32 %v507, 0.0
  %v597 = vmax.f32 %v510, 0.0
  %v598 = vmax.f32 %v512, 0.0
  %v599 = vmax.f32 %v515, 0.0
  %v600 = vmax.f32 %v517, 0.0
  %v601 = vmax.f32 %v520, 0.0
  %v602 = vmax.f32 %v522, 0.0
  %v603 = vmax.f32 %v525, 0.0
  %v604 = vmax.f32 %v527, 0.0
  %v605 = vmax.f32 %v530, 0.0
  %v606 = vmax.f32 %v532, 0.0
  %v607 = vmax.f32 %v535, 0.0
  %v608 = vmax.f32 %v537, 0.0
  %v609 = vmax.f32 %v540, 0.0
  %v610 = vmax.f32 %v542, 0.0
  %v611 = vmax.f32 %v545, 0.0
  %v612 = vmax.f32 %v547, 0.0
  %v613 = vpack.c.bf16 %v549, %v549
  %v614 = vpack.c.bf16 %v550, %v550
  %v615 = vpack.c.bf16 %v551, %v551
  %v616 = vpack.c.bf16 %v552, %v552
  %v617 = vpack.c.bf16 %v553, %v553
  %v618 = vpack.c.bf16 %v554, %v554
  %v619 = vpack.c.bf16 %v555, %v555
  %v620 = vpack.c.bf16 %v556, %v556
  %v621 = vpack.c.bf16 %v557, %v557
  %v622 = vpack.c.bf16 %v558, %v558
  %v623 = vpack.c.bf16 %v559, %v559
  %v624 = vpack.c.bf16 %v560, %v560
  %v625 = vpack.c.bf16 %v561, %v561
  %v626 = vpack.c.bf16 %v562, %v562
  %v627 = vpack.c.bf16 %v563, %v563
  %v628 = vpack.c.bf16 %v564, %v564
  %v629 = vpack.c.bf16 %v565, %v565
  %v630 = vpack.c.bf16 %v566, %v566
  %v631 = vpack.c.bf16 %v567, %v567
  %v632 = vpack.c.bf16 %v568, %v568
  %v633 = vpack.c.bf16 %v569, %v569
  %v634 = vpack.c.bf16 %v570, %v570
  %v635 = vpack.c.bf16 %v571, %v571
  %v636 = vpack.c.bf16 %v572, %v572
  %v637 = vpack.c.bf16 %v573, %v573
  %v638 = vpack.c.bf16 %v574, %v574
  %v639 = vpack.c.bf16 %v575, %v575
  %v640 = vpack.c.bf16 %v576, %v576
  %v641 = vpack.c.bf16 %v577, %v577
  %v642 = vpack.c.bf16 %v578, %v578
  %v643 = vpack.c.bf16 %v579, %v579
  %v644 = vpack.c.bf16 %v580, %v580
  %v645 = vpack.c.bf16 %v581, %v581
  %v646 = vpack.c.bf16 %v582, %v582
  %v647 = vpack.c.bf16 %v583, %v583
  %v648 = vpack.c.bf16 %v584, %v584
  %v649 = vpack.c.bf16 %v585, %v585
  %v650 = vpack.c.bf16 %v586, %v586
  %v651 = vpack.c.bf16 %v587, %v587
  %v652 = vpack.c.bf16 %v588, %v588
  %v653 = vpack.c.bf16 %v589, %v589
  %v654 = vpack.c.bf16 %v590, %v590
  %v655 = vpack.c.bf16 %v591, %v591
  %v656 = vpack.c.bf16 %v592, %v592
  %v657 = vpack.c.bf16 %v593, %v593
  %v658 = vpack.c.bf16 %v594, %v594
  %v659 = vpack.c.bf16 %v595, %v595
  %v660 = vpack.c.bf16 %v596, %v596
  %v661 = vpack.c.bf16 %v597, %v597
  %v662 = vpack.c.bf16 %v598, %v598
  %v663 = vpack.c.bf16 %v599, %v599
  %v664 = vpack.c.bf16 %v600, %v600
  %v665 = vpack.c.bf16 %v601, %v601
  %v666 = vpack.c.bf16 %v602, %v602
  %v667 = vpack.c.bf16 %v603, %v603
  %v668 = vpack.c.bf16 %v604, %v604
  %v669 = vpack.c.bf16 %v605, %v605
  %v670 = vpack.c.bf16 %v606, %v606
  %v671 = vpack.c.bf16 %v607, %v607
  %v672 = vpack.c.bf16 %v608, %v608
  %v673 = vpack.c.bf16 %v609, %v609
  %v674 = vpack.c.bf16 %v610, %v610
  %v675 = vpack.c.bf16 %v611, %v611
  %v676 = vpack.c.bf16 %v612, %v612
  %vm677 = vcmask 125952
  %678 = vst.msk [vmem:[%s3] sm:$0xf] %vm677, %v613
  %679 = vst.msk [vmem:[%s3 + $0x4] sm:$0xf] %vm677, %v614
  %680 = vst.msk [vmem:[%s3 + $0x8] sm:$0xf] %vm677, %v615
  %681 = vst.msk [vmem:[%s3 + $0xc] sm:$0xf] %vm677, %v616
  %682 = vst.msk [vmem:[%s3 + $0x10] sm:$0xf] %vm677, %v617
  %683 = vst.msk [vmem:[%s3 + $0x14] sm:$0xf] %vm677, %v618
  %684 = vst.msk [vmem:[%s3 + $0x18] sm:$0xf] %vm677, %v619
  %685 = vst.msk [vmem:[%s3 + $0x1c] sm:$0xf] %vm677, %v620
  %686 = vst.msk [vmem:[%s3 + $0x20] sm:$0xf] %vm677, %v621
  %687 = vst.msk [vmem:[%s3 + $0x24] sm:$0xf] %vm677, %v622
  %688 = vst.msk [vmem:[%s3 + $0x28] sm:$0xf] %vm677, %v623
  %689 = vst.msk [vmem:[%s3 + $0x2c] sm:$0xf] %vm677, %v624
  %690 = vst.msk [vmem:[%s3 + $0x30] sm:$0xf] %vm677, %v625
  %691 = vst.msk [vmem:[%s3 + $0x34] sm:$0xf] %vm677, %v626
  %692 = vst.msk [vmem:[%s3 + $0x38] sm:$0xf] %vm677, %v627
  %693 = vst.msk [vmem:[%s3 + $0x3c] sm:$0xf] %vm677, %v628
  %694 = vst.msk [vmem:[%s3 + $0x40] sm:$0xf] %vm677, %v629
  %695 = vst.msk [vmem:[%s3 + $0x44] sm:$0xf] %vm677, %v630
  %696 = vst.msk [vmem:[%s3 + $0x48] sm:$0xf] %vm677, %v631
  %697 = vst.msk [vmem:[%s3 + $0x4c] sm:$0xf] %vm677, %v632
  %698 = vst.msk [vmem:[%s3 + $0x50] sm:$0xf] %vm677, %v633
  %699 = vst.msk [vmem:[%s3 + $0x54] sm:$0xf] %vm677, %v634
  %700 = vst.msk [vmem:[%s3 + $0x58] sm:$0xf] %vm677, %v635
  %701 = vst.msk [vmem:[%s3 + $0x5c] sm:$0xf] %vm677, %v636
  %702 = vst.msk [vmem:[%s3 + $0x60] sm:$0xf] %vm677, %v637
  %703 = vst.msk [vmem:[%s3 + $0x64] sm:$0xf] %vm677, %v638
  %704 = vst.msk [vmem:[%s3 + $0x68] sm:$0xf] %vm677, %v639
  %705 = vst.msk [vmem:[%s3 + $0x6c] sm:$0xf] %vm677, %v640
  %706 = vst.msk [vmem:[%s3 + $0x70] sm:$0xf] %vm677, %v641
  %707 = vst.msk [vmem:[%s3 + $0x74] sm:$0xf] %vm677, %v642
  %708 = vst.msk [vmem:[%s3 + $0x78] sm:$0xf] %vm677, %v643
  %709 = vst.msk [vmem:[%s3 + $0x7c] sm:$0xf] %vm677, %v644
  %710 = vst.msk [vmem:[%s3 + $0x80] sm:$0xf] %vm677, %v645
  %711 = vst.msk [vmem:[%s3 + $0x84] sm:$0xf] %vm677, %v646
  %712 = vst.msk [vmem:[%s3 + $0x88] sm:$0xf] %vm677, %v647
  %713 = vst.msk [vmem:[%s3 + $0x8c] sm:$0xf] %vm677, %v648
  %714 = vst.msk [vmem:[%s3 + $0x90] sm:$0xf] %vm677, %v649
  %715 = vst.msk [vmem:[%s3 + $0x94] sm:$0xf] %vm677, %v650
  %716 = vst.msk [vmem:[%s3 + $0x98] sm:$0xf] %vm677, %v651
  %717 = vst.msk [vmem:[%s3 + $0x9c] sm:$0xf] %vm677, %v652
  %718 = vst.msk [vmem:[%s3 + $0xa0] sm:$0xf] %vm677, %v653
  %719 = vst.msk [vmem:[%s3 + $0xa4] sm:$0xf] %vm677, %v654
  %720 = vst.msk [vmem:[%s3 + $0xa8] sm:$0xf] %vm677, %v655
  %721 = vst.msk [vmem:[%s3 + $0xac] sm:$0xf] %vm677, %v656
  %722 = vst.msk [vmem:[%s3 + $0xb0] sm:$0xf] %vm677, %v657
  %723 = vst.msk [vmem:[%s3 + $0xb4] sm:$0xf] %vm677, %v658
  %724 = vst.msk [vmem:[%s3 + $0xb8] sm:$0xf] %vm677, %v659
  %725 = vst.msk [vmem:[%s3 + $0xbc] sm:$0xf] %vm677, %v660
  %726 = vst.msk [vmem:[%s3 + $0xc0] sm:$0xf] %vm677, %v661
  %727 = vst.msk [vmem:[%s3 + $0xc4] sm:$0xf] %vm677, %v662
  %728 = vst.msk [vmem:[%s3 + $0xc8] sm:$0xf] %vm677, %v663
  %729 = vst.msk [vmem:[%s3 + $0xcc] sm:$0xf] %vm677, %v664
  %730 = vst.msk [vmem:[%s3 + $0xd0] sm:$0xf] %vm677, %v665
  %731 = vst.msk [vmem:[%s3 + $0xd4] sm:$0xf] %vm677, %v666
  %732 = vst.msk [vmem:[%s3 + $0xd8] sm:$0xf] %vm677, %v667
  %733 = vst.msk [vmem:[%s3 + $0xdc] sm:$0xf] %vm677, %v668
  %734 = vst.msk [vmem:[%s3 + $0xe0] sm:$0xf] %vm677, %v669
  %735 = vst.msk [vmem:[%s3 + $0xe4] sm:$0xf] %vm677, %v670
  %736 = vst.msk [vmem:[%s3 + $0xe8] sm:$0xf] %vm677, %v671
  %737 = vst.msk [vmem:[%s3 + $0xec] sm:$0xf] %vm677, %v672
  %738 = vst.msk [vmem:[%s3 + $0xf0] sm:$0xf] %vm677, %v673
  %739 = vst.msk [vmem:[%s3 + $0xf4] sm:$0xf] %vm677, %v674
  %740 = vst.msk [vmem:[%s3 + $0xf8] sm:$0xf] %vm677, %v675
  %741 = vst.msk [vmem:[%s3 + $0xfc] sm:$0xf] %vm677, %v676
  // Predicated region
  $region14: #{_lambda_.6} parent=0 // pred_check
    _
  $region15: #{_lambda_.6} parent=0 // pred_check_branch
    %743 = sbr.rel (0) target = $region17
  $region16: #{_lambda_.6} parent=0 // pred_region
    _
  $region17: #{_lambda_.6} parent=0 // pred_fallthru
    _
  // Predicated region
  $region18: #{_lambda_.6} parent=0 // pred_check
    _
  $region19: #{_lambda_.6} parent=0 // pred_check_branch
    %745 = sbr.rel (0) target = $region21
  $region20: #{_lambda_.6} parent=0 // pred_region
    _
  $region21: #{_lambda_.6} parent=0 // pred_fallthru
    _

// kernel: _lambda_.7
$region0: #{_lambda_.7}
  #allocation0 [shape = 'u32[]', space=smem, size = 0x4, offset = 0x4, fixed_abs, tag = 'smem constant byte address 0x4 - core index']
  #allocation1 [shape = 'u32[72,128]{1,0:T(1,128)}', space=vmem, size = 0x9000, scoped, tag = 'internal scratch']
  %s0 = inlined_call_operand.vmem [shape: bf16[128,144], index: 0, kind: input, shape index: {}]
  %s1 = inlined_call_operand.vmem [shape: bf16[144,32], index: 1, kind: input, shape index: {}]
  %s2 = inlined_call_operand.vmem [shape: f32[1,32], index: 2, kind: input, shape index: {}]
  %s3 = inlined_call_operand.vmem [shape: bf16[128,32], index: 3, kind: output, shape index: {}]
  %s4 = sld [smem:[#allocation0]]
  $region22: #{_lambda_.7} parent=0
    _
  %s6 = ssub.s32 1, %s4
  %s7 = scalar_select 0, %s6, %s4
  // Predicated region
  $region2: #{_lambda_.7} parent=0 // pred_check
    _
  $region3: #{_lambda_.7} parent=0 // pred_check_branch
    %9 = sbr.rel (0) target = $region5
  $region4: #{_lambda_.7} parent=0 // pred_region
    _
  $region5: #{_lambda_.7} parent=0 // pred_fallthru
    _
  // Predicated region
  $region6: #{_lambda_.7} parent=0 // pred_check
    _
  $region7: #{_lambda_.7} parent=0 // pred_check_branch
    %11 = sbr.rel (0) target = $region9
  $region8: #{_lambda_.7} parent=0 // pred_region
    _
  $region9: #{_lambda_.7} parent=0 // pred_fallthru
    _
  // Predicated region
  $region10: #{_lambda_.7} parent=0 // pred_check
    _
  $region11: #{_lambda_.7} parent=0 // pred_check_branch
    %13 = sbr.rel (0) target = $region13
  $region12: #{_lambda_.7} parent=0 // pred_region
    _
  $region13: #{_lambda_.7} parent=0 // pred_fallthru
    _
  %v15 = vld [vmem:[%s0] sm:$0xff]
  %v16 = vld [vmem:[%s0 + $0x8] sm:$0xff]
  %v17 = vld [vmem:[%s0 + $0x10] sm:$0xff]
  %v18 = vld [vmem:[%s0 + $0x18] sm:$0xff]
  %v19 = vld [vmem:[%s0 + $0x20] sm:$0xff]
  %v20 = vld [vmem:[%s0 + $0x28] sm:$0xff]
  %v21 = vld [vmem:[%s0 + $0x30] sm:$0xff]
  %v22 = vld [vmem:[%s0 + $0x38] sm:$0xff]
  %v23 = vld [vmem:[%s0 + $0x40] sm:$0xff]
  %v24 = vld [vmem:[%s0 + $0x48] sm:$0xff]
  %v25 = vld [vmem:[%s0 + $0x50] sm:$0xff]
  %v26 = vld [vmem:[%s0 + $0x58] sm:$0xff]
  %v27 = vld [vmem:[%s0 + $0x60] sm:$0xff]
  %v28 = vld [vmem:[%s0 + $0x68] sm:$0xff]
  %v29 = vld [vmem:[%s0 + $0x70] sm:$0xff]
  %v30 = vld [vmem:[%s0 + $0x78] sm:$0xff]
  %v31 = vld [vmem:[%s1] sm:$0xf]
  %v32 = vld [vmem:[%s1 + $0x4] sm:$0xf]
  %v33 = vld [vmem:[%s1 + $0x8] sm:$0xf]
  %v34 = vld [vmem:[%s1 + $0xc] sm:$0xf]
  %v35 = vld [vmem:[%s1 + $0x10] sm:$0xf]
  %v36 = vld [vmem:[%s1 + $0x14] sm:$0xf]
  %v37 = vld [vmem:[%s1 + $0x18] sm:$0xf]
  %v38 = vld [vmem:[%s1 + $0x1c] sm:$0xf]
  %v39 = vld [vmem:[%s1 + $0x20] sm:$0xf]
  %v40 = vld [vmem:[%s1 + $0x24] sm:$0xf]
  %v41 = vld [vmem:[%s1 + $0x28] sm:$0xf]
  %v42 = vld [vmem:[%s1 + $0x2c] sm:$0xf]
  %v43 = vld [vmem:[%s1 + $0x30] sm:$0xf]
  %v44 = vld [vmem:[%s1 + $0x34] sm:$0xf]
  %v45 = vld [vmem:[%s1 + $0x38] sm:$0xf]
  %v46 = vld [vmem:[%s1 + $0x3c] sm:$0xf]
  %v47 = vld [vmem:[%s1 + $0x40] sm:$0xf]
  %v48 = vld [vmem:[%s1 + $0x44] sm:$0xf]
  %v49 = vld [vmem:[%s2] sm:$0x1]
  %v51 = vperm.slane %v49, 0
  %v69 = vunpack.c.l.b16 %v15
  %v70 = vunpack.c.h.b16 %v15
  %v71 = vunpack.c.l.b16 %v16
  %v72 = vunpack.c.h.b16 %v16
  %v73 = vunpack.c.l.b16 %v17
  %v74 = vunpack.c.h.b16 %v17
  %v75 = vunpack.c.l.b16 %v18
  %v76 = vunpack.c.h.b16 %v18
  %v77 = vunpack.c.l.b16 %v19
  %v78 = vunpack.c.h.b16 %v19
  %v79 = vunpack.c.l.b16 %v20
  %v80 = vunpack.c.h.b16 %v20
  %v81 = vunpack.c.l.b16 %v21
  %v82 = vunpack.c.h.b16 %v21
  %v83 = vunpack.c.l.b16 %v22
  %v84 = vunpack.c.h.b16 %v22
  %v85 = vunpack.c.l.b16 %v23
  %v86 = vunpack.c.h.b16 %v23
  %v87 = vunpack.c.l.b16 %v24
  %v88 = vunpack.c.h.b16 %v24
  %v89 = vunpack.c.l.b16 %v25
  %v90 = vunpack.c.h.b16 %v25
  %v91 = vunpack.c.l.b16 %v26
  %v92 = vunpack.c.h.b16 %v26
  %v93 = vunpack.c.l.b16 %v27
  %v94 = vunpack.c.h.b16 %v27
  %v95 = vunpack.c.l.b16 %v28
  %v96 = vunpack.c.h.b16 %v28
  %v97 = vunpack.c.l.b16 %v29
  %v98 = vunpack.c.h.b16 %v29
  %v99 = vunpack.c.l.b16 %v30
  %v100 = vunpack.c.h.b16 %v30
  %v101 = vpack.c.b16 %v71, %v69
  %v102 = vpack.c.b16 %v72, %v70
  %v103 = vpack.c.b16 %v75, %v73
  %v104 = vpack.c.b16 %v76, %v74
  %v105 = vpack.c.b16 %v79, %v77
  %v106 = vpack.c.b16 %v80, %v78
  %v107 = vpack.c.b16 %v83, %v81
  %v108 = vpack.c.b16 %v84, %v82
  %v109 = vpack.c.b16 %v87, %v85
  %v110 = vpack.c.b16 %v88, %v86
  %v111 = vpack.c.b16 %v91, %v89
  %v112 = vpack.c.b16 %v92, %v90
  %v113 = vpack.c.b16 %v95, %v93
  %v114 = vpack.c.b16 %v96, %v94
  %v115 = vpack.c.b16 %v99, %v97
  %v116 = vpack.c.b16 %v100, %v98
  %v143 = vunpack.c.l.b16 %v31
  %v144 = vunpack.c.l.b16 %v32
  %v145 = vunpack.c.l.b16 %v33
  %v146 = vunpack.c.l.b16 %v34
  %v147 = vunpack.c.l.b16 %v35
  %v148 = vunpack.c.l.b16 %v36
  %v149 = vunpack.c.l.b16 %v37
  %v150 = vunpack.c.l.b16 %v38
  %v151 = vunpack.c.l.b16 %v39
  %v152 = vunpack.c.l.b16 %v40
  %v153 = vunpack.c.l.b16 %v41
  %v154 = vunpack.c.l.b16 %v42
  %v155 = vunpack.c.l.b16 %v43
  %v156 = vunpack.c.l.b16 %v44
  %v157 = vunpack.c.l.b16 %v45
  %v158 = vunpack.c.l.b16 %v46
  %v159 = vunpack.c.l.b16 %v47
  %v160 = vunpack.c.l.b16 %v48
  %v161 = vpack.c.b16 %v144, %v143
  %v162 = vpack.c.b16 %v146, %v145
  %v163 = vpack.c.b16 %v148, %v147
  %v164 = vpack.c.b16 %v150, %v149
  %v165 = vpack.c.b16 %v152, %v151
  %v166 = vpack.c.b16 %v154, %v153
  %v167 = vpack.c.b16 %v156, %v155
  %v168 = vpack.c.b16 %v158, %v157
  %v169 = vpack.c.b16 %v160, %v159
  %vm179 = vcmask 130048
  %v181 = vsel %vm179, %v102, 0
  %v184 = vsel %vm179, %v104, 0
  %v187 = vsel %vm179, %v106, 0
  %v190 = vsel %vm179, %v108, 0
  %v193 = vsel %vm179, %v110, 0
  %v196 = vsel %vm179, %v112, 0
  %v199 = vsel %vm179, %v114, 0
  %v202 = vsel %vm179, %v116, 0
  %204 = vmatpush.bf16.msra.mxu0 %v168
  %205 = vmatpush.bf16.msra.mxu0 %v167
  %206 = vmatpush.bf16.msra.mxu0 %v166
  %207 = vmatpush.bf16.msra.mxu0 %v165
  %208 = vmatpush.bf16.msra.mxu0 %v164
  %209 = vmatpush.bf16.msra.mxu0 %v163
  %210 = vmatpush.bf16.msra.mxu0 %v162
  %211 = vmatpush.bf16.msra.mxu0 %v161
  %212 = vmatmul.bf16.gmra.mxu0 %v101
  %v213 = vpop.f32.mrf.mxu0
  %v214 = vadd.f32 %v51, %v213
  %v215 = vpop.f32.mrf.mxu0
  %v216 = vadd.f32 %v51, %v215
  %217 = vmatmul.bf16.gmra.mxu0 %v103
  %v218 = vpop.f32.mrf.mxu0
  %v219 = vadd.f32 %v51, %v218
  %v220 = vpop.f32.mrf.mxu0
  %v221 = vadd.f32 %v51, %v220
  %222 = vmatmul.bf16.gmra.mxu0 %v105
  %v223 = vpop.f32.mrf.mxu0
  %v224 = vadd.f32 %v51, %v223
  %v225 = vpop.f32.mrf.mxu0
  %v226 = vadd.f32 %v51, %v225
  %227 = vmatmul.bf16.gmra.mxu0 %v107
  %v228 = vpop.f32.mrf.mxu0
  %v229 = vadd.f32 %v51, %v228
  %v230 = vpop.f32.mrf.mxu0
  %v231 = vadd.f32 %v51, %v230
  %232 = vmatmul.bf16.gmra.mxu0 %v109
  %v233 = vpop.f32.mrf.mxu0
  %v234 = vadd.f32 %v51, %v233
  %v235 = vpop.f32.mrf.mxu0
  %v236 = vadd.f32 %v51, %v235
  %237 = vmatmul.bf16.gmra.mxu0 %v111
  %v238 = vpop.f32.mrf.mxu0
  %v239 = vadd.f32 %v51, %v238
  %v240 = vpop.f32.mrf.mxu0
  %v241 = vadd.f32 %v51, %v240
  %242 = vmatmul.bf16.gmra.mxu0 %v113
  %v243 = vpop.f32.mrf.mxu0
  %v244 = vadd.f32 %v51, %v243
  %v245 = vpop.f32.mrf.mxu0
  %v246 = vadd.f32 %v51, %v245
  %247 = vmatmul.bf16.gmra.mxu0 %v115
  %v248 = vpop.f32.mrf.mxu0
  %v249 = vadd.f32 %v51, %v248
  %v250 = vpop.f32.mrf.mxu0
  %v251 = vadd.f32 %v51, %v250
  %252 = vdwg.mxu0
  %253 = vmatpush.bf16.msra.mxu0 0
  %254 = vmatpush.bf16.msra.mxu0 0
  %255 = vmatpush.bf16.msra.mxu0 0
  %256 = vmatpush.bf16.msra.mxu0 0
  %257 = vmatpush.bf16.msra.mxu0 0
  %258 = vmatpush.bf16.msra.mxu0 0
  %259 = vmatpush.bf16.msra.mxu0 0
  %260 = vmatpush.bf16.msra.mxu0 %v169
  %261 = vmatmul.bf16.gmra.mxu0 %v181
  %v262 = vpop.f32.mrf.mxu0
  %v263 = vadd.f32 %v214, %v262
  %v264 = vpop.f32.mrf.mxu0
  %v265 = vadd.f32 %v216, %v264
  %266 = vmatmul.bf16.gmra.mxu0 %v184
  %v267 = vpop.f32.mrf.mxu0
  %v268 = vadd.f32 %v219, %v267
  %v269 = vpop.f32.mrf.mxu0
  %v270 = vadd.f32 %v221, %v269
  %271 = vmatmul.bf16.gmra.mxu0 %v187
  %v272 = vpop.f32.mrf.mxu0
  %v273 = vadd.f32 %v224, %v272
  %v274 = vpop.f32.mrf.mxu0
  %v275 = vadd.f32 %v226, %v274
  %276 = vmatmul.bf16.gmra.mxu0 %v190
  %v277 = vpop.f32.mrf.mxu0
  %v278 = vadd.f32 %v229, %v277
  %v279 = vpop.f32.mrf.mxu0
  %v280 = vadd.f32 %v231, %v279
  %281 = vmatmul.bf16.gmra.mxu0 %v193
  %v282 = vpop.f32.mrf.mxu0
  %v283 = vadd.f32 %v234, %v282
  %v284 = vpop.f32.mrf.mxu0
  %v285 = vadd.f32 %v236, %v284
  %286 = vmatmul.bf16.gmra.mxu0 %v196
  %v287 = vpop.f32.mrf.mxu0
  %v288 = vadd.f32 %v239, %v287
  %v289 = vpop.f32.mrf.mxu0
  %v290 = vadd.f32 %v241, %v289
  %291 = vmatmul.bf16.gmra.mxu0 %v199
  %v292 = vpop.f32.mrf.mxu0
  %v293 = vadd.f32 %v244, %v292
  %v294 = vpop.f32.mrf.mxu0
  %v295 = vadd.f32 %v246, %v294
  %296 = vmatmul.bf16.gmra.mxu0 %v202
  %v297 = vpop.f32.mrf.mxu0
  %v298 = vadd.f32 %v249, %v297
  %v299 = vpop.f32.mrf.mxu0
  %v300 = vadd.f32 %v251, %v299
  %301 = vdwg.mxu0
  %v302 = vmax.f32 %v263, 0.0
  %v303 = vmax.f32 %v265, 0.0
  %v304 = vmax.f32 %v268, 0.0
  %v305 = vmax.f32 %v270, 0.0
  %v306 = vmax.f32 %v273, 0.0
  %v307 = vmax.f32 %v275, 0.0
  %v308 = vmax.f32 %v278, 0.0
  %v309 = vmax.f32 %v280, 0.0
  %v310 = vmax.f32 %v283, 0.0
  %v311 = vmax.f32 %v285, 0.0
  %v312 = vmax.f32 %v288, 0.0
  %v313 = vmax.f32 %v290, 0.0
  %v314 = vmax.f32 %v293, 0.0
  %v315 = vmax.f32 %v295, 0.0
  %v316 = vmax.f32 %v298, 0.0
  %v317 = vmax.f32 %v300, 0.0
  %v318 = vpack.c.bf16 %v302, %v302
  %v319 = vpack.c.bf16 %v303, %v303
  %v320 = vpack.c.bf16 %v304, %v304
  %v321 = vpack.c.bf16 %v305, %v305
  %v322 = vpack.c.bf16 %v306, %v306
  %v323 = vpack.c.bf16 %v307, %v307
  %v324 = vpack.c.bf16 %v308, %v308
  %v325 = vpack.c.bf16 %v309, %v309
  %v326 = vpack.c.bf16 %v310, %v310
  %v327 = vpack.c.bf16 %v311, %v311
  %v328 = vpack.c.bf16 %v312, %v312
  %v329 = vpack.c.bf16 %v313, %v313
  %v330 = vpack.c.bf16 %v314, %v314
  %v331 = vpack.c.bf16 %v315, %v315
  %v332 = vpack.c.bf16 %v316, %v316
  %v333 = vpack.c.bf16 %v317, %v317
  %vm334 = vcmask 257024
  %335 = vst.msk [vmem:[%s3] sm:$0xf] %vm334, %v318
  %336 = vst.msk [vmem:[%s3 + $0x4] sm:$0xf] %vm334, %v319
  %337 = vst.msk [vmem:[%s3 + $0x8] sm:$0xf] %vm334, %v320
  %338 = vst.msk [vmem:[%s3 + $0xc] sm:$0xf] %vm334, %v321
  %339 = vst.msk [vmem:[%s3 + $0x10] sm:$0xf] %vm334, %v322
  %340 = vst.msk [vmem:[%s3 + $0x14] sm:$0xf] %vm334, %v323
  %341 = vst.msk [vmem:[%s3 + $0x18] sm:$0xf] %vm334, %v324
  %342 = vst.msk [vmem:[%s3 + $0x1c] sm:$0xf] %vm334, %v325
  %343 = vst.msk [vmem:[%s3 + $0x20] sm:$0xf] %vm334, %v326
  %344 = vst.msk [vmem:[%s3 + $0x24] sm:$0xf] %vm334, %v327
  %345 = vst.msk [vmem:[%s3 + $0x28] sm:$0xf] %vm334, %v328
  %346 = vst.msk [vmem:[%s3 + $0x2c] sm:$0xf] %vm334, %v329
  %347 = vst.msk [vmem:[%s3 + $0x30] sm:$0xf] %vm334, %v330
  %348 = vst.msk [vmem:[%s3 + $0x34] sm:$0xf] %vm334, %v331
  %349 = vst.msk [vmem:[%s3 + $0x38] sm:$0xf] %vm334, %v332
  %350 = vst.msk [vmem:[%s3 + $0x3c] sm:$0xf] %vm334, %v333
  // Predicated region
  $region14: #{_lambda_.7} parent=0 // pred_check
    _
  $region15: #{_lambda_.7} parent=0 // pred_check_branch
    %352 = sbr.rel (0) target = $region17
  $region16: #{_lambda_.7} parent=0 // pred_region
    _
  $region17: #{_lambda_.7} parent=0 // pred_fallthru
    _
  // Predicated region
  $region18: #{_lambda_.7} parent=0 // pred_check
    _
  $region19: #{_lambda_.7} parent=0 // pred_check_branch
    %354 = sbr.rel (0) target = $region21
  $region20: #{_lambda_.7} parent=0 // pred_region
    _
  $region21: #{_lambda_.7} parent=0 // pred_fallthru
    _

// kernel: _lambda_.8
$region0: #{_lambda_.8}
  #allocation0 [shape = 'u32[]', space=smem, size = 0x4, offset = 0x4, fixed_abs, tag = 'smem constant byte address 0x4 - core index']
  #allocation1 [shape = 'u32[72,128]{1,0:T(1,128)}', space=vmem, size = 0x9000, scoped, tag = 'internal scratch']
  %s0 = inlined_call_operand.vmem [shape: bf16[32,288], index: 0, kind: input, shape index: {}]
  %s1 = inlined_call_operand.vmem [shape: bf16[288,64], index: 1, kind: input, shape index: {}]
  %s2 = inlined_call_operand.vmem [shape: f32[1,64], index: 2, kind: input, shape index: {}]
  %s3 = inlined_call_operand.vmem [shape: bf16[32,64], index: 3, kind: output, shape index: {}]
  %s4 = sld [smem:[#allocation0]]
  $region22: #{_lambda_.8} parent=0
    _
  %s6 = ssub.s32 1, %s4
  %s7 = scalar_select 0, %s6, %s4
  // Predicated region
  $region2: #{_lambda_.8} parent=0 // pred_check
    _
  $region3: #{_lambda_.8} parent=0 // pred_check_branch
    %9 = sbr.rel (0) target = $region5
  $region4: #{_lambda_.8} parent=0 // pred_region
    _
  $region5: #{_lambda_.8} parent=0 // pred_fallthru
    _
  // Predicated region
  $region6: #{_lambda_.8} parent=0 // pred_check
    _
  $region7: #{_lambda_.8} parent=0 // pred_check_branch
    %11 = sbr.rel (0) target = $region9
  $region8: #{_lambda_.8} parent=0 // pred_region
    _
  $region9: #{_lambda_.8} parent=0 // pred_fallthru
    _
  // Predicated region
  $region10: #{_lambda_.8} parent=0 // pred_check
    _
  $region11: #{_lambda_.8} parent=0 // pred_check_branch
    %13 = sbr.rel (0) target = $region13
  $region12: #{_lambda_.8} parent=0 // pred_region
    _
  $region13: #{_lambda_.8} parent=0 // pred_fallthru
    _
  %v15 = vld [vmem:[%s0] sm:$0xff]
  %v16 = vld [vmem:[%s0 + $0x8] sm:$0xf]
  %v17 = vld [vmem:[%s0 + $0xc] sm:$0xff]
  %v18 = vld [vmem:[%s0 + $0x14] sm:$0xf]
  %v19 = vld [vmem:[%s0 + $0x18] sm:$0xff]
  %v20 = vld [vmem:[%s0 + $0x20] sm:$0xf]
  %v21 = vld [vmem:[%s0 + $0x24] sm:$0xff]
  %v22 = vld [vmem:[%s0 + $0x2c] sm:$0xf]
  %v23 = vld [vmem:[%s1] sm:$0xf]
  %v24 = vld [vmem:[%s1 + $0x4] sm:$0xf]
  %v25 = vld [vmem:[%s1 + $0x8] sm:$0xf]
  %v26 = vld [vmem:[%s1 + $0xc] sm:$0xf]
  %v27 = vld [vmem:[%s1 + $0x10] sm:$0xf]
  %v28 = vld [vmem:[%s1 + $0x14] sm:$0xf]
  %v29 = vld [vmem:[%s1 + $0x18] sm:$0xf]
  %v30 = vld [vmem:[%s1 + $0x1c] sm:$0xf]
  %v31 = vld [vmem:[%s1 + $0x20] sm:$0xf]
  %v32 = vld [vmem:[%s1 + $0x24] sm:$0xf]
  %v33 = vld [vmem:[%s1 + $0x28] sm:$0xf]
  %v34 = vld [vmem:[%s1 + $0x2c] sm:$0xf]
  %v35 = vld [vmem:[%s1 + $0x30] sm:$0xf]
  %v36 = vld [vmem:[%s1 + $0x34] sm:$0xf]
  %v37 = vld [vmem:[%s1 + $0x38] sm:$0xf]
  %v38 = vld [vmem:[%s1 + $0x3c] sm:$0xf]
  %v39 = vld [vmem:[%s1 + $0x40] sm:$0xf]
  %v40 = vld [vmem:[%s1 + $0x44] sm:$0xf]
  %v41 = vld [vmem:[%s1 + $0x48] sm:$0xf]
  %v42 = vld [vmem:[%s1 + $0x4c] sm:$0xf]
  %v43 = vld [vmem:[%s1 + $0x50] sm:$0xf]
  %v44 = vld [vmem:[%s1 + $0x54] sm:$0xf]
  %v45 = vld [vmem:[%s1 + $0x58] sm:$0xf]
  %v46 = vld [vmem:[%s1 + $0x5c] sm:$0xf]
  %v47 = vld [vmem:[%s1 + $0x60] sm:$0xf]
  %v48 = vld [vmem:[%s1 + $0x64] sm:$0xf]
  %v49 = vld [vmem:[%s1 + $0x68] sm:$0xf]
  %v50 = vld [vmem:[%s1 + $0x6c] sm:$0xf]
  %v51 = vld [vmem:[%s1 + $0x70] sm:$0xf]
  %v52 = vld [vmem:[%s1 + $0x74] sm:$0xf]
  %v53 = vld [vmem:[%s1 + $0x78] sm:$0xf]
  %v54 = vld [vmem:[%s1 + $0x7c] sm:$0xf]
  %v55 = vld [vmem:[%s1 + $0x80] sm:$0xf]
  %v56 = vld [vmem:[%s1 + $0x84] sm:$0xf]
  %v57 = vld [vmem:[%s1 + $0x88] sm:$0xf]
  %v58 = vld [vmem:[%s1 + $0x8c] sm:$0xf]
  %v59 = vld [vmem:[%s2] sm:$0x1]
  %v61 = vperm.slane %v59, 0
  %v71 = vunpack.c.l.b16 %v15
  %v72 = vunpack.c.h.b16 %v15
  %v73 = vunpack.c.l.b16 %v16
  %v74 = vunpack.c.l.b16 %v17
  %v75 = vunpack.c.h.b16 %v17
  %v76 = vunpack.c.l.b16 %v18
  %v77 = vunpack.c.l.b16 %v19
  %v78 = vunpack.c.h.b16 %v19
  %v79 = vunpack.c.l.b16 %v20
  %v80 = vunpack.c.l.b16 %v21
  %v81 = vunpack.c.h.b16 %v21
  %v82 = vunpack.c.l.b16 %v22
  %v83 = vpack.c.b16 %v74, %v71
  %v84 = vpack.c.b16 %v75, %v72
  %v85 = vpack.c.b16 %v76, %v73
  %v86 = vpack.c.b16 %v80, %v77
  %v87 = vpack.c.b16 %v81, %v78
  %v88 = vpack.c.b16 %v82, %v79
  %v129 = vunpack.c.l.b16 %v23
  %v130 = vunpack.c.l.b16 %v24
  %v131 = vunpack.c.l.b16 %v25
  %v132 = vunpack.c.l.b16 %v26
  %v133 = vunpack.c.l.b16 %v27
  %v134 = vunpack.c.l.b16 %v28
  %v135 = vunpack.c.l.b16 %v29
  %v136 = vunpack.c.l.b16 %v30
  %v137 = vunpack.c.l.b16 %v31
  %v138 = vunpack.c.l.b16 %v32
  %v139 = vunpack.c.l.b16 %v33
  %v140 = vunpack.c.l.b16 %v34
  %v141 = vunpack.c.l.b16 %v35
  %v142 = vunpack.c.l.b16 %v36
  %v143 = vunpack.c.l.b16 %v37
  %v144 = vunpack.c.l.b16 %v38
  %v145 = vunpack.c.l.b16 %v39
  %v146 = vunpack.c.l.b16 %v40
  %v147 = vunpack.c.l.b16 %v41
  %v148 = vunpack.c.l.b16 %v42
  %v149 = vunpack.c.l.b16 %v43
  %v150 = vunpack.c.l.b16 %v44
  %v151 = vunpack.c.l.b16 %v45
  %v152 = vunpack.c.l.b16 %v46
  %v153 = vunpack.c.l.b16 %v47
  %v154 = vunpack.c.l.b16 %v48
  %v155 = vunpack.c.l.b16 %v49
  %v156 = vunpack.c.l.b16 %v50
  %v157 = vunpack.c.l.b16 %v51
  %v158 = vunpack.c.l.b16 %v52
  %v159 = vunpack.c.l.b16 %v53
  %v160 = vunpack.c.l.b16 %v54
  %v161 = vunpack.c.l.b16 %v55
  %v162 = vunpack.c.l.b16 %v56
  %v163 = vunpack.c.l.b16 %v57
  %v164 = vunpack.c.l.b16 %v58
  %v165 = vpack.c.b16 %v130, %v129
  %v166 = vpack.c.b16 %v132, %v131
  %v167 = vpack.c.b16 %v134, %v133
  %v168 = vpack.c.b16 %v136, %v135
  %v169 = vpack.c.b16 %v138, %v137
  %v170 = vpack.c.b16 %v140, %v139
  %v171 = vpack.c.b16 %v142, %v141
  %v172 = vpack.c.b16 %v144, %v143
  %v173 = vpack.c.b16 %v146, %v145
  %v174 = vpack.c.b16 %v148, %v147
  %v175 = vpack.c.b16 %v150, %v149
  %v176 = vpack.c.b16 %v152, %v151
  %v177 = vpack.c.b16 %v154, %v153
  %v178 = vpack.c.b16 %v156, %v155
  %v179 = vpack.c.b16 %v158, %v157
  %v180 = vpack.c.b16 %v160, %v159
  %v181 = vpack.c.b16 %v162, %v161
  %v182 = vpack.c.b16 %v164, %v163
  %vm201 = vcmask 261120
  %v203 = vsel %vm201, %v85, 0
  %v206 = vsel %vm201, %v88, 0
  %208 = vmatpush.bf16.msra.mxu0 %v172
  %209 = vmatpush.bf16.msra.mxu0 %v171
  %210 = vmatpush.bf16.msra.mxu0 %v170
  %211 = vmatpush.bf16.msra.mxu0 %v169
  %212 = vmatpush.bf16.msra.mxu0 %v168
  %213 = vmatpush.bf16.msra.mxu0 %v167
  %214 = vmatpush.bf16.msra.mxu0 %v166
  %215 = vmatpush.bf16.msra.mxu0 %v165
  %216 = vmatmul.bf16.gmra.mxu0 %v83
  %v217 = vpop.f32.mrf.mxu0
  %v218 = vadd.f32 %v61, %v217
  %v219 = vpop.f32.mrf.mxu0
  %v220 = vadd.f32 %v61, %v219
  %221 = vmatmul.bf16.gmra.mxu0 %v86
  %v222 = vpop.f32.mrf.mxu0
  %v223 = vadd.f32 %v61, %v222
  %v224 = vpop.f32.mrf.mxu0
  %v225 = vadd.f32 %v61, %v224
  %226 = vdwg.mxu0
  %227 = vmatpush.bf16.msra.mxu0 %v180
  %228 = vmatpush.bf16.msra.mxu0 %v179
  %229 = vmatpush.bf16.msra.mxu0 %v178
  %230 = vmatpush.bf16.msra.mxu0 %v177
  %231 = vmatpush.bf16.msra.mxu0 %v176
  %232 = vmatpush.bf16.msra.mxu0 %v175
  %233 = vmatpush.bf16.msra.mxu0 %v174
  %234 = vmatpush.bf16.msra.mxu0 %v173
  %235 = vmatmul.bf16.gmra.mxu0 %v84
  %v236 = vpop.f32.mrf.mxu0
  %v237 = vadd.f32 %v218, %v236
  %v238 = vpop.f32.mrf.mxu0
  %v239 = vadd.f32 %v220, %v238
  %240 = vmatmul.bf16.gmra.mxu0 %v87
  %v241 = vpop.f32.mrf.mxu0
  %v242 = vadd.f32 %v223, %v241
  %v243 = vpop.f32.mrf.mxu0
  %v244 = vadd.f32 %v225, %v243
  %245 = vdwg.mxu0
  %246 = vmatpush.bf16.msra.mxu0 0
  %247 = vmatpush.bf16.msra.mxu0 0
  %248 = vmatpush.bf16.msra.mxu0 0
  %249 = vmatpush.bf16.msra.mxu0 0
  %250 = vmatpush.bf16.msra.mxu0 0
  %251 = vmatpush.bf16.msra.mxu0 0
  %252 = vmatpush.bf16.msra.mxu0 %v182
  %253 = vmatpush.bf16.msra.mxu0 %v181
  %254 = vmatmul.bf16.gmra.mxu0 %v203
  %v255 = vpop.f32.mrf.mxu0
  %v256 = vadd.f32 %v237, %v255
  %v257 = vpop.f32.mrf.mxu0
  %v258 = vadd.f32 %v239, %v257
  %259 = vmatmul.bf16.gmra.mxu0 %v206
  %v260 = vpop.f32.mrf.mxu0
  %v261 = vadd.f32 %v242, %v260
  %v262 = vpop.f32.mrf.mxu0
  %v263 = vadd.f32 %v244, %v262
  %264 = vdwg.mxu0
  %v265 = vmax.f32 %v256, 0.0
  %v266 = vmax.f32 %v258, 0.0
  %v267 = vmax.f32 %v261, 0.0
  %v268 = vmax.f32 %v263, 0.0
  %v269 = vpack.c.bf16 %v265, %v265
  %v270 = vpack.c.bf16 %v266, %v266
  %v271 = vpack.c.bf16 %v267, %v267
  %v272 = vpack.c.bf16 %v268, %v268
  %vm273 = vcmask 519168
  %274 = vst.msk [vmem:[%s3] sm:$0xf] %vm273, %v269
  %275 = vst.msk [vmem:[%s3 + $0x4] sm:$0xf] %vm273, %v270
  %276 = vst.msk [vmem:[%s3 + $0x8] sm:$0xf] %vm273, %v271
  %277 = vst.msk [vmem:[%s3 + $0xc] sm:$0xf] %vm273, %v272
  // Predicated region
  $region14: #{_lambda_.8} parent=0 // pred_check
    _
  $region15: #{_lambda_.8} parent=0 // pred_check_branch
    %279 = sbr.rel (0) target = $region17
  $region16: #{_lambda_.8} parent=0 // pred_region
    _
  $region17: #{_lambda_.8} parent=0 // pred_fallthru
    _
  // Predicated region
  $region18: #{_lambda_.8} parent=0 // pred_check
    _
  $region19: #{_lambda_.8} parent=0 // pred_check_branch
    %281 = sbr.rel (0) target = $region21
  $region20: #{_lambda_.8} parent=0 // pred_region
    _
  $region21: #{_lambda_.8} parent=0 // pred_fallthru
    _

// kernel: _lambda_.9
$region0: #{_lambda_.9}
  #allocation0 [shape = 'u32[]', space=smem, size = 0x4, offset = 0x4, fixed_abs, tag = 'smem constant byte address 0x4 - core index']
  #allocation1 [shape = 'u32[72,128]{1,0:T(1,128)}', space=vmem, size = 0x9000, scoped, tag = 'internal scratch']
  %s0 = inlined_call_operand.vmem [shape: bf16[2,1024], index: 0, kind: input, shape index: {}]
  %s1 = inlined_call_operand.vmem [shape: bf16[1024,2560], index: 1, kind: input, shape index: {}]
  %s2 = inlined_call_operand.vmem [shape: f32[1,2560], index: 2, kind: input, shape index: {}]
  %s3 = inlined_call_operand.vmem [shape: bf16[5,512,128], index: 3, kind: input, shape index: {}]
  %s4 = inlined_call_operand.vmem [shape: f32[5,1,128], index: 4, kind: input, shape index: {}]
  %s5 = inlined_call_operand.vmem [shape: bf16[5,128,128], index: 5, kind: input, shape index: {}]
  %s6 = inlined_call_operand.vmem [shape: f32[5,1,128], index: 6, kind: input, shape index: {}]
  %s7 = inlined_call_operand.vmem [shape: f32[2,640], index: 7, kind: output, shape index: {}]
  %s8 = sld [smem:[#allocation0]]
  $region38: #{_lambda_.9} parent=0
    _
  %s10 = ssub.s32 1, %s8
  %s11 = scalar_select 0, %s10, %s8
  // Predicated region
  $region2: #{_lambda_.9} parent=0 // pred_check
    _
  $region3: #{_lambda_.9} parent=0 // pred_check_branch
    %13 = sbr.rel (0) target = $region5
  $region4: #{_lambda_.9} parent=0 // pred_region
    _
  $region5: #{_lambda_.9} parent=0 // pred_fallthru
    _
  // Predicated region
  $region6: #{_lambda_.9} parent=0 // pred_check
    _
  $region7: #{_lambda_.9} parent=0 // pred_check_branch
    %15 = sbr.rel (0) target = $region9
  $region8: #{_lambda_.9} parent=0 // pred_region
    _
  $region9: #{_lambda_.9} parent=0 // pred_fallthru
    _
  // Predicated region
  $region10: #{_lambda_.9} parent=0 // pred_check
    _
  $region11: #{_lambda_.9} parent=0 // pred_check_branch
    %17 = sbr.rel (0) target = $region13
  $region12: #{_lambda_.9} parent=0 // pred_region
    _
  $region13: #{_lambda_.9} parent=0 // pred_fallthru
    _
  // Predicated region
  $region14: #{_lambda_.9} parent=0 // pred_check
    _
  $region15: #{_lambda_.9} parent=0 // pred_check_branch
    %19 = sbr.rel (0) target = $region17
  $region16: #{_lambda_.9} parent=0 // pred_region
    _
  $region17: #{_lambda_.9} parent=0 // pred_fallthru
    _
  // Predicated region
  $region18: #{_lambda_.9} parent=0 // pred_check
    _
  $region19: #{_lambda_.9} parent=0 // pred_check_branch
    %21 = sbr.rel (0) target = $region21
  $region20: #{_lambda_.9} parent=0 // pred_region
    _
  $region21: #{_lambda_.9} parent=0 // pred_fallthru
    _
  // Predicated region
  $region22: #{_lambda_.9} parent=0 // pred_check
    _
  $region23: #{_lambda_.9} parent=0 // pred_check_branch
    %23 = sbr.rel (0) target = $region25
  $region24: #{_lambda_.9} parent=0 // pred_region
    _
  $region25: #{_lambda_.9} parent=0 // pred_fallthru
    _
  // Predicated region
  $region26: #{_lambda_.9} parent=0 // pred_check
    _
  $region27: #{_lambda_.9} parent=0 // pred_check_branch
    %25 = sbr.rel (0) target = $region29
  $region28: #{_lambda_.9} parent=0 // pred_region
    _
  $region29: #{_lambda_.9} parent=0 // pred_fallthru
    _
  %v26 = vld [vmem:[%s0] sm:$0xff]
  %v27 = vld [vmem:[%s1] sm:$0xff]
  %v28 = vld [vmem:[%s1 + $0x8] sm:$0xff]
  %v29 = vld [vmem:[%s1 + $0x10] sm:$0xff]
  %v30 = vld [vmem:[%s1 + $0x18] sm:$0xff]
  %v31 = vld [vmem:[%s1 + $0x20] sm:$0xff]
  %v32 = vld [vmem:[%s1 + $0x28] sm:$0xff]
  %v33 = vld [vmem:[%s1 + $0x30] sm:$0xff]
  %v34 = vld [vmem:[%s1 + $0x38] sm:$0xff]
  %v35 = vld [vmem:[%s1 + $0x40] sm:$0xff]
  %v36 = vld [vmem:[%s1 + $0x48] sm:$0xff]
  %v37 = vld [vmem:[%s1 + $0x50] sm:$0xff]
  %v38 = vld [vmem:[%s1 + $0x58] sm:$0xff]
  %v39 = vld [vmem:[%s1 + $0x60] sm:$0xff]
  %v40 = vld [vmem:[%s1 + $0x68] sm:$0xff]
  %v41 = vld [vmem:[%s1 + $0x70] sm:$0xff]
  %v42 = vld [vmem:[%s1 + $0x78] sm:$0xff]
  %v43 = vld [vmem:[%s1 + $0x80] sm:$0xff]
  %v44 = vld [vmem:[%s1 + $0x88] sm:$0xff]
  %v45 = vld [vmem:[%s1 + $0x90] sm:$0xff]
  %v46 = vld [vmem:[%s1 + $0x98] sm:$0xff]
  %v47 = vld [vmem:[%s1 + $0xa0] sm:$0xff]
  %v48 = vld [vmem:[%s1 + $0xa8] sm:$0xff]
  %v49 = vld [vmem:[%s1 + $0xb0] sm:$0xff]
  %v50 = vld [vmem:[%s1 + $0xb8] sm:$0xff]
  %v51 = vld [vmem:[%s1 + $0xc0] sm:$0xff]
  %v52 = vld [vmem:[%s1 + $0xc8] sm:$0xff]
  %v53 = vld [vmem:[%s1 + $0xd0] sm:$0xff]
  %v54 = vld [vmem:[%s1 + $0xd8] sm:$0xff]
  %v55 = vld [vmem:[%s1 + $0xe0] sm:$0xff]
  %v56 = vld [vmem:[%s1 + $0xe8] sm:$0xff]
  %v57 = vld [vmem:[%s1 + $0xf0] sm:$0xff]
  %v58 = vld [vmem:[%s1 + $0xf8] sm:$0xff]
  %v59 = vld [vmem:[%s1 + $0x100] sm:$0xff]
  %v60 = vld [vmem:[%s1 + $0x108] sm:$0xff]
  %v61 = vld [vmem:[%s1 + $0x110] sm:$0xff]
  %v62 = vld [vmem:[%s1 + $0x118] sm:$0xff]
  %v63 = vld [vmem:[%s1 + $0x120] sm:$0xff]
  %v64 = vld [vmem:[%s1 + $0x128] sm:$0xff]
  %v65 = vld [vmem:[%s1 + $0x130] sm:$0xff]
  %v66 = vld [vmem:[%s1 + $0x138] sm:$0xff]
  %v67 = vld [vmem:[%s1 + $0x140] sm:$0xff]
  %v68 = vld [vmem:[%s1 + $0x148] sm:$0xff]
  %v69 = vld [vmem:[%s1 + $0x150] sm:$0xff]
  %v70 = vld [vmem:[%s1 + $0x158] sm:$0xff]
  %v71 = vld [vmem:[%s1 + $0x160] sm:$0xff]
  %v72 = vld [vmem:[%s1 + $0x168] sm:$0xff]
  %v73 = vld [vmem:[%s1 + $0x170] sm:$0xff]
  %v74 = vld [vmem:[%s1 + $0x178] sm:$0xff]
  %v75 = vld [vmem:[%s1 + $0x180] sm:$0xff]
  %v76 = vld [vmem:[%s1 + $0x188] sm:$0xff]
  %v77 = vld [vmem:[%s1 + $0x190] sm:$0xff]
  %v78 = vld [vmem:[%s1 + $0x198] sm:$0xff]
  %v79 = vld [vmem:[%s1 + $0x1a0] sm:$0xff]
  %v80 = vld [vmem:[%s1 + $0x1a8] sm:$0xff]
  %v81 = vld [vmem:[%s1 + $0x1b0] sm:$0xff]
  %v82 = vld [vmem:[%s1 + $0x1b8] sm:$0xff]
  %v83 = vld [vmem:[%s1 + $0x1c0] sm:$0xff]
  %v84 = vld [vmem:[%s1 + $0x1c8] sm:$0xff]
  %v85 = vld [vmem:[%s1 + $0x1d0] sm:$0xff]
  %v86 = vld [vmem:[%s1 + $0x1d8] sm:$0xff]
  %v87 = vld [vmem:[%s1 + $0x1e0] sm:$0xff]
  %v88 = vld [vmem:[%s1 + $0x1e8] sm:$0xff]
  %v89 = vld [vmem:[%s1 + $0x1f0] sm:$0xff]
  %v90 = vld [vmem:[%s1 + $0x1f8] sm:$0xff]
  %v91 = vld [vmem:[%s1 + $0x200] sm:$0xff]
  %v92 = vld [vmem:[%s1 + $0x208] sm:$0xff]
  %v93 = vld [vmem:[%s1 + $0x210] sm:$0xff]
  %v94 = vld [vmem:[%s1 + $0x218] sm:$0xff]
  %v95 = vld [vmem:[%s1 + $0x220] sm:$0xff]
  %v96 = vld [vmem:[%s1 + $0x228] sm:$0xff]
  %v97 = vld [vmem:[%s1 + $0x230] sm:$0xff]
  %v98 = vld [vmem:[%s1 + $0x238] sm:$0xff]
  %v99 = vld [vmem:[%s1 + $0x240] sm:$0xff]
  %v100 = vld [vmem:[%s1 + $0x248] sm:$0xff]
  %v101 = vld [vmem:[%s1 + $0x250] sm:$0xff]
  %v102 = vld [vmem:[%s1 + $0x258] sm:$0xff]
  %v103 = vld [vmem:[%s1 + $0x260] sm:$0xff]
  %v104 = vld [vmem:[%s1 + $0x268] sm:$0xff]
  %v105 = vld [vmem:[%s1 + $0x270] sm:$0xff]
  %v106 = vld [vmem:[%s1 + $0x278] sm:$0xff]
  %v107 = vld [vmem:[%s1 + $0x280] sm:$0xff]
  %v108 = vld [vmem:[%s1 + $0x288] sm:$0xff]
  %v109 = vld [vmem:[%s1 + $0x290] sm:$0xff]
  %v110 = vld [vmem:[%s1 + $0x298] sm:$0xff]
  %v111 = vld [vmem:[%s1 + $0x2a0] sm:$0xff]
  %v112 = vld [vmem:[%s1 + $0x2a8] sm:$0xff]
  %v113 = vld [vmem:[%s1 + $0x2b0] sm:$0xff]
  %v114 = vld [vmem:[%s1 + $0x2b8] sm:$0xff]
  %v115 = vld [vmem:[%s1 + $0x2c0] sm:$0xff]
  %v116 = vld [vmem:[%s1 + $0x2c8] sm:$0xff]
  %v117 = vld [vmem:[%s1 + $0x2d0] sm:$0xff]
  %v118 = vld [vmem:[%s1 + $0x2d8] sm:$0xff]
  %v119 = vld [vmem:[%s1 + $0x2e0] sm:$0xff]
  %v120 = vld [vmem:[%s1 + $0x2e8] sm:$0xff]
  %v121 = vld [vmem:[%s1 + $0x2f0] sm:$0xff]
  %v122 = vld [vmem:[%s1 + $0x2f8] sm:$0xff]
  %v123 = vld [vmem:[%s1 + $0x300] sm:$0xff]
  %v124 = vld [vmem:[%s1 + $0x308] sm:$0xff]
  %v125 = vld [vmem:[%s1 + $0x310] sm:$0xff]
  %v126 = vld [vmem:[%s1 + $0x318] sm:$0xff]
  %v127 = vld [vmem:[%s1 + $0x320] sm:$0xff]
  %v128 = vld [vmem:[%s1 + $0x328] sm:$0xff]
  %v129 = vld [vmem:[%s1 + $0x330] sm:$0xff]
  %v130 = vld [vmem:[%s1 + $0x338] sm:$0xff]
  %v131 = vld [vmem:[%s1 + $0x340] sm:$0xff]
  %v132 = vld [vmem:[%s1 + $0x348] sm:$0xff]
  %v133 = vld [vmem:[%s1 + $0x350] sm:$0xff]
  %v134 = vld [vmem:[%s1 + $0x358] sm:$0xff]
  %v135 = vld [vmem:[%s1 + $0x360] sm:$0xff]
  %v136 = vld [vmem:[%s1 + $0x368] sm:$0xff]
  %v137 = vld [vmem:[%s1 + $0x370] sm:$0xff]
  %v138 = vld [vmem:[%s1 + $0x378] sm:$0xff]
  %v139 = vld [vmem:[%s1 + $0x380] sm:$0xff]
  %v140 = vld [vmem:[%s1 + $0x388] sm:$0xff]
  %v141 = vld [vmem:[%s1 + $0x390] sm:$0xff]
  %v142 = vld [vmem:[%s1 + $0x398] sm:$0xff]
  %v143 = vld [vmem:[%s1 + $0x3a0] sm:$0xff]
  %v144 = vld [vmem:[%s1 + $0x3a8] sm:$0xff]
  %v145 = vld [vmem:[%s1 + $0x3b0] sm:$0xff]
  %v146 = vld [vmem:[%s1 + $0x3b8] sm:$0xff]
  %v147 = vld [vmem:[%s1 + $0x3c0] sm:$0xff]
  %v148 = vld [vmem:[%s1 + $0x3c8] sm:$0xff]
  %v149 = vld [vmem:[%s1 + $0x3d0] sm:$0xff]
  %v150 = vld [vmem:[%s1 + $0x3d8] sm:$0xff]
  %v151 = vld [vmem:[%s1 + $0x3e0] sm:$0xff]
  %v152 = vld [vmem:[%s1 + $0x3e8] sm:$0xff]
  %v153 = vld [vmem:[%s1 + $0x3f0] sm:$0xff]
  %v154 = vld [vmem:[%s1 + $0x3f8] sm:$0xff]
  %v155 = vld [vmem:[%s1 + $0x400] sm:$0xff]
  %v156 = vld [vmem:[%s1 + $0x408] sm:$0xff]
  %v157 = vld [vmem:[%s1 + $0x410] sm:$0xff]
  %v158 = vld [vmem:[%s1 + $0x418] sm:$0xff]
  %v159 = vld [vmem:[%s1 + $0x420] sm:$0xff]
  %v160 = vld [vmem:[%s1 + $0x428] sm:$0xff]
  %v161 = vld [vmem:[%s1 + $0x430] sm:$0xff]
  %v162 = vld [vmem:[%s1 + $0x438] sm:$0xff]
  %v163 = vld [vmem:[%s1 + $0x440] sm:$0xff]
  %v164 = vld [vmem:[%s1 + $0x448] sm:$0xff]
  %v165 = vld [vmem:[%s1 + $0x450] sm:$0xff]
  %v166 = vld [vmem:[%s1 + $0x458] sm:$0xff]
  %v167 = vld [vmem:[%s1 + $0x460] sm:$0xff]
  %v168 = vld [vmem:[%s1 + $0x468] sm:$0xff]
  %v169 = vld [vmem:[%s1 + $0x470] sm:$0xff]
  %v170 = vld [vmem:[%s1 + $0x478] sm:$0xff]
  %v171 = vld [vmem:[%s1 + $0x480] sm:$0xff]
  %v172 = vld [vmem:[%s1 + $0x488] sm:$0xff]
  %v173 = vld [vmem:[%s1 + $0x490] sm:$0xff]
  %v174 = vld [vmem:[%s1 + $0x498] sm:$0xff]
  %v175 = vld [vmem:[%s1 + $0x4a0] sm:$0xff]
  %v176 = vld [vmem:[%s1 + $0x4a8] sm:$0xff]
  %v177 = vld [vmem:[%s1 + $0x4b0] sm:$0xff]
  %v178 = vld [vmem:[%s1 + $0x4b8] sm:$0xff]
  %v179 = vld [vmem:[%s1 + $0x4c0] sm:$0xff]
  %v180 = vld [vmem:[%s1 + $0x4c8] sm:$0xff]
  %v181 = vld [vmem:[%s1 + $0x4d0] sm:$0xff]
  %v182 = vld [vmem:[%s1 + $0x4d8] sm:$0xff]
  %v183 = vld [vmem:[%s1 + $0x4e0] sm:$0xff]
  %v184 = vld [vmem:[%s1 + $0x4e8] sm:$0xff]
  %v185 = vld [vmem:[%s1 + $0x4f0] sm:$0xff]
  %v186 = vld [vmem:[%s1 + $0x4f8] sm:$0xff]
  %v187 = vld [vmem:[%s1 + $0x500] sm:$0xff]
  %v188 = vld [vmem:[%s1 + $0x508] sm:$0xff]
  %v189 = vld [vmem:[%s1 + $0x510] sm:$0xff]
  %v190 = vld [vmem:[%s1 + $0x518] sm:$0xff]
  %v191 = vld [vmem:[%s1 + $0x520] sm:$0xff]
  %v192 = vld [vmem:[%s1 + $0x528] sm:$0xff]
  %v193 = vld [vmem:[%s1 + $0x530] sm:$0xff]
  %v194 = vld [vmem:[%s1 + $0x538] sm:$0xff]
  %v195 = vld [vmem:[%s1 + $0x540] sm:$0xff]
  %v196 = vld [vmem:[%s1 + $0x548] sm:$0xff]
  %v197 = vld [vmem:[%s1 + $0x550] sm:$0xff]
  %v198 = vld [vmem:[%s1 + $0x558] sm:$0xff]
  %v199 = vld [vmem:[%s1 + $0x560] sm:$0xff]
  %v200 = vld [vmem:[%s1 + $0x568] sm:$0xff]
  %v201 = vld [vmem:[%s1 + $0x570] sm:$0xff]
  %v202 = vld [vmem:[%s1 + $0x578] sm:$0xff]
  %v203 = vld [vmem:[%s1 + $0x580] sm:$0xff]
  %v204 = vld [vmem:[%s1 + $0x588] sm:$0xff]
  %v205 = vld [vmem:[%s1 + $0x590] sm:$0xff]
  %v206 = vld [vmem:[%s1 + $0x598] sm:$0xff]
  %v207 = vld [vmem:[%s1 + $0x5a0] sm:$0xff]
  %v208 = vld [vmem:[%s1 + $0x5a8] sm:$0xff]
  %v209 = vld [vmem:[%s1 + $0x5b0] sm:$0xff]
  %v210 = vld [vmem:[%s1 + $0x5b8] sm:$0xff]
  %v211 = vld [vmem:[%s1 + $0x5c0] sm:$0xff]
  %v212 = vld [vmem:[%s1 + $0x5c8] sm:$0xff]
  %v213 = vld [vmem:[%s1 + $0x5d0] sm:$0xff]
  %v214 = vld [vmem:[%s1 + $0x5d8] sm:$0xff]
  %v215 = vld [vmem:[%s1 + $0x5e0] sm:$0xff]
  %v216 = vld [vmem:[%s1 + $0x5e8] sm:$0xff]
  %v217 = vld [vmem:[%s1 + $0x5f0] sm:$0xff]
  %v218 = vld [vmem:[%s1 + $0x5f8] sm:$0xff]
  %v219 = vld [vmem:[%s1 + $0x600] sm:$0xff]
  %v220 = vld [vmem:[%s1 + $0x608] sm:$0xff]
  %v221 = vld [vmem:[%s1 + $0x610] sm:$0xff]
  %v222 = vld [vmem:[%s1 + $0x618] sm:$0xff]
  %v223 = vld [vmem:[%s1 + $0x620] sm:$0xff]
  %v224 = vld [vmem:[%s1 + $0x628] sm:$0xff]
  %v225 = vld [vmem:[%s1 + $0x630] sm:$0xff]
  %v226 = vld [vmem:[%s1 + $0x638] sm:$0xff]
  %v227 = vld [vmem:[%s1 + $0x640] sm:$0xff]
  %v228 = vld [vmem:[%s1 + $0x648] sm:$0xff]
  %v229 = vld [vmem:[%s1 + $0x650] sm:$0xff]
  %v230 = vld [vmem:[%s1 + $0x658] sm:$0xff]
  %v231 = vld [vmem:[%s1 + $0x660] sm:$0xff]
  %v232 = vld [vmem:[%s1 + $0x668] sm:$0xff]
  %v233 = vld [vmem:[%s1 + $0x670] sm:$0xff]
  %v234 = vld [vmem:[%s1 + $0x678] sm:$0xff]
  %v235 = vld [vmem:[%s1 + $0x680] sm:$0xff]
  %v236 = vld [vmem:[%s1 + $0x688] sm:$0xff]
  %v237 = vld [vmem:[%s1 + $0x690] sm:$0xff]
  %v238 = vld [vmem:[%s1 + $0x698] sm:$0xff]
  %v239 = vld [vmem:[%s1 + $0x6a0] sm:$0xff]
  %v240 = vld [vmem:[%s1 + $0x6a8] sm:$0xff]
  %v241 = vld [vmem:[%s1 + $0x6b0] sm:$0xff]
  %v242 = vld [vmem:[%s1 + $0x6b8] sm:$0xff]
  %v243 = vld [vmem:[%s1 + $0x6c0] sm:$0xff]
  %v244 = vld [vmem:[%s1 + $0x6c8] sm:$0xff]
  %v245 = vld [vmem:[%s1 + $0x6d0] sm:$0xff]
  %v246 = vld [vmem:[%s1 + $0x6d8] sm:$0xff]
  %v247 = vld [vmem:[%s1 + $0x6e0] sm:$0xff]
  %v248 = vld [vmem:[%s1 + $0x6e8] sm:$0xff]
  %v249 = vld [vmem:[%s1 + $0x6f0] sm:$0xff]
  %v250 = vld [vmem:[%s1 + $0x6f8] sm:$0xff]
  %v251 = vld [vmem:[%s1 + $0x700] sm:$0xff]
  %v252 = vld [vmem:[%s1 + $0x708] sm:$0xff]
  %v253 = vld [vmem:[%s1 + $0x710] sm:$0xff]
  %v254 = vld [vmem:[%s1 + $0x718] sm:$0xff]
  %v255 = vld [vmem:[%s1 + $0x720] sm:$0xff]
  %v256 = vld [vmem:[%s1 + $0x728] sm:$0xff]
  %v257 = vld [vmem:[%s1 + $0x730] sm:$0xff]
  %v258 = vld [vmem:[%s1 + $0x738] sm:$0xff]
  %v259 = vld [vmem:[%s1 + $0x740] sm:$0xff]
  %v260 = vld [vmem:[%s1 + $0x748] sm:$0xff]
  %v261 = vld [vmem:[%s1 + $0x750] sm:$0xff]
  %v262 = vld [vmem:[%s1 + $0x758] sm:$0xff]
  %v263 = vld [vmem:[%s1 + $0x760] sm:$0xff]
  %v264 = vld [vmem:[%s1 + $0x768] sm:$0xff]
  %v265 = vld [vmem:[%s1 + $0x770] sm:$0xff]
  %v266 = vld [vmem:[%s1 + $0x778] sm:$0xff]
  %v267 = vld [vmem:[%s1 + $0x780] sm:$0xff]
  %v268 = vld [vmem:[%s1 + $0x788] sm:$0xff]
  %v269 = vld [vmem:[%s1 + $0x790] sm:$0xff]
  %v270 = vld [vmem:[%s1 + $0x798] sm:$0xff]
  %v271 = vld [vmem:[%s1 + $0x7a0] sm:$0xff]
  %v272 = vld [vmem:[%s1 + $0x7a8] sm:$0xff]
  %v273 = vld [vmem:[%s1 + $0x7b0] sm:$0xff]
  %v274 = vld [vmem:[%s1 + $0x7b8] sm:$0xff]
  %v275 = vld [vmem:[%s1 + $0x7c0] sm:$0xff]
  %v276 = vld [vmem:[%s1 + $0x7c8] sm:$0xff]
  %v277 = vld [vmem:[%s1 + $0x7d0] sm:$0xff]
  %v278 = vld [vmem:[%s1 + $0x7d8] sm:$0xff]
  %v279 = vld [vmem:[%s1 + $0x7e0] sm:$0xff]
  %v280 = vld [vmem:[%s1 + $0x7e8] sm:$0xff]
  %v281 = vld [vmem:[%s1 + $0x7f0] sm:$0xff]
  %v282 = vld [vmem:[%s1 + $0x7f8] sm:$0xff]
  %v283 = vld [vmem:[%s1 + $0x800] sm:$0xff]
  %v284 = vld [vmem:[%s1 + $0x808] sm:$0xff]
  %v285 = vld [vmem:[%s1 + $0x810] sm:$0xff]
  %v286 = vld [vmem:[%s1 + $0x818] sm:$0xff]
  %v287 = vld [vmem:[%s1 + $0x820] sm:$0xff]
  %v288 = vld [vmem:[%s1 + $0x828] sm:$0xff]
  %v289 = vld [vmem:[%s1 + $0x830] sm:$0xff]
  %v290 = vld [vmem:[%s1 + $0x838] sm:$0xff]
  %v291 = vld [vmem:[%s1 + $0x840] sm:$0xff]
  %v292 = vld [vmem:[%s1 + $0x848] sm:$0xff]
  %v293 = vld [vmem:[%s1 + $0x850] sm:$0xff]
  %v294 = vld [vmem:[%s1 + $0x858] sm:$0xff]
  %v295 = vld [vmem:[%s1 + $0x860] sm:$0xff]
  %v296 = vld [vmem:[%s1 + $0x868] sm:$0xff]
  %v297 = vld [vmem:[%s1 + $0x870] sm:$0xff]
  %v298 = vld [vmem:[%s1 + $0x878] sm:$0xff]
  %v299 = vld [vmem:[%s1 + $0x880] sm:$0xff]
  %v300 = vld [vmem:[%s1 + $0x888] sm:$0xff]
  %v301 = vld [vmem:[%s1 + $0x890] sm:$0xff]
  %v302 = vld [vmem:[%s1 + $0x898] sm:$0xff]
  %v303 = vld [vmem:[%s1 + $0x8a0] sm:$0xff]
  %v304 = vld [vmem:[%s1 + $0x8a8] sm:$0xff]
  %v305 = vld [vmem:[%s1 + $0x8b0] sm:$0xff]
  %v306 = vld [vmem:[%s1 + $0x8b8] sm:$0xff]
  %v307 = vld [vmem:[%s1 + $0x8c0] sm:$0xff]
  %v308 = vld [vmem:[%s1 + $0x8c8] sm:$0xff]
  %v309 = vld [vmem:[%s1 + $0x8d0] sm:$0xff]
  %v310 = vld [vmem:[%s1 + $0x8d8] sm:$0xff]
  %v311 = vld [vmem:[%s1 + $0x8e0] sm:$0xff]
  %v312 = vld [vmem:[%s1 + $0x8e8] sm:$0xff]
  %v313 = vld [vmem:[%s1 + $0x8f0] sm:$0xff]
  %v314 = vld [vmem:[%s1 + $0x8f8] sm:$0xff]
  %v315 = vld [vmem:[%s1 + $0x900] sm:$0xff]
  %v316 = vld [vmem:[%s1 + $0x908] sm:$0xff]
  %v317 = vld [vmem:[%s1 + $0x910] sm:$0xff]
  %v318 = vld [vmem:[%s1 + $0x918] sm:$0xff]
  %v319 = vld [vmem:[%s1 + $0x920] sm:$0xff]
  %v320 = vld [vmem:[%s1 + $0x928] sm:$0xff]
  %v321 = vld [vmem:[%s1 + $0x930] sm:$0xff]
  %v322 = vld [vmem:[%s1 + $0x938] sm:$0xff]
  %v323 = vld [vmem:[%s1 + $0x940] sm:$0xff]
  %v324 = vld [vmem:[%s1 + $0x948] sm:$0xff]
  %v325 = vld [vmem:[%s1 + $0x950] sm:$0xff]
  %v326 = vld [vmem:[%s1 + $0x958] sm:$0xff]
  %v327 = vld [vmem:[%s1 + $0x960] sm:$0xff]
  %v328 = vld [vmem:[%s1 + $0x968] sm:$0xff]
  %v329 = vld [vmem:[%s1 + $0x970] sm:$0xff]
  %v330 = vld [vmem:[%s1 + $0x978] sm:$0xff]
  %v331 = vld [vmem:[%s1 + $0x980] sm:$0xff]
  %v332 = vld [vmem:[%s1 + $0x988] sm:$0xff]
  %v333 = vld [vmem:[%s1 + $0x990] sm:$0xff]
  %v334 = vld [vmem:[%s1 + $0x998] sm:$0xff]
  %v335 = vld [vmem:[%s1 + $0x9a0] sm:$0xff]
  %v336 = vld [vmem:[%s1 + $0x9a8] sm:$0xff]
  %v337 = vld [vmem:[%s1 + $0x9b0] sm:$0xff]
  %v338 = vld [vmem:[%s1 + $0x9b8] sm:$0xff]
  %v339 = vld [vmem:[%s1 + $0x9c0] sm:$0xff]
  %v340 = vld [vmem:[%s1 + $0x9c8] sm:$0xff]
  %v341 = vld [vmem:[%s1 + $0x9d0] sm:$0xff]
  %v342 = vld [vmem:[%s1 + $0x9d8] sm:$0xff]
  %v343 = vld [vmem:[%s1 + $0x9e0] sm:$0xff]
  %v344 = vld [vmem:[%s1 + $0x9e8] sm:$0xff]
  %v345 = vld [vmem:[%s1 + $0x9f0] sm:$0xff]
  %v346 = vld [vmem:[%s1 + $0x9f8] sm:$0xff]
  %v347 = vld [vmem:[%s1 + $0xa00] sm:$0xff]
  %v348 = vld [vmem:[%s1 + $0xa08] sm:$0xff]
  %v349 = vld [vmem:[%s1 + $0xa10] sm:$0xff]
  %v350 = vld [vmem:[%s1 + $0xa18] sm:$0xff]
  %v351 = vld [vmem:[%s1 + $0xa20] sm:$0xff]
  %v352 = vld [vmem:[%s1 + $0xa28] sm:$0xff]
  %v353 = vld [vmem:[%s1 + $0xa30] sm:$0xff]
  %v354 = vld [vmem:[%s1 + $0xa38] sm:$0xff]
  %v355 = vld [vmem:[%s1 + $0xa40] sm:$0xff]
  %v356 = vld [vmem:[%s1 + $0xa48] sm:$0xff]
  %v357 = vld [vmem:[%s1 + $0xa50] sm:$0xff]
  %v358 = vld [vmem:[%s1 + $0xa58] sm:$0xff]
  %v359 = vld [vmem:[%s1 + $0xa60] sm:$0xff]
  %v360 = vld [vmem:[%s1 + $0xa68] sm:$0xff]
  %v361 = vld [vmem:[%s1 + $0xa70] sm:$0xff]
  %v362 = vld [vmem:[%s1 + $0xa78] sm:$0xff]
  %v363 = vld [vmem:[%s1 + $0xa80] sm:$0xff]
  %v364 = vld [vmem:[%s1 + $0xa88] sm:$0xff]
  %v365 = vld [vmem:[%s1 + $0xa90] sm:$0xff]
  %v366 = vld [vmem:[%s1 + $0xa98] sm:$0xff]
  %v367 = vld [vmem:[%s1 + $0xaa0] sm:$0xff]
  %v368 = vld [vmem:[%s1 + $0xaa8] sm:$0xff]
  %v369 = vld [vmem:[%s1 + $0xab0] sm:$0xff]
  %v370 = vld [vmem:[%s1 + $0xab8] sm:$0xff]
  %v371 = vld [vmem:[%s1 + $0xac0] sm:$0xff]
  %v372 = vld [vmem:[%s1 + $0xac8] sm:$0xff]
  %v373 = vld [vmem:[%s1 + $0xad0] sm:$0xff]
  %v374 = vld [vmem:[%s1 + $0xad8] sm:$0xff]
  %v375 = vld [vmem:[%s1 + $0xae0] sm:$0xff]
  %v376 = vld [vmem:[%s1 + $0xae8] sm:$0xff]
  %v377 = vld [vmem:[%s1 + $0xaf0] sm:$0xff]
  %v378 = vld [vmem:[%s1 + $0xaf8] sm:$0xff]
  %v379 = vld [vmem:[%s1 + $0xb00] sm:$0xff]
  %v380 = vld [vmem:[%s1 + $0xb08] sm:$0xff]
  %v381 = vld [vmem:[%s1 + $0xb10] sm:$0xff]
  %v382 = vld [vmem:[%s1 + $0xb18] sm:$0xff]
  %v383 = vld [vmem:[%s1 + $0xb20] sm:$0xff]
  %v384 = vld [vmem:[%s1 + $0xb28] sm:$0xff]
  %v385 = vld [vmem:[%s1 + $0xb30] sm:$0xff]
  %v386 = vld [vmem:[%s1 + $0xb38] sm:$0xff]
  %v387 = vld [vmem:[%s1 + $0xb40] sm:$0xff]
  %v388 = vld [vmem:[%s1 + $0xb48] sm:$0xff]
  %v389 = vld [vmem:[%s1 + $0xb50] sm:$0xff]
  %v390 = vld [vmem:[%s1 + $0xb58] sm:$0xff]
  %v391 = vld [vmem:[%s1 + $0xb60] sm:$0xff]
  %v392 = vld [vmem:[%s1 + $0xb68] sm:$0xff]
  %v393 = vld [vmem:[%s1 + $0xb70] sm:$0xff]
  %v394 = vld [vmem:[%s1 + $0xb78] sm:$0xff]
  %v395 = vld [vmem:[%s1 + $0xb80] sm:$0xff]
  %v396 = vld [vmem:[%s1 + $0xb88] sm:$0xff]
  %v397 = vld [vmem:[%s1 + $0xb90] sm:$0xff]
  %v398 = vld [vmem:[%s1 + $0xb98] sm:$0xff]
  %v399 = vld [vmem:[%s1 + $0xba0] sm:$0xff]
  %v400 = vld [vmem:[%s1 + $0xba8] sm:$0xff]
  %v401 = vld [vmem:[%s1 + $0xbb0] sm:$0xff]
  %v402 = vld [vmem:[%s1 + $0xbb8] sm:$0xff]
  %v403 = vld [vmem:[%s1 + $0xbc0] sm:$0xff]
  %v404 = vld [vmem:[%s1 + $0xbc8] sm:$0xff]
  %v405 = vld [vmem:[%s1 + $0xbd0] sm:$0xff]
  %v406 = vld [vmem:[%s1 + $0xbd8] sm:$0xff]
  %v407 = vld [vmem:[%s1 + $0xbe0] sm:$0xff]
  %v408 = vld [vmem:[%s1 + $0xbe8] sm:$0xff]
  %v409 = vld [vmem:[%s1 + $0xbf0] sm:$0xff]
  %v410 = vld [vmem:[%s1 + $0xbf8] sm:$0xff]
  %v411 = vld [vmem:[%s1 + $0xc00] sm:$0xff]
  %v412 = vld [vmem:[%s1 + $0xc08] sm:$0xff]
  %v413 = vld [vmem:[%s1 + $0xc10] sm:$0xff]
  %v414 = vld [vmem:[%s1 + $0xc18] sm:$0xff]
  %v415 = vld [vmem:[%s1 + $0xc20] sm:$0xff]
  %v416 = vld [vmem:[%s1 + $0xc28] sm:$0xff]
  %v417 = vld [vmem:[%s1 + $0xc30] sm:$0xff]
  %v418 = vld [vmem:[%s1 + $0xc38] sm:$0xff]
  %v419 = vld [vmem:[%s1 + $0xc40] sm:$0xff]
  %v420 = vld [vmem:[%s1 + $0xc48] sm:$0xff]
  %v421 = vld [vmem:[%s1 + $0xc50] sm:$0xff]
  %v422 = vld [vmem:[%s1 + $0xc58] sm:$0xff]
  %v423 = vld [vmem:[%s1 + $0xc60] sm:$0xff]
  %v424 = vld [vmem:[%s1 + $0xc68] sm:$0xff]
  %v425 = vld [vmem:[%s1 + $0xc70] sm:$0xff]
  %v426 = vld [vmem:[%s1 + $0xc78] sm:$0xff]
  %v427 = vld [vmem:[%s1 + $0xc80] sm:$0xff]
  %v428 = vld [vmem:[%s1 + $0xc88] sm:$0xff]
  %v429 = vld [vmem:[%s1 + $0xc90] sm:$0xff]
  %v430 = vld [vmem:[%s1 + $0xc98] sm:$0xff]
  %v431 = vld [vmem:[%s1 + $0xca0] sm:$0xff]
  %v432 = vld [vmem:[%s1 + $0xca8] sm:$0xff]
  %v433 = vld [vmem:[%s1 + $0xcb0] sm:$0xff]
  %v434 = vld [vmem:[%s1 + $0xcb8] sm:$0xff]
  %v435 = vld [vmem:[%s1 + $0xcc0] sm:$0xff]
  %v436 = vld [vmem:[%s1 + $0xcc8] sm:$0xff]
  %v437 = vld [vmem:[%s1 + $0xcd0] sm:$0xff]
  %v438 = vld [vmem:[%s1 + $0xcd8] sm:$0xff]
  %v439 = vld [vmem:[%s1 + $0xce0] sm:$0xff]
  %v440 = vld [vmem:[%s1 + $0xce8] sm:$0xff]
  %v441 = vld [vmem:[%s1 + $0xcf0] sm:$0xff]
  %v442 = vld [vmem:[%s1 + $0xcf8] sm:$0xff]
  %v443 = vld [vmem:[%s1 + $0xd00] sm:$0xff]
  %v444 = vld [vmem:[%s1 + $0xd08] sm:$0xff]
  %v445 = vld [vmem:[%s1 + $0xd10] sm:$0xff]
  %v446 = vld [vmem:[%s1 + $0xd18] sm:$0xff]
  %v447 = vld [vmem:[%s1 + $0xd20] sm:$0xff]
  %v448 = vld [vmem:[%s1 + $0xd28] sm:$0xff]
  %v449 = vld [vmem:[%s1 + $0xd30] sm:$0xff]
  %v450 = vld [vmem:[%s1 + $0xd38] sm:$0xff]
  %v451 = vld [vmem:[%s1 + $0xd40] sm:$0xff]
  %v452 = vld [vmem:[%s1 + $0xd48] sm:$0xff]
  %v453 = vld [vmem:[%s1 + $0xd50] sm:$0xff]
  %v454 = vld [vmem:[%s1 + $0xd58] sm:$0xff]
  %v455 = vld [vmem:[%s1 + $0xd60] sm:$0xff]
  %v456 = vld [vmem:[%s1 + $0xd68] sm:$0xff]
  %v457 = vld [vmem:[%s1 + $0xd70] sm:$0xff]
  %v458 = vld [vmem:[%s1 + $0xd78] sm:$0xff]
  %v459 = vld [vmem:[%s1 + $0xd80] sm:$0xff]
  %v460 = vld [vmem:[%s1 + $0xd88] sm:$0xff]
  %v461 = vld [vmem:[%s1 + $0xd90] sm:$0xff]
  %v462 = vld [vmem:[%s1 + $0xd98] sm:$0xff]
  %v463 = vld [vmem:[%s1 + $0xda0] sm:$0xff]
  %v464 = vld [vmem:[%s1 + $0xda8] sm:$0xff]
  %v465 = vld [vmem:[%s1 + $0xdb0] sm:$0xff]
  %v466 = vld [vmem:[%s1 + $0xdb8] sm:$0xff]
  %v467 = vld [vmem:[%s1 + $0xdc0] sm:$0xff]
  %v468 = vld [vmem:[%s1 + $0xdc8] sm:$0xff]
  %v469 = vld [vmem:[%s1 + $0xdd0] sm:$0xff]
  %v470 = vld [vmem:[%s1 + $0xdd8] sm:$0xff]
  %v471 = vld [vmem:[%s1 + $0xde0] sm:$0xff]
  %v472 = vld [vmem:[%s1 + $0xde8] sm:$0xff]
  %v473 = vld [vmem:[%s1 + $0xdf0] sm:$0xff]
  %v474 = vld [vmem:[%s1 + $0xdf8] sm:$0xff]
  %v475 = vld [vmem:[%s1 + $0xe00] sm:$0xff]
  %v476 = vld [vmem:[%s1 + $0xe08] sm:$0xff]
  %v477 = vld [vmem:[%s1 + $0xe10] sm:$0xff]
  %v478 = vld [vmem:[%s1 + $0xe18] sm:$0xff]
  %v479 = vld [vmem:[%s1 + $0xe20] sm:$0xff]
  %v480 = vld [vmem:[%s1 + $0xe28] sm:$0xff]
  %v481 = vld [vmem:[%s1 + $0xe30] sm:$0xff]
  %v482 = vld [vmem:[%s1 + $0xe38] sm:$0xff]
  %v483 = vld [vmem:[%s1 + $0xe40] sm:$0xff]
  %v484 = vld [vmem:[%s1 + $0xe48] sm:$0xff]
  %v485 = vld [vmem:[%s1 + $0xe50] sm:$0xff]
  %v486 = vld [vmem:[%s1 + $0xe58] sm:$0xff]
  %v487 = vld [vmem:[%s1 + $0xe60] sm:$0xff]
  %v488 = vld [vmem:[%s1 + $0xe68] sm:$0xff]
  %v489 = vld [vmem:[%s1 + $0xe70] sm:$0xff]
  %v490 = vld [vmem:[%s1 + $0xe78] sm:$0xff]
  %v491 = vld [vmem:[%s1 + $0xe80] sm:$0xff]
  %v492 = vld [vmem:[%s1 + $0xe88] sm:$0xff]
  %v493 = vld [vmem:[%s1 + $0xe90] sm:$0xff]
  %v494 = vld [vmem:[%s1 + $0xe98] sm:$0xff]
  %v495 = vld [vmem:[%s1 + $0xea0] sm:$0xff]
  %v496 = vld [vmem:[%s1 + $0xea8] sm:$0xff]
  %v497 = vld [vmem:[%s1 + $0xeb0] sm:$0xff]
  %v498 = vld [vmem:[%s1 + $0xeb8] sm:$0xff]
  %v499 = vld [vmem:[%s1 + $0xec0] sm:$0xff]
  %v500 = vld [vmem:[%s1 + $0xec8] sm:$0xff]
  %v501 = vld [vmem:[%s1 + $0xed0] sm:$0xff]
  %v502 = vld [vmem:[%s1 + $0xed8] sm:$0xff]
  %v503 = vld [vmem:[%s1 + $0xee0] sm:$0xff]
  %v504 = vld [vmem:[%s1 + $0xee8] sm:$0xff]
  %v505 = vld [vmem:[%s1 + $0xef0] sm:$0xff]
  %v506 = vld [vmem:[%s1 + $0xef8] sm:$0xff]
  %v507 = vld [vmem:[%s1 + $0xf00] sm:$0xff]
  %v508 = vld [vmem:[%s1 + $0xf08] sm:$0xff]
  %v509 = vld [vmem:[%s1 + $0xf10] sm:$0xff]
  %v510 = vld [vmem:[%s1 + $0xf18] sm:$0xff]
  %v511 = vld [vmem:[%s1 + $0xf20] sm:$0xff]
  %v512 = vld [vmem:[%s1 + $0xf28] sm:$0xff]
  %v513 = vld [vmem:[%s1 + $0xf30] sm:$0xff]
  %v514 = vld [vmem:[%s1 + $0xf38] sm:$0xff]
  %v515 = vld [vmem:[%s1 + $0xf40] sm:$0xff]
  %v516 = vld [vmem:[%s1 + $0xf48] sm:$0xff]
  %v517 = vld [vmem:[%s1 + $0xf50] sm:$0xff]
  %v518 = vld [vmem:[%s1 + $0xf58] sm:$0xff]
  %v519 = vld [vmem:[%s1 + $0xf60] sm:$0xff]
  %v520 = vld [vmem:[%s1 + $0xf68] sm:$0xff]
  %v521 = vld [vmem:[%s1 + $0xf70] sm:$0xff]
  %v522 = vld [vmem:[%s1 + $0xf78] sm:$0xff]
  %v523 = vld [vmem:[%s1 + $0xf80] sm:$0xff]
  %v524 = vld [vmem:[%s1 + $0xf88] sm:$0xff]
  %v525 = vld [vmem:[%s1 + $0xf90] sm:$0xff]
  %v526 = vld [vmem:[%s1 + $0xf98] sm:$0xff]
  %v527 = vld [vmem:[%s1 + $0xfa0] sm:$0xff]
  %v528 = vld [vmem:[%s1 + $0xfa8] sm:$0xff]
  %v529 = vld [vmem:[%s1 + $0xfb0] sm:$0xff]
  %v530 = vld [vmem:[%s1 + $0xfb8] sm:$0xff]
  %v531 = vld [vmem:[%s1 + $0xfc0] sm:$0xff]
  %v532 = vld [vmem:[%s1 + $0xfc8] sm:$0xff]
  %v533 = vld [vmem:[%s1 + $0xfd0] sm:$0xff]
  %v534 = vld [vmem:[%s1 + $0xfd8] sm:$0xff]
  %v535 = vld [vmem:[%s1 + $0xfe0] sm:$0xff]
  %v536 = vld [vmem:[%s1 + $0xfe8] sm:$0xff]
  %v537 = vld [vmem:[%s1 + $0xff0] sm:$0xff]
  %v538 = vld [vmem:[%s1 + $0xff8] sm:$0xff]
  %v539 = vld [vmem:[%s1 + $0x1000] sm:$0xff]
  %v540 = vld [vmem:[%s1 + $0x1008] sm:$0xff]
  %v541 = vld [vmem:[%s1 + $0x1010] sm:$0xff]
  %v542 = vld [vmem:[%s1 + $0x1018] sm:$0xff]
  %v543 = vld [vmem:[%s1 + $0x1020] sm:$0xff]
  %v544 = vld [vmem:[%s1 + $0x1028] sm:$0xff]
  %v545 = vld [vmem:[%s1 + $0x1030] sm:$0xff]
  %v546 = vld [vmem:[%s1 + $0x1038] sm:$0xff]
  %v547 = vld [vmem:[%s1 + $0x1040] sm:$0xff]
  %v548 = vld [vmem:[%s1 + $0x1048] sm:$0xff]
  %v549 = vld [vmem:[%s1 + $0x1050] sm:$0xff]
  %v550 = vld [vmem:[%s1 + $0x1058] sm:$0xff]
  %v551 = vld [vmem:[%s1 + $0x1060] sm:$0xff]
  %v552 = vld [vmem:[%s1 + $0x1068] sm:$0xff]
  %v553 = vld [vmem:[%s1 + $0x1070] sm:$0xff]
  %v554 = vld [vmem:[%s1 + $0x1078] sm:$0xff]
  %v555 = vld [vmem:[%s1 + $0x1080] sm:$0xff]
  %v556 = vld [vmem:[%s1 + $0x1088] sm:$0xff]
  %v557 = vld [vmem:[%s1 + $0x1090] sm:$0xff]
  %v558 = vld [vmem:[%s1 + $0x1098] sm:$0xff]
  %v559 = vld [vmem:[%s1 + $0x10a0] sm:$0xff]
  %v560 = vld [vmem:[%s1 + $0x10a8] sm:$0xff]
  %v561 = vld [vmem:[%s1 + $0x10b0] sm:$0xff]
  %v562 = vld [vmem:[%s1 + $0x10b8] sm:$0xff]
  %v563 = vld [vmem:[%s1 + $0x10c0] sm:$0xff]
  %v564 = vld [vmem:[%s1 + $0x10c8] sm:$0xff]
  %v565 = vld [vmem:[%s1 + $0x10d0] sm:$0xff]
  %v566 = vld [vmem:[%s1 + $0x10d8] sm:$0xff]
  %v567 = vld [vmem:[%s1 + $0x10e0] sm:$0xff]
  %v568 = vld [vmem:[%s1 + $0x10e8] sm:$0xff]
  %v569 = vld [vmem:[%s1 + $0x10f0] sm:$0xff]
  %v570 = vld [vmem:[%s1 + $0x10f8] sm:$0xff]
  %v571 = vld [vmem:[%s1 + $0x1100] sm:$0xff]
  %v572 = vld [vmem:[%s1 + $0x1108] sm:$0xff]
  %v573 = vld [vmem:[%s1 + $0x1110] sm:$0xff]
  %v574 = vld [vmem:[%s1 + $0x1118] sm:$0xff]
  %v575 = vld [vmem:[%s1 + $0x1120] sm:$0xff]
  %v576 = vld [vmem:[%s1 + $0x1128] sm:$0xff]
  %v577 = vld [vmem:[%s1 + $0x1130] sm:$0xff]
  %v578 = vld [vmem:[%s1 + $0x1138] sm:$0xff]
  %v579 = vld [vmem:[%s1 + $0x1140] sm:$0xff]
  %v580 = vld [vmem:[%s1 + $0x1148] sm:$0xff]
  %v581 = vld [vmem:[%s1 + $0x1150] sm:$0xff]
  %v582 = vld [vmem:[%s1 + $0x1158] sm:$0xff]
  %v583 = vld [vmem:[%s1 + $0x1160] sm:$0xff]
  %v584 = vld [vmem:[%s1 + $0x1168] sm:$0xff]
  %v585 = vld [vmem:[%s1 + $0x1170] sm:$0xff]
  %v586 = vld [vmem:[%s1 + $0x1178] sm:$0xff]
  %v587 = vld [vmem:[%s1 + $0x1180] sm:$0xff]
  %v588 = vld [vmem:[%s1 + $0x1188] sm:$0xff]
  %v589 = vld [vmem:[%s1 + $0x1190] sm:$0xff]
  %v590 = vld [vmem:[%s1 + $0x1198] sm:$0xff]
  %v591 = vld [vmem:[%s1 + $0x11a0] sm:$0xff]
  %v592 = vld [vmem:[%s1 + $0x11a8] sm:$0xff]
  %v593 = vld [vmem:[%s1 + $0x11b0] sm:$0xff]
  %v594 = vld [vmem:[%s1 + $0x11b8] sm:$0xff]
  %v595 = vld [vmem:[%s1 + $0x11c0] sm:$0xff]
  %v596 = vld [vmem:[%s1 + $0x11c8] sm:$0xff]
  %v597 = vld [vmem:[%s1 + $0x11d0] sm:$0xff]
  %v598 = vld [vmem:[%s1 + $0x11d8] sm:$0xff]
  %v599 = vld [vmem:[%s1 + $0x11e0] sm:$0xff]
  %v600 = vld [vmem:[%s1 + $0x11e8] sm:$0xff]
  %v601 = vld [vmem:[%s1 + $0x11f0] sm:$0xff]
  %v602 = vld [vmem:[%s1 + $0x11f8] sm:$0xff]
  %v603 = vld [vmem:[%s1 + $0x1200] sm:$0xff]
  %v604 = vld [vmem:[%s1 + $0x1208] sm:$0xff]
  %v605 = vld [vmem:[%s1 + $0x1210] sm:$0xff]
  %v606 = vld [vmem:[%s1 + $0x1218] sm:$0xff]
  %v607 = vld [vmem:[%s1 + $0x1220] sm:$0xff]
  %v608 = vld [vmem:[%s1 + $0x1228] sm:$0xff]
  %v609 = vld [vmem:[%s1 + $0x1230] sm:$0xff]
  %v610 = vld [vmem:[%s1 + $0x1238] sm:$0xff]
  %v611 = vld [vmem:[%s1 + $0x1240] sm:$0xff]
  %v612 = vld [vmem:[%s1 + $0x1248] sm:$0xff]
  %v613 = vld [vmem:[%s1 + $0x1250] sm:$0xff]
  %v614 = vld [vmem:[%s1 + $0x1258] sm:$0xff]
  %v615 = vld [vmem:[%s1 + $0x1260] sm:$0xff]
  %v616 = vld [vmem:[%s1 + $0x1268] sm:$0xff]
  %v617 = vld [vmem:[%s1 + $0x1270] sm:$0xff]
  %v618 = vld [vmem:[%s1 + $0x1278] sm:$0xff]
  %v619 = vld [vmem:[%s1 + $0x1280] sm:$0xff]
  %v620 = vld [vmem:[%s1 + $0x1288] sm:$0xff]
  %v621 = vld [vmem:[%s1 + $0x1290] sm:$0xff]
  %v622 = vld [vmem:[%s1 + $0x1298] sm:$0xff]
  %v623 = vld [vmem:[%s1 + $0x12a0] sm:$0xff]
  %v624 = vld [vmem:[%s1 + $0x12a8] sm:$0xff]
  %v625 = vld [vmem:[%s1 + $0x12b0] sm:$0xff]
  %v626 = vld [vmem:[%s1 + $0x12b8] sm:$0xff]
  %v627 = vld [vmem:[%s1 + $0x12c0] sm:$0xff]
  %v628 = vld [vmem:[%s1 + $0x12c8] sm:$0xff]
  %v629 = vld [vmem:[%s1 + $0x12d0] sm:$0xff]
  %v630 = vld [vmem:[%s1 + $0x12d8] sm:$0xff]
  %v631 = vld [vmem:[%s1 + $0x12e0] sm:$0xff]
  %v632 = vld [vmem:[%s1 + $0x12e8] sm:$0xff]
  %v633 = vld [vmem:[%s1 + $0x12f0] sm:$0xff]
  %v634 = vld [vmem:[%s1 + $0x12f8] sm:$0xff]
  %v635 = vld [vmem:[%s1 + $0x1300] sm:$0xff]
  %v636 = vld [vmem:[%s1 + $0x1308] sm:$0xff]
  %v637 = vld [vmem:[%s1 + $0x1310] sm:$0xff]
  %v638 = vld [vmem:[%s1 + $0x1318] sm:$0xff]
  %v639 = vld [vmem:[%s1 + $0x1320] sm:$0xff]
  %v640 = vld [vmem:[%s1 + $0x1328] sm:$0xff]
  %v641 = vld [vmem:[%s1 + $0x1330] sm:$0xff]
  %v642 = vld [vmem:[%s1 + $0x1338] sm:$0xff]
  %v643 = vld [vmem:[%s1 + $0x1340] sm:$0xff]
  %v644 = vld [vmem:[%s1 + $0x1348] sm:$0xff]
  %v645 = vld [vmem:[%s1 + $0x1350] sm:$0xff]
  %v646 = vld [vmem:[%s1 + $0x1358] sm:$0xff]
  %v647 = vld [vmem:[%s1 + $0x1360] sm:$0xff]
  %v648 = vld [vmem:[%s1 + $0x1368] sm:$0xff]
  %v649 = vld [vmem:[%s1 + $0x1370] sm:$0xff]
  %v650 = vld [vmem:[%s1 + $0x1378] sm:$0xff]
  %v651 = vld [vmem:[%s1 + $0x1380] sm:$0xff]
  %v652 = vld [vmem:[%s1 + $0x1388] sm:$0xff]
  %v653 = vld [vmem:[%s1 + $0x1390] sm:$0xff]
  %v654 = vld [vmem:[%s1 + $0x1398] sm:$0xff]
  %v655 = vld [vmem:[%s1 + $0x13a0] sm:$0xff]
  %v656 = vld [vmem:[%s1 + $0x13a8] sm:$0xff]
  %v657 = vld [vmem:[%s1 + $0x13b0] sm:$0xff]
  %v658 = vld [vmem:[%s1 + $0x13b8] sm:$0xff]
  %v659 = vld [vmem:[%s1 + $0x13c0] sm:$0xff]
  %v660 = vld [vmem:[%s1 + $0x13c8] sm:$0xff]
  %v661 = vld [vmem:[%s1 + $0x13d0] sm:$0xff]
  %v662 = vld [vmem:[%s1 + $0x13d8] sm:$0xff]
  %v663 = vld [vmem:[%s1 + $0x13e0] sm:$0xff]
  %v664 = vld [vmem:[%s1 + $0x13e8] sm:$0xff]
  %v665 = vld [vmem:[%s1 + $0x13f0] sm:$0xff]
  %v666 = vld [vmem:[%s1 + $0x13f8] sm:$0xff]
  %v667 = vld [vmem:[%s1 + $0x1400] sm:$0xff]
  %v668 = vld [vmem:[%s1 + $0x1408] sm:$0xff]
  %v669 = vld [vmem:[%s1 + $0x1410] sm:$0xff]
  %v670 = vld [vmem:[%s1 + $0x1418] sm:$0xff]
  %v671 = vld [vmem:[%s1 + $0x1420] sm:$0xff]
  %v672 = vld [vmem:[%s1 + $0x1428] sm:$0xff]
  %v673 = vld [vmem:[%s1 + $0x1430] sm:$0xff]
  %v674 = vld [vmem:[%s1 + $0x1438] sm:$0xff]
  %v675 = vld [vmem:[%s1 + $0x1440] sm:$0xff]
  %v676 = vld [vmem:[%s1 + $0x1448] sm:$0xff]
  %v677 = vld [vmem:[%s1 + $0x1450] sm:$0xff]
  %v678 = vld [vmem:[%s1 + $0x1458] sm:$0xff]
  %v679 = vld [vmem:[%s1 + $0x1460] sm:$0xff]
  %v680 = vld [vmem:[%s1 + $0x1468] sm:$0xff]
  %v681 = vld [vmem:[%s1 + $0x1470] sm:$0xff]
  %v682 = vld [vmem:[%s1 + $0x1478] sm:$0xff]
  %v683 = vld [vmem:[%s1 + $0x1480] sm:$0xff]
  %v684 = vld [vmem:[%s1 + $0x1488] sm:$0xff]
  %v685 = vld [vmem:[%s1 + $0x1490] sm:$0xff]
  %v686 = vld [vmem:[%s1 + $0x1498] sm:$0xff]
  %v687 = vld [vmem:[%s1 + $0x14a0] sm:$0xff]
  %v688 = vld [vmem:[%s1 + $0x14a8] sm:$0xff]
  %v689 = vld [vmem:[%s1 + $0x14b0] sm:$0xff]
  %v690 = vld [vmem:[%s1 + $0x14b8] sm:$0xff]
  %v691 = vld [vmem:[%s1 + $0x14c0] sm:$0xff]
  %v692 = vld [vmem:[%s1 + $0x14c8] sm:$0xff]
  %v693 = vld [vmem:[%s1 + $0x14d0] sm:$0xff]
  %v694 = vld [vmem:[%s1 + $0x14d8] sm:$0xff]
  %v695 = vld [vmem:[%s1 + $0x14e0] sm:$0xff]
  %v696 = vld [vmem:[%s1 + $0x14e8] sm:$0xff]
  %v697 = vld [vmem:[%s1 + $0x14f0] sm:$0xff]
  %v698 = vld [vmem:[%s1 + $0x14f8] sm:$0xff]
  %v699 = vld [vmem:[%s1 + $0x1500] sm:$0xff]
  %v700 = vld [vmem:[%s1 + $0x1508] sm:$0xff]
  %v701 = vld [vmem:[%s1 + $0x1510] sm:$0xff]
  %v702 = vld [vmem:[%s1 + $0x1518] sm:$0xff]
  %v703 = vld [vmem:[%s1 + $0x1520] sm:$0xff]
  %v704 = vld [vmem:[%s1 + $0x1528] sm:$0xff]
  %v705 = vld [vmem:[%s1 + $0x1530] sm:$0xff]
  %v706 = vld [vmem:[%s1 + $0x1538] sm:$0xff]
  %v707 = vld [vmem:[%s1 + $0x1540] sm:$0xff]
  %v708 = vld [vmem:[%s1 + $0x1548] sm:$0xff]
  %v709 = vld [vmem:[%s1 + $0x1550] sm:$0xff]
  %v710 = vld [vmem:[%s1 + $0x1558] sm:$0xff]
  %v711 = vld [vmem:[%s1 + $0x1560] sm:$0xff]
  %v712 = vld [vmem:[%s1 + $0x1568] sm:$0xff]
  %v713 = vld [vmem:[%s1 + $0x1570] sm:$0xff]
  %v714 = vld [vmem:[%s1 + $0x1578] sm:$0xff]
  %v715 = vld [vmem:[%s1 + $0x1580] sm:$0xff]
  %v716 = vld [vmem:[%s1 + $0x1588] sm:$0xff]
  %v717 = vld [vmem:[%s1 + $0x1590] sm:$0xff]
  %v718 = vld [vmem:[%s1 + $0x1598] sm:$0xff]
  %v719 = vld [vmem:[%s1 + $0x15a0] sm:$0xff]
  %v720 = vld [vmem:[%s1 + $0x15a8] sm:$0xff]
  %v721 = vld [vmem:[%s1 + $0x15b0] sm:$0xff]
  %v722 = vld [vmem:[%s1 + $0x15b8] sm:$0xff]
  %v723 = vld [vmem:[%s1 + $0x15c0] sm:$0xff]
  %v724 = vld [vmem:[%s1 + $0x15c8] sm:$0xff]
  %v725 = vld [vmem:[%s1 + $0x15d0] sm:$0xff]
  %v726 = vld [vmem:[%s1 + $0x15d8] sm:$0xff]
  %v727 = vld [vmem:[%s1 + $0x15e0] sm:$0xff]
  %v728 = vld [vmem:[%s1 + $0x15e8] sm:$0xff]
  %v729 = vld [vmem:[%s1 + $0x15f0] sm:$0xff]
  %v730 = vld [vmem:[%s1 + $0x15f8] sm:$0xff]
  %v731 = vld [vmem:[%s1 + $0x1600] sm:$0xff]
  %v732 = vld [vmem:[%s1 + $0x1608] sm:$0xff]
  %v733 = vld [vmem:[%s1 + $0x1610] sm:$0xff]
  %v734 = vld [vmem:[%s1 + $0x1618] sm:$0xff]
  %v735 = vld [vmem:[%s1 + $0x1620] sm:$0xff]
  %v736 = vld [vmem:[%s1 + $0x1628] sm:$0xff]
  %v737 = vld [vmem:[%s1 + $0x1630] sm:$0xff]
  %v738 = vld [vmem:[%s1 + $0x1638] sm:$0xff]
  %v739 = vld [vmem:[%s1 + $0x1640] sm:$0xff]
  %v740 = vld [vmem:[%s1 + $0x1648] sm:$0xff]
  %v741 = vld [vmem:[%s1 + $0x1650] sm:$0xff]
  %v742 = vld [vmem:[%s1 + $0x1658] sm:$0xff]
  %v743 = vld [vmem:[%s1 + $0x1660] sm:$0xff]
  %v744 = vld [vmem:[%s1 + $0x1668] sm:$0xff]
  %v745 = vld [vmem:[%s1 + $0x1670] sm:$0xff]
  %v746 = vld [vmem:[%s1 + $0x1678] sm:$0xff]
  %v747 = vld [vmem:[%s1 + $0x1680] sm:$0xff]
  %v748 = vld [vmem:[%s1 + $0x1688] sm:$0xff]
  %v749 = vld [vmem:[%s1 + $0x1690] sm:$0xff]
  %v750 = vld [vmem:[%s1 + $0x1698] sm:$0xff]
  %v751 = vld [vmem:[%s1 + $0x16a0] sm:$0xff]
  %v752 = vld [vmem:[%s1 + $0x16a8] sm:$0xff]
  %v753 = vld [vmem:[%s1 + $0x16b0] sm:$0xff]
  %v754 = vld [vmem:[%s1 + $0x16b8] sm:$0xff]
  %v755 = vld [vmem:[%s1 + $0x16c0] sm:$0xff]
  %v756 = vld [vmem:[%s1 + $0x16c8] sm:$0xff]
  %v757 = vld [vmem:[%s1 + $0x16d0] sm:$0xff]
  %v758 = vld [vmem:[%s1 + $0x16d8] sm:$0xff]
  %v759 = vld [vmem:[%s1 + $0x16e0] sm:$0xff]
  %v760 = vld [vmem:[%s1 + $0x16e8] sm:$0xff]
  %v761 = vld [vmem:[%s1 + $0x16f0] sm:$0xff]
  %v762 = vld [vmem:[%s1 + $0x16f8] sm:$0xff]
  %v763 = vld [vmem:[%s1 + $0x1700] sm:$0xff]
  %v764 = vld [vmem:[%s1 + $0x1708] sm:$0xff]
  %v765 = vld [vmem:[%s1 + $0x1710] sm:$0xff]
  %v766 = vld [vmem:[%s1 + $0x1718] sm:$0xff]
  %v767 = vld [vmem:[%s1 + $0x1720] sm:$0xff]
  %v768 = vld [vmem:[%s1 + $0x1728] sm:$0xff]
  %v769 = vld [vmem:[%s1 + $0x1730] sm:$0xff]
  %v770 = vld [vmem:[%s1 + $0x1738] sm:$0xff]
  %v771 = vld [vmem:[%s1 + $0x1740] sm:$0xff]
  %v772 = vld [vmem:[%s1 + $0x1748] sm:$0xff]
  %v773 = vld [vmem:[%s1 + $0x1750] sm:$0xff]
  %v774 = vld [vmem:[%s1 + $0x1758] sm:$0xff]
  %v775 = vld [vmem:[%s1 + $0x1760] sm:$0xff]
  %v776 = vld [vmem:[%s1 + $0x1768] sm:$0xff]
  %v777 = vld [vmem:[%s1 + $0x1770] sm:$0xff]
  %v778 = vld [vmem:[%s1 + $0x1778] sm:$0xff]
  %v779 = vld [vmem:[%s1 + $0x1780] sm:$0xff]
  %v780 = vld [vmem:[%s1 + $0x1788] sm:$0xff]
  %v781 = vld [vmem:[%s1 + $0x1790] sm:$0xff]
  %v782 = vld [vmem:[%s1 + $0x1798] sm:$0xff]
  %v783 = vld [vmem:[%s1 + $0x17a0] sm:$0xff]
  %v784 = vld [vmem:[%s1 + $0x17a8] sm:$0xff]
  %v785 = vld [vmem:[%s1 + $0x17b0] sm:$0xff]
  %v786 = vld [vmem:[%s1 + $0x17b8] sm:$0xff]
  %v787 = vld [vmem:[%s1 + $0x17c0] sm:$0xff]
  %v788 = vld [vmem:[%s1 + $0x17c8] sm:$0xff]
  %v789 = vld [vmem:[%s1 + $0x17d0] sm:$0xff]
  %v790 = vld [vmem:[%s1 + $0x17d8] sm:$0xff]
  %v791 = vld [vmem:[%s1 + $0x17e0] sm:$0xff]
  %v792 = vld [vmem:[%s1 + $0x17e8] sm:$0xff]
  %v793 = vld [vmem:[%s1 + $0x17f0] sm:$0xff]
  %v794 = vld [vmem:[%s1 + $0x17f8] sm:$0xff]
  %v795 = vld [vmem:[%s1 + $0x1800] sm:$0xff]
  %v796 = vld [vmem:[%s1 + $0x1808] sm:$0xff]
  %v797 = vld [vmem:[%s1 + $0x1810] sm:$0xff]
  %v798 = vld [vmem:[%s1 + $0x1818] sm:$0xff]
  %v799 = vld [vmem:[%s1 + $0x1820] sm:$0xff]
  %v800 = vld [vmem:[%s1 + $0x1828] sm:$0xff]
  %v801 = vld [vmem:[%s1 + $0x1830] sm:$0xff]
  %v802 = vld [vmem:[%s1 + $0x1838] sm:$0xff]
  %v803 = vld [vmem:[%s1 + $0x1840] sm:$0xff]
  %v804 = vld [vmem:[%s1 + $0x1848] sm:$0xff]
  %v805 = vld [vmem:[%s1 + $0x1850] sm:$0xff]
  %v806 = vld [vmem:[%s1 + $0x1858] sm:$0xff]
  %v807 = vld [vmem:[%s1 + $0x1860] sm:$0xff]
  %v808 = vld [vmem:[%s1 + $0x1868] sm:$0xff]
  %v809 = vld [vmem:[%s1 + $0x1870] sm:$0xff]
  %v810 = vld [vmem:[%s1 + $0x1878] sm:$0xff]
  %v811 = vld [vmem:[%s1 + $0x1880] sm:$0xff]
  %v812 = vld [vmem:[%s1 + $0x1888] sm:$0xff]
  %v813 = vld [vmem:[%s1 + $0x1890] sm:$0xff]
  %v814 = vld [vmem:[%s1 + $0x1898] sm:$0xff]
  %v815 = vld [vmem:[%s1 + $0x18a0] sm:$0xff]
  %v816 = vld [vmem:[%s1 + $0x18a8] sm:$0xff]
  %v817 = vld [vmem:[%s1 + $0x18b0] sm:$0xff]
  %v818 = vld [vmem:[%s1 + $0x18b8] sm:$0xff]
  %v819 = vld [vmem:[%s1 + $0x18c0] sm:$0xff]
  %v820 = vld [vmem:[%s1 + $0x18c8] sm:$0xff]
  %v821 = vld [vmem:[%s1 + $0x18d0] sm:$0xff]
  %v822 = vld [vmem:[%s1 + $0x18d8] sm:$0xff]
  %v823 = vld [vmem:[%s1 + $0x18e0] sm:$0xff]
  %v824 = vld [vmem:[%s1 + $0x18e8] sm:$0xff]
  %v825 = vld [vmem:[%s1 + $0x18f0] sm:$0xff]
  %v826 = vld [vmem:[%s1 + $0x18f8] sm:$0xff]
  %v827 = vld [vmem:[%s1 + $0x1900] sm:$0xff]
  %v828 = vld [vmem:[%s1 + $0x1908] sm:$0xff]
  %v829 = vld [vmem:[%s1 + $0x1910] sm:$0xff]
  %v830 = vld [vmem:[%s1 + $0x1918] sm:$0xff]
  %v831 = vld [vmem:[%s1 + $0x1920] sm:$0xff]
  %v832 = vld [vmem:[%s1 + $0x1928] sm:$0xff]
  %v833 = vld [vmem:[%s1 + $0x1930] sm:$0xff]
  %v834 = vld [vmem:[%s1 + $0x1938] sm:$0xff]
  %v835 = vld [vmem:[%s1 + $0x1940] sm:$0xff]
  %v836 = vld [vmem:[%s1 + $0x1948] sm:$0xff]
  %v837 = vld [vmem:[%s1 + $0x1950] sm:$0xff]
  %v838 = vld [vmem:[%s1 + $0x1958] sm:$0xff]
  %v839 = vld [vmem:[%s1 + $0x1960] sm:$0xff]
  %v840 = vld [vmem:[%s1 + $0x1968] sm:$0xff]
  %v841 = vld [vmem:[%s1 + $0x1970] sm:$0xff]
  %v842 = vld [vmem:[%s1 + $0x1978] sm:$0xff]
  %v843 = vld [vmem:[%s1 + $0x1980] sm:$0xff]
  %v844 = vld [vmem:[%s1 + $0x1988] sm:$0xff]
  %v845 = vld [vmem:[%s1 + $0x1990] sm:$0xff]
  %v846 = vld [vmem:[%s1 + $0x1998] sm:$0xff]
  %v847 = vld [vmem:[%s1 + $0x19a0] sm:$0xff]
  %v848 = vld [vmem:[%s1 + $0x19a8] sm:$0xff]
  %v849 = vld [vmem:[%s1 + $0x19b0] sm:$0xff]
  %v850 = vld [vmem:[%s1 + $0x19b8] sm:$0xff]
  %v851 = vld [vmem:[%s1 + $0x19c0] sm:$0xff]
  %v852 = vld [vmem:[%s1 + $0x19c8] sm:$0xff]
  %v853 = vld [vmem:[%s1 + $0x19d0] sm:$0xff]
  %v854 = vld [vmem:[%s1 + $0x19d8] sm:$0xff]
  %v855 = vld [vmem:[%s1 + $0x19e0] sm:$0xff]
  %v856 = vld [vmem:[%s1 + $0x19e8] sm:$0xff]
  %v857 = vld [vmem:[%s1 + $0x19f0] sm:$0xff]
  %v858 = vld [vmem:[%s1 + $0x19f8] sm:$0xff]
  %v859 = vld [vmem:[%s1 + $0x1a00] sm:$0xff]
  %v860 = vld [vmem:[%s1 + $0x1a08] sm:$0xff]
  %v861 = vld [vmem:[%s1 + $0x1a10] sm:$0xff]
  %v862 = vld [vmem:[%s1 + $0x1a18] sm:$0xff]
  %v863 = vld [vmem:[%s1 + $0x1a20] sm:$0xff]
  %v864 = vld [vmem:[%s1 + $0x1a28] sm:$0xff]
  %v865 = vld [vmem:[%s1 + $0x1a30] sm:$0xff]
  %v866 = vld [vmem:[%s1 + $0x1a38] sm:$0xff]
  %v867 = vld [vmem:[%s1 + $0x1a40] sm:$0xff]
  %v868 = vld [vmem:[%s1 + $0x1a48] sm:$0xff]
  %v869 = vld [vmem:[%s1 + $0x1a50] sm:$0xff]
  %v870 = vld [vmem:[%s1 + $0x1a58] sm:$0xff]
  %v871 = vld [vmem:[%s1 + $0x1a60] sm:$0xff]
  %v872 = vld [vmem:[%s1 + $0x1a68] sm:$0xff]
  %v873 = vld [vmem:[%s1 + $0x1a70] sm:$0xff]
  %v874 = vld [vmem:[%s1 + $0x1a78] sm:$0xff]
  %v875 = vld [vmem:[%s1 + $0x1a80] sm:$0xff]
  %v876 = vld [vmem:[%s1 + $0x1a88] sm:$0xff]
  %v877 = vld [vmem:[%s1 + $0x1a90] sm:$0xff]
  %v878 = vld [vmem:[%s1 + $0x1a98] sm:$0xff]
  %v879 = vld [vmem:[%s1 + $0x1aa0] sm:$0xff]
  %v880 = vld [vmem:[%s1 + $0x1aa8] sm:$0xff]
  %v881 = vld [vmem:[%s1 + $0x1ab0] sm:$0xff]
  %v882 = vld [vmem:[%s1 + $0x1ab8] sm:$0xff]
  %v883 = vld [vmem:[%s1 + $0x1ac0] sm:$0xff]
  %v884 = vld [vmem:[%s1 + $0x1ac8] sm:$0xff]
  %v885 = vld [vmem:[%s1 + $0x1ad0] sm:$0xff]
  %v886 = vld [vmem:[%s1 + $0x1ad8] sm:$0xff]
  %v887 = vld [vmem:[%s1 + $0x1ae0] sm:$0xff]
  %v888 = vld [vmem:[%s1 + $0x1ae8] sm:$0xff]
  %v889 = vld [vmem:[%s1 + $0x1af0] sm:$0xff]
  %v890 = vld [vmem:[%s1 + $0x1af8] sm:$0xff]
  %v891 = vld [vmem:[%s1 + $0x1b00] sm:$0xff]
  %v892 = vld [vmem:[%s1 + $0x1b08] sm:$0xff]
  %v893 = vld [vmem:[%s1 + $0x1b10] sm:$0xff]
  %v894 = vld [vmem:[%s1 + $0x1b18] sm:$0xff]
  %v895 = vld [vmem:[%s1 + $0x1b20] sm:$0xff]
  %v896 = vld [vmem:[%s1 + $0x1b28] sm:$0xff]
  %v897 = vld [vmem:[%s1 + $0x1b30] sm:$0xff]
  %v898 = vld [vmem:[%s1 + $0x1b38] sm:$0xff]
  %v899 = vld [vmem:[%s1 + $0x1b40] sm:$0xff]
  %v900 = vld [vmem:[%s1 + $0x1b48] sm:$0xff]
  %v901 = vld [vmem:[%s1 + $0x1b50] sm:$0xff]
  %v902 = vld [vmem:[%s1 + $0x1b58] sm:$0xff]
  %v903 = vld [vmem:[%s1 + $0x1b60] sm:$0xff]
  %v904 = vld [vmem:[%s1 + $0x1b68] sm:$0xff]
  %v905 = vld [vmem:[%s1 + $0x1b70] sm:$0xff]
  %v906 = vld [vmem:[%s1 + $0x1b78] sm:$0xff]
  %v907 = vld [vmem:[%s1 + $0x1b80] sm:$0xff]
  %v908 = vld [vmem:[%s1 + $0x1b88] sm:$0xff]
  %v909 = vld [vmem:[%s1 + $0x1b90] sm:$0xff]
  %v910 = vld [vmem:[%s1 + $0x1b98] sm:$0xff]
  %v911 = vld [vmem:[%s1 + $0x1ba0] sm:$0xff]
  %v912 = vld [vmem:[%s1 + $0x1ba8] sm:$0xff]
  %v913 = vld [vmem:[%s1 + $0x1bb0] sm:$0xff]
  %v914 = vld [vmem:[%s1 + $0x1bb8] sm:$0xff]
  %v915 = vld [vmem:[%s1 + $0x1bc0] sm:$0xff]
  %v916 = vld [vmem:[%s1 + $0x1bc8] sm:$0xff]
  %v917 = vld [vmem:[%s1 + $0x1bd0] sm:$0xff]
  %v918 = vld [vmem:[%s1 + $0x1bd8] sm:$0xff]
  %v919 = vld [vmem:[%s1 + $0x1be0] sm:$0xff]
  %v920 = vld [vmem:[%s1 + $0x1be8] sm:$0xff]
  %v921 = vld [vmem:[%s1 + $0x1bf0] sm:$0xff]
  %v922 = vld [vmem:[%s1 + $0x1bf8] sm:$0xff]
  %v923 = vld [vmem:[%s1 + $0x1c00] sm:$0xff]
  %v924 = vld [vmem:[%s1 + $0x1c08] sm:$0xff]
  %v925 = vld [vmem:[%s1 + $0x1c10] sm:$0xff]
  %v926 = vld [vmem:[%s1 + $0x1c18] sm:$0xff]
  %v927 = vld [vmem:[%s1 + $0x1c20] sm:$0xff]
  %v928 = vld [vmem:[%s1 + $0x1c28] sm:$0xff]
  %v929 = vld [vmem:[%s1 + $0x1c30] sm:$0xff]
  %v930 = vld [vmem:[%s1 + $0x1c38] sm:$0xff]
  %v931 = vld [vmem:[%s1 + $0x1c40] sm:$0xff]
  %v932 = vld [vmem:[%s1 + $0x1c48] sm:$0xff]
  %v933 = vld [vmem:[%s1 + $0x1c50] sm:$0xff]
  %v934 = vld [vmem:[%s1 + $0x1c58] sm:$0xff]
  %v935 = vld [vmem:[%s1 + $0x1c60] sm:$0xff]
  %v936 = vld [vmem:[%s1 + $0x1c68] sm:$0xff]
  %v937 = vld [vmem:[%s1 + $0x1c70] sm:$0xff]
  %v938 = vld [vmem:[%s1 + $0x1c78] sm:$0xff]
  %v939 = vld [vmem:[%s1 + $0x1c80] sm:$0xff]
  %v940 = vld [vmem:[%s1 + $0x1c88] sm:$0xff]
  %v941 = vld [vmem:[%s1 + $0x1c90] sm:$0xff]
  %v942 = vld [vmem:[%s1 + $0x1c98] sm:$0xff]
  %v943 = vld [vmem:[%s1 + $0x1ca0] sm:$0xff]
  %v944 = vld [vmem:[%s1 + $0x1ca8] sm:$0xff]
  %v945 = vld [vmem:[%s1 + $0x1cb0] sm:$0xff]
  %v946 = vld [vmem:[%s1 + $0x1cb8] sm:$0xff]
  %v947 = vld [vmem:[%s1 + $0x1cc0] sm:$0xff]
  %v948 = vld [vmem:[%s1 + $0x1cc8] sm:$0xff]
  %v949 = vld [vmem:[%s1 + $0x1cd0] sm:$0xff]
  %v950 = vld [vmem:[%s1 + $0x1cd8] sm:$0xff]
  %v951 = vld [vmem:[%s1 + $0x1ce0] sm:$0xff]
  %v952 = vld [vmem:[%s1 + $0x1ce8] sm:$0xff]
  %v953 = vld [vmem:[%s1 + $0x1cf0] sm:$0xff]
  %v954 = vld [vmem:[%s1 + $0x1cf8] sm:$0xff]
  %v955 = vld [vmem:[%s1 + $0x1d00] sm:$0xff]
  %v956 = vld [vmem:[%s1 + $0x1d08] sm:$0xff]
  %v957 = vld [vmem:[%s1 + $0x1d10] sm:$0xff]
  %v958 = vld [vmem:[%s1 + $0x1d18] sm:$0xff]
  %v959 = vld [vmem:[%s1 + $0x1d20] sm:$0xff]
  %v960 = vld [vmem:[%s1 + $0x1d28] sm:$0xff]
  %v961 = vld [vmem:[%s1 + $0x1d30] sm:$0xff]
  %v962 = vld [vmem:[%s1 + $0x1d38] sm:$0xff]
  %v963 = vld [vmem:[%s1 + $0x1d40] sm:$0xff]
  %v964 = vld [vmem:[%s1 + $0x1d48] sm:$0xff]
  %v965 = vld [vmem:[%s1 + $0x1d50] sm:$0xff]
  %v966 = vld [vmem:[%s1 + $0x1d58] sm:$0xff]
  %v967 = vld [vmem:[%s1 + $0x1d60] sm:$0xff]
  %v968 = vld [vmem:[%s1 + $0x1d68] sm:$0xff]
  %v969 = vld [vmem:[%s1 + $0x1d70] sm:$0xff]
  %v970 = vld [vmem:[%s1 + $0x1d78] sm:$0xff]
  %v971 = vld [vmem:[%s1 + $0x1d80] sm:$0xff]
  %v972 = vld [vmem:[%s1 + $0x1d88] sm:$0xff]
  %v973 = vld [vmem:[%s1 + $0x1d90] sm:$0xff]
  %v974 = vld [vmem:[%s1 + $0x1d98] sm:$0xff]
  %v975 = vld [vmem:[%s1 + $0x1da0] sm:$0xff]
  %v976 = vld [vmem:[%s1 + $0x1da8] sm:$0xff]
  %v977 = vld [vmem:[%s1 + $0x1db0] sm:$0xff]
  %v978 = vld [vmem:[%s1 + $0x1db8] sm:$0xff]
  %v979 = vld [vmem:[%s1 + $0x1dc0] sm:$0xff]
  %v980 = vld [vmem:[%s1 + $0x1dc8] sm:$0xff]
  %v981 = vld [vmem:[%s1 + $0x1dd0] sm:$0xff]
  %v982 = vld [vmem:[%s1 + $0x1dd8] sm:$0xff]
  %v983 = vld [vmem:[%s1 + $0x1de0] sm:$0xff]
  %v984 = vld [vmem:[%s1 + $0x1de8] sm:$0xff]
  %v985 = vld [vmem:[%s1 + $0x1df0] sm:$0xff]
  %v986 = vld [vmem:[%s1 + $0x1df8] sm:$0xff]
  %v987 = vld [vmem:[%s1 + $0x1e00] sm:$0xff]
  %v988 = vld [vmem:[%s1 + $0x1e08] sm:$0xff]
  %v989 = vld [vmem:[%s1 + $0x1e10] sm:$0xff]
  %v990 = vld [vmem:[%s1 + $0x1e18] sm:$0xff]
  %v991 = vld [vmem:[%s1 + $0x1e20] sm:$0xff]
  %v992 = vld [vmem:[%s1 + $0x1e28] sm:$0xff]
  %v993 = vld [vmem:[%s1 + $0x1e30] sm:$0xff]
  %v994 = vld [vmem:[%s1 + $0x1e38] sm:$0xff]
  %v995 = vld [vmem:[%s1 + $0x1e40] sm:$0xff]
  %v996 = vld [vmem:[%s1 + $0x1e48] sm:$0xff]
  %v997 = vld [vmem:[%s1 + $0x1e50] sm:$0xff]
  %v998 = vld [vmem:[%s1 + $0x1e58] sm:$0xff]
  %v999 = vld [vmem:[%s1 + $0x1e60] sm:$0xff]
  %v1000 = vld [vmem:[%s1 + $0x1e68] sm:$0xff]
  %v1001 = vld [vmem:[%s1 + $0x1e70] sm:$0xff]
  %v1002 = vld [vmem:[%s1 + $0x1e78] sm:$0xff]
  %v1003 = vld [vmem:[%s1 + $0x1e80] sm:$0xff]
  %v1004 = vld [vmem:[%s1 + $0x1e88] sm:$0xff]
  %v1005 = vld [vmem:[%s1 + $0x1e90] sm:$0xff]
  %v1006 = vld [vmem:[%s1 + $0x1e98] sm:$0xff]
  %v1007 = vld [vmem:[%s1 + $0x1ea0] sm:$0xff]
  %v1008 = vld [vmem:[%s1 + $0x1ea8] sm:$0xff]
  %v1009 = vld [vmem:[%s1 + $0x1eb0] sm:$0xff]
  %v1010 = vld [vmem:[%s1 + $0x1eb8] sm:$0xff]
  %v1011 = vld [vmem:[%s1 + $0x1ec0] sm:$0xff]
  %v1012 = vld [vmem:[%s1 + $0x1ec8] sm:$0xff]
  %v1013 = vld [vmem:[%s1 + $0x1ed0] sm:$0xff]
  %v1014 = vld [vmem:[%s1 + $0x1ed8] sm:$0xff]
  %v1015 = vld [vmem:[%s1 + $0x1ee0] sm:$0xff]
  %v1016 = vld [vmem:[%s1 + $0x1ee8] sm:$0xff]
  %v1017 = vld [vmem:[%s1 + $0x1ef0] sm:$0xff]
  %v1018 = vld [vmem:[%s1 + $0x1ef8] sm:$0xff]
  %v1019 = vld [vmem:[%s1 + $0x1f00] sm:$0xff]
  %v1020 = vld [vmem:[%s1 + $0x1f08] sm:$0xff]
  %v1021 = vld [vmem:[%s1 + $0x1f10] sm:$0xff]
  %v1022 = vld [vmem:[%s1 + $0x1f18] sm:$0xff]
  %v1023 = vld [vmem:[%s1 + $0x1f20] sm:$0xff]
  %v1024 = vld [vmem:[%s1 + $0x1f28] sm:$0xff]
  %v1025 = vld [vmem:[%s1 + $0x1f30] sm:$0xff]
  %v1026 = vld [vmem:[%s1 + $0x1f38] sm:$0xff]
  %v1027 = vld [vmem:[%s1 + $0x1f40] sm:$0xff]
  %v1028 = vld [vmem:[%s1 + $0x1f48] sm:$0xff]
  %v1029 = vld [vmem:[%s1 + $0x1f50] sm:$0xff]
  %v1030 = vld [vmem:[%s1 + $0x1f58] sm:$0xff]
  %v1031 = vld [vmem:[%s1 + $0x1f60] sm:$0xff]
  %v1032 = vld [vmem:[%s1 + $0x1f68] sm:$0xff]
  %v1033 = vld [vmem:[%s1 + $0x1f70] sm:$0xff]
  %v1034 = vld [vmem:[%s1 + $0x1f78] sm:$0xff]
  %v1035 = vld [vmem:[%s1 + $0x1f80] sm:$0xff]
  %v1036 = vld [vmem:[%s1 + $0x1f88] sm:$0xff]
  %v1037 = vld [vmem:[%s1 + $0x1f90] sm:$0xff]
  %v1038 = vld [vmem:[%s1 + $0x1f98] sm:$0xff]
  %v1039 = vld [vmem:[%s1 + $0x1fa0] sm:$0xff]
  %v1040 = vld [vmem:[%s1 + $0x1fa8] sm:$0xff]
  %v1041 = vld [vmem:[%s1 + $0x1fb0] sm:$0xff]
  %v1042 = vld [vmem:[%s1 + $0x1fb8] sm:$0xff]
  %v1043 = vld [vmem:[%s1 + $0x1fc0] sm:$0xff]
  %v1044 = vld [vmem:[%s1 + $0x1fc8] sm:$0xff]
  %v1045 = vld [vmem:[%s1 + $0x1fd0] sm:$0xff]
  %v1046 = vld [vmem:[%s1 + $0x1fd8] sm:$0xff]
  %v1047 = vld [vmem:[%s1 + $0x1fe0] sm:$0xff]
  %v1048 = vld [vmem:[%s1 + $0x1fe8] sm:$0xff]
  %v1049 = vld [vmem:[%s1 + $0x1ff0] sm:$0xff]
  %v1050 = vld [vmem:[%s1 + $0x1ff8] sm:$0xff]
  %v1051 = vld [vmem:[%s1 + $0x2000] sm:$0xff]
  %v1052 = vld [vmem:[%s1 + $0x2008] sm:$0xff]
  %v1053 = vld [vmem:[%s1 + $0x2010] sm:$0xff]
  %v1054 = vld [vmem:[%s1 + $0x2018] sm:$0xff]
  %v1055 = vld [vmem:[%s1 + $0x2020] sm:$0xff]
  %v1056 = vld [vmem:[%s1 + $0x2028] sm:$0xff]
  %v1057 = vld [vmem:[%s1 + $0x2030] sm:$0xff]
  %v1058 = vld [vmem:[%s1 + $0x2038] sm:$0xff]
  %v1059 = vld [vmem:[%s1 + $0x2040] sm:$0xff]
  %v1060 = vld [vmem:[%s1 + $0x2048] sm:$0xff]
  %v1061 = vld [vmem:[%s1 + $0x2050] sm:$0xff]
  %v1062 = vld [vmem:[%s1 + $0x2058] sm:$0xff]
  %v1063 = vld [vmem:[%s1 + $0x2060] sm:$0xff]
  %v1064 = vld [vmem:[%s1 + $0x2068] sm:$0xff]
  %v1065 = vld [vmem:[%s1 + $0x2070] sm:$0xff]
  %v1066 = vld [vmem:[%s1 + $0x2078] sm:$0xff]
  %v1067 = vld [vmem:[%s1 + $0x2080] sm:$0xff]
  %v1068 = vld [vmem:[%s1 + $0x2088] sm:$0xff]
  %v1069 = vld [vmem:[%s1 + $0x2090] sm:$0xff]
  %v1070 = vld [vmem:[%s1 + $0x2098] sm:$0xff]
  %v1071 = vld [vmem:[%s1 + $0x20a0] sm:$0xff]
  %v1072 = vld [vmem:[%s1 + $0x20a8] sm:$0xff]
  %v1073 = vld [vmem:[%s1 + $0x20b0] sm:$0xff]
  %v1074 = vld [vmem:[%s1 + $0x20b8] sm:$0xff]
  %v1075 = vld [vmem:[%s1 + $0x20c0] sm:$0xff]
  %v1076 = vld [vmem:[%s1 + $0x20c8] sm:$0xff]
  %v1077 = vld [vmem:[%s1 + $0x20d0] sm:$0xff]
  %v1078 = vld [vmem:[%s1 + $0x20d8] sm:$0xff]
  %v1079 = vld [vmem:[%s1 + $0x20e0] sm:$0xff]
  %v1080 = vld [vmem:[%s1 + $0x20e8] sm:$0xff]
  %v1081 = vld [vmem:[%s1 + $0x20f0] sm:$0xff]
  %v1082 = vld [vmem:[%s1 + $0x20f8] sm:$0xff]
  %v1083 = vld [vmem:[%s1 + $0x2100] sm:$0xff]
  %v1084 = vld [vmem:[%s1 + $0x2108] sm:$0xff]
  %v1085 = vld [vmem:[%s1 + $0x2110] sm:$0xff]
  %v1086 = vld [vmem:[%s1 + $0x2118] sm:$0xff]
  %v1087 = vld [vmem:[%s1 + $0x2120] sm:$0xff]
  %v1088 = vld [vmem:[%s1 + $0x2128] sm:$0xff]
  %v1089 = vld [vmem:[%s1 + $0x2130] sm:$0xff]
  %v1090 = vld [vmem:[%s1 + $0x2138] sm:$0xff]
  %v1091 = vld [vmem:[%s1 + $0x2140] sm:$0xff]
  %v1092 = vld [vmem:[%s1 + $0x2148] sm:$0xff]
  %v1093 = vld [vmem:[%s1 + $0x2150] sm:$0xff]
  %v1094 = vld [vmem:[%s1 + $0x2158] sm:$0xff]
  %v1095 = vld [vmem:[%s1 + $0x2160] sm:$0xff]
  %v1096 = vld [vmem:[%s1 + $0x2168] sm:$0xff]
  %v1097 = vld [vmem:[%s1 + $0x2170] sm:$0xff]
  %v1098 = vld [vmem:[%s1 + $0x2178] sm:$0xff]
  %v1099 = vld [vmem:[%s1 + $0x2180] sm:$0xff]
  %v1100 = vld [vmem:[%s1 + $0x2188] sm:$0xff]
  %v1101 = vld [vmem:[%s1 + $0x2190] sm:$0xff]
  %v1102 = vld [vmem:[%s1 + $0x2198] sm:$0xff]
  %v1103 = vld [vmem:[%s1 + $0x21a0] sm:$0xff]
  %v1104 = vld [vmem:[%s1 + $0x21a8] sm:$0xff]
  %v1105 = vld [vmem:[%s1 + $0x21b0] sm:$0xff]
  %v1106 = vld [vmem:[%s1 + $0x21b8] sm:$0xff]
  %v1107 = vld [vmem:[%s1 + $0x21c0] sm:$0xff]
  %v1108 = vld [vmem:[%s1 + $0x21c8] sm:$0xff]
  %v1109 = vld [vmem:[%s1 + $0x21d0] sm:$0xff]
  %v1110 = vld [vmem:[%s1 + $0x21d8] sm:$0xff]
  %v1111 = vld [vmem:[%s1 + $0x21e0] sm:$0xff]
  %v1112 = vld [vmem:[%s1 + $0x21e8] sm:$0xff]
  %v1113 = vld [vmem:[%s1 + $0x21f0] sm:$0xff]
  %v1114 = vld [vmem:[%s1 + $0x21f8] sm:$0xff]
  %v1115 = vld [vmem:[%s1 + $0x2200] sm:$0xff]
  %v1116 = vld [vmem:[%s1 + $0x2208] sm:$0xff]
  %v1117 = vld [vmem:[%s1 + $0x2210] sm:$0xff]
  %v1118 = vld [vmem:[%s1 + $0x2218] sm:$0xff]
  %v1119 = vld [vmem:[%s1 + $0x2220] sm:$0xff]
  %v1120 = vld [vmem:[%s1 + $0x2228] sm:$0xff]
  %v1121 = vld [vmem:[%s1 + $0x2230] sm:$0xff]
  %v1122 = vld [vmem:[%s1 + $0x2238] sm:$0xff]
  %v1123 = vld [vmem:[%s1 + $0x2240] sm:$0xff]
  %v1124 = vld [vmem:[%s1 + $0x2248] sm:$0xff]
  %v1125 = vld [vmem:[%s1 + $0x2250] sm:$0xff]
  %v1126 = vld [vmem:[%s1 + $0x2258] sm:$0xff]
  %v1127 = vld [vmem:[%s1 + $0x2260] sm:$0xff]
  %v1128 = vld [vmem:[%s1 + $0x2268] sm:$0xff]
  %v1129 = vld [vmem:[%s1 + $0x2270] sm:$0xff]
  %v1130 = vld [vmem:[%s1 + $0x2278] sm:$0xff]
  %v1131 = vld [vmem:[%s1 + $0x2280] sm:$0xff]
  %v1132 = vld [vmem:[%s1 + $0x2288] sm:$0xff]
  %v1133 = vld [vmem:[%s1 + $0x2290] sm:$0xff]
  %v1134 = vld [vmem:[%s1 + $0x2298] sm:$0xff]
  %v1135 = vld [vmem:[%s1 + $0x22a0] sm:$0xff]
  %v1136 = vld [vmem:[%s1 + $0x22a8] sm:$0xff]
  %v1137 = vld [vmem:[%s1 + $0x22b0] sm:$0xff]
  %v1138 = vld [vmem:[%s1 + $0x22b8] sm:$0xff]
  %v1139 = vld [vmem:[%s1 + $0x22c0] sm:$0xff]
  %v1140 = vld [vmem:[%s1 + $0x22c8] sm:$0xff]
  %v1141 = vld [vmem:[%s1 + $0x22d0] sm:$0xff]
  %v1142 = vld [vmem:[%s1 + $0x22d8] sm:$0xff]
  %v1143 = vld [vmem:[%s1 + $0x22e0] sm:$0xff]
  %v1144 = vld [vmem:[%s1 + $0x22e8] sm:$0xff]
  %v1145 = vld [vmem:[%s1 + $0x22f0] sm:$0xff]
  %v1146 = vld [vmem:[%s1 + $0x22f8] sm:$0xff]
  %v1147 = vld [vmem:[%s1 + $0x2300] sm:$0xff]
  %v1148 = vld [vmem:[%s1 + $0x2308] sm:$0xff]
  %v1149 = vld [vmem:[%s1 + $0x2310] sm:$0xff]
  %v1150 = vld [vmem:[%s1 + $0x2318] sm:$0xff]
  %v1151 = vld [vmem:[%s1 + $0x2320] sm:$0xff]
  %v1152 = vld [vmem:[%s1 + $0x2328] sm:$0xff]
  %v1153 = vld [vmem:[%s1 + $0x2330] sm:$0xff]
  %v1154 = vld [vmem:[%s1 + $0x2338] sm:$0xff]
  %v1155 = vld [vmem:[%s1 + $0x2340] sm:$0xff]
  %v1156 = vld [vmem:[%s1 + $0x2348] sm:$0xff]
  %v1157 = vld [vmem:[%s1 + $0x2350] sm:$0xff]
  %v1158 = vld [vmem:[%s1 + $0x2358] sm:$0xff]
  %v1159 = vld [vmem:[%s1 + $0x2360] sm:$0xff]
  %v1160 = vld [vmem:[%s1 + $0x2368] sm:$0xff]
  %v1161 = vld [vmem:[%s1 + $0x2370] sm:$0xff]
  %v1162 = vld [vmem:[%s1 + $0x2378] sm:$0xff]
  %v1163 = vld [vmem:[%s1 + $0x2380] sm:$0xff]
  %v1164 = vld [vmem:[%s1 + $0x2388] sm:$0xff]
  %v1165 = vld [vmem:[%s1 + $0x2390] sm:$0xff]
  %v1166 = vld [vmem:[%s1 + $0x2398] sm:$0xff]
  %v1167 = vld [vmem:[%s1 + $0x23a0] sm:$0xff]
  %v1168 = vld [vmem:[%s1 + $0x23a8] sm:$0xff]
  %v1169 = vld [vmem:[%s1 + $0x23b0] sm:$0xff]
  %v1170 = vld [vmem:[%s1 + $0x23b8] sm:$0xff]
  %v1171 = vld [vmem:[%s1 + $0x23c0] sm:$0xff]
  %v1172 = vld [vmem:[%s1 + $0x23c8] sm:$0xff]
  %v1173 = vld [vmem:[%s1 + $0x23d0] sm:$0xff]
  %v1174 = vld [vmem:[%s1 + $0x23d8] sm:$0xff]
  %v1175 = vld [vmem:[%s1 + $0x23e0] sm:$0xff]
  %v1176 = vld [vmem:[%s1 + $0x23e8] sm:$0xff]
  %v1177 = vld [vmem:[%s1 + $0x23f0] sm:$0xff]
  %v1178 = vld [vmem:[%s1 + $0x23f8] sm:$0xff]
  %v1179 = vld [vmem:[%s1 + $0x2400] sm:$0xff]
  %v1180 = vld [vmem:[%s1 + $0x2408] sm:$0xff]
  %v1181 = vld [vmem:[%s1 + $0x2410] sm:$0xff]
  %v1182 = vld [vmem:[%s1 + $0x2418] sm:$0xff]
  %v1183 = vld [vmem:[%s1 + $0x2420] sm:$0xff]
  %v1184 = vld [vmem:[%s1 + $0x2428] sm:$0xff]
  %v1185 = vld [vmem:[%s1 + $0x2430] sm:$0xff]
  %v1186 = vld [vmem:[%s1 + $0x2438] sm:$0xff]
  %v1187 = vld [vmem:[%s1 + $0x2440] sm:$0xff]
  %v1188 = vld [vmem:[%s1 + $0x2448] sm:$0xff]
  %v1189 = vld [vmem:[%s1 + $0x2450] sm:$0xff]
  %v1190 = vld [vmem:[%s1 + $0x2458] sm:$0xff]
  %v1191 = vld [vmem:[%s1 + $0x2460] sm:$0xff]
  %v1192 = vld [vmem:[%s1 + $0x2468] sm:$0xff]
  %v1193 = vld [vmem:[%s1 + $0x2470] sm:$0xff]
  %v1194 = vld [vmem:[%s1 + $0x2478] sm:$0xff]
  %v1195 = vld [vmem:[%s1 + $0x2480] sm:$0xff]
  %v1196 = vld [vmem:[%s1 + $0x2488] sm:$0xff]
  %v1197 = vld [vmem:[%s1 + $0x2490] sm:$0xff]
  %v1198 = vld [vmem:[%s1 + $0x2498] sm:$0xff]
  %v1199 = vld [vmem:[%s1 + $0x24a0] sm:$0xff]
  %v1200 = vld [vmem:[%s1 + $0x24a8] sm:$0xff]
  %v1201 = vld [vmem:[%s1 + $0x24b0] sm:$0xff]
  %v1202 = vld [vmem:[%s1 + $0x24b8] sm:$0xff]
  %v1203 = vld [vmem:[%s1 + $0x24c0] sm:$0xff]
  %v1204 = vld [vmem:[%s1 + $0x24c8] sm:$0xff]
  %v1205 = vld [vmem:[%s1 + $0x24d0] sm:$0xff]
  %v1206 = vld [vmem:[%s1 + $0x24d8] sm:$0xff]
  %v1207 = vld [vmem:[%s1 + $0x24e0] sm:$0xff]
  %v1208 = vld [vmem:[%s1 + $0x24e8] sm:$0xff]
  %v1209 = vld [vmem:[%s1 + $0x24f0] sm:$0xff]
  %v1210 = vld [vmem:[%s1 + $0x24f8] sm:$0xff]
  %v1211 = vld [vmem:[%s1 + $0x2500] sm:$0xff]
  %v1212 = vld [vmem:[%s1 + $0x2508] sm:$0xff]
  %v1213 = vld [vmem:[%s1 + $0x2510] sm:$0xff]
  %v1214 = vld [vmem:[%s1 + $0x2518] sm:$0xff]
  %v1215 = vld [vmem:[%s1 + $0x2520] sm:$0xff]
  %v1216 = vld [vmem:[%s1 + $0x2528] sm:$0xff]
  %v1217 = vld [vmem:[%s1 + $0x2530] sm:$0xff]
  %v1218 = vld [vmem:[%s1 + $0x2538] sm:$0xff]
  %v1219 = vld [vmem:[%s1 + $0x2540] sm:$0xff]
  %v1220 = vld [vmem:[%s1 + $0x2548] sm:$0xff]
  %v1221 = vld [vmem:[%s1 + $0x2550] sm:$0xff]
  %v1222 = vld [vmem:[%s1 + $0x2558] sm:$0xff]
  %v1223 = vld [vmem:[%s1 + $0x2560] sm:$0xff]
  %v1224 = vld [vmem:[%s1 + $0x2568] sm:$0xff]
  %v1225 = vld [vmem:[%s1 + $0x2570] sm:$0xff]
  %v1226 = vld [vmem:[%s1 + $0x2578] sm:$0xff]
  %v1227 = vld [vmem:[%s1 + $0x2580] sm:$0xff]
  %v1228 = vld [vmem:[%s1 + $0x2588] sm:$0xff]
  %v1229 = vld [vmem:[%s1 + $0x2590] sm:$0xff]
  %v1230 = vld [vmem:[%s1 + $0x2598] sm:$0xff]
  %v1231 = vld [vmem:[%s1 + $0x25a0] sm:$0xff]
  %v1232 = vld [vmem:[%s1 + $0x25a8] sm:$0xff]
  %v1233 = vld [vmem:[%s1 + $0x25b0] sm:$0xff]
  %v1234 = vld [vmem:[%s1 + $0x25b8] sm:$0xff]
  %v1235 = vld [vmem:[%s1 + $0x25c0] sm:$0xff]
  %v1236 = vld [vmem:[%s1 + $0x25c8] sm:$0xff]
  %v1237 = vld [vmem:[%s1 + $0x25d0] sm:$0xff]
  %v1238 = vld [vmem:[%s1 + $0x25d8] sm:$0xff]
  %v1239 = vld [vmem:[%s1 + $0x25e0] sm:$0xff]
  %v1240 = vld [vmem:[%s1 + $0x25e8] sm:$0xff]
  %v1241 = vld [vmem:[%s1 + $0x25f0] sm:$0xff]
  %v1242 = vld [vmem:[%s1 + $0x25f8] sm:$0xff]
  %v1243 = vld [vmem:[%s1 + $0x2600] sm:$0xff]
  %v1244 = vld [vmem:[%s1 + $0x2608] sm:$0xff]
  %v1245 = vld [vmem:[%s1 + $0x2610] sm:$0xff]
  %v1246 = vld [vmem:[%s1 + $0x2618] sm:$0xff]
  %v1247 = vld [vmem:[%s1 + $0x2620] sm:$0xff]
  %v1248 = vld [vmem:[%s1 + $0x2628] sm:$0xff]
  %v1249 = vld [vmem:[%s1 + $0x2630] sm:$0xff]
  %v1250 = vld [vmem:[%s1 + $0x2638] sm:$0xff]
  %v1251 = vld [vmem:[%s1 + $0x2640] sm:$0xff]
  %v1252 = vld [vmem:[%s1 + $0x2648] sm:$0xff]
  %v1253 = vld [vmem:[%s1 + $0x2650] sm:$0xff]
  %v1254 = vld [vmem:[%s1 + $0x2658] sm:$0xff]
  %v1255 = vld [vmem:[%s1 + $0x2660] sm:$0xff]
  %v1256 = vld [vmem:[%s1 + $0x2668] sm:$0xff]
  %v1257 = vld [vmem:[%s1 + $0x2670] sm:$0xff]
  %v1258 = vld [vmem:[%s1 + $0x2678] sm:$0xff]
  %v1259 = vld [vmem:[%s1 + $0x2680] sm:$0xff]
  %v1260 = vld [vmem:[%s1 + $0x2688] sm:$0xff]
  %v1261 = vld [vmem:[%s1 + $0x2690] sm:$0xff]
  %v1262 = vld [vmem:[%s1 + $0x2698] sm:$0xff]
  %v1263 = vld [vmem:[%s1 + $0x26a0] sm:$0xff]
  %v1264 = vld [vmem:[%s1 + $0x26a8] sm:$0xff]
  %v1265 = vld [vmem:[%s1 + $0x26b0] sm:$0xff]
  %v1266 = vld [vmem:[%s1 + $0x26b8] sm:$0xff]
  %v1267 = vld [vmem:[%s1 + $0x26c0] sm:$0xff]
  %v1268 = vld [vmem:[%s1 + $0x26c8] sm:$0xff]
  %v1269 = vld [vmem:[%s1 + $0x26d0] sm:$0xff]
  %v1270 = vld [vmem:[%s1 + $0x26d8] sm:$0xff]
  %v1271 = vld [vmem:[%s1 + $0x26e0] sm:$0xff]
  %v1272 = vld [vmem:[%s1 + $0x26e8] sm:$0xff]
  %v1273 = vld [vmem:[%s1 + $0x26f0] sm:$0xff]
  %v1274 = vld [vmem:[%s1 + $0x26f8] sm:$0xff]
  %v1275 = vld [vmem:[%s1 + $0x2700] sm:$0xff]
  %v1276 = vld [vmem:[%s1 + $0x2708] sm:$0xff]
  %v1277 = vld [vmem:[%s1 + $0x2710] sm:$0xff]
  %v1278 = vld [vmem:[%s1 + $0x2718] sm:$0xff]
  %v1279 = vld [vmem:[%s1 + $0x2720] sm:$0xff]
  %v1280 = vld [vmem:[%s1 + $0x2728] sm:$0xff]
  %v1281 = vld [vmem:[%s1 + $0x2730] sm:$0xff]
  %v1282 = vld [vmem:[%s1 + $0x2738] sm:$0xff]
  %v1283 = vld [vmem:[%s1 + $0x2740] sm:$0xff]
  %v1284 = vld [vmem:[%s1 + $0x2748] sm:$0xff]
  %v1285 = vld [vmem:[%s1 + $0x2750] sm:$0xff]
  %v1286 = vld [vmem:[%s1 + $0x2758] sm:$0xff]
  %v1287 = vld [vmem:[%s1 + $0x2760] sm:$0xff]
  %v1288 = vld [vmem:[%s1 + $0x2768] sm:$0xff]
  %v1289 = vld [vmem:[%s1 + $0x2770] sm:$0xff]
  %v1290 = vld [vmem:[%s1 + $0x2778] sm:$0xff]
  %v1291 = vld [vmem:[%s1 + $0x2780] sm:$0xff]
  %v1292 = vld [vmem:[%s1 + $0x2788] sm:$0xff]
  %v1293 = vld [vmem:[%s1 + $0x2790] sm:$0xff]
  %v1294 = vld [vmem:[%s1 + $0x2798] sm:$0xff]
  %v1295 = vld [vmem:[%s1 + $0x27a0] sm:$0xff]
  %v1296 = vld [vmem:[%s1 + $0x27a8] sm:$0xff]
  %v1297 = vld [vmem:[%s1 + $0x27b0] sm:$0xff]
  %v1298 = vld [vmem:[%s1 + $0x27b8] sm:$0xff]
  %v1299 = vld [vmem:[%s1 + $0x27c0] sm:$0xff]
  %v1300 = vld [vmem:[%s1 + $0x27c8] sm:$0xff]
  %v1301 = vld [vmem:[%s1 + $0x27d0] sm:$0xff]
  %v1302 = vld [vmem:[%s1 + $0x27d8] sm:$0xff]
  %v1303 = vld [vmem:[%s1 + $0x27e0] sm:$0xff]
  %v1304 = vld [vmem:[%s1 + $0x27e8] sm:$0xff]
  %v1305 = vld [vmem:[%s1 + $0x27f0] sm:$0xff]
  %v1306 = vld [vmem:[%s1 + $0x27f8] sm:$0xff]
  %v1307 = vld [vmem:[%s2] sm:$0xff]
  %v1308 = vld [vmem:[%s2 + $0x8] sm:$0xff]
  %v1309 = vld [vmem:[%s2 + $0x10] sm:$0xf]
  %v1313 = vperm.slane %v1307, 0
  %v1314 = vperm.slane %v1307, 1
  %v1315 = vperm.slane %v1307, 2
  %v1316 = vperm.slane %v1307, 3
  %v1317 = vperm.slane %v1307, 4
  %v1318 = vperm.slane %v1307, 5
  %v1319 = vperm.slane %v1307, 6
  %v1320 = vperm.slane %v1307, 7
  %v1321 = vperm.slane %v1308, 0
  %v1322 = vperm.slane %v1308, 1
  %v1323 = vperm.slane %v1308, 2
  %v1324 = vperm.slane %v1308, 3
  %v1325 = vperm.slane %v1308, 4
  %v1326 = vperm.slane %v1308, 5
  %v1327 = vperm.slane %v1308, 6
  %v1328 = vperm.slane %v1308, 7
  %v1329 = vperm.slane %v1309, 0
  %v1330 = vperm.slane %v1309, 1
  %v1331 = vperm.slane %v1309, 2
  %v1332 = vperm.slane %v1309, 3
  %1354 = vst [vmem:[#allocation1] ss:$9 sm:$0xff] %v26
  %v1355 = vld [vmem:[#allocation1] sm:$0xff]
  %v1356 = vld [vmem:[#allocation1 + $0x9] sm:$0xff]
  %v1357 = vld [vmem:[#allocation1 + $0x12] sm:$0xff]
  %v1358 = vld [vmem:[#allocation1 + $0x1b] sm:$0xff]
  %v1359 = vld [vmem:[#allocation1 + $0x24] sm:$0xff]
  %v1360 = vld [vmem:[#allocation1 + $0x2d] sm:$0xff]
  %v1361 = vld [vmem:[#allocation1 + $0x36] sm:$0xff]
  %v1362 = vld [vmem:[#allocation1 + $0x3f] sm:$0xff]
  %v2651 = vunpack.c.l.b16 %v27
  %v2652 = vunpack.c.h.b16 %v27
  %v2653 = vunpack.c.l.b16 %v28
  %v2654 = vunpack.c.h.b16 %v28
  %v2655 = vunpack.c.l.b16 %v29
  %v2656 = vunpack.c.h.b16 %v29
  %v2657 = vunpack.c.l.b16 %v30
  %v2658 = vunpack.c.h.b16 %v30
  %v2659 = vunpack.c.l.b16 %v31
  %v2660 = vunpack.c.h.b16 %v31
  %v2661 = vunpack.c.l.b16 %v32
  %v2662 = vunpack.c.h.b16 %v32
  %v2663 = vunpack.c.l.b16 %v33
  %v2664 = vunpack.c.h.b16 %v33
  %v2665 = vunpack.c.l.b16 %v34
  %v2666 = vunpack.c.h.b16 %v34
  %v2667 = vunpack.c.l.b16 %v35
  %v2668 = vunpack.c.h.b16 %v35
  %v2669 = vunpack.c.l.b16 %v36
  %v2670 = vunpack.c.h.b16 %v36
  %v2671 = vunpack.c.l.b16 %v37
  %v2672 = vunpack.c.h.b16 %v37
  %v2673 = vunpack.c.l.b16 %v38
  %v2674 = vunpack.c.h.b16 %v38
  %v2675 = vunpack.c.l.b16 %v39
  %v2676 = vunpack.c.h.b16 %v39
  %v2677 = vunpack.c.l.b16 %v40
  %v2678 = vunpack.c.h.b16 %v40
  %v2679 = vunpack.c.l.b16 %v41
  %v2680 = vunpack.c.h.b16 %v41
  %v2681 = vunpack.c.l.b16 %v42
  %v2682 = vunpack.c.h.b16 %v42
  %v2683 = vunpack.c.l.b16 %v43
  %v2684 = vunpack.c.h.b16 %v43
  %v2685 = vunpack.c.l.b16 %v44
  %v2686 = vunpack.c.h.b16 %v44
  %v2687 = vunpack.c.l.b16 %v45
  %v2688 = vunpack.c.h.b16 %v45
  %v2689 = vunpack.c.l.b16 %v46
  %v2690 = vunpack.c.h.b16 %v46
  %v2691 = vunpack.c.l.b16 %v47
  %v2692 = vunpack.c.h.b16 %v47
  %v2693 = vunpack.c.l.b16 %v48
  %v2694 = vunpack.c.h.b16 %v48
  %v2695 = vunpack.c.l.b16 %v49
  %v2696 = vunpack.c.h.b16 %v49
  %v2697 = vunpack.c.l.b16 %v50
  %v2698 = vunpack.c.h.b16 %v50
  %v2699 = vunpack.c.l.b16 %v51
  %v2700 = vunpack.c.h.b16 %v51
  %v2701 = vunpack.c.l.b16 %v52
  %v2702 = vunpack.c.h.b16 %v52
  %v2703 = vunpack.c.l.b16 %v53
  %v2704 = vunpack.c.h.b16 %v53
  %v2705 = vunpack.c.l.b16 %v54
  %v2706 = vunpack.c.h.b16 %v54
  %v2707 = vunpack.c.l.b16 %v55
  %v2708 = vunpack.c.h.b16 %v55
  %v2709 = vunpack.c.l.b16 %v56
  %v2710 = vunpack.c.h.b16 %v56
  %v2711 = vunpack.c.l.b16 %v57
  %v2712 = vunpack.c.h.b16 %v57
  %v2713 = vunpack.c.l.b16 %v58
  %v2714 = vunpack.c.h.b16 %v58
  %v2715 = vunpack.c.l.b16 %v59
  %v2716 = vunpack.c.h.b16 %v59
  %v2717 = vunpack.c.l.b16 %v60
  %v2718 = vunpack.c.h.b16 %v60
  %v2719 = vunpack.c.l.b16 %v61
  %v2720 = vunpack.c.h.b16 %v61
  %v2721 = vunpack.c.l.b16 %v62
  %v2722 = vunpack.c.h.b16 %v62
  %v2723 = vunpack.c.l.b16 %v63
  %v2724 = vunpack.c.h.b16 %v63
  %v2725 = vunpack.c.l.b16 %v64
  %v2726 = vunpack.c.h.b16 %v64
  %v2727 = vunpack.c.l.b16 %v65
  %v2728 = vunpack.c.h.b16 %v65
  %v2729 = vunpack.c.l.b16 %v66
  %v2730 = vunpack.c.h.b16 %v66
  %v2731 = vunpack.c.l.b16 %v67
  %v2732 = vunpack.c.h.b16 %v67
  %v2733 = vunpack.c.l.b16 %v68
  %v2734 = vunpack.c.h.b16 %v68
  %v2735 = vunpack.c.l.b16 %v69
  %v2736 = vunpack.c.h.b16 %v69
  %v2737 = vunpack.c.l.b16 %v70
  %v2738 = vunpack.c.h.b16 %v70
  %v2739 = vunpack.c.l.b16 %v71
  %v2740 = vunpack.c.h.b16 %v71
  %v2741 = vunpack.c.l.b16 %v72
  %v2742 = vunpack.c.h.b16 %v72
  %v2743 = vunpack.c.l.b16 %v73
  %v2744 = vunpack.c.h.b16 %v73
  %v2745 = vunpack.c.l.b16 %v74
  %v2746 = vunpack.c.h.b16 %v74
  %v2747 = vunpack.c.l.b16 %v75
  %v2748 = vunpack.c.h.b16 %v75
  %v2749 = vunpack.c.l.b16 %v76
  %v2750 = vunpack.c.h.b16 %v76
  %v2751 = vunpack.c.l.b16 %v77
  %v2752 = vunpack.c.h.b16 %v77
  %v2753 = vunpack.c.l.b16 %v78
  %v2754 = vunpack.c.h.b16 %v78
  %v2755 = vunpack.c.l.b16 %v79
  %v2756 = vunpack.c.h.b16 %v79
  %v2757 = vunpack.c.l.b16 %v80
  %v2758 = vunpack.c.h.b16 %v80
  %v2759 = vunpack.c.l.b16 %v81
  %v2760 = vunpack.c.h.b16 %v81
  %v2761 = vunpack.c.l.b16 %v82
  %v2762 = vunpack.c.h.b16 %v82
  %v2763 = vunpack.c.l.b16 %v83
  %v2764 = vunpack.c.h.b16 %v83
  %v2765 = vunpack.c.l.b16 %v84
  %v2766 = vunpack.c.h.b16 %v84
  %v2767 = vunpack.c.l.b16 %v85
  %v2768 = vunpack.c.h.b16 %v85
  %v2769 = vunpack.c.l.b16 %v86
  %v2770 = vunpack.c.h.b16 %v86
  %v2771 = vunpack.c.l.b16 %v87
  %v2772 = vunpack.c.h.b16 %v87
  %v2773 = vunpack.c.l.b16 %v88
  %v2774 = vunpack.c.h.b16 %v88
  %v2775 = vunpack.c.l.b16 %v89
  %v2776 = vunpack.c.h.b16 %v89
  %v2777 = vunpack.c.l.b16 %v90
  %v2778 = vunpack.c.h.b16 %v90
  %v2779 = vunpack.c.l.b16 %v91
  %v2780 = vunpack.c.h.b16 %v91
  %v2781 = vunpack.c.l.b16 %v92
  %v2782 = vunpack.c.h.b16 %v92
  %v2783 = vunpack.c.l.b16 %v93
  %v2784 = vunpack.c.h.b16 %v93
  %v2785 = vunpack.c.l.b16 %v94
  %v2786 = vunpack.c.h.b16 %v94
  %v2787 = vunpack.c.l.b16 %v95
  %v2788 = vunpack.c.h.b16 %v95
  %v2789 = vunpack.c.l.b16 %v96
  %v2790 = vunpack.c.h.b16 %v96
  %v2791 = vunpack.c.l.b16 %v97
  %v2792 = vunpack.c.h.b16 %v97
  %v2793 = vunpack.c.l.b16 %v98
  %v2794 = vunpack.c.h.b16 %v98
  %v2795 = vunpack.c.l.b16 %v99
  %v2796 = vunpack.c.h.b16 %v99
  %v2797 = vunpack.c.l.b16 %v100
  %v2798 = vunpack.c.h.b16 %v100
  %v2799 = vunpack.c.l.b16 %v101
  %v2800 = vunpack.c.h.b16 %v101
  %v2801 = vunpack.c.l.b16 %v102
  %v2802 = vunpack.c.h.b16 %v102
  %v2803 = vunpack.c.l.b16 %v103
  %v2804 = vunpack.c.h.b16 %v103
  %v2805 = vunpack.c.l.b16 %v104
  %v2806 = vunpack.c.h.b16 %v104
  %v2807 = vunpack.c.l.b16 %v105
  %v2808 = vunpack.c.h.b16 %v105
  %v2809 = vunpack.c.l.b16 %v106
  %v2810 = vunpack.c.h.b16 %v106
  %v2811 = vunpack.c.l.b16 %v107
  %v2812 = vunpack.c.h.b16 %v107
  %v2813 = vunpack.c.l.b16 %v108
  %v2814 = vunpack.c.h.b16 %v108
  %v2815 = vunpack.c.l.b16 %v109
  %v2816 = vunpack.c.h.b16 %v109
  %v2817 = vunpack.c.l.b16 %v110
  %v2818 = vunpack.c.h.b16 %v110
  %v2819 = vunpack.c.l.b16 %v111
  %v2820 = vunpack.c.h.b16 %v111
  %v2821 = vunpack.c.l.b16 %v112
  %v2822 = vunpack.c.h.b16 %v112
  %v2823 = vunpack.c.l.b16 %v113
  %v2824 = vunpack.c.h.b16 %v113
  %v2825 = vunpack.c.l.b16 %v114
  %v2826 = vunpack.c.h.b16 %v114
  %v2827 = vunpack.c.l.b16 %v115
  %v2828 = vunpack.c.h.b16 %v115
  %v2829 = vunpack.c.l.b16 %v116
  %v2830 = vunpack.c.h.b16 %v116
  %v2831 = vunpack.c.l.b16 %v117
  %v2832 = vunpack.c.h.b16 %v117
  %v2833 = vunpack.c.l.b16 %v118
  %v2834 = vunpack.c.h.b16 %v118
  %v2835 = vunpack.c.l.b16 %v119
  %v2836 = vunpack.c.h.b16 %v119
  %v2837 = vunpack.c.l.b16 %v120
  %v2838 = vunpack.c.h.b16 %v120
  %v2839 = vunpack.c.l.b16 %v121
  %v2840 = vunpack.c.h.b16 %v121
  %v2841 = vunpack.c.l.b16 %v122
  %v2842 = vunpack.c.h.b16 %v122
  %v2843 = vunpack.c.l.b16 %v123
  %v2844 = vunpack.c.h.b16 %v123
  %v2845 = vunpack.c.l.b16 %v124
  %v2846 = vunpack.c.h.b16 %v124
  %v2847 = vunpack.c.l.b16 %v125
  %v2848 = vunpack.c.h.b16 %v125
  %v2849 = vunpack.c.l.b16 %v126
  %v2850 = vunpack.c.h.b16 %v126
  %v2851 = vunpack.c.l.b16 %v127
  %v2852 = vunpack.c.h.b16 %v127
  %v2853 = vunpack.c.l.b16 %v128
  %v2854 = vunpack.c.h.b16 %v128
  %v2855 = vunpack.c.l.b16 %v129
  %v2856 = vunpack.c.h.b16 %v129
  %v2857 = vunpack.c.l.b16 %v130
  %v2858 = vunpack.c.h.b16 %v130
  %v2859 = vunpack.c.l.b16 %v131
  %v2860 = vunpack.c.h.b16 %v131
  %v2861 = vunpack.c.l.b16 %v132
  %v2862 = vunpack.c.h.b16 %v132
  %v2863 = vunpack.c.l.b16 %v133
  %v2864 = vunpack.c.h.b16 %v133
  %v2865 = vunpack.c.l.b16 %v134
  %v2866 = vunpack.c.h.b16 %v134
  %v2867 = vunpack.c.l.b16 %v135
  %v2868 = vunpack.c.h.b16 %v135
  %v2869 = vunpack.c.l.b16 %v136
  %v2870 = vunpack.c.h.b16 %v136
  %v2871 = vunpack.c.l.b16 %v137
  %v2872 = vunpack.c.h.b16 %v137
  %v2873 = vunpack.c.l.b16 %v138
  %v2874 = vunpack.c.h.b16 %v138
  %v2875 = vunpack.c.l.b16 %v139
  %v2876 = vunpack.c.h.b16 %v139
  %v2877 = vunpack.c.l.b16 %v140
  %v2878 = vunpack.c.h.b16 %v140
  %v2879 = vunpack.c.l.b16 %v141
  %v2880 = vunpack.c.h.b16 %v141
  %v2881 = vunpack.c.l.b16 %v142
  %v2882 = vunpack.c.h.b16 %v142
  %v2883 = vunpack.c.l.b16 %v143
  %v2884 = vunpack.c.h.b16 %v143
  %v2885 = vunpack.c.l.b16 %v144
  %v2886 = vunpack.c.h.b16 %v144
  %v2887 = vunpack.c.l.b16 %v145
  %v2888 = vunpack.c.h.b16 %v145
  %v2889 = vunpack.c.l.b16 %v146
  %v2890 = vunpack.c.h.b16 %v146
  %v2891 = vunpack.c.l.b16 %v147
  %v2892 = vunpack.c.h.b16 %v147
  %v2893 = vunpack.c.l.b16 %v148
  %v2894 = vunpack.c.h.b16 %v148
  %v2895 = vunpack.c.l.b16 %v149
  %v2896 = vunpack.c.h.b16 %v149
  %v2897 = vunpack.c.l.b16 %v150
  %v2898 = vunpack.c.h.b16 %v150
  %v2899 = vunpack.c.l.b16 %v151
  %v2900 = vunpack.c.h.b16 %v151
  %v2901 = vunpack.c.l.b16 %v152
  %v2902 = vunpack.c.h.b16 %v152
  %v2903 = vunpack.c.l.b16 %v153
  %v2904 = vunpack.c.h.b16 %v153
  %v2905 = vunpack.c.l.b16 %v154
  %v2906 = vunpack.c.h.b16 %v154
  %v2907 = vunpack.c.l.b16 %v155
  %v2908 = vunpack.c.h.b16 %v155
  %v2909 = vunpack.c.l.b16 %v156
  %v2910 = vunpack.c.h.b16 %v156
  %v2911 = vunpack.c.l.b16 %v157
  %v2912 = vunpack.c.h.b16 %v157
  %v2913 = vunpack.c.l.b16 %v158
  %v2914 = vunpack.c.h.b16 %v158
  %v2915 = vunpack.c.l.b16 %v159
  %v2916 = vunpack.c.h.b16 %v159
  %v2917 = vunpack.c.l.b16 %v160
  %v2918 = vunpack.c.h.b16 %v160
  %v2919 = vunpack.c.l.b16 %v161
  %v2920 = vunpack.c.h.b16 %v161
  %v2921 = vunpack.c.l.b16 %v162
  %v2922 = vunpack.c.h.b16 %v162
  %v2923 = vunpack.c.l.b16 %v163
  %v2924 = vunpack.c.h.b16 %v163
  %v2925 = vunpack.c.l.b16 %v164
  %v2926 = vunpack.c.h.b16 %v164
  %v2927 = vunpack.c.l.b16 %v165
  %v2928 = vunpack.c.h.b16 %v165
  %v2929 = vunpack.c.l.b16 %v166
  %v2930 = vunpack.c.h.b16 %v166
  %v2931 = vunpack.c.l.b16 %v167
  %v2932 = vunpack.c.h.b16 %v167
  %v2933 = vunpack.c.l.b16 %v168
  %v2934 = vunpack.c.h.b16 %v168
  %v2935 = vunpack.c.l.b16 %v169
  %v2936 = vunpack.c.h.b16 %v169
  %v2937 = vunpack.c.l.b16 %v170
  %v2938 = vunpack.c.h.b16 %v170
  %v2939 = vunpack.c.l.b16 %v171
  %v2940 = vunpack.c.h.b16 %v171
  %v2941 = vunpack.c.l.b16 %v172
  %v2942 = vunpack.c.h.b16 %v172
  %v2943 = vunpack.c.l.b16 %v173
  %v2944 = vunpack.c.h.b16 %v173
  %v2945 = vunpack.c.l.b16 %v174
  %v2946 = vunpack.c.h.b16 %v174
  %v2947 = vunpack.c.l.b16 %v175
  %v2948 = vunpack.c.h.b16 %v175
  %v2949 = vunpack.c.l.b16 %v176
  %v2950 = vunpack.c.h.b16 %v176
  %v2951 = vunpack.c.l.b16 %v177
  %v2952 = vunpack.c.h.b16 %v177
  %v2953 = vunpack.c.l.b16 %v178
  %v2954 = vunpack.c.h.b16 %v178
  %v2955 = vunpack.c.l.b16 %v179
  %v2956 = vunpack.c.h.b16 %v179
  %v2957 = vunpack.c.l.b16 %v180
  %v2958 = vunpack.c.h.b16 %v180
  %v2959 = vunpack.c.l.b16 %v181
  %v2960 = vunpack.c.h.b16 %v181
  %v2961 = vunpack.c.l.b16 %v182
  %v2962 = vunpack.c.h.b16 %v182
  %v2963 = vunpack.c.l.b16 %v183
  %v2964 = vunpack.c.h.b16 %v183
  %v2965 = vunpack.c.l.b16 %v184
  %v2966 = vunpack.c.h.b16 %v184
  %v2967 = vunpack.c.l.b16 %v185
  %v2968 = vunpack.c.h.b16 %v185
  %v2969 = vunpack.c.l.b16 %v186
  %v2970 = vunpack.c.h.b16 %v186
  %v2971 = vunpack.c.l.b16 %v187
  %v2972 = vunpack.c.h.b16 %v187
  %v2973 = vunpack.c.l.b16 %v188
  %v2974 = vunpack.c.h.b16 %v188
  %v2975 = vunpack.c.l.b16 %v189
  %v2976 = vunpack.c.h.b16 %v189
  %v2977 = vunpack.c.l.b16 %v190
  %v2978 = vunpack.c.h.b16 %v190
  %v2979 = vunpack.c.l.b16 %v191
  %v2980 = vunpack.c.h.b16 %v191
  %v2981 = vunpack.c.l.b16 %v192
  %v2982 = vunpack.c.h.b16 %v192
  %v2983 = vunpack.c.l.b16 %v193
  %v2984 = vunpack.c.h.b16 %v193
  %v2985 = vunpack.c.l.b16 %v194
  %v2986 = vunpack.c.h.b16 %v194
  %v2987 = vunpack.c.l.b16 %v195
  %v2988 = vunpack.c.h.b16 %v195
  %v2989 = vunpack.c.l.b16 %v196
  %v2990 = vunpack.c.h.b16 %v196
  %v2991 = vunpack.c.l.b16 %v197
  %v2992 = vunpack.c.h.b16 %v197
  %v2993 = vunpack.c.l.b16 %v198
  %v2994 = vunpack.c.h.b16 %v198
  %v2995 = vunpack.c.l.b16 %v199
  %v2996 = vunpack.c.h.b16 %v199
  %v2997 = vunpack.c.l.b16 %v200
  %v2998 = vunpack.c.h.b16 %v200
  %v2999 = vunpack.c.l.b16 %v201
  %v3000 = vunpack.c.h.b16 %v201
  %v3001 = vunpack.c.l.b16 %v202
  %v3002 = vunpack.c.h.b16 %v202
  %v3003 = vunpack.c.l.b16 %v203
  %v3004 = vunpack.c.h.b16 %v203
  %v3005 = vunpack.c.l.b16 %v204
  %v3006 = vunpack.c.h.b16 %v204
  %v3007 = vunpack.c.l.b16 %v205
  %v3008 = vunpack.c.h.b16 %v205
  %v3009 = vunpack.c.l.b16 %v206
  %v3010 = vunpack.c.h.b16 %v206
  %v3011 = vunpack.c.l.b16 %v207
  %v3012 = vunpack.c.h.b16 %v207
  %v3013 = vunpack.c.l.b16 %v208
  %v3014 = vunpack.c.h.b16 %v208
  %v3015 = vunpack.c.l.b16 %v209
  %v3016 = vunpack.c.h.b16 %v209
  %v3017 = vunpack.c.l.b16 %v210
  %v3018 = vunpack.c.h.b16 %v210
  %v3019 = vunpack.c.l.b16 %v211
  %v3020 = vunpack.c.h.b16 %v211
  %v3021 = vunpack.c.l.b16 %v212
  %v3022 = vunpack.c.h.b16 %v212
  %v3023 = vunpack.c.l.b16 %v213
  %v3024 = vunpack.c.h.b16 %v213
  %v3025 = vunpack.c.l.b16 %v214
  %v3026 = vunpack.c.h.b16 %v214
  %v3027 = vunpack.c.l.b16 %v215
  %v3028 = vunpack.c.h.b16 %v215
  %v3029 = vunpack.c.l.b16 %v216
  %v3030 = vunpack.c.h.b16 %v216
  %v3031 = vunpack.c.l.b16 %v217
  %v3032 = vunpack.c.h.b16 %v217
  %v3033 = vunpack.c.l.b16 %v218
  %v3034 = vunpack.c.h.b16 %v218
  %v3035 = vunpack.c.l.b16 %v219
  %v3036 = vunpack.c.h.b16 %v219
  %v3037 = vunpack.c.l.b16 %v220
  %v3038 = vunpack.c.h.b16 %v220
  %v3039 = vunpack.c.l.b16 %v221
  %v3040 = vunpack.c.h.b16 %v221
  %v3041 = vunpack.c.l.b16 %v222
  %v3042 = vunpack.c.h.b16 %v222
  %v3043 = vunpack.c.l.b16 %v223
  %v3044 = vunpack.c.h.b16 %v223
  %v3045 = vunpack.c.l.b16 %v224
  %v3046 = vunpack.c.h.b16 %v224
  %v3047 = vunpack.c.l.b16 %v225
  %v3048 = vunpack.c.h.b16 %v225
  %v3049 = vunpack.c.l.b16 %v226
  %v3050 = vunpack.c.h.b16 %v226
  %v3051 = vunpack.c.l.b16 %v227
  %v3052 = vunpack.c.h.b16 %v227
  %v3053 = vunpack.c.l.b16 %v228
  %v3054 = vunpack.c.h.b16 %v228
  %v3055 = vunpack.c.l.b16 %v229
  %v3056 = vunpack.c.h.b16 %v229
  %v3057 = vunpack.c.l.b16 %v230
  %v3058 = vunpack.c.h.b16 %v230
  %v3059 = vunpack.c.l.b16 %v231
  %v3060 = vunpack.c.h.b16 %v231
  %v3061 = vunpack.c.l.b16 %v232
  %v3062 = vunpack.c.h.b16 %v232
  %v3063 = vunpack.c.l.b16 %v233
  %v3064 = vunpack.c.h.b16 %v233
  %v3065 = vunpack.c.l.b16 %v234
  %v3066 = vunpack.c.h.b16 %v234
  %v3067 = vunpack.c.l.b16 %v235
  %v3068 = vunpack.c.h.b16 %v235
  %v3069 = vunpack.c.l.b16 %v236
  %v3070 = vunpack.c.h.b16 %v236
  %v3071 = vunpack.c.l.b16 %v237
  %v3072 = vunpack.c.h.b16 %v237
  %v3073 = vunpack.c.l.b16 %v238
  %v3074 = vunpack.c.h.b16 %v238
  %v3075 = vunpack.c.l.b16 %v239
  %v3076 = vunpack.c.h.b16 %v239
  %v3077 = vunpack.c.l.b16 %v240
  %v3078 = vunpack.c.h.b16 %v240
  %v3079 = vunpack.c.l.b16 %v241
  %v3080 = vunpack.c.h.b16 %v241
  %v3081 = vunpack.c.l.b16 %v242
  %v3082 = vunpack.c.h.b16 %v242
  %v3083 = vunpack.c.l.b16 %v243
  %v3084 = vunpack.c.h.b16 %v243
  %v3085 = vunpack.c.l.b16 %v244
  %v3086 = vunpack.c.h.b16 %v244
  %v3087 = vunpack.c.l.b16 %v245
  %v3088 = vunpack.c.h.b16 %v245
  %v3089 = vunpack.c.l.b16 %v246
  %v3090 = vunpack.c.h.b16 %v246
  %v3091 = vunpack.c.l.b16 %v247
  %v3092 = vunpack.c.h.b16 %v247
  %v3093 = vunpack.c.l.b16 %v248
  %v3094 = vunpack.c.h.b16 %v248
  %v3095 = vunpack.c.l.b16 %v249
  %v3096 = vunpack.c.h.b16 %v249
  %v3097 = vunpack.c.l.b16 %v250
  %v3098 = vunpack.c.h.b16 %v250
  %v3099 = vunpack.c.l.b16 %v251
  %v3100 = vunpack.c.h.b16 %v251
  %v3101 = vunpack.c.l.b16 %v252
  %v3102 = vunpack.c.h.b16 %v252
  %v3103 = vunpack.c.l.b16 %v253
  %v3104 = vunpack.c.h.b16 %v253
  %v3105 = vunpack.c.l.b16 %v254
  %v3106 = vunpack.c.h.b16 %v254
  %v3107 = vunpack.c.l.b16 %v255
  %v3108 = vunpack.c.h.b16 %v255
  %v3109 = vunpack.c.l.b16 %v256
  %v3110 = vunpack.c.h.b16 %v256
  %v3111 = vunpack.c.l.b16 %v257
  %v3112 = vunpack.c.h.b16 %v257
  %v3113 = vunpack.c.l.b16 %v258
  %v3114 = vunpack.c.h.b16 %v258
  %v3115 = vunpack.c.l.b16 %v259
  %v3116 = vunpack.c.h.b16 %v259
  %v3117 = vunpack.c.l.b16 %v260
  %v3118 = vunpack.c.h.b16 %v260
  %v3119 = vunpack.c.l.b16 %v261
  %v3120 = vunpack.c.h.b16 %v261
  %v3121 = vunpack.c.l.b16 %v262
  %v3122 = vunpack.c.h.b16 %v262
  %v3123 = vunpack.c.l.b16 %v263
  %v3124 = vunpack.c.h.b16 %v263
  %v3125 = vunpack.c.l.b16 %v264
  %v3126 = vunpack.c.h.b16 %v264
  %v3127 = vunpack.c.l.b16 %v265
  %v3128 = vunpack.c.h.b16 %v265
  %v3129 = vunpack.c.l.b16 %v266
  %v3130 = vunpack.c.h.b16 %v266
  %v3131 = vunpack.c.l.b16 %v267
  %v3132 = vunpack.c.h.b16 %v267
  %v3133 = vunpack.c.l.b16 %v268
  %v3134 = vunpack.c.h.b16 %v268
  %v3135 = vunpack.c.l.b16 %v269
  %v3136 = vunpack.c.h.b16 %v269
  %v3137 = vunpack.c.l.b16 %v270
  %v3138 = vunpack.c.h.b16 %v270
  %v3139 = vunpack.c.l.b16 %v271
  %v3140 = vunpack.c.h.b16 %v271
  %v3141 = vunpack.c.l.b16 %v272
  %v3142 = vunpack.c.h.b16 %v272
  %v3143 = vunpack.c.l.b16 %v273
  %v3144 = vunpack.c.h.b16 %v273
  %v3145 = vunpack.c.l.b16 %v274
  %v3146 = vunpack.c.h.b16 %v274
  %v3147 = vunpack.c.l.b16 %v275
  %v3148 = vunpack.c.h.b16 %v275
  %v3149 = vunpack.c.l.b16 %v276
  %v3150 = vunpack.c.h.b16 %v276
  %v3151 = vunpack.c.l.b16 %v277
  %v3152 = vunpack.c.h.b16 %v277
  %v3153 = vunpack.c.l.b16 %v278
  %v3154 = vunpack.c.h.b16 %v278
  %v3155 = vunpack.c.l.b16 %v279
  %v3156 = vunpack.c.h.b16 %v279
  %v3157 = vunpack.c.l.b16 %v280
  %v3158 = vunpack.c.h.b16 %v280
  %v3159 = vunpack.c.l.b16 %v281
  %v3160 = vunpack.c.h.b16 %v281
  %v3161 = vunpack.c.l.b16 %v282
  %v3162 = vunpack.c.h.b16 %v282
  %v3163 = vunpack.c.l.b16 %v283
  %v3164 = vunpack.c.h.b16 %v283
  %v3165 = vunpack.c.l.b16 %v284
  %v3166 = vunpack.c.h.b16 %v284
  %v3167 = vunpack.c.l.b16 %v285
  %v3168 = vunpack.c.h.b16 %v285
  %v3169 = vunpack.c.l.b16 %v286
  %v3170 = vunpack.c.h.b16 %v286
  %v3171 = vunpack.c.l.b16 %v287
  %v3172 = vunpack.c.h.b16 %v287
  %v3173 = vunpack.c.l.b16 %v288
  %v3174 = vunpack.c.h.b16 %v288
  %v3175 = vunpack.c.l.b16 %v289
  %v3176 = vunpack.c.h.b16 %v289
  %v3177 = vunpack.c.l.b16 %v290
  %v3178 = vunpack.c.h.b16 %v290
  %v3179 = vunpack.c.l.b16 %v291
  %v3180 = vunpack.c.h.b16 %v291
  %v3181 = vunpack.c.l.b16 %v292
  %v3182 = vunpack.c.h.b16 %v292
  %v3183 = vunpack.c.l.b16 %v293
  %v3184 = vunpack.c.h.b16 %v293
  %v3185 = vunpack.c.l.b16 %v294
  %v3186 = vunpack.c.h.b16 %v294
  %v3187 = vunpack.c.l.b16 %v295
  %v3188 = vunpack.c.h.b16 %v295
  %v3189 = vunpack.c.l.b16 %v296
  %v3190 = vunpack.c.h.b16 %v296
  %v3191 = vunpack.c.l.b16 %v297
  %v3192 = vunpack.c.h.b16 %v297
  %v3193 = vunpack.c.l.b16 %v298
  %v3194 = vunpack.c.h.b16 %v298
  %v3195 = vunpack.c.l.b16 %v299
  %v3196 = vunpack.c.h.b16 %v299
  %v3197 = vunpack.c.l.b16 %v300
  %v3198 = vunpack.c.h.b16 %v300
  %v3199 = vunpack.c.l.b16 %v301
  %v3200 = vunpack.c.h.b16 %v301
  %v3201 = vunpack.c.l.b16 %v302
  %v3202 = vunpack.c.h.b16 %v302
  %v3203 = vunpack.c.l.b16 %v303
  %v3204 = vunpack.c.h.b16 %v303
  %v3205 = vunpack.c.l.b16 %v304
  %v3206 = vunpack.c.h.b16 %v304
  %v3207 = vunpack.c.l.b16 %v305
  %v3208 = vunpack.c.h.b16 %v305
  %v3209 = vunpack.c.l.b16 %v306
  %v3210 = vunpack.c.h.b16 %v306
  %v3211 = vunpack.c.l.b16 %v307
  %v3212 = vunpack.c.h.b16 %v307
  %v3213 = vunpack.c.l.b16 %v308
  %v3214 = vunpack.c.h.b16 %v308
  %v3215 = vunpack.c.l.b16 %v309
  %v3216 = vunpack.c.h.b16 %v309
  %v3217 = vunpack.c.l.b16 %v310
  %v3218 = vunpack.c.h.b16 %v310
  %v3219 = vunpack.c.l.b16 %v311
  %v3220 = vunpack.c.h.b16 %v311
  %v3221 = vunpack.c.l.b16 %v312
  %v3222 = vunpack.c.h.b16 %v312
  %v3223 = vunpack.c.l.b16 %v313
  %v3224 = vunpack.c.h.b16 %v313
  %v3225 = vunpack.c.l.b16 %v314
  %v3226 = vunpack.c.h.b16 %v314
  %v3227 = vunpack.c.l.b16 %v315
  %v3228 = vunpack.c.h.b16 %v315
  %v3229 = vunpack.c.l.b16 %v316
  %v3230 = vunpack.c.h.b16 %v316
  %v3231 = vunpack.c.l.b16 %v317
  %v3232 = vunpack.c.h.b16 %v317
  %v3233 = vunpack.c.l.b16 %v318
  %v3234 = vunpack.c.h.b16 %v318
  %v3235 = vunpack.c.l.b16 %v319
  %v3236 = vunpack.c.h.b16 %v319
  %v3237 = vunpack.c.l.b16 %v320
  %v3238 = vunpack.c.h.b16 %v320
  %v3239 = vunpack.c.l.b16 %v321
  %v3240 = vunpack.c.h.b16 %v321
  %v3241 = vunpack.c.l.b16 %v322
  %v3242 = vunpack.c.h.b16 %v322
  %v3243 = vunpack.c.l.b16 %v323
  %v3244 = vunpack.c.h.b16 %v323
  %v3245 = vunpack.c.l.b16 %v324
  %v3246 = vunpack.c.h.b16 %v324
  %v3247 = vunpack.c.l.b16 %v325
  %v3248 = vunpack.c.h.b16 %v325
  %v3249 = vunpack.c.l.b16 %v326
  %v3250 = vunpack.c.h.b16 %v326
  %v3251 = vunpack.c.l.b16 %v327
  %v3252 = vunpack.c.h.b16 %v327
  %v3253 = vunpack.c.l.b16 %v328
  %v3254 = vunpack.c.h.b16 %v328
  %v3255 = vunpack.c.l.b16 %v329
  %v3256 = vunpack.c.h.b16 %v329
  %v3257 = vunpack.c.l.b16 %v330
  %v3258 = vunpack.c.h.b16 %v330
  %v3259 = vunpack.c.l.b16 %v331
  %v3260 = vunpack.c.h.b16 %v331
  %v3261 = vunpack.c.l.b16 %v332
  %v3262 = vunpack.c.h.b16 %v332
  %v3263 = vunpack.c.l.b16 %v333
  %v3264 = vunpack.c.h.b16 %v333
  %v3265 = vunpack.c.l.b16 %v334
  %v3266 = vunpack.c.h.b16 %v334
  %v3267 = vunpack.c.l.b16 %v335
  %v3268 = vunpack.c.h.b16 %v335
  %v3269 = vunpack.c.l.b16 %v336
  %v3270 = vunpack.c.h.b16 %v336
  %v3271 = vunpack.c.l.b16 %v337
  %v3272 = vunpack.c.h.b16 %v337
  %v3273 = vunpack.c.l.b16 %v338
  %v3274 = vunpack.c.h.b16 %v338
  %v3275 = vunpack.c.l.b16 %v339
  %v3276 = vunpack.c.h.b16 %v339
  %v3277 = vunpack.c.l.b16 %v340
  %v3278 = vunpack.c.h.b16 %v340
  %v3279 = vunpack.c.l.b16 %v341
  %v3280 = vunpack.c.h.b16 %v341
  %v3281 = vunpack.c.l.b16 %v342
  %v3282 = vunpack.c.h.b16 %v342
  %v3283 = vunpack.c.l.b16 %v343
  %v3284 = vunpack.c.h.b16 %v343
  %v3285 = vunpack.c.l.b16 %v344
  %v3286 = vunpack.c.h.b16 %v344
  %v3287 = vunpack.c.l.b16 %v345
  %v3288 = vunpack.c.h.b16 %v345
  %v3289 = vunpack.c.l.b16 %v346
  %v3290 = vunpack.c.h.b16 %v346
  %v3291 = vunpack.c.l.b16 %v347
  %v3292 = vunpack.c.h.b16 %v347
  %v3293 = vunpack.c.l.b16 %v348
  %v3294 = vunpack.c.h.b16 %v348
  %v3295 = vunpack.c.l.b16 %v349
  %v3296 = vunpack.c.h.b16 %v349
  %v3297 = vunpack.c.l.b16 %v350
  %v3298 = vunpack.c.h.b16 %v350
  %v3299 = vunpack.c.l.b16 %v351
  %v3300 = vunpack.c.h.b16 %v351
  %v3301 = vunpack.c.l.b16 %v352
  %v3302 = vunpack.c.h.b16 %v352
  %v3303 = vunpack.c.l.b16 %v353
  %v3304 = vunpack.c.h.b16 %v353
  %v3305 = vunpack.c.l.b16 %v354
  %v3306 = vunpack.c.h.b16 %v354
  %v3307 = vunpack.c.l.b16 %v355
  %v3308 = vunpack.c.h.b16 %v355
  %v3309 = vunpack.c.l.b16 %v356
  %v3310 = vunpack.c.h.b16 %v356
  %v3311 = vunpack.c.l.b16 %v357
  %v3312 = vunpack.c.h.b16 %v357
  %v3313 = vunpack.c.l.b16 %v358
  %v3314 = vunpack.c.h.b16 %v358
  %v3315 = vunpack.c.l.b16 %v359
  %v3316 = vunpack.c.h.b16 %v359
  %v3317 = vunpack.c.l.b16 %v360
  %v3318 = vunpack.c.h.b16 %v360
  %v3319 = vunpack.c.l.b16 %v361
  %v3320 = vunpack.c.h.b16 %v361
  %v3321 = vunpack.c.l.b16 %v362
  %v3322 = vunpack.c.h.b16 %v362
  %v3323 = vunpack.c.l.b16 %v363
  %v3324 = vunpack.c.h.b16 %v363
  %v3325 = vunpack.c.l.b16 %v364
  %v3326 = vunpack.c.h.b16 %v364
  %v3327 = vunpack.c.l.b16 %v365
  %v3328 = vunpack.c.h.b16 %v365
  %v3329 = vunpack.c.l.b16 %v366
  %v3330 = vunpack.c.h.b16 %v366
  %v3331 = vunpack.c.l.b16 %v367
  %v3332 = vunpack.c.h.b16 %v367
  %v3333 = vunpack.c.l.b16 %v368
  %v3334 = vunpack.c.h.b16 %v368
  %v3335 = vunpack.c.l.b16 %v369
  %v3336 = vunpack.c.h.b16 %v369
  %v3337 = vunpack.c.l.b16 %v370
  %v3338 = vunpack.c.h.b16 %v370
  %v3339 = vunpack.c.l.b16 %v371
  %v3340 = vunpack.c.h.b16 %v371
  %v3341 = vunpack.c.l.b16 %v372
  %v3342 = vunpack.c.h.b16 %v372
  %v3343 = vunpack.c.l.b16 %v373
  %v3344 = vunpack.c.h.b16 %v373
  %v3345 = vunpack.c.l.b16 %v374
  %v3346 = vunpack.c.h.b16 %v374
  %v3347 = vunpack.c.l.b16 %v375
  %v3348 = vunpack.c.h.b16 %v375
  %v3349 = vunpack.c.l.b16 %v376
  %v3350 = vunpack.c.h.b16 %v376
  %v3351 = vunpack.c.l.b16 %v377
  %v3352 = vunpack.c.h.b16 %v377
  %v3353 = vunpack.c.l.b16 %v378
  %v3354 = vunpack.c.h.b16 %v378
  %v3355 = vunpack.c.l.b16 %v379
  %v3356 = vunpack.c.h.b16 %v379
  %v3357 = vunpack.c.l.b16 %v380
  %v3358 = vunpack.c.h.b16 %v380
  %v3359 = vunpack.c.l.b16 %v381
  %v3360 = vunpack.c.h.b16 %v381
  %v3361 = vunpack.c.l.b16 %v382
  %v3362 = vunpack.c.h.b16 %v382
  %v3363 = vunpack.c.l.b16 %v383
  %v3364 = vunpack.c.h.b16 %v383
  %v3365 = vunpack.c.l.b16 %v384
  %v3366 = vunpack.c.h.b16 %v384
  %v3367 = vunpack.c.l.b16 %v385
  %v3368 = vunpack.c.h.b16 %v385
  %v3369 = vunpack.c.l.b16 %v386
  %v3370 = vunpack.c.h.b16 %v386
  %v3371 = vunpack.c.l.b16 %v387
  %v3372 = vunpack.c.h.b16 %v387
  %v3373 = vunpack.c.l.b16 %v388
  %v3374 = vunpack.c.h.b16 %v388
  %v3375 = vunpack.c.l.b16 %v389
  %v3376 = vunpack.c.h.b16 %v389
  %v3377 = vunpack.c.l.b16 %v390
  %v3378 = vunpack.c.h.b16 %v390
  %v3379 = vunpack.c.l.b16 %v391
  %v3380 = vunpack.c.h.b16 %v391
  %v3381 = vunpack.c.l.b16 %v392
  %v3382 = vunpack.c.h.b16 %v392
  %v3383 = vunpack.c.l.b16 %v393
  %v3384 = vunpack.c.h.b16 %v393
  %v3385 = vunpack.c.l.b16 %v394
  %v3386 = vunpack.c.h.b16 %v394
  %v3387 = vunpack.c.l.b16 %v395
  %v3388 = vunpack.c.h.b16 %v395
  %v3389 = vunpack.c.l.b16 %v396
  %v3390 = vunpack.c.h.b16 %v396
  %v3391 = vunpack.c.l.b16 %v397
  %v3392 = vunpack.c.h.b16 %v397
  %v3393 = vunpack.c.l.b16 %v398
  %v3394 = vunpack.c.h.b16 %v398
  %v3395 = vunpack.c.l.b16 %v399
  %v3396 = vunpack.c.h.b16 %v399
  %v3397 = vunpack.c.l.b16 %v400
  %v3398 = vunpack.c.h.b16 %v400
  %v3399 = vunpack.c.l.b16 %v401
  %v3400 = vunpack.c.h.b16 %v401
  %v3401 = vunpack.c.l.b16 %v402
  %v3402 = vunpack.c.h.b16 %v402
  %v3403 = vunpack.c.l.b16 %v403
  %v3404 = vunpack.c.h.b16 %v403
  %v3405 = vunpack.c.l.b16 %v404
  %v3406 = vunpack.c.h.b16 %v404
  %v3407 = vunpack.c.l.b16 %v405
  %v3408 = vunpack.c.h.b16 %v405
  %v3409 = vunpack.c.l.b16 %v406
  %v3410 = vunpack.c.h.b16 %v406
  %v3411 = vunpack.c.l.b16 %v407
  %v3412 = vunpack.c.h.b16 %v407
  %v3413 = vunpack.c.l.b16 %v408
  %v3414 = vunpack.c.h.b16 %v408
  %v3415 = vunpack.c.l.b16 %v409
  %v3416 = vunpack.c.h.b16 %v409
  %v3417 = vunpack.c.l.b16 %v410
  %v3418 = vunpack.c.h.b16 %v410
  %v3419 = vunpack.c.l.b16 %v411
  %v3420 = vunpack.c.h.b16 %v411
  %v3421 = vunpack.c.l.b16 %v412
  %v3422 = vunpack.c.h.b16 %v412
  %v3423 = vunpack.c.l.b16 %v413
  %v3424 = vunpack.c.h.b16 %v413
  %v3425 = vunpack.c.l.b16 %v414
  %v3426 = vunpack.c.h.b16 %v414
  %v3427 = vunpack.c.l.b16 %v415
  %v3428 = vunpack.c.h.b16 %v415
  %v3429 = vunpack.c.l.b16 %v416
  %v3430 = vunpack.c.h.b16 %v416
  %v3431 = vunpack.c.l.b16 %v417
  %v3432 = vunpack.c.h.b16 %v417
  %v3433 = vunpack.c.l.b16 %v418
  %v3434 = vunpack.c.h.b16 %v418
  %v3435 = vunpack.c.l.b16 %v419
  %v3436 = vunpack.c.h.b16 %v419
  %v3437 = vunpack.c.l.b16 %v420
  %v3438 = vunpack.c.h.b16 %v420
  %v3439 = vunpack.c.l.b16 %v421
  %v3440 = vunpack.c.h.b16 %v421
  %v3441 = vunpack.c.l.b16 %v422
  %v3442 = vunpack.c.h.b16 %v422
  %v3443 = vunpack.c.l.b16 %v423
  %v3444 = vunpack.c.h.b16 %v423
  %v3445 = vunpack.c.l.b16 %v424
  %v3446 = vunpack.c.h.b16 %v424
  %v3447 = vunpack.c.l.b16 %v425
  %v3448 = vunpack.c.h.b16 %v425
  %v3449 = vunpack.c.l.b16 %v426
  %v3450 = vunpack.c.h.b16 %v426
  %v3451 = vunpack.c.l.b16 %v427
  %v3452 = vunpack.c.h.b16 %v427
  %v3453 = vunpack.c.l.b16 %v428
  %v3454 = vunpack.c.h.b16 %v428
  %v3455 = vunpack.c.l.b16 %v429
  %v3456 = vunpack.c.h.b16 %v429
  %v3457 = vunpack.c.l.b16 %v430
  %v3458 = vunpack.c.h.b16 %v430
  %v3459 = vunpack.c.l.b16 %v431
  %v3460 = vunpack.c.h.b16 %v431
  %v3461 = vunpack.c.l.b16 %v432
  %v3462 = vunpack.c.h.b16 %v432
  %v3463 = vunpack.c.l.b16 %v433
  %v3464 = vunpack.c.h.b16 %v433
  %v3465 = vunpack.c.l.b16 %v434
  %v3466 = vunpack.c.h.b16 %v434
  %v3467 = vunpack.c.l.b16 %v435
  %v3468 = vunpack.c.h.b16 %v435
  %v3469 = vunpack.c.l.b16 %v436
  %v3470 = vunpack.c.h.b16 %v436
  %v3471 = vunpack.c.l.b16 %v437
  %v3472 = vunpack.c.h.b16 %v437
  %v3473 = vunpack.c.l.b16 %v438
  %v3474 = vunpack.c.h.b16 %v438
  %v3475 = vunpack.c.l.b16 %v439
  %v3476 = vunpack.c.h.b16 %v439
  %v3477 = vunpack.c.l.b16 %v440
  %v3478 = vunpack.c.h.b16 %v440
  %v3479 = vunpack.c.l.b16 %v441
  %v3480 = vunpack.c.h.b16 %v441
  %v3481 = vunpack.c.l.b16 %v442
  %v3482 = vunpack.c.h.b16 %v442
  %v3483 = vunpack.c.l.b16 %v443
  %v3484 = vunpack.c.h.b16 %v443
  %v3485 = vunpack.c.l.b16 %v444
  %v3486 = vunpack.c.h.b16 %v444
  %v3487 = vunpack.c.l.b16 %v445
  %v3488 = vunpack.c.h.b16 %v445
  %v3489 = vunpack.c.l.b16 %v446
  %v3490 = vunpack.c.h.b16 %v446
  %v3491 = vunpack.c.l.b16 %v447
  %v3492 = vunpack.c.h.b16 %v447
  %v3493 = vunpack.c.l.b16 %v448
  %v3494 = vunpack.c.h.b16 %v448
  %v3495 = vunpack.c.l.b16 %v449
  %v3496 = vunpack.c.h.b16 %v449
  %v3497 = vunpack.c.l.b16 %v450
  %v3498 = vunpack.c.h.b16 %v450
  %v3499 = vunpack.c.l.b16 %v451
  %v3500 = vunpack.c.h.b16 %v451
  %v3501 = vunpack.c.l.b16 %v452
  %v3502 = vunpack.c.h.b16 %v452
  %v3503 = vunpack.c.l.b16 %v453
  %v3504 = vunpack.c.h.b16 %v453
  %v3505 = vunpack.c.l.b16 %v454
  %v3506 = vunpack.c.h.b16 %v454
  %v3507 = vunpack.c.l.b16 %v455
  %v3508 = vunpack.c.h.b16 %v455
  %v3509 = vunpack.c.l.b16 %v456
  %v3510 = vunpack.c.h.b16 %v456
  %v3511 = vunpack.c.l.b16 %v457
  %v3512 = vunpack.c.h.b16 %v457
  %v3513 = vunpack.c.l.b16 %v458
  %v3514 = vunpack.c.h.b16 %v458
  %v3515 = vunpack.c.l.b16 %v459
  %v3516 = vunpack.c.h.b16 %v459
  %v3517 = vunpack.c.l.b16 %v460
  %v3518 = vunpack.c.h.b16 %v460
  %v3519 = vunpack.c.l.b16 %v461
  %v3520 = vunpack.c.h.b16 %v461
  %v3521 = vunpack.c.l.b16 %v462
  %v3522 = vunpack.c.h.b16 %v462
  %v3523 = vunpack.c.l.b16 %v463
  %v3524 = vunpack.c.h.b16 %v463
  %v3525 = vunpack.c.l.b16 %v464
  %v3526 = vunpack.c.h.b16 %v464
  %v3527 = vunpack.c.l.b16 %v465
  %v3528 = vunpack.c.h.b16 %v465
  %v3529 = vunpack.c.l.b16 %v466
  %v3530 = vunpack.c.h.b16 %v466
  %v3531 = vunpack.c.l.b16 %v467
  %v3532 = vunpack.c.h.b16 %v467
  %v3533 = vunpack.c.l.b16 %v468
  %v3534 = vunpack.c.h.b16 %v468
  %v3535 = vunpack.c.l.b16 %v469
  %v3536 = vunpack.c.h.b16 %v469
  %v3537 = vunpack.c.l.b16 %v470
  %v3538 = vunpack.c.h.b16 %v470
  %v3539 = vunpack.c.l.b16 %v471
  %v3540 = vunpack.c.h.b16 %v471
  %v3541 = vunpack.c.l.b16 %v472
  %v3542 = vunpack.c.h.b16 %v472
  %v3543 = vunpack.c.l.b16 %v473
  %v3544 = vunpack.c.h.b16 %v473
  %v3545 = vunpack.c.l.b16 %v474
  %v3546 = vunpack.c.h.b16 %v474
  %v3547 = vunpack.c.l.b16 %v475
  %v3548 = vunpack.c.h.b16 %v475
  %v3549 = vunpack.c.l.b16 %v476
  %v3550 = vunpack.c.h.b16 %v476
  %v3551 = vunpack.c.l.b16 %v477
  %v3552 = vunpack.c.h.b16 %v477
  %v3553 = vunpack.c.l.b16 %v478
  %v3554 = vunpack.c.h.b16 %v478
  %v3555 = vunpack.c.l.b16 %v479
  %v3556 = vunpack.c.h.b16 %v479
  %v3557 = vunpack.c.l.b16 %v480
  %v3558 = vunpack.c.h.b16 %v480
  %v3559 = vunpack.c.l.b16 %v481
  %v3560 = vunpack.c.h.b16 %v481
  %v3561 = vunpack.c.l.b16 %v482
  %v3562 = vunpack.c.h.b16 %v482
  %v3563 = vunpack.c.l.b16 %v483
  %v3564 = vunpack.c.h.b16 %v483
  %v3565 = vunpack.c.l.b16 %v484
  %v3566 = vunpack.c.h.b16 %v484
  %v3567 = vunpack.c.l.b16 %v485
  %v3568 = vunpack.c.h.b16 %v485
  %v3569 = vunpack.c.l.b16 %v486
  %v3570 = vunpack.c.h.b16 %v486
  %v3571 = vunpack.c.l.b16 %v487
  %v3572 = vunpack.c.h.b16 %v487
  %v3573 = vunpack.c.l.b16 %v488
  %v3574 = vunpack.c.h.b16 %v488
  %v3575 = vunpack.c.l.b16 %v489
  %v3576 = vunpack.c.h.b16 %v489
  %v3577 = vunpack.c.l.b16 %v490
  %v3578 = vunpack.c.h.b16 %v490
  %v3579 = vunpack.c.l.b16 %v491
  %v3580 = vunpack.c.h.b16 %v491
  %v3581 = vunpack.c.l.b16 %v492
  %v3582 = vunpack.c.h.b16 %v492
  %v3583 = vunpack.c.l.b16 %v493
  %v3584 = vunpack.c.h.b16 %v493
  %v3585 = vunpack.c.l.b16 %v494
  %v3586 = vunpack.c.h.b16 %v494
  %v3587 = vunpack.c.l.b16 %v495
  %v3588 = vunpack.c.h.b16 %v495
  %v3589 = vunpack.c.l.b16 %v496
  %v3590 = vunpack.c.h.b16 %v496
  %v3591 = vunpack.c.l.b16 %v497
  %v3592 = vunpack.c.h.b16 %v497
  %v3593 = vunpack.c.l.b16 %v498
  %v3594 = vunpack.c.h.b16 %v498
  %v3595 = vunpack.c.l.b16 %v499
  %v3596 = vunpack.c.h.b16 %v499
  %v3597 = vunpack.c.l.b16 %v500
  %v3598 = vunpack.c.h.b16 %v500
  %v3599 = vunpack.c.l.b16 %v501
  %v3600 = vunpack.c.h.b16 %v501
  %v3601 = vunpack.c.l.b16 %v502
  %v3602 = vunpack.c.h.b16 %v502
  %v3603 = vunpack.c.l.b16 %v503
  %v3604 = vunpack.c.h.b16 %v503
  %v3605 = vunpack.c.l.b16 %v504
  %v3606 = vunpack.c.h.b16 %v504
  %v3607 = vunpack.c.l.b16 %v505
  %v3608 = vunpack.c.h.b16 %v505
  %v3609 = vunpack.c.l.b16 %v506
  %v3610 = vunpack.c.h.b16 %v506
  %v3611 = vunpack.c.l.b16 %v507
  %v3612 = vunpack.c.h.b16 %v507
  %v3613 = vunpack.c.l.b16 %v508
  %v3614 = vunpack.c.h.b16 %v508
  %v3615 = vunpack.c.l.b16 %v509
  %v3616 = vunpack.c.h.b16 %v509
  %v3617 = vunpack.c.l.b16 %v510
  %v3618 = vunpack.c.h.b16 %v510
  %v3619 = vunpack.c.l.b16 %v511
  %v3620 = vunpack.c.h.b16 %v511
  %v3621 = vunpack.c.l.b16 %v512
  %v3622 = vunpack.c.h.b16 %v512
  %v3623 = vunpack.c.l.b16 %v513
  %v3624 = vunpack.c.h.b16 %v513
  %v3625 = vunpack.c.l.b16 %v514
  %v3626 = vunpack.c.h.b16 %v514
  %v3627 = vunpack.c.l.b16 %v515
  %v3628 = vunpack.c.h.b16 %v515
  %v3629 = vunpack.c.l.b16 %v516
  %v3630 = vunpack.c.h.b16 %v516
  %v3631 = vunpack.c.l.b16 %v517
  %v3632 = vunpack.c.h.b16 %v517
  %v3633 = vunpack.c.l.b16 %v518
  %v3634 = vunpack.c.h.b16 %v518
  %v3635 = vunpack.c.l.b16 %v519
  %v3636 = vunpack.c.h.b16 %v519
  %v3637 = vunpack.c.l.b16 %v520
  %v3638 = vunpack.c.h.b16 %v520
  %v3639 = vunpack.c.l.b16 %v521
  %v3640 = vunpack.c.h.b16 %v521
  %v3641 = vunpack.c.l.b16 %v522
  %v3642 = vunpack.c.h.b16 %v522
  %v3643 = vunpack.c.l.b16 %v523
  %v3644 = vunpack.c.h.b16 %v523
  %v3645 = vunpack.c.l.b16 %v524
  %v3646 = vunpack.c.h.b16 %v524
  %v3647 = vunpack.c.l.b16 %v525
  %v3648 = vunpack.c.h.b16 %v525
  %v3649 = vunpack.c.l.b16 %v526
  %v3650 = vunpack.c.h.b16 %v526
  %v3651 = vunpack.c.l.b16 %v527
  %v3652 = vunpack.c.h.b16 %v527
  %v3653 = vunpack.c.l.b16 %v528
  %v3654 = vunpack.c.h.b16 %v528
  %v3655 = vunpack.c.l.b16 %v529
  %v3656 = vunpack.c.h.b16 %v529
  %v3657 = vunpack.c.l.b16 %v530
  %v3658 = vunpack.c.h.b16 %v530
  %v3659 = vunpack.c.l.b16 %v531
  %v3660 = vunpack.c.h.b16 %v531
  %v3661 = vunpack.c.l.b16 %v532
  %v3662 = vunpack.c.h.b16 %v532
  %v3663 = vunpack.c.l.b16 %v533
  %v3664 = vunpack.c.h.b16 %v533
  %v3665 = vunpack.c.l.b16 %v534
  %v3666 = vunpack.c.h.b16 %v534
  %v3667 = vunpack.c.l.b16 %v535
  %v3668 = vunpack.c.h.b16 %v535
  %v3669 = vunpack.c.l.b16 %v536
  %v3670 = vunpack.c.h.b16 %v536
  %v3671 = vunpack.c.l.b16 %v537
  %v3672 = vunpack.c.h.b16 %v537
  %v3673 = vunpack.c.l.b16 %v538
  %v3674 = vunpack.c.h.b16 %v538
  %v3675 = vunpack.c.l.b16 %v539
  %v3676 = vunpack.c.h.b16 %v539
  %v3677 = vunpack.c.l.b16 %v540
  %v3678 = vunpack.c.h.b16 %v540
  %v3679 = vunpack.c.l.b16 %v541
  %v3680 = vunpack.c.h.b16 %v541
  %v3681 = vunpack.c.l.b16 %v542
  %v3682 = vunpack.c.h.b16 %v542
  %v3683 = vunpack.c.l.b16 %v543
  %v3684 = vunpack.c.h.b16 %v543
  %v3685 = vunpack.c.l.b16 %v544
  %v3686 = vunpack.c.h.b16 %v544
  %v3687 = vunpack.c.l.b16 %v545
  %v3688 = vunpack.c.h.b16 %v545
  %v3689 = vunpack.c.l.b16 %v546
  %v3690 = vunpack.c.h.b16 %v546
  %v3691 = vunpack.c.l.b16 %v547
  %v3692 = vunpack.c.h.b16 %v547
  %v3693 = vunpack.c.l.b16 %v548
  %v3694 = vunpack.c.h.b16 %v548
  %v3695 = vunpack.c.l.b16 %v549
  %v3696 = vunpack.c.h.b16 %v549
  %v3697 = vunpack.c.l.b16 %v550
  %v3698 = vunpack.c.h.b16 %v550
  %v3699 = vunpack.c.l.b16 %v551
  %v3700 = vunpack.c.h.b16 %v551
  %v3701 = vunpack.c.l.b16 %v552
  %v3702 = vunpack.c.h.b16 %v552
  %v3703 = vunpack.c.l.b16 %v553
  %v3704 = vunpack.c.h.b16 %v553
  %v3705 = vunpack.c.l.b16 %v554
  %v3706 = vunpack.c.h.b16 %v554
  %v3707 = vunpack.c.l.b16 %v555
  %v3708 = vunpack.c.h.b16 %v555
  %v3709 = vunpack.c.l.b16 %v556
  %v3710 = vunpack.c.h.b16 %v556
  %v3711 = vunpack.c.l.b16 %v557
  %v3712 = vunpack.c.h.b16 %v557
  %v3713 = vunpack.c.l.b16 %v558
  %v3714 = vunpack.c.h.b16 %v558
  %v3715 = vunpack.c.l.b16 %v559
  %v3716 = vunpack.c.h.b16 %v559
  %v3717 = vunpack.c.l.b16 %v560
  %v3718 = vunpack.c.h.b16 %v560
  %v3719 = vunpack.c.l.b16 %v561
  %v3720 = vunpack.c.h.b16 %v561
  %v3721 = vunpack.c.l.b16 %v562
  %v3722 = vunpack.c.h.b16 %v562
  %v3723 = vunpack.c.l.b16 %v563
  %v3724 = vunpack.c.h.b16 %v563
  %v3725 = vunpack.c.l.b16 %v564
  %v3726 = vunpack.c.h.b16 %v564
  %v3727 = vunpack.c.l.b16 %v565
  %v3728 = vunpack.c.h.b16 %v565
  %v3729 = vunpack.c.l.b16 %v566
  %v3730 = vunpack.c.h.b16 %v566
  %v3731 = vunpack.c.l.b16 %v567
  %v3732 = vunpack.c.h.b16 %v567
  %v3733 = vunpack.c.l.b16 %v568
  %v3734 = vunpack.c.h.b16 %v568
  %v3735 = vunpack.c.l.b16 %v569
  %v3736 = vunpack.c.h.b16 %v569
  %v3737 = vunpack.c.l.b16 %v570
  %v3738 = vunpack.c.h.b16 %v570
  %v3739 = vunpack.c.l.b16 %v571
  %v3740 = vunpack.c.h.b16 %v571
  %v3741 = vunpack.c.l.b16 %v572
  %v3742 = vunpack.c.h.b16 %v572
  %v3743 = vunpack.c.l.b16 %v573
  %v3744 = vunpack.c.h.b16 %v573
  %v3745 = vunpack.c.l.b16 %v574
  %v3746 = vunpack.c.h.b16 %v574
  %v3747 = vunpack.c.l.b16 %v575
  %v3748 = vunpack.c.h.b16 %v575
  %v3749 = vunpack.c.l.b16 %v576
  %v3750 = vunpack.c.h.b16 %v576
  %v3751 = vunpack.c.l.b16 %v577
  %v3752 = vunpack.c.h.b16 %v577
  %v3753 = vunpack.c.l.b16 %v578
  %v3754 = vunpack.c.h.b16 %v578
  %v3755 = vunpack.c.l.b16 %v579
  %v3756 = vunpack.c.h.b16 %v579
  %v3757 = vunpack.c.l.b16 %v580
  %v3758 = vunpack.c.h.b16 %v580
  %v3759 = vunpack.c.l.b16 %v581
  %v3760 = vunpack.c.h.b16 %v581
  %v3761 = vunpack.c.l.b16 %v582
  %v3762 = vunpack.c.h.b16 %v582
  %v3763 = vunpack.c.l.b16 %v583
  %v3764 = vunpack.c.h.b16 %v583
  %v3765 = vunpack.c.l.b16 %v584
  %v3766 = vunpack.c.h.b16 %v584
  %v3767 = vunpack.c.l.b16 %v585
  %v3768 = vunpack.c.h.b16 %v585
  %v3769 = vunpack.c.l.b16 %v586
  %v3770 = vunpack.c.h.b16 %v586
  %v3771 = vunpack.c.l.b16 %v587
  %v3772 = vunpack.c.h.b16 %v587
  %v3773 = vunpack.c.l.b16 %v588
  %v3774 = vunpack.c.h.b16 %v588
  %v3775 = vunpack.c.l.b16 %v589
  %v3776 = vunpack.c.h.b16 %v589
  %v3777 = vunpack.c.l.b16 %v590
  %v3778 = vunpack.c.h.b16 %v590
  %v3779 = vunpack.c.l.b16 %v591
  %v3780 = vunpack.c.h.b16 %v591
  %v3781 = vunpack.c.l.b16 %v592
  %v3782 = vunpack.c.h.b16 %v592
  %v3783 = vunpack.c.l.b16 %v593
  %v3784 = vunpack.c.h.b16 %v593
  %v3785 = vunpack.c.l.b16 %v594
  %v3786 = vunpack.c.h.b16 %v594
  %v3787 = vunpack.c.l.b16 %v595
  %v3788 = vunpack.c.h.b16 %v595
  %v3789 = vunpack.c.l.b16 %v596
  %v3790 = vunpack.c.h.b16 %v596
  %v3791 = vunpack.c.l.b16 %v597
  %v3792 = vunpack.c.h.b16 %v597
  %v3793 = vunpack.c.l.b16 %v598
  %v3794 = vunpack.c.h.b16 %v598
  %v3795 = vunpack.c.l.b16 %v599
  %v3796 = vunpack.c.h.b16 %v599
  %v3797 = vunpack.c.l.b16 %v600
  %v3798 = vunpack.c.h.b16 %v600
  %v3799 = vunpack.c.l.b16 %v601
  %v3800 = vunpack.c.h.b16 %v601
  %v3801 = vunpack.c.l.b16 %v602
  %v3802 = vunpack.c.h.b16 %v602
  %v3803 = vunpack.c.l.b16 %v603
  %v3804 = vunpack.c.h.b16 %v603
  %v3805 = vunpack.c.l.b16 %v604
  %v3806 = vunpack.c.h.b16 %v604
  %v3807 = vunpack.c.l.b16 %v605
  %v3808 = vunpack.c.h.b16 %v605
  %v3809 = vunpack.c.l.b16 %v606
  %v3810 = vunpack.c.h.b16 %v606
  %v3811 = vunpack.c.l.b16 %v607
  %v3812 = vunpack.c.h.b16 %v607
  %v3813 = vunpack.c.l.b16 %v608
  %v3814 = vunpack.c.h.b16 %v608
  %v3815 = vunpack.c.l.b16 %v609
  %v3816 = vunpack.c.h.b16 %v609
  %v3817 = vunpack.c.l.b16 %v610
  %v3818 = vunpack.c.h.b16 %v610
  %v3819 = vunpack.c.l.b16 %v611
  %v3820 = vunpack.c.h.b16 %v611
  %v3821 = vunpack.c.l.b16 %v612
  %v3822 = vunpack.c.h.b16 %v612
  %v3823 = vunpack.c.l.b16 %v613
  %v3824 = vunpack.c.h.b16 %v613
  %v3825 = vunpack.c.l.b16 %v614
  %v3826 = vunpack.c.h.b16 %v614
  %v3827 = vunpack.c.l.b16 %v615
  %v3828 = vunpack.c.h.b16 %v615
  %v3829 = vunpack.c.l.b16 %v616
  %v3830 = vunpack.c.h.b16 %v616
  %v3831 = vunpack.c.l.b16 %v617
  %v3832 = vunpack.c.h.b16 %v617
  %v3833 = vunpack.c.l.b16 %v618
  %v3834 = vunpack.c.h.b16 %v618
  %v3835 = vunpack.c.l.b16 %v619
  %v3836 = vunpack.c.h.b16 %v619
  %v3837 = vunpack.c.l.b16 %v620
  %v3838 = vunpack.c.h.b16 %v620
  %v3839 = vunpack.c.l.b16 %v621
  %v3840 = vunpack.c.h.b16 %v621
  %v3841 = vunpack.c.l.b16 %v622
  %v3842 = vunpack.c.h.b16 %v622
  %v3843 = vunpack.c.l.b16 %v623
  %v3844 = vunpack.c.h.b16 %v623
  %v3845 = vunpack.c.l.b16 %v624
  %v3846 = vunpack.c.h.b16 %v624
  %v3847 = vunpack.c.l.b16 %v625
  %v3848 = vunpack.c.h.b16 %v625
  %v3849 = vunpack.c.l.b16 %v626
  %v3850 = vunpack.c.h.b16 %v626
  %v3851 = vunpack.c.l.b16 %v627
  %v3852 = vunpack.c.h.b16 %v627
  %v3853 = vunpack.c.l.b16 %v628
  %v3854 = vunpack.c.h.b16 %v628
  %v3855 = vunpack.c.l.b16 %v629
  %v3856 = vunpack.c.h.b16 %v629
  %v3857 = vunpack.c.l.b16 %v630
  %v3858 = vunpack.c.h.b16 %v630
  %v3859 = vunpack.c.l.b16 %v631
  %v3860 = vunpack.c.h.b16 %v631
  %v3861 = vunpack.c.l.b16 %v632
  %v3862 = vunpack.c.h.b16 %v632
  %v3863 = vunpack.c.l.b16 %v633
  %v3864 = vunpack.c.h.b16 %v633
  %v3865 = vunpack.c.l.b16 %v634
  %v3866 = vunpack.c.h.b16 %v634
  %v3867 = vunpack.c.l.b16 %v635
  %v3868 = vunpack.c.h.b16 %v635
  %v3869 = vunpack.c.l.b16 %v636
  %v3870 = vunpack.c.h.b16 %v636
  %v3871 = vunpack.c.l.b16 %v637
  %v3872 = vunpack.c.h.b16 %v637
  %v3873 = vunpack.c.l.b16 %v638
  %v3874 = vunpack.c.h.b16 %v638
  %v3875 = vunpack.c.l.b16 %v639
  %v3876 = vunpack.c.h.b16 %v639
  %v3877 = vunpack.c.l.b16 %v640
  %v3878 = vunpack.c.h.b16 %v640
  %v3879 = vunpack.c.l.b16 %v641
  %v3880 = vunpack.c.h.b16 %v641
  %v3881 = vunpack.c.l.b16 %v642
  %v3882 = vunpack.c.h.b16 %v642
  %v3883 = vunpack.c.l.b16 %v643
  %v3884 = vunpack.c.h.b16 %v643
  %v3885 = vunpack.c.l.b16 %v644
  %v3886 = vunpack.c.h.b16 %v644
  %v3887 = vunpack.c.l.b16 %v645
  %v3888 = vunpack.c.h.b16 %v645
  %v3889 = vunpack.c.l.b16 %v646
  %v3890 = vunpack.c.h.b16 %v646
  %v3891 = vunpack.c.l.b16 %v647
  %v3892 = vunpack.c.h.b16 %v647
  %v3893 = vunpack.c.l.b16 %v648
  %v3894 = vunpack.c.h.b16 %v648
  %v3895 = vunpack.c.l.b16 %v649
  %v3896 = vunpack.c.h.b16 %v649
  %v3897 = vunpack.c.l.b16 %v650
  %v3898 = vunpack.c.h.b16 %v650
  %v3899 = vunpack.c.l.b16 %v651
  %v3900 = vunpack.c.h.b16 %v651
  %v3901 = vunpack.c.l.b16 %v652
  %v3902 = vunpack.c.h.b16 %v652
  %v3903 = vunpack.c.l.b16 %v653
  %v3904 = vunpack.c.h.b16 %v653
  %v3905 = vunpack.c.l.b16 %v654
  %v3906 = vunpack.c.h.b16 %v654
  %v3907 = vunpack.c.l.b16 %v655
  %v3908 = vunpack.c.h.b16 %v655
  %v3909 = vunpack.c.l.b16 %v656
  %v3910 = vunpack.c.h.b16 %v656
  %v3911 = vunpack.c.l.b16 %v657
  %v3912 = vunpack.c.h.b16 %v657
  %v3913 = vunpack.c.l.b16 %v658
  %v3914 = vunpack.c.h.b16 %v658
  %v3915 = vunpack.c.l.b16 %v659
  %v3916 = vunpack.c.h.b16 %v659
  %v3917 = vunpack.c.l.b16 %v660
  %v3918 = vunpack.c.h.b16 %v660
  %v3919 = vunpack.c.l.b16 %v661
  %v3920 = vunpack.c.h.b16 %v661
  %v3921 = vunpack.c.l.b16 %v662
  %v3922 = vunpack.c.h.b16 %v662
  %v3923 = vunpack.c.l.b16 %v663
  %v3924 = vunpack.c.h.b16 %v663
  %v3925 = vunpack.c.l.b16 %v664
  %v3926 = vunpack.c.h.b16 %v664
  %v3927 = vunpack.c.l.b16 %v665
  %v3928 = vunpack.c.h.b16 %v665
  %v3929 = vunpack.c.l.b16 %v666
  %v3930 = vunpack.c.h.b16 %v666
  %v3931 = vunpack.c.l.b16 %v667
  %v3932 = vunpack.c.h.b16 %v667
  %v3933 = vunpack.c.l.b16 %v668
  %v3934 = vunpack.c.h.b16 %v668
  %v3935 = vunpack.c.l.b16 %v669
  %v3936 = vunpack.c.h.b16 %v669
  %v3937 = vunpack.c.l.b16 %v670
  %v3938 = vunpack.c.h.b16 %v670
  %v3939 = vunpack.c.l.b16 %v671
  %v3940 = vunpack.c.h.b16 %v671
  %v3941 = vunpack.c.l.b16 %v672
  %v3942 = vunpack.c.h.b16 %v672
  %v3943 = vunpack.c.l.b16 %v673
  %v3944 = vunpack.c.h.b16 %v673
  %v3945 = vunpack.c.l.b16 %v674
  %v3946 = vunpack.c.h.b16 %v674
  %v3947 = vunpack.c.l.b16 %v675
  %v3948 = vunpack.c.h.b16 %v675
  %v3949 = vunpack.c.l.b16 %v676
  %v3950 = vunpack.c.h.b16 %v676
  %v3951 = vunpack.c.l.b16 %v677
  %v3952 = vunpack.c.h.b16 %v677
  %v3953 = vunpack.c.l.b16 %v678
  %v3954 = vunpack.c.h.b16 %v678
  %v3955 = vunpack.c.l.b16 %v679
  %v3956 = vunpack.c.h.b16 %v679
  %v3957 = vunpack.c.l.b16 %v680
  %v3958 = vunpack.c.h.b16 %v680
  %v3959 = vunpack.c.l.b16 %v681
  %v3960 = vunpack.c.h.b16 %v681
  %v3961 = vunpack.c.l.b16 %v682
  %v3962 = vunpack.c.h.b16 %v682
  %v3963 = vunpack.c.l.b16 %v683
  %v3964 = vunpack.c.h.b16 %v683
  %v3965 = vunpack.c.l.b16 %v684
  %v3966 = vunpack.c.h.b16 %v684
  %v3967 = vunpack.c.l.b16 %v685
  %v3968 = vunpack.c.h.b16 %v685
  %v3969 = vunpack.c.l.b16 %v686
  %v3970 = vunpack.c.h.b16 %v686
  %v3971 = vunpack.c.l.b16 %v687
  %v3972 = vunpack.c.h.b16 %v687
  %v3973 = vunpack.c.l.b16 %v688
  %v3974 = vunpack.c.h.b16 %v688
  %v3975 = vunpack.c.l.b16 %v689
  %v3976 = vunpack.c.h.b16 %v689
  %v3977 = vunpack.c.l.b16 %v690
  %v3978 = vunpack.c.h.b16 %v690
  %v3979 = vunpack.c.l.b16 %v691
  %v3980 = vunpack.c.h.b16 %v691
  %v3981 = vunpack.c.l.b16 %v692
  %v3982 = vunpack.c.h.b16 %v692
  %v3983 = vunpack.c.l.b16 %v693
  %v3984 = vunpack.c.h.b16 %v693
  %v3985 = vunpack.c.l.b16 %v694
  %v3986 = vunpack.c.h.b16 %v694
  %v3987 = vunpack.c.l.b16 %v695
  %v3988 = vunpack.c.h.b16 %v695
  %v3989 = vunpack.c.l.b16 %v696
  %v3990 = vunpack.c.h.b16 %v696
  %v3991 = vunpack.c.l.b16 %v697
  %v3992 = vunpack.c.h.b16 %v697
  %v3993 = vunpack.c.l.b16 %v698
  %v3994 = vunpack.c.h.b16 %v698
  %v3995 = vunpack.c.l.b16 %v699
  %v3996 = vunpack.c.h.b16 %v699
  %v3997 = vunpack.c.l.b16 %v700
  %v3998 = vunpack.c.h.b16 %v700
  %v3999 = vunpack.c.l.b16 %v701
  %v4000 = vunpack.c.h.b16 %v701
  %v4001 = vunpack.c.l.b16 %v702
  %v4002 = vunpack.c.h.b16 %v702
  %v4003 = vunpack.c.l.b16 %v703
  %v4004 = vunpack.c.h.b16 %v703
  %v4005 = vunpack.c.l.b16 %v704
  %v4006 = vunpack.c.h.b16 %v704
  %v4007 = vunpack.c.l.b16 %v705
  %v4008 = vunpack.c.h.b16 %v705
  %v4009 = vunpack.c.l.b16 %v706
  %v4010 = vunpack.c.h.b16 %v706
  %v4011 = vunpack.c.l.b16 %v707
  %v4012 = vunpack.c.h.b16 %v707
  %v4013 = vunpack.c.l.b16 %v708
  %v4014 = vunpack.c.h.b16 %v708
  %v4015 = vunpack.c.l.b16 %v709
  %v4016 = vunpack.c.h.b16 %v709
  %v4017 = vunpack.c.l.b16 %v710
  %v4018 = vunpack.c.h.b16 %v710
  %v4019 = vunpack.c.l.b16 %v711
  %v4020 = vunpack.c.h.b16 %v711
  %v4021 = vunpack.c.l.b16 %v712
  %v4022 = vunpack.c.h.b16 %v712
  %v4023 = vunpack.c.l.b16 %v713
  %v4024 = vunpack.c.h.b16 %v713
  %v4025 = vunpack.c.l.b16 %v714
  %v4026 = vunpack.c.h.b16 %v714
  %v4027 = vunpack.c.l.b16 %v715
  %v4028 = vunpack.c.h.b16 %v715
  %v4029 = vunpack.c.l.b16 %v716
  %v4030 = vunpack.c.h.b16 %v716
  %v4031 = vunpack.c.l.b16 %v717
  %v4032 = vunpack.c.h.b16 %v717
  %v4033 = vunpack.c.l.b16 %v718
  %v4034 = vunpack.c.h.b16 %v718
  %v4035 = vunpack.c.l.b16 %v719
  %v4036 = vunpack.c.h.b16 %v719
  %v4037 = vunpack.c.l.b16 %v720
  %v4038 = vunpack.c.h.b16 %v720
  %v4039 = vunpack.c.l.b16 %v721
  %v4040 = vunpack.c.h.b16 %v721
  %v4041 = vunpack.c.l.b16 %v722
  %v4042 = vunpack.c.h.b16 %v722
  %v4043 = vunpack.c.l.b16 %v723
  %v4044 = vunpack.c.h.b16 %v723
  %v4045 = vunpack.c.l.b16 %v724
  %v4046 = vunpack.c.h.b16 %v724
  %v4047 = vunpack.c.l.b16 %v725
  %v4048 = vunpack.c.h.b16 %v725
  %v4049 = vunpack.c.l.b16 %v726
  %v4050 = vunpack.c.h.b16 %v726
  %v4051 = vunpack.c.l.b16 %v727
  %v4052 = vunpack.c.h.b16 %v727
  %v4053 = vunpack.c.l.b16 %v728
  %v4054 = vunpack.c.h.b16 %v728
  %v4055 = vunpack.c.l.b16 %v729
  %v4056 = vunpack.c.h.b16 %v729
  %v4057 = vunpack.c.l.b16 %v730
  %v4058 = vunpack.c.h.b16 %v730
  %v4059 = vunpack.c.l.b16 %v731
  %v4060 = vunpack.c.h.b16 %v731
  %v4061 = vunpack.c.l.b16 %v732
  %v4062 = vunpack.c.h.b16 %v732
  %v4063 = vunpack.c.l.b16 %v733
  %v4064 = vunpack.c.h.b16 %v733
  %v4065 = vunpack.c.l.b16 %v734
  %v4066 = vunpack.c.h.b16 %v734
  %v4067 = vunpack.c.l.b16 %v735
  %v4068 = vunpack.c.h.b16 %v735
  %v4069 = vunpack.c.l.b16 %v736
  %v4070 = vunpack.c.h.b16 %v736
  %v4071 = vunpack.c.l.b16 %v737
  %v4072 = vunpack.c.h.b16 %v737
  %v4073 = vunpack.c.l.b16 %v738
  %v4074 = vunpack.c.h.b16 %v738
  %v4075 = vunpack.c.l.b16 %v739
  %v4076 = vunpack.c.h.b16 %v739
  %v4077 = vunpack.c.l.b16 %v740
  %v4078 = vunpack.c.h.b16 %v740
  %v4079 = vunpack.c.l.b16 %v741
  %v4080 = vunpack.c.h.b16 %v741
  %v4081 = vunpack.c.l.b16 %v742
  %v4082 = vunpack.c.h.b16 %v742
  %v4083 = vunpack.c.l.b16 %v743
  %v4084 = vunpack.c.h.b16 %v743
  %v4085 = vunpack.c.l.b16 %v744
  %v4086 = vunpack.c.h.b16 %v744
  %v4087 = vunpack.c.l.b16 %v745
  %v4088 = vunpack.c.h.b16 %v745
  %v4089 = vunpack.c.l.b16 %v746
  %v4090 = vunpack.c.h.b16 %v746
  %v4091 = vunpack.c.l.b16 %v747
  %v4092 = vunpack.c.h.b16 %v747
  %v4093 = vunpack.c.l.b16 %v748
  %v4094 = vunpack.c.h.b16 %v748
  %v4095 = vunpack.c.l.b16 %v749
  %v4096 = vunpack.c.h.b16 %v749
  %v4097 = vunpack.c.l.b16 %v750
  %v4098 = vunpack.c.h.b16 %v750
  %v4099 = vunpack.c.l.b16 %v751
  %v4100 = vunpack.c.h.b16 %v751
  %v4101 = vunpack.c.l.b16 %v752
  %v4102 = vunpack.c.h.b16 %v752
  %v4103 = vunpack.c.l.b16 %v753
  %v4104 = vunpack.c.h.b16 %v753
  %v4105 = vunpack.c.l.b16 %v754
  %v4106 = vunpack.c.h.b16 %v754
  %v4107 = vunpack.c.l.b16 %v755
  %v4108 = vunpack.c.h.b16 %v755
  %v4109 = vunpack.c.l.b16 %v756
  %v4110 = vunpack.c.h.b16 %v756
  %v4111 = vunpack.c.l.b16 %v757
  %v4112 = vunpack.c.h.b16 %v757
  %v4113 = vunpack.c.l.b16 %v758
  %v4114 = vunpack.c.h.b16 %v758
  %v4115 = vunpack.c.l.b16 %v759
  %v4116 = vunpack.c.h.b16 %v759
  %v4117 = vunpack.c.l.b16 %v760
  %v4118 = vunpack.c.h.b16 %v760
  %v4119 = vunpack.c.l.b16 %v761
  %v4120 = vunpack.c.h.b16 %v761
  %v4121 = vunpack.c.l.b16 %v762
  %v4122 = vunpack.c.h.b16 %v762
  %v4123 = vunpack.c.l.b16 %v763
  %v4124 = vunpack.c.h.b16 %v763
  %v4125 = vunpack.c.l.b16 %v764
  %v4126 = vunpack.c.h.b16 %v764
  %v4127 = vunpack.c.l.b16 %v765
  %v4128 = vunpack.c.h.b16 %v765
  %v4129 = vunpack.c.l.b16 %v766
  %v4130 = vunpack.c.h.b16 %v766
  %v4131 = vunpack.c.l.b16 %v767
  %v4132 = vunpack.c.h.b16 %v767
  %v4133 = vunpack.c.l.b16 %v768
  %v4134 = vunpack.c.h.b16 %v768
  %v4135 = vunpack.c.l.b16 %v769
  %v4136 = vunpack.c.h.b16 %v769
  %v4137 = vunpack.c.l.b16 %v770
  %v4138 = vunpack.c.h.b16 %v770
  %v4139 = vunpack.c.l.b16 %v771
  %v4140 = vunpack.c.h.b16 %v771
  %v4141 = vunpack.c.l.b16 %v772
  %v4142 = vunpack.c.h.b16 %v772
  %v4143 = vunpack.c.l.b16 %v773
  %v4144 = vunpack.c.h.b16 %v773
  %v4145 = vunpack.c.l.b16 %v774
  %v4146 = vunpack.c.h.b16 %v774
  %v4147 = vunpack.c.l.b16 %v775
  %v4148 = vunpack.c.h.b16 %v775
  %v4149 = vunpack.c.l.b16 %v776
  %v4150 = vunpack.c.h.b16 %v776
  %v4151 = vunpack.c.l.b16 %v777
  %v4152 = vunpack.c.h.b16 %v777
  %v4153 = vunpack.c.l.b16 %v778
  %v4154 = vunpack.c.h.b16 %v778
  %v4155 = vunpack.c.l.b16 %v779
  %v4156 = vunpack.c.h.b16 %v779
  %v4157 = vunpack.c.l.b16 %v780
  %v4158 = vunpack.c.h.b16 %v780
  %v4159 = vunpack.c.l.b16 %v781
  %v4160 = vunpack.c.h.b16 %v781
  %v4161 = vunpack.c.l.b16 %v782
  %v4162 = vunpack.c.h.b16 %v782
  %v4163 = vunpack.c.l.b16 %v783
  %v4164 = vunpack.c.h.b16 %v783
  %v4165 = vunpack.c.l.b16 %v784
  %v4166 = vunpack.c.h.b16 %v784
  %v4167 = vunpack.c.l.b16 %v785
  %v4168 = vunpack.c.h.b16 %v785
  %v4169 = vunpack.c.l.b16 %v786
  %v4170 = vunpack.c.h.b16 %v786
  %v4171 = vunpack.c.l.b16 %v787
  %v4172 = vunpack.c.h.b16 %v787
  %v4173 = vunpack.c.l.b16 %v788
  %v4174 = vunpack.c.h.b16 %v788
  %v4175 = vunpack.c.l.b16 %v789
  %v4176 = vunpack.c.h.b16 %v789
  %v4177 = vunpack.c.l.b16 %v790
  %v4178 = vunpack.c.h.b16 %v790
  %v4179 = vunpack.c.l.b16 %v791
  %v4180 = vunpack.c.h.b16 %v791
  %v4181 = vunpack.c.l.b16 %v792
  %v4182 = vunpack.c.h.b16 %v792
  %v4183 = vunpack.c.l.b16 %v793
  %v4184 = vunpack.c.h.b16 %v793
  %v4185 = vunpack.c.l.b16 %v794
  %v4186 = vunpack.c.h.b16 %v794
  %v4187 = vunpack.c.l.b16 %v795
  %v4188 = vunpack.c.h.b16 %v795
  %v4189 = vunpack.c.l.b16 %v796
  %v4190 = vunpack.c.h.b16 %v796
  %v4191 = vunpack.c.l.b16 %v797
  %v4192 = vunpack.c.h.b16 %v797
  %v4193 = vunpack.c.l.b16 %v798
  %v4194 = vunpack.c.h.b16 %v798
  %v4195 = vunpack.c.l.b16 %v799
  %v4196 = vunpack.c.h.b16 %v799
  %v4197 = vunpack.c.l.b16 %v800
  %v4198 = vunpack.c.h.b16 %v800
  %v4199 = vunpack.c.l.b16 %v801
  %v4200 = vunpack.c.h.b16 %v801
  %v4201 = vunpack.c.l.b16 %v802
  %v4202 = vunpack.c.h.b16 %v802
  %v4203 = vunpack.c.l.b16 %v803
  %v4204 = vunpack.c.h.b16 %v803
  %v4205 = vunpack.c.l.b16 %v804
  %v4206 = vunpack.c.h.b16 %v804
  %v4207 = vunpack.c.l.b16 %v805
  %v4208 = vunpack.c.h.b16 %v805
  %v4209 = vunpack.c.l.b16 %v806
  %v4210 = vunpack.c.h.b16 %v806
  %v4211 = vunpack.c.l.b16 %v807
  %v4212 = vunpack.c.h.b16 %v807
  %v4213 = vunpack.c.l.b16 %v808
  %v4214 = vunpack.c.h.b16 %v808
  %v4215 = vunpack.c.l.b16 %v809
  %v4216 = vunpack.c.h.b16 %v809
  %v4217 = vunpack.c.l.b16 %v810
  %v4218 = vunpack.c.h.b16 %v810
  %v4219 = vunpack.c.l.b16 %v811
  %v4220 = vunpack.c.h.b16 %v811
  %v4221 = vunpack.c.l.b16 %v812
  %v4222 = vunpack.c.h.b16 %v812
  %v4223 = vunpack.c.l.b16 %v813
  %v4224 = vunpack.c.h.b16 %v813
  %v4225 = vunpack.c.l.b16 %v814
  %v4226 = vunpack.c.h.b16 %v814
  %v4227 = vunpack.c.l.b16 %v815
  %v4228 = vunpack.c.h.b16 %v815
  %v4229 = vunpack.c.l.b16 %v816
  %v4230 = vunpack.c.h.b16 %v816
  %v4231 = vunpack.c.l.b16 %v817
  %v4232 = vunpack.c.h.b16 %v817
  %v4233 = vunpack.c.l.b16 %v818
  %v4234 = vunpack.c.h.b16 %v818
  %v4235 = vunpack.c.l.b16 %v819
  %v4236 = vunpack.c.h.b16 %v819
  %v4237 = vunpack.c.l.b16 %v820
  %v4238 = vunpack.c.h.b16 %v820
  %v4239 = vunpack.c.l.b16 %v821
  %v4240 = vunpack.c.h.b16 %v821
  %v4241 = vunpack.c.l.b16 %v822
  %v4242 = vunpack.c.h.b16 %v822
  %v4243 = vunpack.c.l.b16 %v823
  %v4244 = vunpack.c.h.b16 %v823
  %v4245 = vunpack.c.l.b16 %v824
  %v4246 = vunpack.c.h.b16 %v824
  %v4247 = vunpack.c.l.b16 %v825
  %v4248 = vunpack.c.h.b16 %v825
  %v4249 = vunpack.c.l.b16 %v826
  %v4250 = vunpack.c.h.b16 %v826
  %v4251 = vunpack.c.l.b16 %v827
  %v4252 = vunpack.c.h.b16 %v827
  %v4253 = vunpack.c.l.b16 %v828
  %v4254 = vunpack.c.h.b16 %v828
  %v4255 = vunpack.c.l.b16 %v829
  %v4256 = vunpack.c.h.b16 %v829
  %v4257 = vunpack.c.l.b16 %v830
  %v4258 = vunpack.c.h.b16 %v830
  %v4259 = vunpack.c.l.b16 %v831
  %v4260 = vunpack.c.h.b16 %v831
  %v4261 = vunpack.c.l.b16 %v832
  %v4262 = vunpack.c.h.b16 %v832
  %v4263 = vunpack.c.l.b16 %v833
  %v4264 = vunpack.c.h.b16 %v833
  %v4265 = vunpack.c.l.b16 %v834
  %v4266 = vunpack.c.h.b16 %v834
  %v4267 = vunpack.c.l.b16 %v835
  %v4268 = vunpack.c.h.b16 %v835
  %v4269 = vunpack.c.l.b16 %v836
  %v4270 = vunpack.c.h.b16 %v836
  %v4271 = vunpack.c.l.b16 %v837
  %v4272 = vunpack.c.h.b16 %v837
  %v4273 = vunpack.c.l.b16 %v838
  %v4274 = vunpack.c.h.b16 %v838
  %v4275 = vunpack.c.l.b16 %v839
  %v4276 = vunpack.c.h.b16 %v839
  %v4277 = vunpack.c.l.b16 %v840
  %v4278 = vunpack.c.h.b16 %v840
  %v4279 = vunpack.c.l.b16 %v841
  %v4280 = vunpack.c.h.b16 %v841
  %v4281 = vunpack.c.l.b16 %v842
  %v4282 = vunpack.c.h.b16 %v842
  %v4283 = vunpack.c.l.b16 %v843
  %v4284 = vunpack.c.h.b16 %v843
  %v4285 = vunpack.c.l.b16 %v844
  %v4286 = vunpack.c.h.b16 %v844
  %v4287 = vunpack.c.l.b16 %v845
  %v4288 = vunpack.c.h.b16 %v845
  %v4289 = vunpack.c.l.b16 %v846
  %v4290 = vunpack.c.h.b16 %v846
  %v4291 = vunpack.c.l.b16 %v847
  %v4292 = vunpack.c.h.b16 %v847
  %v4293 = vunpack.c.l.b16 %v848
  %v4294 = vunpack.c.h.b16 %v848
  %v4295 = vunpack.c.l.b16 %v849
  %v4296 = vunpack.c.h.b16 %v849
  %v4297 = vunpack.c.l.b16 %v850
  %v4298 = vunpack.c.h.b16 %v850
  %v4299 = vunpack.c.l.b16 %v851
  %v4300 = vunpack.c.h.b16 %v851
  %v4301 = vunpack.c.l.b16 %v852
  %v4302 = vunpack.c.h.b16 %v852
  %v4303 = vunpack.c.l.b16 %v853
  %v4304 = vunpack.c.h.b16 %v853
  %v4305 = vunpack.c.l.b16 %v854
  %v4306 = vunpack.c.h.b16 %v854
  %v4307 = vunpack.c.l.b16 %v855
  %v4308 = vunpack.c.h.b16 %v855
  %v4309 = vunpack.c.l.b16 %v856
  %v4310 = vunpack.c.h.b16 %v856
  %v4311 = vunpack.c.l.b16 %v857
  %v4312 = vunpack.c.h.b16 %v857
  %v4313 = vunpack.c.l.b16 %v858
  %v4314 = vunpack.c.h.b16 %v858
  %v4315 = vunpack.c.l.b16 %v859
  %v4316 = vunpack.c.h.b16 %v859
  %v4317 = vunpack.c.l.b16 %v860
  %v4318 = vunpack.c.h.b16 %v860
  %v4319 = vunpack.c.l.b16 %v861
  %v4320 = vunpack.c.h.b16 %v861
  %v4321 = vunpack.c.l.b16 %v862
  %v4322 = vunpack.c.h.b16 %v862
  %v4323 = vunpack.c.l.b16 %v863
  %v4324 = vunpack.c.h.b16 %v863
  %v4325 = vunpack.c.l.b16 %v864
  %v4326 = vunpack.c.h.b16 %v864
  %v4327 = vunpack.c.l.b16 %v865
  %v4328 = vunpack.c.h.b16 %v865
  %v4329 = vunpack.c.l.b16 %v866
  %v4330 = vunpack.c.h.b16 %v866
  %v4331 = vunpack.c.l.b16 %v867
  %v4332 = vunpack.c.h.b16 %v867
  %v4333 = vunpack.c.l.b16 %v868
  %v4334 = vunpack.c.h.b16 %v868
  %v4335 = vunpack.c.l.b16 %v869
  %v4336 = vunpack.c.h.b16 %v869
  %v4337 = vunpack.c.l.b16 %v870
  %v4338 = vunpack.c.h.b16 %v870
  %v4339 = vunpack.c.l.b16 %v871
  %v4340 = vunpack.c.h.b16 %v871
  %v4341 = vunpack.c.l.b16 %v872
  %v4342 = vunpack.c.h.b16 %v872
  %v4343 = vunpack.c.l.b16 %v873
  %v4344 = vunpack.c.h.b16 %v873
  %v4345 = vunpack.c.l.b16 %v874
  %v4346 = vunpack.c.h.b16 %v874
  %v4347 = vunpack.c.l.b16 %v875
  %v4348 = vunpack.c.h.b16 %v875
  %v4349 = vunpack.c.l.b16 %v876
  %v4350 = vunpack.c.h.b16 %v876
  %v4351 = vunpack.c.l.b16 %v877
  %v4352 = vunpack.c.h.b16 %v877
  %v4353 = vunpack.c.l.b16 %v878
  %v4354 = vunpack.c.h.b16 %v878
  %v4355 = vunpack.c.l.b16 %v879
  %v4356 = vunpack.c.h.b16 %v879
  %v4357 = vunpack.c.l.b16 %v880
  %v4358 = vunpack.c.h.b16 %v880
  %v4359 = vunpack.c.l.b16 %v881
  %v4360 = vunpack.c.h.b16 %v881
  %v4361 = vunpack.c.l.b16 %v882
  %v4362 = vunpack.c.h.b16 %v882
  %v4363 = vunpack.c.l.b16 %v883
  %v4364 = vunpack.c.h.b16 %v883
  %v4365 = vunpack.c.l.b16 %v884
  %v4366 = vunpack.c.h.b16 %v884
  %v4367 = vunpack.c.l.b16 %v885
  %v4368 = vunpack.c.h.b16 %v885
  %v4369 = vunpack.c.l.b16 %v886
  %v4370 = vunpack.c.h.b16 %v886
  %v4371 = vunpack.c.l.b16 %v887
  %v4372 = vunpack.c.h.b16 %v887
  %v4373 = vunpack.c.l.b16 %v888
  %v4374 = vunpack.c.h.b16 %v888
  %v4375 = vunpack.c.l.b16 %v889
  %v4376 = vunpack.c.h.b16 %v889
  %v4377 = vunpack.c.l.b16 %v890
  %v4378 = vunpack.c.h.b16 %v890
  %v4379 = vunpack.c.l.b16 %v891
  %v4380 = vunpack.c.h.b16 %v891
  %v4381 = vunpack.c.l.b16 %v892
  %v4382 = vunpack.c.h.b16 %v892
  %v4383 = vunpack.c.l.b16 %v893
  %v4384 = vunpack.c.h.b16 %v893
  %v4385 = vunpack.c.l.b16 %v894
  %v4386 = vunpack.c.h.b16 %v894
  %v4387 = vunpack.c.l.b16 %v895
  %v4388 = vunpack.c.h.b16 %v895
  %v4389 = vunpack.c.l.b16 %v896
  %v4390 = vunpack.c.h.b16 %v896
  %v4391 = vunpack.c.l.b16 %v897
  %v4392 = vunpack.c.h.b16 %v897
  %v4393 = vunpack.c.l.b16 %v898
  %v4394 = vunpack.c.h.b16 %v898
  %v4395 = vunpack.c.l.b16 %v899
  %v4396 = vunpack.c.h.b16 %v899
  %v4397 = vunpack.c.l.b16 %v900
  %v4398 = vunpack.c.h.b16 %v900
  %v4399 = vunpack.c.l.b16 %v901
  %v4400 = vunpack.c.h.b16 %v901
  %v4401 = vunpack.c.l.b16 %v902
  %v4402 = vunpack.c.h.b16 %v902
  %v4403 = vunpack.c.l.b16 %v903
  %v4404 = vunpack.c.h.b16 %v903
  %v4405 = vunpack.c.l.b16 %v904
  %v4406 = vunpack.c.h.b16 %v904
  %v4407 = vunpack.c.l.b16 %v905
  %v4408 = vunpack.c.h.b16 %v905
  %v4409 = vunpack.c.l.b16 %v906
  %v4410 = vunpack.c.h.b16 %v906
  %v4411 = vunpack.c.l.b16 %v907
  %v4412 = vunpack.c.h.b16 %v907
  %v4413 = vunpack.c.l.b16 %v908
  %v4414 = vunpack.c.h.b16 %v908
  %v4415 = vunpack.c.l.b16 %v909
  %v4416 = vunpack.c.h.b16 %v909
  %v4417 = vunpack.c.l.b16 %v910
  %v4418 = vunpack.c.h.b16 %v910
  %v4419 = vunpack.c.l.b16 %v911
  %v4420 = vunpack.c.h.b16 %v911
  %v4421 = vunpack.c.l.b16 %v912
  %v4422 = vunpack.c.h.b16 %v912
  %v4423 = vunpack.c.l.b16 %v913
  %v4424 = vunpack.c.h.b16 %v913
  %v4425 = vunpack.c.l.b16 %v914
  %v4426 = vunpack.c.h.b16 %v914
  %v4427 = vunpack.c.l.b16 %v915
  %v4428 = vunpack.c.h.b16 %v915
  %v4429 = vunpack.c.l.b16 %v916
  %v4430 = vunpack.c.h.b16 %v916
  %v4431 = vunpack.c.l.b16 %v917
  %v4432 = vunpack.c.h.b16 %v917
  %v4433 = vunpack.c.l.b16 %v918
  %v4434 = vunpack.c.h.b16 %v918
  %v4435 = vunpack.c.l.b16 %v919
  %v4436 = vunpack.c.h.b16 %v919
  %v4437 = vunpack.c.l.b16 %v920
  %v4438 = vunpack.c.h.b16 %v920
  %v4439 = vunpack.c.l.b16 %v921
  %v4440 = vunpack.c.h.b16 %v921
  %v4441 = vunpack.c.l.b16 %v922
  %v4442 = vunpack.c.h.b16 %v922
  %v4443 = vunpack.c.l.b16 %v923
  %v4444 = vunpack.c.h.b16 %v923
  %v4445 = vunpack.c.l.b16 %v924
  %v4446 = vunpack.c.h.b16 %v924
  %v4447 = vunpack.c.l.b16 %v925
  %v4448 = vunpack.c.h.b16 %v925
  %v4449 = vunpack.c.l.b16 %v926
  %v4450 = vunpack.c.h.b16 %v926
  %v4451 = vunpack.c.l.b16 %v927
  %v4452 = vunpack.c.h.b16 %v927
  %v4453 = vunpack.c.l.b16 %v928
  %v4454 = vunpack.c.h.b16 %v928
  %v4455 = vunpack.c.l.b16 %v929
  %v4456 = vunpack.c.h.b16 %v929
  %v4457 = vunpack.c.l.b16 %v930
  %v4458 = vunpack.c.h.b16 %v930
  %v4459 = vunpack.c.l.b16 %v931
  %v4460 = vunpack.c.h.b16 %v931
  %v4461 = vunpack.c.l.b16 %v932
  %v4462 = vunpack.c.h.b16 %v932
  %v4463 = vunpack.c.l.b16 %v933
  %v4464 = vunpack.c.h.b16 %v933
  %v4465 = vunpack.c.l.b16 %v934
  %v4466 = vunpack.c.h.b16 %v934
  %v4467 = vunpack.c.l.b16 %v935
  %v4468 = vunpack.c.h.b16 %v935
  %v4469 = vunpack.c.l.b16 %v936
  %v4470 = vunpack.c.h.b16 %v936
  %v4471 = vunpack.c.l.b16 %v937
  %v4472 = vunpack.c.h.b16 %v937
  %v4473 = vunpack.c.l.b16 %v938
  %v4474 = vunpack.c.h.b16 %v938
  %v4475 = vunpack.c.l.b16 %v939
  %v4476 = vunpack.c.h.b16 %v939
  %v4477 = vunpack.c.l.b16 %v940
  %v4478 = vunpack.c.h.b16 %v940
  %v4479 = vunpack.c.l.b16 %v941
  %v4480 = vunpack.c.h.b16 %v941
  %v4481 = vunpack.c.l.b16 %v942
  %v4482 = vunpack.c.h.b16 %v942
  %v4483 = vunpack.c.l.b16 %v943
  %v4484 = vunpack.c.h.b16 %v943
  %v4485 = vunpack.c.l.b16 %v944
  %v4486 = vunpack.c.h.b16 %v944
  %v4487 = vunpack.c.l.b16 %v945
  %v4488 = vunpack.c.h.b16 %v945
  %v4489 = vunpack.c.l.b16 %v946
  %v4490 = vunpack.c.h.b16 %v946
  %v4491 = vunpack.c.l.b16 %v947
  %v4492 = vunpack.c.h.b16 %v947
  %v4493 = vunpack.c.l.b16 %v948
  %v4494 = vunpack.c.h.b16 %v948
  %v4495 = vunpack.c.l.b16 %v949
  %v4496 = vunpack.c.h.b16 %v949
  %v4497 = vunpack.c.l.b16 %v950
  %v4498 = vunpack.c.h.b16 %v950
  %v4499 = vunpack.c.l.b16 %v951
  %v4500 = vunpack.c.h.b16 %v951
  %v4501 = vunpack.c.l.b16 %v952
  %v4502 = vunpack.c.h.b16 %v952
  %v4503 = vunpack.c.l.b16 %v953
  %v4504 = vunpack.c.h.b16 %v953
  %v4505 = vunpack.c.l.b16 %v954
  %v4506 = vunpack.c.h.b16 %v954
  %v4507 = vunpack.c.l.b16 %v955
  %v4508 = vunpack.c.h.b16 %v955
  %v4509 = vunpack.c.l.b16 %v956
  %v4510 = vunpack.c.h.b16 %v956
  %v4511 = vunpack.c.l.b16 %v957
  %v4512 = vunpack.c.h.b16 %v957
  %v4513 = vunpack.c.l.b16 %v958
  %v4514 = vunpack.c.h.b16 %v958
  %v4515 = vunpack.c.l.b16 %v959
  %v4516 = vunpack.c.h.b16 %v959
  %v4517 = vunpack.c.l.b16 %v960
  %v4518 = vunpack.c.h.b16 %v960
  %v4519 = vunpack.c.l.b16 %v961
  %v4520 = vunpack.c.h.b16 %v961
  %v4521 = vunpack.c.l.b16 %v962
  %v4522 = vunpack.c.h.b16 %v962
  %v4523 = vunpack.c.l.b16 %v963
  %v4524 = vunpack.c.h.b16 %v963
  %v4525 = vunpack.c.l.b16 %v964
  %v4526 = vunpack.c.h.b16 %v964
  %v4527 = vunpack.c.l.b16 %v965
  %v4528 = vunpack.c.h.b16 %v965
  %v4529 = vunpack.c.l.b16 %v966
  %v4530 = vunpack.c.h.b16 %v966
  %v4531 = vunpack.c.l.b16 %v967
  %v4532 = vunpack.c.h.b16 %v967
  %v4533 = vunpack.c.l.b16 %v968
  %v4534 = vunpack.c.h.b16 %v968
  %v4535 = vunpack.c.l.b16 %v969
  %v4536 = vunpack.c.h.b16 %v969
  %v4537 = vunpack.c.l.b16 %v970
  %v4538 = vunpack.c.h.b16 %v970
  %v4539 = vunpack.c.l.b16 %v971
  %v4540 = vunpack.c.h.b16 %v971
  %v4541 = vunpack.c.l.b16 %v972
  %v4542 = vunpack.c.h.b16 %v972
  %v4543 = vunpack.c.l.b16 %v973
  %v4544 = vunpack.c.h.b16 %v973
  %v4545 = vunpack.c.l.b16 %v974
  %v4546 = vunpack.c.h.b16 %v974
  %v4547 = vunpack.c.l.b16 %v975
  %v4548 = vunpack.c.h.b16 %v975
  %v4549 = vunpack.c.l.b16 %v976
  %v4550 = vunpack.c.h.b16 %v976
  %v4551 = vunpack.c.l.b16 %v977
  %v4552 = vunpack.c.h.b16 %v977
  %v4553 = vunpack.c.l.b16 %v978
  %v4554 = vunpack.c.h.b16 %v978
  %v4555 = vunpack.c.l.b16 %v979
  %v4556 = vunpack.c.h.b16 %v979
  %v4557 = vunpack.c.l.b16 %v980
  %v4558 = vunpack.c.h.b16 %v980
  %v4559 = vunpack.c.l.b16 %v981
  %v4560 = vunpack.c.h.b16 %v981
  %v4561 = vunpack.c.l.b16 %v982
  %v4562 = vunpack.c.h.b16 %v982
  %v4563 = vunpack.c.l.b16 %v983
  %v4564 = vunpack.c.h.b16 %v983
  %v4565 = vunpack.c.l.b16 %v984
  %v4566 = vunpack.c.h.b16 %v984
  %v4567 = vunpack.c.l.b16 %v985
  %v4568 = vunpack.c.h.b16 %v985
  %v4569 = vunpack.c.l.b16 %v986
  %v4570 = vunpack.c.h.b16 %v986
  %v4571 = vunpack.c.l.b16 %v987
  %v4572 = vunpack.c.h.b16 %v987
  %v4573 = vunpack.c.l.b16 %v988
  %v4574 = vunpack.c.h.b16 %v988
  %v4575 = vunpack.c.l.b16 %v989
  %v4576 = vunpack.c.h.b16 %v989
  %v4577 = vunpack.c.l.b16 %v990
  %v4578 = vunpack.c.h.b16 %v990
  %v4579 = vunpack.c.l.b16 %v991
  %v4580 = vunpack.c.h.b16 %v991
  %v4581 = vunpack.c.l.b16 %v992
  %v4582 = vunpack.c.h.b16 %v992
  %v4583 = vunpack.c.l.b16 %v993
  %v4584 = vunpack.c.h.b16 %v993
  %v4585 = vunpack.c.l.b16 %v994
  %v4586 = vunpack.c.h.b16 %v994
  %v4587 = vunpack.c.l.b16 %v995
  %v4588 = vunpack.c.h.b16 %v995
  %v4589 = vunpack.c.l.b16 %v996
  %v4590 = vunpack.c.h.b16 %v996
  %v4591 = vunpack.c.l.b16 %v997
  %v4592 = vunpack.c.h.b16 %v997
  %v4593 = vunpack.c.l.b16 %v998
  %v4594 = vunpack.c.h.b16 %v998
  %v4595 = vunpack.c.l.b16 %v999
  %v4596 = vunpack.c.h.b16 %v999
  %v4597 = vunpack.c.l.b16 %v1000
  %v4598 = vunpack.c.h.b16 %v1000
  %v4599 = vunpack.c.l.b16 %v1001
  %v4600 = vunpack.c.h.b16 %v1001
  %v4601 = vunpack.c.l.b16 %v1002
  %v4602 = vunpack.c.h.b16 %v1002
  %v4603 = vunpack.c.l.b16 %v1003
  %v4604 = vunpack.c.h.b16 %v1003
  %v4605 = vunpack.c.l.b16 %v1004
  %v4606 = vunpack.c.h.b16 %v1004
  %v4607 = vunpack.c.l.b16 %v1005
  %v4608 = vunpack.c.h.b16 %v1005
  %v4609 = vunpack.c.l.b16 %v1006
  %v4610 = vunpack.c.h.b16 %v1006
  %v4611 = vunpack.c.l.b16 %v1007
  %v4612 = vunpack.c.h.b16 %v1007
  %v4613 = vunpack.c.l.b16 %v1008
  %v4614 = vunpack.c.h.b16 %v1008
  %v4615 = vunpack.c.l.b16 %v1009
  %v4616 = vunpack.c.h.b16 %v1009
  %v4617 = vunpack.c.l.b16 %v1010
  %v4618 = vunpack.c.h.b16 %v1010
  %v4619 = vunpack.c.l.b16 %v1011
  %v4620 = vunpack.c.h.b16 %v1011
  %v4621 = vunpack.c.l.b16 %v1012
  %v4622 = vunpack.c.h.b16 %v1012
  %v4623 = vunpack.c.l.b16 %v1013
  %v4624 = vunpack.c.h.b16 %v1013
  %v4625 = vunpack.c.l.b16 %v1014
  %v4626 = vunpack.c.h.b16 %v1014
  %v4627 = vunpack.c.l.b16 %v1015
  %v4628 = vunpack.c.h.b16 %v1015
  %v4629 = vunpack.c.l.b16 %v1016
  %v4630 = vunpack.c.h.b16 %v1016
  %v4631 = vunpack.c.l.b16 %v1017
  %v4632 = vunpack.c.h.b16 %v1017
  %v4633 = vunpack.c.l.b16 %v1018
  %v4634 = vunpack.c.h.b16 %v1018
  %v4635 = vunpack.c.l.b16 %v1019
  %v4636 = vunpack.c.h.b16 %v1019
  %v4637 = vunpack.c.l.b16 %v1020
  %v4638 = vunpack.c.h.b16 %v1020
  %v4639 = vunpack.c.l.b16 %v1021
  %v4640 = vunpack.c.h.b16 %v1021
  %v4641 = vunpack.c.l.b16 %v1022
  %v4642 = vunpack.c.h.b16 %v1022
  %v4643 = vunpack.c.l.b16 %v1023
  %v4644 = vunpack.c.h.b16 %v1023
  %v4645 = vunpack.c.l.b16 %v1024
  %v4646 = vunpack.c.h.b16 %v1024
  %v4647 = vunpack.c.l.b16 %v1025
  %v4648 = vunpack.c.h.b16 %v1025
  %v4649 = vunpack.c.l.b16 %v1026
  %v4650 = vunpack.c.h.b16 %v1026
  %v4651 = vunpack.c.l.b16 %v1027
  %v4652 = vunpack.c.h.b16 %v1027
  %v4653 = vunpack.c.l.b16 %v1028
  %v4654 = vunpack.c.h.b16 %v1028
  %v4655 = vunpack.c.l.b16 %v1029
  %v4656 = vunpack.c.h.b16 %v1029
  %v4657 = vunpack.c.l.b16 %v1030
  %v4658 = vunpack.c.h.b16 %v1030
  %v4659 = vunpack.c.l.b16 %v1031
  %v4660 = vunpack.c.h.b16 %v1031
  %v4661 = vunpack.c.l.b16 %v1032
  %v4662 = vunpack.c.h.b16 %v1032
  %v4663 = vunpack.c.l.b16 %v1033
  %v4664 = vunpack.c.h.b16 %v1033
  %v4665 = vunpack.c.l.b16 %v1034
  %v4666 = vunpack.c.h.b16 %v1034
  %v4667 = vunpack.c.l.b16 %v1035
  %v4668 = vunpack.c.h.b16 %v1035
  %v4669 = vunpack.c.l.b16 %v1036
  %v4670 = vunpack.c.h.b16 %v1036
  %v4671 = vunpack.c.l.b16 %v1037
  %v4672 = vunpack.c.h.b16 %v1037
  %v4673 = vunpack.c.l.b16 %v1038
  %v4674 = vunpack.c.h.b16 %v1038
  %v4675 = vunpack.c.l.b16 %v1039
  %v4676 = vunpack.c.h.b16 %v1039
  %v4677 = vunpack.c.l.b16 %v1040
  %v4678 = vunpack.c.h.b16 %v1040
  %v4679 = vunpack.c.l.b16 %v1041
  %v4680 = vunpack.c.h.b16 %v1041
  %v4681 = vunpack.c.l.b16 %v1042
  %v4682 = vunpack.c.h.b16 %v1042
  %v4683 = vunpack.c.l.b16 %v1043
  %v4684 = vunpack.c.h.b16 %v1043
  %v4685 = vunpack.c.l.b16 %v1044
  %v4686 = vunpack.c.h.b16 %v1044
  %v4687 = vunpack.c.l.b16 %v1045
  %v4688 = vunpack.c.h.b16 %v1045
  %v4689 = vunpack.c.l.b16 %v1046
  %v4690 = vunpack.c.h.b16 %v1046
  %v4691 = vunpack.c.l.b16 %v1047
  %v4692 = vunpack.c.h.b16 %v1047
  %v4693 = vunpack.c.l.b16 %v1048
  %v4694 = vunpack.c.h.b16 %v1048
  %v4695 = vunpack.c.l.b16 %v1049
  %v4696 = vunpack.c.h.b16 %v1049
  %v4697 = vunpack.c.l.b16 %v1050
  %v4698 = vunpack.c.h.b16 %v1050
  %v4699 = vunpack.c.l.b16 %v1051
  %v4700 = vunpack.c.h.b16 %v1051
  %v4701 = vunpack.c.l.b16 %v1052
  %v4702 = vunpack.c.h.b16 %v1052
  %v4703 = vunpack.c.l.b16 %v1053
  %v4704 = vunpack.c.h.b16 %v1053
  %v4705 = vunpack.c.l.b16 %v1054
  %v4706 = vunpack.c.h.b16 %v1054
  %v4707 = vunpack.c.l.b16 %v1055
  %v4708 = vunpack.c.h.b16 %v1055
  %v4709 = vunpack.c.l.b16 %v1056
  %v4710 = vunpack.c.h.b16 %v1056
  %v4711 = vunpack.c.l.b16 %v1057
  %v4712 = vunpack.c.h.b16 %v1057
  %v4713 = vunpack.c.l.b16 %v1058
  %v4714 = vunpack.c.h.b16 %v1058
  %v4715 = vunpack.c.l.b16 %v1059
  %v4716 = vunpack.c.h.b16 %v1059
  %v4717 = vunpack.c.l.b16 %v1060
  %v4718 = vunpack.c.h.b16 %v1060
  %v4719 = vunpack.c.l.b16 %v1061
  %v4720 = vunpack.c.h.b16 %v1061
  %v4721 = vunpack.c.l.b16 %v1062
  %v4722 = vunpack.c.h.b16 %v1062
  %v4723 = vunpack.c.l.b16 %v1063
  %v4724 = vunpack.c.h.b16 %v1063
  %v4725 = vunpack.c.l.b16 %v1064
  %v4726 = vunpack.c.h.b16 %v1064
  %v4727 = vunpack.c.l.b16 %v1065
  %v4728 = vunpack.c.h.b16 %v1065
  %v4729 = vunpack.c.l.b16 %v1066
  %v4730 = vunpack.c.h.b16 %v1066
  %v4731 = vunpack.c.l.b16 %v1067
  %v4732 = vunpack.c.h.b16 %v1067
  %v4733 = vunpack.c.l.b16 %v1068
  %v4734 = vunpack.c.h.b16 %v1068
  %v4735 = vunpack.c.l.b16 %v1069
  %v4736 = vunpack.c.h.b16 %v1069
  %v4737 = vunpack.c.l.b16 %v1070
  %v4738 = vunpack.c.h.b16 %v1070
  %v4739 = vunpack.c.l.b16 %v1071
  %v4740 = vunpack.c.h.b16 %v1071
  %v4741 = vunpack.c.l.b16 %v1072
  %v4742 = vunpack.c.h.b16 %v1072
  %v4743 = vunpack.c.l.b16 %v1073
  %v4744 = vunpack.c.h.b16 %v1073
  %v4745 = vunpack.c.l.b16 %v1074
  %v4746 = vunpack.c.h.b16 %v1074
  %v4747 = vunpack.c.l.b16 %v1075
  %v4748 = vunpack.c.h.b16 %v1075
  %v4749 = vunpack.c.l.b16 %v1076
  %v4750 = vunpack.c.h.b16 %v1076
  %v4751 = vunpack.c.l.b16 %v1077
  %v4752 = vunpack.c.h.b16 %v1077
  %v4753 = vunpack.c.l.b16 %v1078
  %v4754 = vunpack.c.h.b16 %v1078
  %v4755 = vunpack.c.l.b16 %v1079
  %v4756 = vunpack.c.h.b16 %v1079
  %v4757 = vunpack.c.l.b16 %v1080
  %v4758 = vunpack.c.h.b16 %v1080
  %v4759 = vunpack.c.l.b16 %v1081
  %v4760 = vunpack.c.h.b16 %v1081
  %v4761 = vunpack.c.l.b16 %v1082
  %v4762 = vunpack.c.h.b16 %v1082
  %v4763 = vunpack.c.l.b16 %v1083
  %v4764 = vunpack.c.h.b16 %v1083
  %v4765 = vunpack.c.l.b16 %v1084
  %v4766 = vunpack.c.h.b16 %v1084
  %v4767 = vunpack.c.l.b16 %v1085
  %v4768 = vunpack.c.h.b16 %v1085
  %v4769 = vunpack.c.l.b16 %v1086
  %v4770 = vunpack.c.h.b16 %v1086
  %v4771 = vunpack.c.l.b16 %v1087
  %v4772 = vunpack.c.h.b16 %v1087
  %v4773 = vunpack.c.l.b16 %v1088
  %v4774 = vunpack.c.h.b16 %v1088
  %v4775 = vunpack.c.l.b16 %v1089
  %v4776 = vunpack.c.h.b16 %v1089
  %v4777 = vunpack.c.l.b16 %v1090
  %v4778 = vunpack.c.h.b16 %v1090
  %v4779 = vunpack.c.l.b16 %v1091
  %v4780 = vunpack.c.h.b16 %v1091
  %v4781 = vunpack.c.l.b16 %v1092
  %v4782 = vunpack.c.h.b16 %v1092
  %v4783 = vunpack.c.l.b16 %v1093
  %v4784 = vunpack.c.h.b16 %v1093
  %v4785 = vunpack.c.l.b16 %v1094
  %v4786 = vunpack.c.h.b16 %v1094
  %v4787 = vunpack.c.l.b16 %v1095
  %v4788 = vunpack.c.h.b16 %v1095
  %v4789 = vunpack.c.l.b16 %v1096
  %v4790 = vunpack.c.h.b16 %v1096
  %v4791 = vunpack.c.l.b16 %v1097
  %v4792 = vunpack.c.h.b16 %v1097
  %v4793 = vunpack.c.l.b16 %v1098
  %v4794 = vunpack.c.h.b16 %v1098
  %v4795 = vunpack.c.l.b16 %v1099
  %v4796 = vunpack.c.h.b16 %v1099
  %v4797 = vunpack.c.l.b16 %v1100
  %v4798 = vunpack.c.h.b16 %v1100
  %v4799 = vunpack.c.l.b16 %v1101
  %v4800 = vunpack.c.h.b16 %v1101
  %v4801 = vunpack.c.l.b16 %v1102
  %v4802 = vunpack.c.h.b16 %v1102
  %v4803 = vunpack.c.l.b16 %v1103
  %v4804 = vunpack.c.h.b16 %v1103
  %v4805 = vunpack.c.l.b16 %v1104
  %v4806 = vunpack.c.h.b16 %v1104
  %v4807 = vunpack.c.l.b16 %v1105
  %v4808 = vunpack.c.h.b16 %v1105
  %v4809 = vunpack.c.l.b16 %v1106
  %v4810 = vunpack.c.h.b16 %v1106
  %v4811 = vunpack.c.l.b16 %v1107
  %v4812 = vunpack.c.h.b16 %v1107
  %v4813 = vunpack.c.l.b16 %v1108
  %v4814 = vunpack.c.h.b16 %v1108
  %v4815 = vunpack.c.l.b16 %v1109
  %v4816 = vunpack.c.h.b16 %v1109
  %v4817 = vunpack.c.l.b16 %v1110
  %v4818 = vunpack.c.h.b16 %v1110
  %v4819 = vunpack.c.l.b16 %v1111
  %v4820 = vunpack.c.h.b16 %v1111
  %v4821 = vunpack.c.l.b16 %v1112
  %v4822 = vunpack.c.h.b16 %v1112
  %v4823 = vunpack.c.l.b16 %v1113
  %v4824 = vunpack.c.h.b16 %v1113
  %v4825 = vunpack.c.l.b16 %v1114
  %v4826 = vunpack.c.h.b16 %v1114
  %v4827 = vunpack.c.l.b16 %v1115
  %v4828 = vunpack.c.h.b16 %v1115
  %v4829 = vunpack.c.l.b16 %v1116
  %v4830 = vunpack.c.h.b16 %v1116
  %v4831 = vunpack.c.l.b16 %v1117
  %v4832 = vunpack.c.h.b16 %v1117
  %v4833 = vunpack.c.l.b16 %v1118
  %v4834 = vunpack.c.h.b16 %v1118
  %v4835 = vunpack.c.l.b16 %v1119
  %v4836 = vunpack.c.h.b16 %v1119
  %v4837 = vunpack.c.l.b16 %v1120
  %v4838 = vunpack.c.h.b16 %v1120
  %v4839 = vunpack.c.l.b16 %v1121
  %v4840 = vunpack.c.h.b16 %v1121
  %v4841 = vunpack.c.l.b16 %v1122
  %v4842 = vunpack.c.h.b16 %v1122
  %v4843 = vunpack.c.l.b16 %v1123
  %v4844 = vunpack.c.h.b16 %v1123
  %v4845 = vunpack.c.l.b16 %v1124
  %v4846 = vunpack.c.h.b16 %v1124
  %v4847 = vunpack.c.l.b16 %v1125
  %v4848 = vunpack.c.h.b16 %v1125
  %v4849 = vunpack.c.l.b16 %v1126
  %v4850 = vunpack.c.h.b16 %v1126
  %v4851 = vunpack.c.l.b16 %v1127
  %v4852 = vunpack.c.h.b16 %v1127
  %v4853 = vunpack.c.l.b16 %v1128
  %v4854 = vunpack.c.h.b16 %v1128
  %v4855 = vunpack.c.l.b16 %v1129
  %v4856 = vunpack.c.h.b16 %v1129
  %v4857 = vunpack.c.l.b16 %v1130
  %v4858 = vunpack.c.h.b16 %v1130
  %v4859 = vunpack.c.l.b16 %v1131
  %v4860 = vunpack.c.h.b16 %v1131
  %v4861 = vunpack.c.l.b16 %v1132
  %v4862 = vunpack.c.h.b16 %v1132
  %v4863 = vunpack.c.l.b16 %v1133
  %v4864 = vunpack.c.h.b16 %v1133
  %v4865 = vunpack.c.l.b16 %v1134
  %v4866 = vunpack.c.h.b16 %v1134
  %v4867 = vunpack.c.l.b16 %v1135
  %v4868 = vunpack.c.h.b16 %v1135
  %v4869 = vunpack.c.l.b16 %v1136
  %v4870 = vunpack.c.h.b16 %v1136
  %v4871 = vunpack.c.l.b16 %v1137
  %v4872 = vunpack.c.h.b16 %v1137
  %v4873 = vunpack.c.l.b16 %v1138
  %v4874 = vunpack.c.h.b16 %v1138
  %v4875 = vunpack.c.l.b16 %v1139
  %v4876 = vunpack.c.h.b16 %v1139
  %v4877 = vunpack.c.l.b16 %v1140
  %v4878 = vunpack.c.h.b16 %v1140
  %v4879 = vunpack.c.l.b16 %v1141
  %v4880 = vunpack.c.h.b16 %v1141
  %v4881 = vunpack.c.l.b16 %v1142
  %v4882 = vunpack.c.h.b16 %v1142
  %v4883 = vunpack.c.l.b16 %v1143
  %v4884 = vunpack.c.h.b16 %v1143
  %v4885 = vunpack.c.l.b16 %v1144
  %v4886 = vunpack.c.h.b16 %v1144
  %v4887 = vunpack.c.l.b16 %v1145
  %v4888 = vunpack.c.h.b16 %v1145
  %v4889 = vunpack.c.l.b16 %v1146
  %v4890 = vunpack.c.h.b16 %v1146
  %v4891 = vunpack.c.l.b16 %v1147
  %v4892 = vunpack.c.h.b16 %v1147
  %v4893 = vunpack.c.l.b16 %v1148
  %v4894 = vunpack.c.h.b16 %v1148
  %v4895 = vunpack.c.l.b16 %v1149
  %v4896 = vunpack.c.h.b16 %v1149
  %v4897 = vunpack.c.l.b16 %v1150
  %v4898 = vunpack.c.h.b16 %v1150
  %v4899 = vunpack.c.l.b16 %v1151
  %v4900 = vunpack.c.h.b16 %v1151
  %v4901 = vunpack.c.l.b16 %v1152
  %v4902 = vunpack.c.h.b16 %v1152
  %v4903 = vunpack.c.l.b16 %v1153
  %v4904 = vunpack.c.h.b16 %v1153
  %v4905 = vunpack.c.l.b16 %v1154
  %v4906 = vunpack.c.h.b16 %v1154
  %v4907 = vunpack.c.l.b16 %v1155
  %v4908 = vunpack.c.h.b16 %v1155
  %v4909 = vunpack.c.l.b16 %v1156
  %v4910 = vunpack.c.h.b16 %v1156
  %v4911 = vunpack.c.l.b16 %v1157
  %v4912 = vunpack.c.h.b16 %v1157
  %v4913 = vunpack.c.l.b16 %v1158
  %v4914 = vunpack.c.h.b16 %v1158
  %v4915 = vunpack.c.l.b16 %v1159
  %v4916 = vunpack.c.h.b16 %v1159
  %v4917 = vunpack.c.l.b16 %v1160
  %v4918 = vunpack.c.h.b16 %v1160
  %v4919 = vunpack.c.l.b16 %v1161
  %v4920 = vunpack.c.h.b16 %v1161
  %v4921 = vunpack.c.l.b16 %v1162
  %v4922 = vunpack.c.h.b16 %v1162
  %v4923 = vunpack.c.l.b16 %v1163
  %v4924 = vunpack.c.h.b16 %v1163
  %v4925 = vunpack.c.l.b16 %v1164
  %v4926 = vunpack.c.h.b16 %v1164
  %v4927 = vunpack.c.l.b16 %v1165
  %v4928 = vunpack.c.h.b16 %v1165
  %v4929 = vunpack.c.l.b16 %v1166
  %v4930 = vunpack.c.h.b16 %v1166
  %v4931 = vunpack.c.l.b16 %v1167
  %v4932 = vunpack.c.h.b16 %v1167
  %v4933 = vunpack.c.l.b16 %v1168
  %v4934 = vunpack.c.h.b16 %v1168
  %v4935 = vunpack.c.l.b16 %v1169
  %v4936 = vunpack.c.h.b16 %v1169
  %v4937 = vunpack.c.l.b16 %v1170
  %v4938 = vunpack.c.h.b16 %v1170
  %v4939 = vunpack.c.l.b16 %v1171
  %v4940 = vunpack.c.h.b16 %v1171
  %v4941 = vunpack.c.l.b16 %v1172
  %v4942 = vunpack.c.h.b16 %v1172
  %v4943 = vunpack.c.l.b16 %v1173
  %v4944 = vunpack.c.h.b16 %v1173
  %v4945 = vunpack.c.l.b16 %v1174
  %v4946 = vunpack.c.h.b16 %v1174
  %v4947 = vunpack.c.l.b16 %v1175
  %v4948 = vunpack.c.h.b16 %v1175
  %v4949 = vunpack.c.l.b16 %v1176
  %v4950 = vunpack.c.h.b16 %v1176
  %v4951 = vunpack.c.l.b16 %v1177
  %v4952 = vunpack.c.h.b16 %v1177
  %v4953 = vunpack.c.l.b16 %v1178
  %v4954 = vunpack.c.h.b16 %v1178
  %v4955 = vunpack.c.l.b16 %v1179
  %v4956 = vunpack.c.h.b16 %v1179
  %v4957 = vunpack.c.l.b16 %v1180
  %v4958 = vunpack.c.h.b16 %v1180
  %v4959 = vunpack.c.l.b16 %v1181
  %v4960 = vunpack.c.h.b16 %v1181
  %v4961 = vunpack.c.l.b16 %v1182
  %v4962 = vunpack.c.h.b16 %v1182
  %v4963 = vunpack.c.l.b16 %v1183
  %v4964 = vunpack.c.h.b16 %v1183
  %v4965 = vunpack.c.l.b16 %v1184
  %v4966 = vunpack.c.h.b16 %v1184
  %v4967 = vunpack.c.l.b16 %v1185
  %v4968 = vunpack.c.h.b16 %v1185
  %v4969 = vunpack.c.l.b16 %v1186
  %v4970 = vunpack.c.h.b16 %v1186
  %v4971 = vunpack.c.l.b16 %v1187
  %v4972 = vunpack.c.h.b16 %v1187
  %v4973 = vunpack.c.l.b16 %v1188
  %v4974 = vunpack.c.h.b16 %v1188
  %v4975 = vunpack.c.l.b16 %v1189
  %v4976 = vunpack.c.h.b16 %v1189
  %v4977 = vunpack.c.l.b16 %v1190
  %v4978 = vunpack.c.h.b16 %v1190
  %v4979 = vunpack.c.l.b16 %v1191
  %v4980 = vunpack.c.h.b16 %v1191
  %v4981 = vunpack.c.l.b16 %v1192
  %v4982 = vunpack.c.h.b16 %v1192
  %v4983 = vunpack.c.l.b16 %v1193
  %v4984 = vunpack.c.h.b16 %v1193
  %v4985 = vunpack.c.l.b16 %v1194
  %v4986 = vunpack.c.h.b16 %v1194
  %v4987 = vunpack.c.l.b16 %v1195
  %v4988 = vunpack.c.h.b16 %v1195
  %v4989 = vunpack.c.l.b16 %v1196
  %v4990 = vunpack.c.h.b16 %v1196
  %v4991 = vunpack.c.l.b16 %v1197
  %v4992 = vunpack.c.h.b16 %v1197
  %v4993 = vunpack.c.l.b16 %v1198
  %v4994 = vunpack.c.h.b16 %v1198
  %v4995 = vunpack.c.l.b16 %v1199
  %v4996 = vunpack.c.h.b16 %v1199
  %v4997 = vunpack.c.l.b16 %v1200
  %v4998 = vunpack.c.h.b16 %v1200
  %v4999 = vunpack.c.l.b16 %v1201
  %v5000 = vunpack.c.h.b16 %v1201
  %v5001 = vunpack.c.l.b16 %v1202
  %v5002 = vunpack.c.h.b16 %v1202
  %v5003 = vunpack.c.l.b16 %v1203
  %v5004 = vunpack.c.h.b16 %v1203
  %v5005 = vunpack.c.l.b16 %v1204
  %v5006 = vunpack.c.h.b16 %v1204
  %v5007 = vunpack.c.l.b16 %v1205
  %v5008 = vunpack.c.h.b16 %v1205
  %v5009 = vunpack.c.l.b16 %v1206
  %v5010 = vunpack.c.h.b16 %v1206
  %v5011 = vunpack.c.l.b16 %v1207
  %v5012 = vunpack.c.h.b16 %v1207
  %v5013 = vunpack.c.l.b16 %v1208
  %v5014 = vunpack.c.h.b16 %v1208
  %v5015 = vunpack.c.l.b16 %v1209
  %v5016 = vunpack.c.h.b16 %v1209
  %v5017 = vunpack.c.l.b16 %v1210
  %v5018 = vunpack.c.h.b16 %v1210
  %v5019 = vunpack.c.l.b16 %v1211
  %v5020 = vunpack.c.h.b16 %v1211
  %v5021 = vunpack.c.l.b16 %v1212
  %v5022 = vunpack.c.h.b16 %v1212
  %v5023 = vunpack.c.l.b16 %v1213
  %v5024 = vunpack.c.h.b16 %v1213
  %v5025 = vunpack.c.l.b16 %v1214
  %v5026 = vunpack.c.h.b16 %v1214
  %v5027 = vunpack.c.l.b16 %v1215
  %v5028 = vunpack.c.h.b16 %v1215
  %v5029 = vunpack.c.l.b16 %v1216
  %v5030 = vunpack.c.h.b16 %v1216
  %v5031 = vunpack.c.l.b16 %v1217
  %v5032 = vunpack.c.h.b16 %v1217
  %v5033 = vunpack.c.l.b16 %v1218
  %v5034 = vunpack.c.h.b16 %v1218
  %v5035 = vunpack.c.l.b16 %v1219
  %v5036 = vunpack.c.h.b16 %v1219
  %v5037 = vunpack.c.l.b16 %v1220
  %v5038 = vunpack.c.h.b16 %v1220
  %v5039 = vunpack.c.l.b16 %v1221
  %v5040 = vunpack.c.h.b16 %v1221
  %v5041 = vunpack.c.l.b16 %v1222
  %v5042 = vunpack.c.h.b16 %v1222
  %v5043 = vunpack.c.l.b16 %v1223
  %v5044 = vunpack.c.h.b16 %v1223
  %v5045 = vunpack.c.l.b16 %v1224
  %v5046 = vunpack.c.h.b16 %v1224
  %v5047 = vunpack.c.l.b16 %v1225
  %v5048 = vunpack.c.h.b16 %v1225
  %v5049 = vunpack.c.l.b16 %v1226
  %v5050 = vunpack.c.h.b16 %v1226
  %v5051 = vunpack.c.l.b16 %v1227
  %v5052 = vunpack.c.h.b16 %v1227
  %v5053 = vunpack.c.l.b16 %v1228
  %v5054 = vunpack.c.h.b16 %v1228
  %v5055 = vunpack.c.l.b16 %v1229
  %v5056 = vunpack.c.h.b16 %v1229
  %v5057 = vunpack.c.l.b16 %v1230
  %v5058 = vunpack.c.h.b16 %v1230
  %v5059 = vunpack.c.l.b16 %v1231
  %v5060 = vunpack.c.h.b16 %v1231
  %v5061 = vunpack.c.l.b16 %v1232
  %v5062 = vunpack.c.h.b16 %v1232
  %v5063 = vunpack.c.l.b16 %v1233
  %v5064 = vunpack.c.h.b16 %v1233
  %v5065 = vunpack.c.l.b16 %v1234
  %v5066 = vunpack.c.h.b16 %v1234
  %v5067 = vunpack.c.l.b16 %v1235
  %v5068 = vunpack.c.h.b16 %v1235
  %v5069 = vunpack.c.l.b16 %v1236
  %v5070 = vunpack.c.h.b16 %v1236
  %v5071 = vunpack.c.l.b16 %v1237
  %v5072 = vunpack.c.h.b16 %v1237
  %v5073 = vunpack.c.l.b16 %v1238
  %v5074 = vunpack.c.h.b16 %v1238
  %v5075 = vunpack.c.l.b16 %v1239
  %v5076 = vunpack.c.h.b16 %v1239
  %v5077 = vunpack.c.l.b16 %v1240
  %v5078 = vunpack.c.h.b16 %v1240
  %v5079 = vunpack.c.l.b16 %v1241
  %v5080 = vunpack.c.h.b16 %v1241
  %v5081 = vunpack.c.l.b16 %v1242
  %v5082 = vunpack.c.h.b16 %v1242
  %v5083 = vunpack.c.l.b16 %v1243
  %v5084 = vunpack.c.h.b16 %v1243
  %v5085 = vunpack.c.l.b16 %v1244
  %v5086 = vunpack.c.h.b16 %v1244
  %v5087 = vunpack.c.l.b16 %v1245
  %v5088 = vunpack.c.h.b16 %v1245
  %v5089 = vunpack.c.l.b16 %v1246
  %v5090 = vunpack.c.h.b16 %v1246
  %v5091 = vunpack.c.l.b16 %v1247
  %v5092 = vunpack.c.h.b16 %v1247
  %v5093 = vunpack.c.l.b16 %v1248
  %v5094 = vunpack.c.h.b16 %v1248
  %v5095 = vunpack.c.l.b16 %v1249
  %v5096 = vunpack.c.h.b16 %v1249
  %v5097 = vunpack.c.l.b16 %v1250
  %v5098 = vunpack.c.h.b16 %v1250
  %v5099 = vunpack.c.l.b16 %v1251
  %v5100 = vunpack.c.h.b16 %v1251
  %v5101 = vunpack.c.l.b16 %v1252
  %v5102 = vunpack.c.h.b16 %v1252
  %v5103 = vunpack.c.l.b16 %v1253
  %v5104 = vunpack.c.h.b16 %v1253
  %v5105 = vunpack.c.l.b16 %v1254
  %v5106 = vunpack.c.h.b16 %v1254
  %v5107 = vunpack.c.l.b16 %v1255
  %v5108 = vunpack.c.h.b16 %v1255
  %v5109 = vunpack.c.l.b16 %v1256
  %v5110 = vunpack.c.h.b16 %v1256
  %v5111 = vunpack.c.l.b16 %v1257
  %v5112 = vunpack.c.h.b16 %v1257
  %v5113 = vunpack.c.l.b16 %v1258
  %v5114 = vunpack.c.h.b16 %v1258
  %v5115 = vunpack.c.l.b16 %v1259
  %v5116 = vunpack.c.h.b16 %v1259
  %v5117 = vunpack.c.l.b16 %v1260
  %v5118 = vunpack.c.h.b16 %v1260
  %v5119 = vunpack.c.l.b16 %v1261
  %v5120 = vunpack.c.h.b16 %v1261
  %v5121 = vunpack.c.l.b16 %v1262
  %v5122 = vunpack.c.h.b16 %v1262
  %v5123 = vunpack.c.l.b16 %v1263
  %v5124 = vunpack.c.h.b16 %v1263
  %v5125 = vunpack.c.l.b16 %v1264
  %v5126 = vunpack.c.h.b16 %v1264
  %v5127 = vunpack.c.l.b16 %v1265
  %v5128 = vunpack.c.h.b16 %v1265
  %v5129 = vunpack.c.l.b16 %v1266
  %v5130 = vunpack.c.h.b16 %v1266
  %v5131 = vunpack.c.l.b16 %v1267
  %v5132 = vunpack.c.h.b16 %v1267
  %v5133 = vunpack.c.l.b16 %v1268
  %v5134 = vunpack.c.h.b16 %v1268
  %v5135 = vunpack.c.l.b16 %v1269
  %v5136 = vunpack.c.h.b16 %v1269
  %v5137 = vunpack.c.l.b16 %v1270
  %v5138 = vunpack.c.h.b16 %v1270
  %v5139 = vunpack.c.l.b16 %v1271
  %v5140 = vunpack.c.h.b16 %v1271
  %v5141 = vunpack.c.l.b16 %v1272
  %v5142 = vunpack.c.h.b16 %v1272
  %v5143 = vunpack.c.l.b16 %v1273
  %v5144 = vunpack.c.h.b16 %v1273
  %v5145 = vunpack.c.l.b16 %v1274
  %v5146 = vunpack.c.h.b16 %v1274
  %v5147 = vunpack.c.l.b16 %v1275
  %v5148 = vunpack.c.h.b16 %v1275
  %v5149 = vunpack.c.l.b16 %v1276
  %v5150 = vunpack.c.h.b16 %v1276
  %v5151 = vunpack.c.l.b16 %v1277
  %v5152 = vunpack.c.h.b16 %v1277
  %v5153 = vunpack.c.l.b16 %v1278
  %v5154 = vunpack.c.h.b16 %v1278
  %v5155 = vunpack.c.l.b16 %v1279
  %v5156 = vunpack.c.h.b16 %v1279
  %v5157 = vunpack.c.l.b16 %v1280
  %v5158 = vunpack.c.h.b16 %v1280
  %v5159 = vunpack.c.l.b16 %v1281
  %v5160 = vunpack.c.h.b16 %v1281
  %v5161 = vunpack.c.l.b16 %v1282
  %v5162 = vunpack.c.h.b16 %v1282
  %v5163 = vunpack.c.l.b16 %v1283
  %v5164 = vunpack.c.h.b16 %v1283
  %v5165 = vunpack.c.l.b16 %v1284
  %v5166 = vunpack.c.h.b16 %v1284
  %v5167 = vunpack.c.l.b16 %v1285
  %v5168 = vunpack.c.h.b16 %v1285
  %v5169 = vunpack.c.l.b16 %v1286
  %v5170 = vunpack.c.h.b16 %v1286
  %v5171 = vunpack.c.l.b16 %v1287
  %v5172 = vunpack.c.h.b16 %v1287
  %v5173 = vunpack.c.l.b16 %v1288
  %v5174 = vunpack.c.h.b16 %v1288
  %v5175 = vunpack.c.l.b16 %v1289
  %v5176 = vunpack.c.h.b16 %v1289
  %v5177 = vunpack.c.l.b16 %v1290
  %v5178 = vunpack.c.h.b16 %v1290
  %v5179 = vunpack.c.l.b16 %v1291
  %v5180 = vunpack.c.h.b16 %v1291
  %v5181 = vunpack.c.l.b16 %v1292
  %v5182 = vunpack.c.h.b16 %v1292
  %v5183 = vunpack.c.l.b16 %v1293
  %v5184 = vunpack.c.h.b16 %v1293
  %v5185 = vunpack.c.l.b16 %v1294
  %v5186 = vunpack.c.h.b16 %v1294
  %v5187 = vunpack.c.l.b16 %v1295
  %v5188 = vunpack.c.h.b16 %v1295
  %v5189 = vunpack.c.l.b16 %v1296
  %v5190 = vunpack.c.h.b16 %v1296
  %v5191 = vunpack.c.l.b16 %v1297
  %v5192 = vunpack.c.h.b16 %v1297
  %v5193 = vunpack.c.l.b16 %v1298
  %v5194 = vunpack.c.h.b16 %v1298
  %v5195 = vunpack.c.l.b16 %v1299
  %v5196 = vunpack.c.h.b16 %v1299
  %v5197 = vunpack.c.l.b16 %v1300
  %v5198 = vunpack.c.h.b16 %v1300
  %v5199 = vunpack.c.l.b16 %v1301
  %v5200 = vunpack.c.h.b16 %v1301
  %v5201 = vunpack.c.l.b16 %v1302
  %v5202 = vunpack.c.h.b16 %v1302
  %v5203 = vunpack.c.l.b16 %v1303
  %v5204 = vunpack.c.h.b16 %v1303
  %v5205 = vunpack.c.l.b16 %v1304
  %v5206 = vunpack.c.h.b16 %v1304
  %v5207 = vunpack.c.l.b16 %v1305
  %v5208 = vunpack.c.h.b16 %v1305
  %v5209 = vunpack.c.l.b16 %v1306
  %v5210 = vunpack.c.h.b16 %v1306
  %v5211 = vpack.c.b16 %v2671, %v2651
  %v5212 = vpack.c.b16 %v2672, %v2652
  %v5213 = vpack.c.b16 %v2673, %v2653
  %v5214 = vpack.c.b16 %v2674, %v2654
  %v5215 = vpack.c.b16 %v2675, %v2655
  %v5216 = vpack.c.b16 %v2676, %v2656
  %v5217 = vpack.c.b16 %v2677, %v2657
  %v5218 = vpack.c.b16 %v2678, %v2658
  %v5219 = vpack.c.b16 %v2679, %v2659
  %v5220 = vpack.c.b16 %v2680, %v2660
  %v5221 = vpack.c.b16 %v2681, %v2661
  %v5222 = vpack.c.b16 %v2682, %v2662
  %v5223 = vpack.c.b16 %v2683, %v2663
  %v5224 = vpack.c.b16 %v2684, %v2664
  %v5225 = vpack.c.b16 %v2685, %v2665
  %v5226 = vpack.c.b16 %v2686, %v2666
  %v5227 = vpack.c.b16 %v2687, %v2667
  %v5228 = vpack.c.b16 %v2688, %v2668
  %v5229 = vpack.c.b16 %v2689, %v2669
  %v5230 = vpack.c.b16 %v2690, %v2670
  %v5231 = vpack.c.b16 %v2711, %v2691
  %v5232 = vpack.c.b16 %v2712, %v2692
  %v5233 = vpack.c.b16 %v2713, %v2693
  %v5234 = vpack.c.b16 %v2714, %v2694
  %v5235 = vpack.c.b16 %v2715, %v2695
  %v5236 = vpack.c.b16 %v2716, %v2696
  %v5237 = vpack.c.b16 %v2717, %v2697
  %v5238 = vpack.c.b16 %v2718, %v2698
  %v5239 = vpack.c.b16 %v2719, %v2699
  %v5240 = vpack.c.b16 %v2720, %v2700
  %v5241 = vpack.c.b16 %v2721, %v2701
  %v5242 = vpack.c.b16 %v2722, %v2702
  %v5243 = vpack.c.b16 %v2723, %v2703
  %v5244 = vpack.c.b16 %v2724, %v2704
  %v5245 = vpack.c.b16 %v2725, %v2705
  %v5246 = vpack.c.b16 %v2726, %v2706
  %v5247 = vpack.c.b16 %v2727, %v2707
  %v5248 = vpack.c.b16 %v2728, %v2708
  %v5249 = vpack.c.b16 %v2729, %v2709
  %v5250 = vpack.c.b16 %v2730, %v2710
  %v5251 = vpack.c.b16 %v2751, %v2731
  %v5252 = vpack.c.b16 %v2752, %v2732
  %v5253 = vpack.c.b16 %v2753, %v2733
  %v5254 = vpack.c.b16 %v2754, %v2734
  %v5255 = vpack.c.b16 %v2755, %v2735
  %v5256 = vpack.c.b16 %v2756, %v2736
  %v5257 = vpack.c.b16 %v2757, %v2737
  %v5258 = vpack.c.b16 %v2758, %v2738
  %v5259 = vpack.c.b16 %v2759, %v2739
  %v5260 = vpack.c.b16 %v2760, %v2740
  %v5261 = vpack.c.b16 %v2761, %v2741
  %v5262 = vpack.c.b16 %v2762, %v2742
  %v5263 = vpack.c.b16 %v2763, %v2743
  %v5264 = vpack.c.b16 %v2764, %v2744
  %v5265 = vpack.c.b16 %v2765, %v2745
  %v5266 = vpack.c.b16 %v2766, %v2746
  %v5267 = vpack.c.b16 %v2767, %v2747
  %v5268 = vpack.c.b16 %v2768, %v2748
  %v5269 = vpack.c.b16 %v2769, %v2749
  %v5270 = vpack.c.b16 %v2770, %v2750
  %v5271 = vpack.c.b16 %v2791, %v2771
  %v5272 = vpack.c.b16 %v2792, %v2772
  %v5273 = vpack.c.b16 %v2793, %v2773
  %v5274 = vpack.c.b16 %v2794, %v2774
  %v5275 = vpack.c.b16 %v2795, %v2775
  %v5276 = vpack.c.b16 %v2796, %v2776
  %v5277 = vpack.c.b16 %v2797, %v2777
  %v5278 = vpack.c.b16 %v2798, %v2778
  %v5279 = vpack.c.b16 %v2799, %v2779
  %v5280 = vpack.c.b16 %v2800, %v2780
  %v5281 = vpack.c.b16 %v2801, %v2781
  %v5282 = vpack.c.b16 %v2802, %v2782
  %v5283 = vpack.c.b16 %v2803, %v2783
  %v5284 = vpack.c.b16 %v2804, %v2784
  %v5285 = vpack.c.b16 %v2805, %v2785
  %v5286 = vpack.c.b16 %v2806, %v2786
  %v5287 = vpack.c.b16 %v2807, %v2787
  %v5288 = vpack.c.b16 %v2808, %v2788
  %v5289 = vpack.c.b16 %v2809, %v2789
  %v5290 = vpack.c.b16 %v2810, %v2790
  %v5291 = vpack.c.b16 %v2831, %v2811
  %v5292 = vpack.c.b16 %v2832, %v2812
  %v5293 = vpack.c.b16 %v2833, %v2813
  %v5294 = vpack.c.b16 %v2834, %v2814
  %v5295 = vpack.c.b16 %v2835, %v2815
  %v5296 = vpack.c.b16 %v2836, %v2816
  %v5297 = vpack.c.b16 %v2837, %v2817
  %v5298 = vpack.c.b16 %v2838, %v2818
  %v5299 = vpack.c.b16 %v2839, %v2819
  %v5300 = vpack.c.b16 %v2840, %v2820
  %v5301 = vpack.c.b16 %v2841, %v2821
  %v5302 = vpack.c.b16 %v2842, %v2822
  %v5303 = vpack.c.b16 %v2843, %v2823
  %v5304 = vpack.c.b16 %v2844, %v2824
  %v5305 = vpack.c.b16 %v2845, %v2825
  %v5306 = vpack.c.b16 %v2846, %v2826
  %v5307 = vpack.c.b16 %v2847, %v2827
  %v5308 = vpack.c.b16 %v2848, %v2828
  %v5309 = vpack.c.b16 %v2849, %v2829
  %v5310 = vpack.c.b16 %v2850, %v2830
  %v5311 = vpack.c.b16 %v2871, %v2851
  %v5312 = vpack.c.b16 %v2872, %v2852
  %v5313 = vpack.c.b16 %v2873, %v2853
  %v5314 = vpack.c.b16 %v2874, %v2854
  %v5315 = vpack.c.b16 %v2875, %v2855
  %v5316 = vpack.c.b16 %v2876, %v2856
  %v5317 = vpack.c.b16 %v2877, %v2857
  %v5318 = vpack.c.b16 %v2878, %v2858
  %v5319 = vpack.c.b16 %v2879, %v2859
  %v5320 = vpack.c.b16 %v2880, %v2860
  %v5321 = vpack.c.b16 %v2881, %v2861
  %v5322 = vpack.c.b16 %v2882, %v2862
  %v5323 = vpack.c.b16 %v2883, %v2863
  %v5324 = vpack.c.b16 %v2884, %v2864
  %v5325 = vpack.c.b16 %v2885, %v2865
  %v5326 = vpack.c.b16 %v2886, %v2866
  %v5327 = vpack.c.b16 %v2887, %v2867
  %v5328 = vpack.c.b16 %v2888, %v2868
  %v5329 = vpack.c.b16 %v2889, %v2869
  %v5330 = vpack.c.b16 %v2890, %v2870
  %v5331 = vpack.c.b16 %v2911, %v2891
  %v5332 = vpack.c.b16 %v2912, %v2892
  %v5333 = vpack.c.b16 %v2913, %v2893
  %v5334 = vpack.c.b16 %v2914, %v2894
  %v5335 = vpack.c.b16 %v2915, %v2895
  %v5336 = vpack.c.b16 %v2916, %v2896
  %v5337 = vpack.c.b16 %v2917, %v2897
  %v5338 = vpack.c.b16 %v2918, %v2898
  %v5339 = vpack.c.b16 %v2919, %v2899
  %v5340 = vpack.c.b16 %v2920, %v2900
  %v5341 = vpack.c.b16 %v2921, %v2901
  %v5342 = vpack.c.b16 %v2922, %v2902
  %v5343 = vpack.c.b16 %v2923, %v2903
  %v5344 = vpack.c.b16 %v2924, %v2904
  %v5345 = vpack.c.b16 %v2925, %v2905
  %v5346 = vpack.c.b16 %v2926, %v2906
  %v5347 = vpack.c.b16 %v2927, %v2907
  %v5348 = vpack.c.b16 %v2928, %v2908
  %v5349 = vpack.c.b16 %v2929, %v2909
  %v5350 = vpack.c.b16 %v2930, %v2910
  %v5351 = vpack.c.b16 %v2951, %v2931
  %v5352 = vpack.c.b16 %v2952, %v2932
  %v5353 = vpack.c.b16 %v2953, %v2933
  %v5354 = vpack.c.b16 %v2954, %v2934
  %v5355 = vpack.c.b16 %v2955, %v2935
  %v5356 = vpack.c.b16 %v2956, %v2936
  %v5357 = vpack.c.b16 %v2957, %v2937
  %v5358 = vpack.c.b16 %v2958, %v2938
  %v5359 = vpack.c.b16 %v2959, %v2939
  %v5360 = vpack.c.b16 %v2960, %v2940
  %v5361 = vpack.c.b16 %v2961, %v2941
  %v5362 = vpack.c.b16 %v2962, %v2942
  %v5363 = vpack.c.b16 %v2963, %v2943
  %v5364 = vpack.c.b16 %v2964, %v2944
  %v5365 = vpack.c.b16 %v2965, %v2945
  %v5366 = vpack.c.b16 %v2966, %v2946
  %v5367 = vpack.c.b16 %v2967, %v2947
  %v5368 = vpack.c.b16 %v2968, %v2948
  %v5369 = vpack.c.b16 %v2969, %v2949
  %v5370 = vpack.c.b16 %v2970, %v2950
  %v5371 = vpack.c.b16 %v2991, %v2971
  %v5372 = vpack.c.b16 %v2992, %v2972
  %v5373 = vpack.c.b16 %v2993, %v2973
  %v5374 = vpack.c.b16 %v2994, %v2974
  %v5375 = vpack.c.b16 %v2995, %v2975
  %v5376 = vpack.c.b16 %v2996, %v2976
  %v5377 = vpack.c.b16 %v2997, %v2977
  %v5378 = vpack.c.b16 %v2998, %v2978
  %v5379 = vpack.c.b16 %v2999, %v2979
  %v5380 = vpack.c.b16 %v3000, %v2980
  %v5381 = vpack.c.b16 %v3001, %v2981
  %v5382 = vpack.c.b16 %v3002, %v2982
  %v5383 = vpack.c.b16 %v3003, %v2983
  %v5384 = vpack.c.b16 %v3004, %v2984
  %v5385 = vpack.c.b16 %v3005, %v2985
  %v5386 = vpack.c.b16 %v3006, %v2986
  %v5387 = vpack.c.b16 %v3007, %v2987
  %v5388 = vpack.c.b16 %v3008, %v2988
  %v5389 = vpack.c.b16 %v3009, %v2989
  %v5390 = vpack.c.b16 %v3010, %v2990
  %v5391 = vpack.c.b16 %v3031, %v3011
  %v5392 = vpack.c.b16 %v3032, %v3012
  %v5393 = vpack.c.b16 %v3033, %v3013
  %v5394 = vpack.c.b16 %v3034, %v3014
  %v5395 = vpack.c.b16 %v3035, %v3015
  %v5396 = vpack.c.b16 %v3036, %v3016
  %v5397 = vpack.c.b16 %v3037, %v3017
  %v5398 = vpack.c.b16 %v3038, %v3018
  %v5399 = vpack.c.b16 %v3039, %v3019
  %v5400 = vpack.c.b16 %v3040, %v3020
  %v5401 = vpack.c.b16 %v3041, %v3021
  %v5402 = vpack.c.b16 %v3042, %v3022
  %v5403 = vpack.c.b16 %v3043, %v3023
  %v5404 = vpack.c.b16 %v3044, %v3024
  %v5405 = vpack.c.b16 %v3045, %v3025
  %v5406 = vpack.c.b16 %v3046, %v3026
  %v5407 = vpack.c.b16 %v3047, %v3027
  %v5408 = vpack.c.b16 %v3048, %v3028
  %v5409 = vpack.c.b16 %v3049, %v3029
  %v5410 = vpack.c.b16 %v3050, %v3030
  %v5411 = vpack.c.b16 %v3071, %v3051
  %v5412 = vpack.c.b16 %v3072, %v3052
  %v5413 = vpack.c.b16 %v3073, %v3053
  %v5414 = vpack.c.b16 %v3074, %v3054
  %v5415 = vpack.c.b16 %v3075, %v3055
  %v5416 = vpack.c.b16 %v3076, %v3056
  %v5417 = vpack.c.b16 %v3077, %v3057
  %v5418 = vpack.c.b16 %v3078, %v3058
  %v5419 = vpack.c.b16 %v3079, %v3059
  %v5420 = vpack.c.b16 %v3080, %v3060
  %v5421 = vpack.c.b16 %v3081, %v3061
  %v5422 = vpack.c.b16 %v3082, %v3062
  %v5423 = vpack.c.b16 %v3083, %v3063
  %v5424 = vpack.c.b16 %v3084, %v3064
  %v5425 = vpack.c.b16 %v3085, %v3065
  %v5426 = vpack.c.b16 %v3086, %v3066
  %v5427 = vpack.c.b16 %v3087, %v3067
  %v5428 = vpack.c.b16 %v3088, %v3068
  %v5429 = vpack.c.b16 %v3089, %v3069
  %v5430 = vpack.c.b16 %v3090, %v3070
  %v5431 = vpack.c.b16 %v3111, %v3091
  %v5432 = vpack.c.b16 %v3112, %v3092
  %v5433 = vpack.c.b16 %v3113, %v3093
  %v5434 = vpack.c.b16 %v3114, %v3094
  %v5435 = vpack.c.b16 %v3115, %v3095
  %v5436 = vpack.c.b16 %v3116, %v3096
  %v5437 = vpack.c.b16 %v3117, %v3097
  %v5438 = vpack.c.b16 %v3118, %v3098
  %v5439 = vpack.c.b16 %v3119, %v3099
  %v5440 = vpack.c.b16 %v3120, %v3100
  %v5441 = vpack.c.b16 %v3121, %v3101
  %v5442 = vpack.c.b16 %v3122, %v3102
  %v5443 = vpack.c.b16 %v3123, %v3103
  %v5444 = vpack.c.b16 %v3124, %v3104
  %v5445 = vpack.c.b16 %v3125, %v3105
  %v5446 = vpack.c.b16 %v3126, %v3106
  %v5447 = vpack.c.b16 %v3127, %v3107
  %v5448 = vpack.c.b16 %v3128, %v3108
  %v5449 = vpack.c.b16 %v3129, %v3109
  %v5450 = vpack.c.b16 %v3130, %v3110
  %v5451 = vpack.c.b16 %v3151, %v3131
  %v5452 = vpack.c.b16 %v3152, %v3132
  %v5453 = vpack.c.b16 %v3153, %v3133
  %v5454 = vpack.c.b16 %v3154, %v3134
  %v5455 = vpack.c.b16 %v3155, %v3135
  %v5456 = vpack.c.b16 %v3156, %v3136
  %v5457 = vpack.c.b16 %v3157, %v3137
  %v5458 = vpack.c.b16 %v3158, %v3138
  %v5459 = vpack.c.b16 %v3159, %v3139
  %v5460 = vpack.c.b16 %v3160, %v3140
  %v5461 = vpack.c.b16 %v3161, %v3141
  %v5462 = vpack.c.b16 %v3162, %v3142
  %v5463 = vpack.c.b16 %v3163, %v3143
  %v5464 = vpack.c.b16 %v3164, %v3144
  %v5465 = vpack.c.b16 %v3165, %v3145
  %v5466 = vpack.c.b16 %v3166, %v3146
  %v5467 = vpack.c.b16 %v3167, %v3147
  %v5468 = vpack.c.b16 %v3168, %v3148
  %v5469 = vpack.c.b16 %v3169, %v3149
  %v5470 = vpack.c.b16 %v3170, %v3150
  %v5471 = vpack.c.b16 %v3191, %v3171
  %v5472 = vpack.c.b16 %v3192, %v3172
  %v5473 = vpack.c.b16 %v3193, %v3173
  %v5474 = vpack.c.b16 %v3194, %v3174
  %v5475 = vpack.c.b16 %v3195, %v3175
  %v5476 = vpack.c.b16 %v3196, %v3176
  %v5477 = vpack.c.b16 %v3197, %v3177
  %v5478 = vpack.c.b16 %v3198, %v3178
  %v5479 = vpack.c.b16 %v3199, %v3179
  %v5480 = vpack.c.b16 %v3200, %v3180
  %v5481 = vpack.c.b16 %v3201, %v3181
  %v5482 = vpack.c.b16 %v3202, %v3182
  %v5483 = vpack.c.b16 %v3203, %v3183
  %v5484 = vpack.c.b16 %v3204, %v3184
  %v5485 = vpack.c.b16 %v3205, %v3185
  %v5486 = vpack.c.b16 %v3206, %v3186
  %v5487 = vpack.c.b16 %v3207, %v3187
  %v5488 = vpack.c.b16 %v3208, %v3188
  %v5489 = vpack.c.b16 %v3209, %v3189
  %v5490 = vpack.c.b16 %v3210, %v3190
  %v5491 = vpack.c.b16 %v3231, %v3211
  %v5492 = vpack.c.b16 %v3232, %v3212
  %v5493 = vpack.c.b16 %v3233, %v3213
  %v5494 = vpack.c.b16 %v3234, %v3214
  %v5495 = vpack.c.b16 %v3235, %v3215
  %v5496 = vpack.c.b16 %v3236, %v3216
  %v5497 = vpack.c.b16 %v3237, %v3217
  %v5498 = vpack.c.b16 %v3238, %v3218
  %v5499 = vpack.c.b16 %v3239, %v3219
  %v5500 = vpack.c.b16 %v3240, %v3220
  %v5501 = vpack.c.b16 %v3241, %v3221
  %v5502 = vpack.c.b16 %v3242, %v3222
  %v5503 = vpack.c.b16 %v3243, %v3223
  %v5504 = vpack.c.b16 %v3244, %v3224
  %v5505 = vpack.c.b16 %v3245, %v3225
  %v5506 = vpack.c.b16 %v3246, %v3226
  %v5507 = vpack.c.b16 %v3247, %v3227
  %v5508 = vpack.c.b16 %v3248, %v3228
  %v5509 = vpack.c.b16 %v3249, %v3229
  %v5510 = vpack.c.b16 %v3250, %v3230
  %v5511 = vpack.c.b16 %v3271, %v3251
  %v5512 = vpack.c.b16 %v3272, %v3252
  %v5513 = vpack.c.b16 %v3273, %v3253
  %v5514 = vpack.c.b16 %v3274, %v3254
  %v5515 = vpack.c.b16 %v3275, %v3255
  %v5516 = vpack.c.b16 %v3276, %v3256
  %v5517 = vpack.c.b16 %v3277, %v3257
  %v5518 = vpack.c.b16 %v3278, %v3258
  %v5519 = vpack.c.b16 %v3279, %v3259
  %v5520 = vpack.c.b16 %v3280, %v3260
  %v5521 = vpack.c.b16 %v3281, %v3261
  %v5522 = vpack.c.b16 %v3282, %v3262
  %v5523 = vpack.c.b16 %v3283, %v3263
  %v5524 = vpack.c.b16 %v3284, %v3264
  %v5525 = vpack.c.b16 %v3285, %v3265
  %v5526 = vpack.c.b16 %v3286, %v3266
  %v5527 = vpack.c.b16 %v3287, %v3267
  %v5528 = vpack.c.b16 %v3288, %v3268
  %v5529 = vpack.c.b16 %v3289, %v3269
  %v5530 = vpack.c.b16 %v3290, %v3270
  %v5531 = vpack.c.b16 %v3311, %v3291
  %v5532 = vpack.c.b16 %v3312, %v3292
  %v5533 = vpack.c.b16 %v3313, %v3293
  %v5534 = vpack.c.b16 %v3314, %v3294
  %v5535 = vpack.c.b16 %v3315, %v3295
  %v5536 = vpack.c.b16 %v3316, %v3296
  %v5537 = vpack.c.b16 %v3317, %v3297
  %v5538 = vpack.c.b16 %v3318, %v3298
  %v5539 = vpack.c.b16 %v3319, %v3299
  %v5540 = vpack.c.b16 %v3320, %v3300
  %v5541 = vpack.c.b16 %v3321, %v3301
  %v5542 = vpack.c.b16 %v3322, %v3302
  %v5543 = vpack.c.b16 %v3323, %v3303
  %v5544 = vpack.c.b16 %v3324, %v3304
  %v5545 = vpack.c.b16 %v3325, %v3305
  %v5546 = vpack.c.b16 %v3326, %v3306
  %v5547 = vpack.c.b16 %v3327, %v3307
  %v5548 = vpack.c.b16 %v3328, %v3308
  %v5549 = vpack.c.b16 %v3329, %v3309
  %v5550 = vpack.c.b16 %v3330, %v3310
  %v5551 = vpack.c.b16 %v3351, %v3331
  %v5552 = vpack.c.b16 %v3352, %v3332
  %v5553 = vpack.c.b16 %v3353, %v3333
  %v5554 = vpack.c.b16 %v3354, %v3334
  %v5555 = vpack.c.b16 %v3355, %v3335
  %v5556 = vpack.c.b16 %v3356, %v3336
  %v5557 = vpack.c.b16 %v3357, %v3337
  %v5558 = vpack.c.b16 %v3358, %v3338
  %v5559 = vpack.c.b16 %v3359, %v3339
  %v5560 = vpack.c.b16 %v3360, %v3340
  %v5561 = vpack.c.b16 %v3361, %v3341
  %v5562 = vpack.c.b16 %v3362, %v3342
  %v5563 = vpack.c.b16 %v3363, %v3343
  %v5564 = vpack.c.b16 %v3364, %v3344
  %v5565 = vpack.c.b16 %v3365, %v3345
  %v5566 = vpack.c.b16 %v3366, %v3346
  %v5567 = vpack.c.b16 %v3367, %v3347
  %v5568 = vpack.c.b16 %v3368, %v3348
  %v5569 = vpack.c.b16 %v3369, %v3349
  %v5570 = vpack.c.b16 %v3370, %v3350
  %v5571 = vpack.c.b16 %v3391, %v3371
  %v5572 = vpack.c.b16 %v3392, %v3372
  %v5573 = vpack.c.b16 %v3393, %v3373
  %v5574 = vpack.c.b16 %v3394, %v3374
  %v5575 = vpack.c.b16 %v3395, %v3375
  %v5576 = vpack.c.b16 %v3396, %v3376
  %v5577 = vpack.c.b16 %v3397, %v3377
  %v5578 = vpack.c.b16 %v3398, %v3378
  %v5579 = vpack.c.b16 %v3399, %v3379
  %v5580 = vpack.c.b16 %v3400, %v3380
  %v5581 = vpack.c.b16 %v3401, %v3381
  %v5582 = vpack.c.b16 %v3402, %v3382
  %v5583 = vpack.c.b16 %v3403, %v3383
  %v5584 = vpack.c.b16 %v3404, %v3384
  %v5585 = vpack.c.b16 %v3405, %v3385
  %v5586 = vpack.c.b16 %v3406, %v3386
  %v5587 = vpack.c.b16 %v3407, %v3387
  %v5588 = vpack.c.b16 %v3408, %v3388
  %v5589 = vpack.c.b16 %v3409, %v3389
  %v5590 = vpack.c.b16 %v3410, %v3390
  %v5591 = vpack.c.b16 %v3431, %v3411
  %v5592 = vpack.c.b16 %v3432, %v3412
  %v5593 = vpack.c.b16 %v3433, %v3413
  %v5594 = vpack.c.b16 %v3434, %v3414
  %v5595 = vpack.c.b16 %v3435, %v3415
  %v5596 = vpack.c.b16 %v3436, %v3416
  %v5597 = vpack.c.b16 %v3437, %v3417
  %v5598 = vpack.c.b16 %v3438, %v3418
  %v5599 = vpack.c.b16 %v3439, %v3419
  %v5600 = vpack.c.b16 %v3440, %v3420
  %v5601 = vpack.c.b16 %v3441, %v3421
  %v5602 = vpack.c.b16 %v3442, %v3422
  %v5603 = vpack.c.b16 %v3443, %v3423
  %v5604 = vpack.c.b16 %v3444, %v3424
  %v5605 = vpack.c.b16 %v3445, %v3425
  %v5606 = vpack.c.b16 %v3446, %v3426
  %v5607 = vpack.c.b16 %v3447, %v3427
  %v5608 = vpack.c.b16 %v3448, %v3428
  %v5609 = vpack.c.b16 %v3449, %v3429
  %v5610 = vpack.c.b16 %v3450, %v3430
  %v5611 = vpack.c.b16 %v3471, %v3451
  %v5612 = vpack.c.b16 %v3472, %v3452
  %v5613 = vpack.c.b16 %v3473, %v3453
  %v5614 = vpack.c.b16 %v3474, %v3454
  %v5615 = vpack.c.b16 %v3475, %v3455
  %v5616 = vpack.c.b16 %v3476, %v3456
  %v5617 = vpack.c.b16 %v3477, %v3457
  %v5618 = vpack.c.b16 %v3478, %v3458
  %v5619 = vpack.c.b16 %v3479, %v3459
  %v5620 = vpack.c.b16 %v3480, %v3460
  %v5621 = vpack.c.b16 %v3481, %v3461
  %v5622 = vpack.c.b16 %v3482, %v3462
  %v5623 = vpack.c.b16 %v3483, %v3463
  %v5624 = vpack.c.b16 %v3484, %v3464
  %v5625 = vpack.c.b16 %v3485, %v3465
  %v5626 = vpack.c.b16 %v3486, %v3466
  %v5627 = vpack.c.b16 %v3487, %v3467
  %v5628 = vpack.c.b16 %v3488, %v3468
  %v5629 = vpack.c.b16 %v3489, %v3469
  %v5630 = vpack.c.b16 %v3490, %v3470
  %v5631 = vpack.c.b16 %v3511, %v3491
  %v5632 = vpack.c.b16 %v3512, %v3492
  %v5633 = vpack.c.b16 %v3513, %v3493
  %v5634 = vpack.c.b16 %v3514, %v3494
  %v5635 = vpack.c.b16 %v3515, %v3495
  %v5636 = vpack.c.b16 %v3516, %v3496
  %v5637 = vpack.c.b16 %v3517, %v3497
  %v5638 = vpack.c.b16 %v3518, %v3498
  %v5639 = vpack.c.b16 %v3519, %v3499
  %v5640 = vpack.c.b16 %v3520, %v3500
  %v5641 = vpack.c.b16 %v3521, %v3501
  %v5642 = vpack.c.b16 %v3522, %v3502
  %v5643 = vpack.c.b16 %v3523, %v3503
  %v5644 = vpack.c.b16 %v3524, %v3504
  %v5645 = vpack.c.b16 %v3525, %v3505
  %v5646 = vpack.c.b16 %v3526, %v3506
  %v5647 = vpack.c.b16 %v3527, %v3507
  %v5648 = vpack.c.b16 %v3528, %v3508
  %v5649 = vpack.c.b16 %v3529, %v3509
  %v5650 = vpack.c.b16 %v3530, %v3510
  %v5651 = vpack.c.b16 %v3551, %v3531
  %v5652 = vpack.c.b16 %v3552, %v3532
  %v5653 = vpack.c.b16 %v3553, %v3533
  %v5654 = vpack.c.b16 %v3554, %v3534
  %v5655 = vpack.c.b16 %v3555, %v3535
  %v5656 = vpack.c.b16 %v3556, %v3536
  %v5657 = vpack.c.b16 %v3557, %v3537
  %v5658 = vpack.c.b16 %v3558, %v3538
  %v5659 = vpack.c.b16 %v3559, %v3539
  %v5660 = vpack.c.b16 %v3560, %v3540
  %v5661 = vpack.c.b16 %v3561, %v3541
  %v5662 = vpack.c.b16 %v3562, %v3542
  %v5663 = vpack.c.b16 %v3563, %v3543
  %v5664 = vpack.c.b16 %v3564, %v3544
  %v5665 = vpack.c.b16 %v3565, %v3545
  %v5666 = vpack.c.b16 %v3566, %v3546
  %v5667 = vpack.c.b16 %v3567, %v3547
  %v5668 = vpack.c.b16 %v3568, %v3548
  %v5669 = vpack.c.b16 %v3569, %v3549
  %v5670 = vpack.c.b16 %v3570, %v3550
  %v5671 = vpack.c.b16 %v3591, %v3571
  %v5672 = vpack.c.b16 %v3592, %v3572
  %v5673 = vpack.c.b16 %v3593, %v3573
  %v5674 = vpack.c.b16 %v3594, %v3574
  %v5675 = vpack.c.b16 %v3595, %v3575
  %v5676 = vpack.c.b16 %v3596, %v3576
  %v5677 = vpack.c.b16 %v3597, %v3577
  %v5678 = vpack.c.b16 %v3598, %v3578
  %v5679 = vpack.c.b16 %v3599, %v3579
  %v5680 = vpack.c.b16 %v3600, %v3580
  %v5681 = vpack.c.b16 %v3601, %v3581
  %v5682 = vpack.c.b16 %v3602, %v3582
  %v5683 = vpack.c.b16 %v3603, %v3583
  %v5684 = vpack.c.b16 %v3604, %v3584
  %v5685 = vpack.c.b16 %v3605, %v3585
  %v5686 = vpack.c.b16 %v3606, %v3586
  %v5687 = vpack.c.b16 %v3607, %v3587
  %v5688 = vpack.c.b16 %v3608, %v3588
  %v5689 = vpack.c.b16 %v3609, %v3589
  %v5690 = vpack.c.b16 %v3610, %v3590
  %v5691 = vpack.c.b16 %v3631, %v3611
  %v5692 = vpack.c.b16 %v3632, %v3612
  %v5693 = vpack.c.b16 %v3633, %v3613
  %v5694 = vpack.c.b16 %v3634, %v3614
  %v5695 = vpack.c.b16 %v3635, %v3615
  %v5696 = vpack.c.b16 %v3636, %v3616
  %v5697 = vpack.c.b16 %v3637, %v3617
  %v5698 = vpack.c.b16 %v3638, %v3618
  %v5699 = vpack.c.b16 %v3639, %v3619
  %v5700 = vpack.c.b16 %v3640, %v3620
  %v5701 = vpack.c.b16 %v3641, %v3621
  %v5702 = vpack.c.b16 %v3642, %v3622
  %v5703 = vpack.c.b16 %v3643, %v3623
  %v5704 = vpack.c.b16 %v3644, %v3624
  %v5705 = vpack.c.b16 %v3645, %v3625
  %v5706 = vpack.c.b16 %v3646, %v3626
  %v5707 = vpack.c.b16 %v3647, %v3627
  %v5708 = vpack.c.b16 %v3648, %v3628
  %v5709 = vpack.c.b16 %v3649, %v3629
  %v5710 = vpack.c.b16 %v3650, %v3630
  %v5711 = vpack.c.b16 %v3671, %v3651
  %v5712 = vpack.c.b16 %v3672, %v3652
  %v5713 = vpack.c.b16 %v3673, %v3653
  %v5714 = vpack.c.b16 %v3674, %v3654
  %v5715 = vpack.c.b16 %v3675, %v3655
  %v5716 = vpack.c.b16 %v3676, %v3656
  %v5717 = vpack.c.b16 %v3677, %v3657
  %v5718 = vpack.c.b16 %v3678, %v3658
  %v5719 = vpack.c.b16 %v3679, %v3659
  %v5720 = vpack.c.b16 %v3680, %v3660
  %v5721 = vpack.c.b16 %v3681, %v3661
  %v5722 = vpack.c.b16 %v3682, %v3662
  %v5723 = vpack.c.b16 %v3683, %v3663
  %v5724 = vpack.c.b16 %v3684, %v3664
  %v5725 = vpack.c.b16 %v3685, %v3665
  %v5726 = vpack.c.b16 %v3686, %v3666
  %v5727 = vpack.c.b16 %v3687, %v3667
  %v5728 = vpack.c.b16 %v3688, %v3668
  %v5729 = vpack.c.b16 %v3689, %v3669
  %v5730 = vpack.c.b16 %v3690, %v3670
  %v5731 = vpack.c.b16 %v3711, %v3691
  %v5732 = vpack.c.b16 %v3712, %v3692
  %v5733 = vpack.c.b16 %v3713, %v3693
  %v5734 = vpack.c.b16 %v3714, %v3694
  %v5735 = vpack.c.b16 %v3715, %v3695
  %v5736 = vpack.c.b16 %v3716, %v3696
  %v5737 = vpack.c.b16 %v3717, %v3697
  %v5738 = vpack.c.b16 %v3718, %v3698
  %v5739 = vpack.c.b16 %v3719, %v3699
  %v5740 = vpack.c.b16 %v3720, %v3700
  %v5741 = vpack.c.b16 %v3721, %v3701
  %v5742 = vpack.c.b16 %v3722, %v3702
  %v5743 = vpack.c.b16 %v3723, %v3703
  %v5744 = vpack.c.b16 %v3724, %v3704
  %v5745 = vpack.c.b16 %v3725, %v3705
  %v5746 = vpack.c.b16 %v3726, %v3706
  %v5747 = vpack.c.b16 %v3727, %v3707
  %v5748 = vpack.c.b16 %v3728, %v3708
  %v5749 = vpack.c.b16 %v3729, %v3709
  %v5750 = vpack.c.b16 %v3730, %v3710
  %v5751 = vpack.c.b16 %v3751, %v3731
  %v5752 = vpack.c.b16 %v3752, %v3732
  %v5753 = vpack.c.b16 %v3753, %v3733
  %v5754 = vpack.c.b16 %v3754, %v3734
  %v5755 = vpack.c.b16 %v3755, %v3735
  %v5756 = vpack.c.b16 %v3756, %v3736
  %v5757 = vpack.c.b16 %v3757, %v3737
  %v5758 = vpack.c.b16 %v3758, %v3738
  %v5759 = vpack.c.b16 %v3759, %v3739
  %v5760 = vpack.c.b16 %v3760, %v3740
  %v5761 = vpack.c.b16 %v3761, %v3741
  %v5762 = vpack.c.b16 %v3762, %v3742
  %v5763 = vpack.c.b16 %v3763, %v3743
  %v5764 = vpack.c.b16 %v3764, %v3744
  %v5765 = vpack.c.b16 %v3765, %v3745
  %v5766 = vpack.c.b16 %v3766, %v3746
  %v5767 = vpack.c.b16 %v3767, %v3747
  %v5768 = vpack.c.b16 %v3768, %v3748
  %v5769 = vpack.c.b16 %v3769, %v3749
  %v5770 = vpack.c.b16 %v3770, %v3750
  %v5771 = vpack.c.b16 %v3791, %v3771
  %v5772 = vpack.c.b16 %v3792, %v3772
  %v5773 = vpack.c.b16 %v3793, %v3773
  %v5774 = vpack.c.b16 %v3794, %v3774
  %v5775 = vpack.c.b16 %v3795, %v3775
  %v5776 = vpack.c.b16 %v3796, %v3776
  %v5777 = vpack.c.b16 %v3797, %v3777
  %v5778 = vpack.c.b16 %v3798, %v3778
  %v5779 = vpack.c.b16 %v3799, %v3779
  %v5780 = vpack.c.b16 %v3800, %v3780
  %v5781 = vpack.c.b16 %v3801, %v3781
  %v5782 = vpack.c.b16 %v3802, %v3782
  %v5783 = vpack.c.b16 %v3803, %v3783
  %v5784 = vpack.c.b16 %v3804, %v3784
  %v5785 = vpack.c.b16 %v3805, %v3785
  %v5786 = vpack.c.b16 %v3806, %v3786
  %v5787 = vpack.c.b16 %v3807, %v3787
  %v5788 = vpack.c.b16 %v3808, %v3788
  %v5789 = vpack.c.b16 %v3809, %v3789
  %v5790 = vpack.c.b16 %v3810, %v3790
  %v5791 = vpack.c.b16 %v3831, %v3811
  %v5792 = vpack.c.b16 %v3832, %v3812
  %v5793 = vpack.c.b16 %v3833, %v3813
  %v5794 = vpack.c.b16 %v3834, %v3814
  %v5795 = vpack.c.b16 %v3835, %v3815
  %v5796 = vpack.c.b16 %v3836, %v3816
  %v5797 = vpack.c.b16 %v3837, %v3817
  %v5798 = vpack.c.b16 %v3838, %v3818
  %v5799 = vpack.c.b16 %v3839, %v3819
  %v5800 = vpack.c.b16 %v3840, %v3820
  %v5801 = vpack.c.b16 %v3841, %v3821
  %v5802 = vpack.c.b16 %v3842, %v3822
  %v5803 = vpack.c.b16 %v3843, %v3823
  %v5804 = vpack.c.b16 %v3844, %v3824
  %v5805 = vpack.c.b16 %v3845, %v3825
  %v5806 = vpack.c.b16 %v3846, %v3826
  %v5807 = vpack.c.b16 %v3847, %v3827
  %v5808 = vpack.c.b16 %v3848, %v3828
  %v5809 = vpack.c.b16 %v3849, %v3829
  %v5810 = vpack.c.b16 %v3850, %v3830
  %v5811 = vpack.c.b16 %v3871, %v3851
  %v5812 = vpack.c.b16 %v3872, %v3852
  %v5813 = vpack.c.b16 %v3873, %v3853
  %v5814 = vpack.c.b16 %v3874, %v3854
  %v5815 = vpack.c.b16 %v3875, %v3855
  %v5816 = vpack.c.b16 %v3876, %v3856
  %v5817 = vpack.c.b16 %v3877, %v3857
  %v5818 = vpack.c.b16 %v3878, %v3858
  %v5819 = vpack.c.b16 %v3879, %v3859
  %v5820 = vpack.c.b16 %v3880, %v3860
  %v5821 = vpack.c.b16 %v3881, %v3861
  %v5822 = vpack.c.b16 %v3882, %v3862
  %v5823 = vpack.c.b16 %v3883, %v3863
  %v5824 = vpack.c.b16 %v3884, %v3864
  %v5825 = vpack.c.b16 %v3885, %v3865
  %v5826 = vpack.c.b16 %v3886, %v3866
  %v5827 = vpack.c.b16 %v3887, %v3867
  %v5828 = vpack.c.b16 %v3888, %v3868
  %v5829 = vpack.c.b16 %v3889, %v3869
  %v5830 = vpack.c.b16 %v3890, %v3870
  %v5831 = vpack.c.b16 %v3911, %v3891
  %v5832 = vpack.c.b16 %v3912, %v3892
  %v5833 = vpack.c.b16 %v3913, %v3893
  %v5834 = vpack.c.b16 %v3914, %v3894
  %v5835 = vpack.c.b16 %v3915, %v3895
  %v5836 = vpack.c.b16 %v3916, %v3896
  %v5837 = vpack.c.b16 %v3917, %v3897
  %v5838 = vpack.c.b16 %v3918, %v3898
  %v5839 = vpack.c.b16 %v3919, %v3899
  %v5840 = vpack.c.b16 %v3920, %v3900
  %v5841 = vpack.c.b16 %v3921, %v3901
  %v5842 = vpack.c.b16 %v3922, %v3902
  %v5843 = vpack.c.b16 %v3923, %v3903
  %v5844 = vpack.c.b16 %v3924, %v3904
  %v5845 = vpack.c.b16 %v3925, %v3905
  %v5846 = vpack.c.b16 %v3926, %v3906
  %v5847 = vpack.c.b16 %v3927, %v3907
  %v5848 = vpack.c.b16 %v3928, %v3908
  %v5849 = vpack.c.b16 %v3929, %v3909
  %v5850 = vpack.c.b16 %v3930, %v3910
  %v5851 = vpack.c.b16 %v3951, %v3931
  %v5852 = vpack.c.b16 %v3952, %v3932
  %v5853 = vpack.c.b16 %v3953, %v3933
  %v5854 = vpack.c.b16 %v3954, %v3934
  %v5855 = vpack.c.b16 %v3955, %v3935
  %v5856 = vpack.c.b16 %v3956, %v3936
  %v5857 = vpack.c.b16 %v3957, %v3937
  %v5858 = vpack.c.b16 %v3958, %v3938
  %v5859 = vpack.c.b16 %v3959, %v3939
  %v5860 = vpack.c.b16 %v3960, %v3940
  %v5861 = vpack.c.b16 %v3961, %v3941
  %v5862 = vpack.c.b16 %v3962, %v3942
  %v5863 = vpack.c.b16 %v3963, %v3943
  %v5864 = vpack.c.b16 %v3964, %v3944
  %v5865 = vpack.c.b16 %v3965, %v3945
  %v5866 = vpack.c.b16 %v3966, %v3946
  %v5867 = vpack.c.b16 %v3967, %v3947
  %v5868 = vpack.c.b16 %v3968, %v3948
  %v5869 = vpack.c.b16 %v3969, %v3949
  %v5870 = vpack.c.b16 %v3970, %v3950
  %v5871 = vpack.c.b16 %v3991, %v3971
  %v5872 = vpack.c.b16 %v3992, %v3972
  %v5873 = vpack.c.b16 %v3993, %v3973
  %v5874 = vpack.c.b16 %v3994, %v3974
  %v5875 = vpack.c.b16 %v3995, %v3975
  %v5876 = vpack.c.b16 %v3996, %v3976
  %v5877 = vpack.c.b16 %v3997, %v3977
  %v5878 = vpack.c.b16 %v3998, %v3978
  %v5879 = vpack.c.b16 %v3999, %v3979
  %v5880 = vpack.c.b16 %v4000, %v3980
  %v5881 = vpack.c.b16 %v4001, %v3981
  %v5882 = vpack.c.b16 %v4002, %v3982
  %v5883 = vpack.c.b16 %v4003, %v3983
  %v5884 = vpack.c.b16 %v4004, %v3984
  %v5885 = vpack.c.b16 %v4005, %v3985
  %v5886 = vpack.c.b16 %v4006, %v3986
  %v5887 = vpack.c.b16 %v4007, %v3987
  %v5888 = vpack.c.b16 %v4008, %v3988
  %v5889 = vpack.c.b16 %v4009, %v3989
  %v5890 = vpack.c.b16 %v4010, %v3990
  %v5891 = vpack.c.b16 %v4031, %v4011
  %v5892 = vpack.c.b16 %v4032, %v4012
  %v5893 = vpack.c.b16 %v4033, %v4013
  %v5894 = vpack.c.b16 %v4034, %v4014
  %v5895 = vpack.c.b16 %v4035, %v4015
  %v5896 = vpack.c.b16 %v4036, %v4016
  %v5897 = vpack.c.b16 %v4037, %v4017
  %v5898 = vpack.c.b16 %v4038, %v4018
  %v5899 = vpack.c.b16 %v4039, %v4019
  %v5900 = vpack.c.b16 %v4040, %v4020
  %v5901 = vpack.c.b16 %v4041, %v4021
  %v5902 = vpack.c.b16 %v4042, %v4022
  %v5903 = vpack.c.b16 %v4043, %v4023
  %v5904 = vpack.c.b16 %v4044, %v4024
  %v5905 = vpack.c.b16 %v4045, %v4025
  %v5906 = vpack.c.b16 %v4046, %v4026
  %v5907 = vpack.c.b16 %v4047, %v4027
  %v5908 = vpack.c.b16 %v4048, %v4028
  %v5909 = vpack.c.b16 %v4049, %v4029
  %v5910 = vpack.c.b16 %v4050, %v4030
  %v5911 = vpack.c.b16 %v4071, %v4051
  %v5912 = vpack.c.b16 %v4072, %v4052
  %v5913 = vpack.c.b16 %v4073, %v4053
  %v5914 = vpack.c.b16 %v4074, %v4054
  %v5915 = vpack.c.b16 %v4075, %v4055
  %v5916 = vpack.c.b16 %v4076, %v4056
  %v5917 = vpack.c.b16 %v4077, %v4057
  %v5918 = vpack.c.b16 %v4078, %v4058
  %v5919 = vpack.c.b16 %v4079, %v4059
  %v5920 = vpack.c.b16 %v4080, %v4060
  %v5921 = vpack.c.b16 %v4081, %v4061
  %v5922 = vpack.c.b16 %v4082, %v4062
  %v5923 = vpack.c.b16 %v4083, %v4063
  %v5924 = vpack.c.b16 %v4084, %v4064
  %v5925 = vpack.c.b16 %v4085, %v4065
  %v5926 = vpack.c.b16 %v4086, %v4066
  %v5927 = vpack.c.b16 %v4087, %v4067
  %v5928 = vpack.c.b16 %v4088, %v4068
  %v5929 = vpack.c.b16 %v4089, %v4069
  %v5930 = vpack.c.b16 %v4090, %v4070
  %v5931 = vpack.c.b16 %v4111, %v4091
  %v5932 = vpack.c.b16 %v4112, %v4092
  %v5933 = vpack.c.b16 %v4113, %v4093
  %v5934 = vpack.c.b16 %v4114, %v4094
  %v5935 = vpack.c.b16 %v4115, %v4095
  %v5936 = vpack.c.b16 %v4116, %v4096
  %v5937 = vpack.c.b16 %v4117, %v4097
  %v5938 = vpack.c.b16 %v4118, %v4098
  %v5939 = vpack.c.b16 %v4119, %v4099
  %v5940 = vpack.c.b16 %v4120, %v4100
  %v5941 = vpack.c.b16 %v4121, %v4101
  %v5942 = vpack.c.b16 %v4122, %v4102
  %v5943 = vpack.c.b16 %v4123, %v4103
  %v5944 = vpack.c.b16 %v4124, %v4104
  %v5945 = vpack.c.b16 %v4125, %v4105
  %v5946 = vpack.c.b16 %v4126, %v4106
  %v5947 = vpack.c.b16 %v4127, %v4107
  %v5948 = vpack.c.b16 %v4128, %v4108
  %v5949 = vpack.c.b16 %v4129, %v4109
  %v5950 = vpack.c.b16 %v4130, %v4110
  %v5951 = vpack.c.b16 %v4151, %v4131
  %v5952 = vpack.c.b16 %v4152, %v4132
  %v5953 = vpack.c.b16 %v4153, %v4133
  %v5954 = vpack.c.b16 %v4154, %v4134
  %v5955 = vpack.c.b16 %v4155, %v4135
  %v5956 = vpack.c.b16 %v4156, %v4136
  %v5957 = vpack.c.b16 %v4157, %v4137
  %v5958 = vpack.c.b16 %v4158, %v4138
  %v5959 = vpack.c.b16 %v4159, %v4139
  %v5960 = vpack.c.b16 %v4160, %v4140
  %v5961 = vpack.c.b16 %v4161, %v4141
  %v5962 = vpack.c.b16 %v4162, %v4142
  %v5963 = vpack.c.b16 %v4163, %v4143
  %v5964 = vpack.c.b16 %v4164, %v4144
  %v5965 = vpack.c.b16 %v4165, %v4145
  %v5966 = vpack.c.b16 %v4166, %v4146
  %v5967 = vpack.c.b16 %v4167, %v4147
  %v5968 = vpack.c.b16 %v4168, %v4148
  %v5969 = vpack.c.b16 %v4169, %v4149
  %v5970 = vpack.c.b16 %v4170, %v4150
  %v5971 = vpack.c.b16 %v4191, %v4171
  %v5972 = vpack.c.b16 %v4192, %v4172
  %v5973 = vpack.c.b16 %v4193, %v4173
  %v5974 = vpack.c.b16 %v4194, %v4174
  %v5975 = vpack.c.b16 %v4195, %v4175
  %v5976 = vpack.c.b16 %v4196, %v4176
  %v5977 = vpack.c.b16 %v4197, %v4177
  %v5978 = vpack.c.b16 %v4198, %v4178
  %v5979 = vpack.c.b16 %v4199, %v4179
  %v5980 = vpack.c.b16 %v4200, %v4180
  %v5981 = vpack.c.b16 %v4201, %v4181
  %v5982 = vpack.c.b16 %v4202, %v4182
  %v5983 = vpack.c.b16 %v4203, %v4183
  %v5984 = vpack.c.b16 %v4204, %v4184
  %v5985 = vpack.c.b16 %v4205, %v4185
  %v5986 = vpack.c.b16 %v4206, %v4186
  %v5987 = vpack.c.b16 %v4207, %v4187
  %v5988 = vpack.c.b16 %v4208, %v4188
  %v5989 = vpack.c.b16 %v4209, %v4189
  %v5990 = vpack.c.b16 %v4210, %v4190
  %v5991 = vpack.c.b16 %v4231, %v4211
  %v5992 = vpack.c.b16 %v4232, %v4212
  %v5993 = vpack.c.b16 %v4233, %v4213
  %v5994 = vpack.c.b16 %v4234, %v4214
  %v5995 = vpack.c.b16 %v4235, %v4215
  %v5996 = vpack.c.b16 %v4236, %v4216
  %v5997 = vpack.c.b16 %v4237, %v4217
  %v5998 = vpack.c.b16 %v4238, %v4218
  %v5999 = vpack.c.b16 %v4239, %v4219
  %v6000 = vpack.c.b16 %v4240, %v4220
  %v6001 = vpack.c.b16 %v4241, %v4221
  %v6002 = vpack.c.b16 %v4242, %v4222
  %v6003 = vpack.c.b16 %v4243, %v4223
  %v6004 = vpack.c.b16 %v4244, %v4224
  %v6005 = vpack.c.b16 %v4245, %v4225
  %v6006 = vpack.c.b16 %v4246, %v4226
  %v6007 = vpack.c.b16 %v4247, %v4227
  %v6008 = vpack.c.b16 %v4248, %v4228
  %v6009 = vpack.c.b16 %v4249, %v4229
  %v6010 = vpack.c.b16 %v4250, %v4230
  %v6011 = vpack.c.b16 %v4271, %v4251
  %v6012 = vpack.c.b16 %v4272, %v4252
  %v6013 = vpack.c.b16 %v4273, %v4253
  %v6014 = vpack.c.b16 %v4274, %v4254
  %v6015 = vpack.c.b16 %v4275, %v4255
  %v6016 = vpack.c.b16 %v4276, %v4256
  %v6017 = vpack.c.b16 %v4277, %v4257
  %v6018 = vpack.c.b16 %v4278, %v4258
  %v6019 = vpack.c.b16 %v4279, %v4259
  %v6020 = vpack.c.b16 %v4280, %v4260
  %v6021 = vpack.c.b16 %v4281, %v4261
  %v6022 = vpack.c.b16 %v4282, %v4262
  %v6023 = vpack.c.b16 %v4283, %v4263
  %v6024 = vpack.c.b16 %v4284, %v4264
  %v6025 = vpack.c.b16 %v4285, %v4265
  %v6026 = vpack.c.b16 %v4286, %v4266
  %v6027 = vpack.c.b16 %v4287, %v4267
  %v6028 = vpack.c.b16 %v4288, %v4268
  %v6029 = vpack.c.b16 %v4289, %v4269
  %v6030 = vpack.c.b16 %v4290, %v4270
  %v6031 = vpack.c.b16 %v4311, %v4291
  %v6032 = vpack.c.b16 %v4312, %v4292
  %v6033 = vpack.c.b16 %v4313, %v4293
  %v6034 = vpack.c.b16 %v4314, %v4294
  %v6035 = vpack.c.b16 %v4315, %v4295
  %v6036 = vpack.c.b16 %v4316, %v4296
  %v6037 = vpack.c.b16 %v4317, %v4297
  %v6038 = vpack.c.b16 %v4318, %v4298
  %v6039 = vpack.c.b16 %v4319, %v4299
  %v6040 = vpack.c.b16 %v4320, %v4300
  %v6041 = vpack.c.b16 %v4321, %v4301
  %v6042 = vpack.c.b16 %v4322, %v4302
  %v6043 = vpack.c.b16 %v4323, %v4303
  %v6044 = vpack.c.b16 %v4324, %v4304
  %v6045 = vpack.c.b16 %v4325, %v4305
  %v6046 = vpack.c.b16 %v4326, %v4306
  %v6047 = vpack.c.b16 %v4327, %v4307
  %v6048 = vpack.c.b16 %v4328, %v4308
  %v6049 = vpack.c.b16 %v4329, %v4309
  %v6050 = vpack.c.b16 %v4330, %v4310
  %v6051 = vpack.c.b16 %v4351, %v4331
  %v6052 = vpack.c.b16 %v4352, %v4332
  %v6053 = vpack.c.b16 %v4353, %v4333
  %v6054 = vpack.c.b16 %v4354, %v4334
  %v6055 = vpack.c.b16 %v4355, %v4335
  %v6056 = vpack.c.b16 %v4356, %v4336
  %v6057 = vpack.c.b16 %v4357, %v4337
  %v6058 = vpack.c.b16 %v4358, %v4338
  %v6059 = vpack.c.b16 %v4359, %v4339
  %v6060 = vpack.c.b16 %v4360, %v4340
  %v6061 = vpack.c.b16 %v4361, %v4341
  %v6062 = vpack.c.b16 %v4362, %v4342
  %v6063 = vpack.c.b16 %v4363, %v4343
  %v6064 = vpack.c.b16 %v4364, %v4344
  %v6065 = vpack.c.b16 %v4365, %v4345
  %v6066 = vpack.c.b16 %v4366, %v4346
  %v6067 = vpack.c.b16 %v4367, %v4347
  %v6068 = vpack.c.b16 %v4368, %v4348
  %v6069 = vpack.c.b16 %v4369, %v4349
  %v6070 = vpack.c.b16 %v4370, %v4350
  %v6071 = vpack.c.b16 %v4391, %v4371
  %v6072 = vpack.c.b16 %v4392, %v4372
  %v6073 = vpack.c.b16 %v4393, %v4373
  %v6074 = vpack.c.b16 %v4394, %v4374
  %v6075 = vpack.c.b16 %v4395, %v4375
  %v6076 = vpack.c.b16 %v4396, %v4376
  %v6077 = vpack.c.b16 %v4397, %v4377
  %v6078 = vpack.c.b16 %v4398, %v4378
  %v6079 = vpack.c.b16 %v4399, %v4379
  %v6080 = vpack.c.b16 %v4400, %v4380
  %v6081 = vpack.c.b16 %v4401, %v4381
  %v6082 = vpack.c.b16 %v4402, %v4382
  %v6083 = vpack.c.b16 %v4403, %v4383
  %v6084 = vpack.c.b16 %v4404, %v4384
  %v6085 = vpack.c.b16 %v4405, %v4385
  %v6086 = vpack.c.b16 %v4406, %v4386
  %v6087 = vpack.c.b16 %v4407, %v4387
  %v6088 = vpack.c.b16 %v4408, %v4388
  %v6089 = vpack.c.b16 %v4409, %v4389
  %v6090 = vpack.c.b16 %v4410, %v4390
  %v6091 = vpack.c.b16 %v4431, %v4411
  %v6092 = vpack.c.b16 %v4432, %v4412
  %v6093 = vpack.c.b16 %v4433, %v4413
  %v6094 = vpack.c.b16 %v4434, %v4414
  %v6095 = vpack.c.b16 %v4435, %v4415
  %v6096 = vpack.c.b16 %v4436, %v4416
  %v6097 = vpack.c.b16 %v4437, %v4417
  %v6098 = vpack.c.b16 %v4438, %v4418
  %v6099 = vpack.c.b16 %v4439, %v4419
  %v6100 = vpack.c.b16 %v4440, %v4420
  %v6101 = vpack.c.b16 %v4441, %v4421
  %v6102 = vpack.c.b16 %v4442, %v4422
  %v6103 = vpack.c.b16 %v4443, %v4423
  %v6104 = vpack.c.b16 %v4444, %v4424
  %v6105 = vpack.c.b16 %v4445, %v4425
  %v6106 = vpack.c.b16 %v4446, %v4426
  %v6107 = vpack.c.b16 %v4447, %v4427
  %v6108 = vpack.c.b16 %v4448, %v4428
  %v6109 = vpack.c.b16 %v4449, %v4429
  %v6110 = vpack.c.b16 %v4450, %v4430
  %v6111 = vpack.c.b16 %v4471, %v4451
  %v6112 = vpack.c.b16 %v4472, %v4452
  %v6113 = vpack.c.b16 %v4473, %v4453
  %v6114 = vpack.c.b16 %v4474, %v4454
  %v6115 = vpack.c.b16 %v4475, %v4455
  %v6116 = vpack.c.b16 %v4476, %v4456
  %v6117 = vpack.c.b16 %v4477, %v4457
  %v6118 = vpack.c.b16 %v4478, %v4458
  %v6119 = vpack.c.b16 %v4479, %v4459
  %v6120 = vpack.c.b16 %v4480, %v4460
  %v6121 = vpack.c.b16 %v4481, %v4461
  %v6122 = vpack.c.b16 %v4482, %v4462
  %v6123 = vpack.c.b16 %v4483, %v4463
  %v6124 = vpack.c.b16 %v4484, %v4464
  %v6125 = vpack.c.b16 %v4485, %v4465
  %v6126 = vpack.c.b16 %v4486, %v4466
  %v6127 = vpack.c.b16 %v4487, %v4467
  %v6128 = vpack.c.b16 %v4488, %v4468
  %v6129 = vpack.c.b16 %v4489, %v4469
  %v6130 = vpack.c.b16 %v4490, %v4470
  %v6131 = vpack.c.b16 %v4511, %v4491
  %v6132 = vpack.c.b16 %v4512, %v4492
  %v6133 = vpack.c.b16 %v4513, %v4493
  %v6134 = vpack.c.b16 %v4514, %v4494
  %v6135 = vpack.c.b16 %v4515, %v4495
  %v6136 = vpack.c.b16 %v4516, %v4496
  %v6137 = vpack.c.b16 %v4517, %v4497
  %v6138 = vpack.c.b16 %v4518, %v4498
  %v6139 = vpack.c.b16 %v4519, %v4499
  %v6140 = vpack.c.b16 %v4520, %v4500
  %v6141 = vpack.c.b16 %v4521, %v4501
  %v6142 = vpack.c.b16 %v4522, %v4502
  %v6143 = vpack.c.b16 %v4523, %v4503
  %v6144 = vpack.c.b16 %v4524, %v4504
  %v6145 = vpack.c.b16 %v4525, %v4505
  %v6146 = vpack.c.b16 %v4526, %v4506
  %v6147 = vpack.c.b16 %v4527, %v4507
  %v6148 = vpack.c.b16 %v4528, %v4508
  %v6149 = vpack.c.b16 %v4529, %v4509
  %v6150 = vpack.c.b16 %v4530, %v4510
  %v6151 = vpack.c.b16 %v4551, %v4531
  %v6152 = vpack.c.b16 %v4552, %v4532
  %v6153 = vpack.c.b16 %v4553, %v4533
  %v6154 = vpack.c.b16 %v4554, %v4534
  %v6155 = vpack.c.b16 %v4555, %v4535
  %v6156 = vpack.c.b16 %v4556, %v4536
  %v6157 = vpack.c.b16 %v4557, %v4537
  %v6158 = vpack.c.b16 %v4558, %v4538
  %v6159 = vpack.c.b16 %v4559, %v4539
  %v6160 = vpack.c.b16 %v4560, %v4540
  %v6161 = vpack.c.b16 %v4561, %v4541
  %v6162 = vpack.c.b16 %v4562, %v4542
  %v6163 = vpack.c.b16 %v4563, %v4543
  %v6164 = vpack.c.b16 %v4564, %v4544
  %v6165 = vpack.c.b16 %v4565, %v4545
  %v6166 = vpack.c.b16 %v4566, %v4546
  %v6167 = vpack.c.b16 %v4567, %v4547
  %v6168 = vpack.c.b16 %v4568, %v4548
  %v6169 = vpack.c.b16 %v4569, %v4549
  %v6170 = vpack.c.b16 %v4570, %v4550
  %v6171 = vpack.c.b16 %v4591, %v4571
  %v6172 = vpack.c.b16 %v4592, %v4572
  %v6173 = vpack.c.b16 %v4593, %v4573
  %v6174 = vpack.c.b16 %v4594, %v4574
  %v6175 = vpack.c.b16 %v4595, %v4575
  %v6176 = vpack.c.b16 %v4596, %v4576
  %v6177 = vpack.c.b16 %v4597, %v4577
  %v6178 = vpack.c.b16 %v4598, %v4578
  %v6179 = vpack.c.b16 %v4599, %v4579
  %v6180 = vpack.c.b16 %v4600, %v4580
  %v6181 = vpack.c.b16 %v4601, %v4581
  %v6182 = vpack.c.b16 %v4602, %v4582
  %v6183 = vpack.c.b16 %v4603, %v4583
  %v6184 = vpack.c.b16 %v4604, %v4584
  %v6185 = vpack.c.b16 %v4605, %v4585
  %v6186 = vpack.c.b16 %v4606, %v4586
  %v6187 = vpack.c.b16 %v4607, %v4587
  %v6188 = vpack.c.b16 %v4608, %v4588
  %v6189 = vpack.c.b16 %v4609, %v4589
  %v6190 = vpack.c.b16 %v4610, %v4590
  %v6191 = vpack.c.b16 %v4631, %v4611
  %v6192 = vpack.c.b16 %v4632, %v4612
  %v6193 = vpack.c.b16 %v4633, %v4613
  %v6194 = vpack.c.b16 %v4634, %v4614
  %v6195 = vpack.c.b16 %v4635, %v4615
  %v6196 = vpack.c.b16 %v4636, %v4616
  %v6197 = vpack.c.b16 %v4637, %v4617
  %v6198 = vpack.c.b16 %v4638, %v4618
  %v6199 = vpack.c.b16 %v4639, %v4619
  %v6200 = vpack.c.b16 %v4640, %v4620
  %v6201 = vpack.c.b16 %v4641, %v4621
  %v6202 = vpack.c.b16 %v4642, %v4622
  %v6203 = vpack.c.b16 %v4643, %v4623
  %v6204 = vpack.c.b16 %v4644, %v4624
  %v6205 = vpack.c.b16 %v4645, %v4625
  %v6206 = vpack.c.b16 %v4646, %v4626
  %v6207 = vpack.c.b16 %v4647, %v4627
  %v6208 = vpack.c.b16 %v4648, %v4628
  %v6209 = vpack.c.b16 %v4649, %v4629
  %v6210 = vpack.c.b16 %v4650, %v4630
  %v6211 = vpack.c.b16 %v4671, %v4651
  %v6212 = vpack.c.b16 %v4672, %v4652
  %v6213 = vpack.c.b16 %v4673, %v4653
  %v6214 = vpack.c.b16 %v4674, %v4654
  %v6215 = vpack.c.b16 %v4675, %v4655
  %v6216 = vpack.c.b16 %v4676, %v4656
  %v6217 = vpack.c.b16 %v4677, %v4657
  %v6218 = vpack.c.b16 %v4678, %v4658
  %v6219 = vpack.c.b16 %v4679, %v4659
  %v6220 = vpack.c.b16 %v4680, %v4660
  %v6221 = vpack.c.b16 %v4681, %v4661
  %v6222 = vpack.c.b16 %v4682, %v4662
  %v6223 = vpack.c.b16 %v4683, %v4663
  %v6224 = vpack.c.b16 %v4684, %v4664
  %v6225 = vpack.c.b16 %v4685, %v4665
  %v6226 = vpack.c.b16 %v4686, %v4666
  %v6227 = vpack.c.b16 %v4687, %v4667
  %v6228 = vpack.c.b16 %v4688, %v4668
  %v6229 = vpack.c.b16 %v4689, %v4669
  %v6230 = vpack.c.b16 %v4690, %v4670
  %v6231 = vpack.c.b16 %v4711, %v4691
  %v6232 = vpack.c.b16 %v4712, %v4692
  %v6233 = vpack.c.b16 %v4713, %v4693
  %v6234 = vpack.c.b16 %v4714, %v4694
  %v6235 = vpack.c.b16 %v4715, %v4695
  %v6236 = vpack.c.b16 %v4716, %v4696
  %v6237 = vpack.c.b16 %v4717, %v4697
  %v6238 = vpack.c.b16 %v4718, %v4698
  %v6239 = vpack.c.b16 %v4719, %v4699
  %v6240 = vpack.c.b16 %v4720, %v4700
  %v6241 = vpack.c.b16 %v4721, %v4701
  %v6242 = vpack.c.b16 %v4722, %v4702
  %v6243 = vpack.c.b16 %v4723, %v4703
  %v6244 = vpack.c.b16 %v4724, %v4704
  %v6245 = vpack.c.b16 %v4725, %v4705
  %v6246 = vpack.c.b16 %v4726, %v4706
  %v6247 = vpack.c.b16 %v4727, %v4707
  %v6248 = vpack.c.b16 %v4728, %v4708
  %v6249 = vpack.c.b16 %v4729, %v4709
  %v6250 = vpack.c.b16 %v4730, %v4710
  %v6251 = vpack.c.b16 %v4751, %v4731
  %v6252 = vpack.c.b16 %v4752, %v4732
  %v6253 = vpack.c.b16 %v4753, %v4733
  %v6254 = vpack.c.b16 %v4754, %v4734
  %v6255 = vpack.c.b16 %v4755, %v4735
  %v6256 = vpack.c.b16 %v4756, %v4736
  %v6257 = vpack.c.b16 %v4757, %v4737
  %v6258 = vpack.c.b16 %v4758, %v4738
  %v6259 = vpack.c.b16 %v4759, %v4739
  %v6260 = vpack.c.b16 %v4760, %v4740
  %v6261 = vpack.c.b16 %v4761, %v4741
  %v6262 = vpack.c.b16 %v4762, %v4742
  %v6263 = vpack.c.b16 %v4763, %v4743
  %v6264 = vpack.c.b16 %v4764, %v4744
  %v6265 = vpack.c.b16 %v4765, %v4745
  %v6266 = vpack.c.b16 %v4766, %v4746
  %v6267 = vpack.c.b16 %v4767, %v4747
  %v6268 = vpack.c.b16 %v4768, %v4748
  %v6269 = vpack.c.b16 %v4769, %v4749
  %v6270 = vpack.c.b16 %v4770, %v4750
  %v6271 = vpack.c.b16 %v4791, %v4771
  %v6272 = vpack.c.b16 %v4792, %v4772
  %v6273 = vpack.c.b16 %v4793, %v4773
  %v6274 = vpack.c.b16 %v4794, %v4774
  %v6275 = vpack.c.b16 %v4795, %v4775
  %v6276 = vpack.c.b16 %v4796, %v4776
  %v6277 = vpack.c.b16 %v4797, %v4777
  %v6278 = vpack.c.b16 %v4798, %v4778
  %v6279 = vpack.c.b16 %v4799, %v4779
  %v6280 = vpack.c.b16 %v4800, %v4780
  %v6281 = vpack.c.b16 %v4801, %v4781
  %v6282 = vpack.c.b16 %v4802, %v4782
  %v6283 = vpack.c.b16 %v4803, %v4783
  %v6284 = vpack.c.b16 %v4804, %v4784
  %v6285 = vpack.c.b16 %v4805, %v4785
  %v6286 = vpack.c.b16 %v4806, %v4786
  %v6287 = vpack.c.b16 %v4807, %v4787
  %v6288 = vpack.c.b16 %v4808, %v4788
  %v6289 = vpack.c.b16 %v4809, %v4789
  %v6290 = vpack.c.b16 %v4810, %v4790
  %v6291 = vpack.c.b16 %v4831, %v4811
  %v6292 = vpack.c.b16 %v4832, %v4812
  %v6293 = vpack.c.b16 %v4833, %v4813
  %v6294 = vpack.c.b16 %v4834, %v4814
  %v6295 = vpack.c.b16 %v4835, %v4815
  %v6296 = vpack.c.b16 %v4836, %v4816
  %v6297 = vpack.c.b16 %v4837, %v4817
  %v6298 = vpack.c.b16 %v4838, %v4818
  %v6299 = vpack.c.b16 %v4839, %v4819
  %v6300 = vpack.c.b16 %v4840, %v4820
  %v6301 = vpack.c.b16 %v4841, %v4821
  %v6302 = vpack.c.b16 %v4842, %v4822
  %v6303 = vpack.c.b16 %v4843, %v4823
  %v6304 = vpack.c.b16 %v4844, %v4824
  %v6305 = vpack.c.b16 %v4845, %v4825
  %v6306 = vpack.c.b16 %v4846, %v4826
  %v6307 = vpack.c.b16 %v4847, %v4827
  %v6308 = vpack.c.b16 %v4848, %v4828
  %v6309 = vpack.c.b16 %v4849, %v4829
  %v6310 = vpack.c.b16 %v4850, %v4830
  %v6311 = vpack.c.b16 %v4871, %v4851
  %v6312 = vpack.c.b16 %v4872, %v4852
  %v6313 = vpack.c.b16 %v4873, %v4853
  %v6314 = vpack.c.b16 %v4874, %v4854
  %v6315 = vpack.c.b16 %v4875, %v4855
  %v6316 = vpack.c.b16 %v4876, %v4856
  %v6317 = vpack.c.b16 %v4877, %v4857
  %v6318 = vpack.c.b16 %v4878, %v4858
  %v6319 = vpack.c.b16 %v4879, %v4859
  %v6320 = vpack.c.b16 %v4880, %v4860
  %v6321 = vpack.c.b16 %v4881, %v4861
  %v6322 = vpack.c.b16 %v4882, %v4862
  %v6323 = vpack.c.b16 %v4883, %v4863
  %v6324 = vpack.c.b16 %v4884, %v4864
  %v6325 = vpack.c.b16 %v4885, %v4865
  %v6326 = vpack.c.b16 %v4886, %v4866
  %v6327 = vpack.c.b16 %v4887, %v4867
  %v6328 = vpack.c.b16 %v4888, %v4868
  %v6329 = vpack.c.b16 %v4889, %v4869
  %v6330 = vpack.c.b16 %v4890, %v4870
  %v6331 = vpack.c.b16 %v4911, %v4891
  %v6332 = vpack.c.b16 %v4912, %v4892
  %v6333 = vpack.c.b16 %v4913, %v4893
  %v6334 = vpack.c.b16 %v4914, %v4894
  %v6335 = vpack.c.b16 %v4915, %v4895
  %v6336 = vpack.c.b16 %v4916, %v4896
  %v6337 = vpack.c.b16 %v4917, %v4897
  %v6338 = vpack.c.b16 %v4918, %v4898
  %v6339 = vpack.c.b16 %v4919, %v4899
  %v6340 = vpack.c.b16 %v4920, %v4900
  %v6341 = vpack.c.b16 %v4921, %v4901
  %v6342 = vpack.c.b16 %v4922, %v4902
  %v6343 = vpack.c.b16 %v4923, %v4903
  %v6344 = vpack.c.b16 %v4924, %v4904
  %v6345 = vpack.c.b16 %v4925, %v4905
  %v6346 = vpack.c.b16 %v4926, %v4906
  %v6347 = vpack.c.b16 %v4927, %v4907
  %v6348 = vpack.c.b16 %v4928, %v4908
  %v6349 = vpack.c.b16 %v4929, %v4909
  %v6350 = vpack.c.b16 %v4930, %v4910
  %v6351 = vpack.c.b16 %v4951, %v4931
  %v6352 = vpack.c.b16 %v4952, %v4932
  %v6353 = vpack.c.b16 %v4953, %v4933
  %v6354 = vpack.c.b16 %v4954, %v4934
  %v6355 = vpack.c.b16 %v4955, %v4935
  %v6356 = vpack.c.b16 %v4956, %v4936
  %v6357 = vpack.c.b16 %v4957, %v4937
  %v6358 = vpack.c.b16 %v4958, %v4938
  %v6359 = vpack.c.b16 %v4959, %v4939
  %v6360 = vpack.c.b16 %v4960, %v4940
  %v6361 = vpack.c.b16 %v4961, %v4941
  %v6362 = vpack.c.b16 %v4962, %v4942
  %v6363 = vpack.c.b16 %v4963, %v4943
  %v6364 = vpack.c.b16 %v4964, %v4944
  %v6365 = vpack.c.b16 %v4965, %v4945
  %v6366 = vpack.c.b16 %v4966, %v4946
  %v6367 = vpack.c.b16 %v4967, %v4947
  %v6368 = vpack.c.b16 %v4968, %v4948
  %v6369 = vpack.c.b16 %v4969, %v4949
  %v6370 = vpack.c.b16 %v4970, %v4950
  %v6371 = vpack.c.b16 %v4991, %v4971
  %v6372 = vpack.c.b16 %v4992, %v4972
  %v6373 = vpack.c.b16 %v4993, %v4973
  %v6374 = vpack.c.b16 %v4994, %v4974
  %v6375 = vpack.c.b16 %v4995, %v4975
  %v6376 = vpack.c.b16 %v4996, %v4976
  %v6377 = vpack.c.b16 %v4997, %v4977
  %v6378 = vpack.c.b16 %v4998, %v4978
  %v6379 = vpack.c.b16 %v4999, %v4979
  %v6380 = vpack.c.b16 %v5000, %v4980
  %v6381 = vpack.c.b16 %v5001, %v4981
  %v6382 = vpack.c.b16 %v5002, %v4982
  %v6383 = vpack.c.b16 %v5003, %v4983
  %v6384 = vpack.c.b16 %v5004, %v4984
  %v6385 = vpack.c.b16 %v5005, %v4985
  %v6386 = vpack.c.b16 %v5006, %v4986
  %v6387 = vpack.c.b16 %v5007, %v4987
  %v6388 = vpack.c.b16 %v5008, %v4988
  %v6389 = vpack.c.b16 %v5009, %v4989
  %v6390 = vpack.c.b16 %v5010, %v4990
  %v6391 = vpack.c.b16 %v5031, %v5011
  %v6392 = vpack.c.b16 %v5032, %v5012
  %v6393 = vpack.c.b16 %v5033, %v5013
  %v6394 = vpack.c.b16 %v5034, %v5014
  %v6395 = vpack.c.b16 %v5035, %v5015
  %v6396 = vpack.c.b16 %v5036, %v5016
  %v6397 = vpack.c.b16 %v5037, %v5017
  %v6398 = vpack.c.b16 %v5038, %v5018
  %v6399 = vpack.c.b16 %v5039, %v5019
  %v6400 = vpack.c.b16 %v5040, %v5020
  %v6401 = vpack.c.b16 %v5041, %v5021
  %v6402 = vpack.c.b16 %v5042, %v5022
  %v6403 = vpack.c.b16 %v5043, %v5023
  %v6404 = vpack.c.b16 %v5044, %v5024
  %v6405 = vpack.c.b16 %v5045, %v5025
  %v6406 = vpack.c.b16 %v5046, %v5026
  %v6407 = vpack.c.b16 %v5047, %v5027
  %v6408 = vpack.c.b16 %v5048, %v5028
  %v6409 = vpack.c.b16 %v5049, %v5029
  %v6410 = vpack.c.b16 %v5050, %v5030
  %v6411 = vpack.c.b16 %v5071, %v5051
  %v6412 = vpack.c.b16 %v5072, %v5052
  %v6413 = vpack.c.b16 %v5073, %v5053
  %v6414 = vpack.c.b16 %v5074, %v5054
  %v6415 = vpack.c.b16 %v5075, %v5055
  %v6416 = vpack.c.b16 %v5076, %v5056
  %v6417 = vpack.c.b16 %v5077, %v5057
  %v6418 = vpack.c.b16 %v5078, %v5058
  %v6419 = vpack.c.b16 %v5079, %v5059
  %v6420 = vpack.c.b16 %v5080, %v5060
  %v6421 = vpack.c.b16 %v5081, %v5061
  %v6422 = vpack.c.b16 %v5082, %v5062
  %v6423 = vpack.c.b16 %v5083, %v5063
  %v6424 = vpack.c.b16 %v5084, %v5064
  %v6425 = vpack.c.b16 %v5085, %v5065
  %v6426 = vpack.c.b16 %v5086, %v5066
  %v6427 = vpack.c.b16 %v5087, %v5067
  %v6428 = vpack.c.b16 %v5088, %v5068
  %v6429 = vpack.c.b16 %v5089, %v5069
  %v6430 = vpack.c.b16 %v5090, %v5070
  %v6431 = vpack.c.b16 %v5111, %v5091
  %v6432 = vpack.c.b16 %v5112, %v5092
  %v6433 = vpack.c.b16 %v5113, %v5093
  %v6434 = vpack.c.b16 %v5114, %v5094
  %v6435 = vpack.c.b16 %v5115, %v5095
  %v6436 = vpack.c.b16 %v5116, %v5096
  %v6437 = vpack.c.b16 %v5117, %v5097
  %v6438 = vpack.c.b16 %v5118, %v5098
  %v6439 = vpack.c.b16 %v5119, %v5099
  %v6440 = vpack.c.b16 %v5120, %v5100
  %v6441 = vpack.c.b16 %v5121, %v5101
  %v6442 = vpack.c.b16 %v5122, %v5102
  %v6443 = vpack.c.b16 %v5123, %v5103
  %v6444 = vpack.c.b16 %v5124, %v5104
  %v6445 = vpack.c.b16 %v5125, %v5105
  %v6446 = vpack.c.b16 %v5126, %v5106
  %v6447 = vpack.c.b16 %v5127, %v5107
  %v6448 = vpack.c.b16 %v5128, %v5108
  %v6449 = vpack.c.b16 %v5129, %v5109
  %v6450 = vpack.c.b16 %v5130, %v5110
  %v6451 = vpack.c.b16 %v5151, %v5131
  %v6452 = vpack.c.b16 %v5152, %v5132
  %v6453 = vpack.c.b16 %v5153, %v5133
  %v6454 = vpack.c.b16 %v5154, %v5134
  %v6455 = vpack.c.b16 %v5155, %v5135
  %v6456 = vpack.c.b16 %v5156, %v5136
  %v6457 = vpack.c.b16 %v5157, %v5137
  %v6458 = vpack.c.b16 %v5158, %v5138
  %v6459 = vpack.c.b16 %v5159, %v5139
  %v6460 = vpack.c.b16 %v5160, %v5140
  %v6461 = vpack.c.b16 %v5161, %v5141
  %v6462 = vpack.c.b16 %v5162, %v5142
  %v6463 = vpack.c.b16 %v5163, %v5143
  %v6464 = vpack.c.b16 %v5164, %v5144
  %v6465 = vpack.c.b16 %v5165, %v5145
  %v6466 = vpack.c.b16 %v5166, %v5146
  %v6467 = vpack.c.b16 %v5167, %v5147
  %v6468 = vpack.c.b16 %v5168, %v5148
  %v6469 = vpack.c.b16 %v5169, %v5149
  %v6470 = vpack.c.b16 %v5170, %v5150
  %v6471 = vpack.c.b16 %v5191, %v5171
  %v6472 = vpack.c.b16 %v5192, %v5172
  %v6473 = vpack.c.b16 %v5193, %v5173
  %v6474 = vpack.c.b16 %v5194, %v5174
  %v6475 = vpack.c.b16 %v5195, %v5175
  %v6476 = vpack.c.b16 %v5196, %v5176
  %v6477 = vpack.c.b16 %v5197, %v5177
  %v6478 = vpack.c.b16 %v5198, %v5178
  %v6479 = vpack.c.b16 %v5199, %v5179
  %v6480 = vpack.c.b16 %v5200, %v5180
  %v6481 = vpack.c.b16 %v5201, %v5181
  %v6482 = vpack.c.b16 %v5202, %v5182
  %v6483 = vpack.c.b16 %v5203, %v5183
  %v6484 = vpack.c.b16 %v5204, %v5184
  %v6485 = vpack.c.b16 %v5205, %v5185
  %v6486 = vpack.c.b16 %v5206, %v5186
  %v6487 = vpack.c.b16 %v5207, %v5187
  %v6488 = vpack.c.b16 %v5208, %v5188
  %v6489 = vpack.c.b16 %v5209, %v5189
  %v6490 = vpack.c.b16 %v5210, %v5190
  %7771 = vmatpush.bf16.msra.mxu0 %v5351
  %7772 = vmatpush.bf16.msra.mxu0 %v5331
  %7773 = vmatpush.bf16.msra.mxu0 %v5311
  %7774 = vmatpush.bf16.msra.mxu0 %v5291
  %7775 = vmatpush.bf16.msra.mxu0 %v5271
  %7776 = vmatpush.bf16.msra.mxu0 %v5251
  %7777 = vmatpush.bf16.msra.mxu0 %v5231
  %7778 = vmatpush.bf16.msra.mxu0 %v5211
  %7779 = vmatmul.bf16.gmra.mxu0 %v1355
  %v7780 = vpop.f32.mrf.mxu0
  %v7781 = vadd.f32 %v1313, %v7780
  %v7782 = vpop.f32.mrf.mxu0
  %7783 = vdwg.mxu0
  %7784 = vmatpush.bf16.msra.mxu0 %v5511
  %7785 = vmatpush.bf16.msra.mxu0 %v5491
  %7786 = vmatpush.bf16.msra.mxu0 %v5471
  %7787 = vmatpush.bf16.msra.mxu0 %v5451
  %7788 = vmatpush.bf16.msra.mxu0 %v5431
  %7789 = vmatpush.bf16.msra.mxu0 %v5411
  %7790 = vmatpush.bf16.msra.mxu0 %v5391
  %7791 = vmatpush.bf16.msra.mxu0 %v5371
  %7792 = vmatmul.bf16.gmra.mxu0 %v1356
  %v7793 = vpop.f32.mrf.mxu0
  %v7794 = vadd.f32 %v7781, %v7793
  %v7795 = vpop.f32.mrf.mxu0
  %7796 = vdwg.mxu0
  %7797 = vmatpush.bf16.msra.mxu0 %v5671
  %7798 = vmatpush.bf16.msra.mxu0 %v5651
  %7799 = vmatpush.bf16.msra.mxu0 %v5631
  %7800 = vmatpush.bf16.msra.mxu0 %v5611
  %7801 = vmatpush.bf16.msra.mxu0 %v5591
  %7802 = vmatpush.bf16.msra.mxu0 %v5571
  %7803 = vmatpush.bf16.msra.mxu0 %v5551
  %7804 = vmatpush.bf16.msra.mxu0 %v5531
  %7805 = vmatmul.bf16.gmra.mxu0 %v1357
  %v7806 = vpop.f32.mrf.mxu0
  %v7807 = vadd.f32 %v7794, %v7806
  %v7808 = vpop.f32.mrf.mxu0
  %7809 = vdwg.mxu0
  %7810 = vmatpush.bf16.msra.mxu0 %v5831
  %7811 = vmatpush.bf16.msra.mxu0 %v5811
  %7812 = vmatpush.bf16.msra.mxu0 %v5791
  %7813 = vmatpush.bf16.msra.mxu0 %v5771
  %7814 = vmatpush.bf16.msra.mxu0 %v5751
  %7815 = vmatpush.bf16.msra.mxu0 %v5731
  %7816 = vmatpush.bf16.msra.mxu0 %v5711
  %7817 = vmatpush.bf16.msra.mxu0 %v5691
  %7818 = vmatmul.bf16.gmra.mxu0 %v1358
  %v7819 = vpop.f32.mrf.mxu0
  %v7820 = vadd.f32 %v7807, %v7819
  %v7821 = vpop.f32.mrf.mxu0
  %7822 = vdwg.mxu0
  %7823 = vmatpush.bf16.msra.mxu0 %v5991
  %7824 = vmatpush.bf16.msra.mxu0 %v5971
  %7825 = vmatpush.bf16.msra.mxu0 %v5951
  %7826 = vmatpush.bf16.msra.mxu0 %v5931
  %7827 = vmatpush.bf16.msra.mxu0 %v5911
  %7828 = vmatpush.bf16.msra.mxu0 %v5891
  %7829 = vmatpush.bf16.msra.mxu0 %v5871
  %7830 = vmatpush.bf16.msra.mxu0 %v5851
  %7831 = vmatmul.bf16.gmra.mxu0 %v1359
  %v7832 = vpop.f32.mrf.mxu0
  %v7833 = vadd.f32 %v7820, %v7832
  %v7834 = vpop.f32.mrf.mxu0
  %7835 = vdwg.mxu0
  %7836 = vmatpush.bf16.msra.mxu0 %v6151
  %7837 = vmatpush.bf16.msra.mxu0 %v6131
  %7838 = vmatpush.bf16.msra.mxu0 %v6111
  %7839 = vmatpush.bf16.msra.mxu0 %v6091
  %7840 = vmatpush.bf16.msra.mxu0 %v6071
  %7841 = vmatpush.bf16.msra.mxu0 %v6051
  %7842 = vmatpush.bf16.msra.mxu0 %v6031
  %7843 = vmatpush.bf16.msra.mxu0 %v6011
  %7844 = vmatmul.bf16.gmra.mxu0 %v1360
  %v7845 = vpop.f32.mrf.mxu0
  %v7846 = vadd.f32 %v7833, %v7845
  %v7847 = vpop.f32.mrf.mxu0
  %7848 = vdwg.mxu0
  %7849 = vmatpush.bf16.msra.mxu0 %v6311
  %7850 = vmatpush.bf16.msra.mxu0 %v6291
  %7851 = vmatpush.bf16.msra.mxu0 %v6271
  %7852 = vmatpush.bf16.msra.mxu0 %v6251
  %7853 = vmatpush.bf16.msra.mxu0 %v6231
  %7854 = vmatpush.bf16.msra.mxu0 %v6211
  %7855 = vmatpush.bf16.msra.mxu0 %v6191
  %7856 = vmatpush.bf16.msra.mxu0 %v6171
  %7857 = vmatmul.bf16.gmra.mxu0 %v1361
  %v7858 = vpop.f32.mrf.mxu0
  %v7859 = vadd.f32 %v7846, %v7858
  %v7860 = vpop.f32.mrf.mxu0
  %7861 = vdwg.mxu0
  %7862 = vmatpush.bf16.msra.mxu0 %v6471
  %7863 = vmatpush.bf16.msra.mxu0 %v6451
  %7864 = vmatpush.bf16.msra.mxu0 %v6431
  %7865 = vmatpush.bf16.msra.mxu0 %v6411
  %7866 = vmatpush.bf16.msra.mxu0 %v6391
  %7867 = vmatpush.bf16.msra.mxu0 %v6371
  %7868 = vmatpush.bf16.msra.mxu0 %v6351
  %7869 = vmatpush.bf16.msra.mxu0 %v6331
  %7870 = vmatmul.bf16.gmra.mxu0 %v1362
  %v7871 = vpop.f32.mrf.mxu0
  %v7872 = vadd.f32 %v7859, %v7871
  %v7873 = vpop.f32.mrf.mxu0
  %7874 = vdwg.mxu0
  %7875 = vmatpush.bf16.msra.mxu0 %v5352
  %7876 = vmatpush.bf16.msra.mxu0 %v5332
  %7877 = vmatpush.bf16.msra.mxu0 %v5312
  %7878 = vmatpush.bf16.msra.mxu0 %v5292
  %7879 = vmatpush.bf16.msra.mxu0 %v5272
  %7880 = vmatpush.bf16.msra.mxu0 %v5252
  %7881 = vmatpush.bf16.msra.mxu0 %v5232
  %7882 = vmatpush.bf16.msra.mxu0 %v5212
  %7883 = vmatmul.bf16.gmra.mxu0 %v1355
  %v7884 = vpop.f32.mrf.mxu0
  %v7885 = vadd.f32 %v1314, %v7884
  %v7886 = vpop.f32.mrf.mxu0
  %7887 = vdwg.mxu0
  %7888 = vmatpush.bf16.msra.mxu0 %v5512
  %7889 = vmatpush.bf16.msra.mxu0 %v5492
  %7890 = vmatpush.bf16.msra.mxu0 %v5472
  %7891 = vmatpush.bf16.msra.mxu0 %v5452
  %7892 = vmatpush.bf16.msra.mxu0 %v5432
  %7893 = vmatpush.bf16.msra.mxu0 %v5412
  %7894 = vmatpush.bf16.msra.mxu0 %v5392
  %7895 = vmatpush.bf16.msra.mxu0 %v5372
  %7896 = vmatmul.bf16.gmra.mxu0 %v1356
  %v7897 = vpop.f32.mrf.mxu0
  %v7898 = vadd.f32 %v7885, %v7897
  %v7899 = vpop.f32.mrf.mxu0
  %7900 = vdwg.mxu0
  %7901 = vmatpush.bf16.msra.mxu0 %v5672
  %7902 = vmatpush.bf16.msra.mxu0 %v5652
  %7903 = vmatpush.bf16.msra.mxu0 %v5632
  %7904 = vmatpush.bf16.msra.mxu0 %v5612
  %7905 = vmatpush.bf16.msra.mxu0 %v5592
  %7906 = vmatpush.bf16.msra.mxu0 %v5572
  %7907 = vmatpush.bf16.msra.mxu0 %v5552
  %7908 = vmatpush.bf16.msra.mxu0 %v5532
  %7909 = vmatmul.bf16.gmra.mxu0 %v1357
  %v7910 = vpop.f32.mrf.mxu0
  %v7911 = vadd.f32 %v7898, %v7910
  %v7912 = vpop.f32.mrf.mxu0
  %7913 = vdwg.mxu0
  %7914 = vmatpush.bf16.msra.mxu0 %v5832
  %7915 = vmatpush.bf16.msra.mxu0 %v5812
  %7916 = vmatpush.bf16.msra.mxu0 %v5792
  %7917 = vmatpush.bf16.msra.mxu0 %v5772
  %7918 = vmatpush.bf16.msra.mxu0 %v5752
  %7919 = vmatpush.bf16.msra.mxu0 %v5732
  %7920 = vmatpush.bf16.msra.mxu0 %v5712
  %7921 = vmatpush.bf16.msra.mxu0 %v5692
  %7922 = vmatmul.bf16.gmra.mxu0 %v1358
  %v7923 = vpop.f32.mrf.mxu0
  %v7924 = vadd.f32 %v7911, %v7923
  %v7925 = vpop.f32.mrf.mxu0
  %7926 = vdwg.mxu0
  %7927 = vmatpush.bf16.msra.mxu0 %v5992
  %7928 = vmatpush.bf16.msra.mxu0 %v5972
  %7929 = vmatpush.bf16.msra.mxu0 %v5952
  %7930 = vmatpush.bf16.msra.mxu0 %v5932
  %7931 = vmatpush.bf16.msra.mxu0 %v5912
  %7932 = vmatpush.bf16.msra.mxu0 %v5892
  %7933 = vmatpush.bf16.msra.mxu0 %v5872
  %7934 = vmatpush.bf16.msra.mxu0 %v5852
  %7935 = vmatmul.bf16.gmra.mxu0 %v1359
  %v7936 = vpop.f32.mrf.mxu0
  %v7937 = vadd.f32 %v7924, %v7936
  %v7938 = vpop.f32.mrf.mxu0
  %7939 = vdwg.mxu0
  %7940 = vmatpush.bf16.msra.mxu0 %v6152
  %7941 = vmatpush.bf16.msra.mxu0 %v6132
  %7942 = vmatpush.bf16.msra.mxu0 %v6112
  %7943 = vmatpush.bf16.msra.mxu0 %v6092
  %7944 = vmatpush.bf16.msra.mxu0 %v6072
  %7945 = vmatpush.bf16.msra.mxu0 %v6052
  %7946 = vmatpush.bf16.msra.mxu0 %v6032
  %7947 = vmatpush.bf16.msra.mxu0 %v6012
  %7948 = vmatmul.bf16.gmra.mxu0 %v1360
  %v7949 = vpop.f32.mrf.mxu0
  %v7950 = vadd.f32 %v7937, %v7949
  %v7951 = vpop.f32.mrf.mxu0
  %7952 = vdwg.mxu0
  %7953 = vmatpush.bf16.msra.mxu0 %v6312
  %7954 = vmatpush.bf16.msra.mxu0 %v6292
  %7955 = vmatpush.bf16.msra.mxu0 %v6272
  %7956 = vmatpush.bf16.msra.mxu0 %v6252
  %7957 = vmatpush.bf16.msra.mxu0 %v6232
  %7958 = vmatpush.bf16.msra.mxu0 %v6212
  %7959 = vmatpush.bf16.msra.mxu0 %v6192
  %7960 = vmatpush.bf16.msra.mxu0 %v6172
  %7961 = vmatmul.bf16.gmra.mxu0 %v1361
  %v7962 = vpop.f32.mrf.mxu0
  %v7963 = vadd.f32 %v7950, %v7962
  %v7964 = vpop.f32.mrf.mxu0
  %7965 = vdwg.mxu0
  %7966 = vmatpush.bf16.msra.mxu0 %v6472
  %7967 = vmatpush.bf16.msra.mxu0 %v6452
  %7968 = vmatpush.bf16.msra.mxu0 %v6432
  %7969 = vmatpush.bf16.msra.mxu0 %v6412
  %7970 = vmatpush.bf16.msra.mxu0 %v6392
  %7971 = vmatpush.bf16.msra.mxu0 %v6372
  %7972 = vmatpush.bf16.msra.mxu0 %v6352
  %7973 = vmatpush.bf16.msra.mxu0 %v6332
  %7974 = vmatmul.bf16.gmra.mxu0 %v1362
  %v7975 = vpop.f32.mrf.mxu0
  %v7976 = vadd.f32 %v7963, %v7975
  %v7977 = vpop.f32.mrf.mxu0
  %7978 = vdwg.mxu0
  %7979 = vmatpush.bf16.msra.mxu0 %v5353
  %7980 = vmatpush.bf16.msra.mxu0 %v5333
  %7981 = vmatpush.bf16.msra.mxu0 %v5313
  %7982 = vmatpush.bf16.msra.mxu0 %v5293
  %7983 = vmatpush.bf16.msra.mxu0 %v5273
  %7984 = vmatpush.bf16.msra.mxu0 %v5253
  %7985 = vmatpush.bf16.msra.mxu0 %v5233
  %7986 = vmatpush.bf16.msra.mxu0 %v5213
  %7987 = vmatmul.bf16.gmra.mxu0 %v1355
  %v7988 = vpop.f32.mrf.mxu0
  %v7989 = vadd.f32 %v1315, %v7988
  %v7990 = vpop.f32.mrf.mxu0
  %7991 = vdwg.mxu0
  %7992 = vmatpush.bf16.msra.mxu0 %v5513
  %7993 = vmatpush.bf16.msra.mxu0 %v5493
  %7994 = vmatpush.bf16.msra.mxu0 %v5473
  %7995 = vmatpush.bf16.msra.mxu0 %v5453
  %7996 = vmatpush.bf16.msra.mxu0 %v5433
  %7997 = vmatpush.bf16.msra.mxu0 %v5413
  %7998 = vmatpush.bf16.msra.mxu0 %v5393
  %7999 = vmatpush.bf16.msra.mxu0 %v5373
  %8000 = vmatmul.bf16.gmra.mxu0 %v1356
  %v8001 = vpop.f32.mrf.mxu0
  %v8002 = vadd.f32 %v7989, %v8001
  %v8003 = vpop.f32.mrf.mxu0
  %8004 = vdwg.mxu0
  %8005 = vmatpush.bf16.msra.mxu0 %v5673
  %8006 = vmatpush.bf16.msra.mxu0 %v5653
  %8007 = vmatpush.bf16.msra.mxu0 %v5633
  %8008 = vmatpush.bf16.msra.mxu0 %v5613
  %8009 = vmatpush.bf16.msra.mxu0 %v5593
  %8010 = vmatpush.bf16.msra.mxu0 %v5573
  %8011 = vmatpush.bf16.msra.mxu0 %v5553
  %8012 = vmatpush.bf16.msra.mxu0 %v5533
  %8013 = vmatmul.bf16.gmra.mxu0 %v1357
  %v8014 = vpop.f32.mrf.mxu0
  %v8015 = vadd.f32 %v8002, %v8014
  %v8016 = vpop.f32.mrf.mxu0
  %8017 = vdwg.mxu0
  %8018 = vmatpush.bf16.msra.mxu0 %v5833
  %8019 = vmatpush.bf16.msra.mxu0 %v5813
  %8020 = vmatpush.bf16.msra.mxu0 %v5793
  %8021 = vmatpush.bf16.msra.mxu0 %v5773
  %8022 = vmatpush.bf16.msra.mxu0 %v5753
  %8023 = vmatpush.bf16.msra.mxu0 %v5733
  %8024 = vmatpush.bf16.msra.mxu0 %v5713
  %8025 = vmatpush.bf16.msra.mxu0 %v5693
  %8026 = vmatmul.bf16.gmra.mxu0 %v1358
  %v8027 = vpop.f32.mrf.mxu0
  %v8028 = vadd.f32 %v8015, %v8027
  %v8029 = vpop.f32.mrf.mxu0
  %8030 = vdwg.mxu0
  %8031 = vmatpush.bf16.msra.mxu0 %v5993
  %8032 = vmatpush.bf16.msra.mxu0 %v5973
  %8033 = vmatpush.bf16.msra.mxu0 %v5953
  %8034 = vmatpush.bf16.msra.mxu0 %v5933
  %8035 = vmatpush.bf16.msra.mxu0 %v5913
  %8036 = vmatpush.bf16.msra.mxu0 %v5893
  %8037 = vmatpush.bf16.msra.mxu0 %v5873
  %8038 = vmatpush.bf16.msra.mxu0 %v5853
  %8039 = vmatmul.bf16.gmra.mxu0 %v1359
  %v8040 = vpop.f32.mrf.mxu0
  %v8041 = vadd.f32 %v8028, %v8040
  %v8042 = vpop.f32.mrf.mxu0
  %8043 = vdwg.mxu0
  %8044 = vmatpush.bf16.msra.mxu0 %v6153
  %8045 = vmatpush.bf16.msra.mxu0 %v6133
  %8046 = vmatpush.bf16.msra.mxu0 %v6113
  %8047 = vmatpush.bf16.msra.mxu0 %v6093
  %8048 = vmatpush.bf16.msra.mxu0 %v6073
  %8049 = vmatpush.bf16.msra.mxu0 %v6053
  %8050 = vmatpush.bf16.msra.mxu0 %v6033
  %8051 = vmatpush.bf16.msra.mxu0 %v6013
  %8052 = vmatmul.bf16.gmra.mxu0 %v1360
  %v8053 = vpop.f32.mrf.mxu0
  %v8054 = vadd.f32 %v8041, %v8053
  %v8055 = vpop.f32.mrf.mxu0
  %8056 = vdwg.mxu0
  %8057 = vmatpush.bf16.msra.mxu0 %v6313
  %8058 = vmatpush.bf16.msra.mxu0 %v6293
  %8059 = vmatpush.bf16.msra.mxu0 %v6273
  %8060 = vmatpush.bf16.msra.mxu0 %v6253
  %8061 = vmatpush.bf16.msra.mxu0 %v6233
  %8062 = vmatpush.bf16.msra.mxu0 %v6213
  %8063 = vmatpush.bf16.msra.mxu0 %v6193
  %8064 = vmatpush.bf16.msra.mxu0 %v6173
  %8065 = vmatmul.bf16.gmra.mxu0 %v1361
  %v8066 = vpop.f32.mrf.mxu0
  %v8067 = vadd.f32 %v8054, %v8066
  %v8068 = vpop.f32.mrf.mxu0
  %8069 = vdwg.mxu0
  %8070 = vmatpush.bf16.msra.mxu0 %v6473
  %8071 = vmatpush.bf16.msra.mxu0 %v6453
  %8072 = vmatpush.bf16.msra.mxu0 %v6433
  %8073 = vmatpush.bf16.msra.mxu0 %v6413
  %8074 = vmatpush.bf16.msra.mxu0 %v6393
  %8075 = vmatpush.bf16.msra.mxu0 %v6373
  %8076 = vmatpush.bf16.msra.mxu0 %v6353
  %8077 = vmatpush.bf16.msra.mxu0 %v6333
  %8078 = vmatmul.bf16.gmra.mxu0 %v1362
  %v8079 = vpop.f32.mrf.mxu0
  %v8080 = vadd.f32 %v8067, %v8079
  %v8081 = vpop.f32.mrf.mxu0
  %8082 = vdwg.mxu0
  %8083 = vmatpush.bf16.msra.mxu0 %v5354
  %8084 = vmatpush.bf16.msra.mxu0 %v5334
  %8085 = vmatpush.bf16.msra.mxu0 %v5314
  %8086 = vmatpush.bf16.msra.mxu0 %v5294
  %8087 = vmatpush.bf16.msra.mxu0 %v5274
  %8088 = vmatpush.bf16.msra.mxu0 %v5254
  %8089 = vmatpush.bf16.msra.mxu0 %v5234
  %8090 = vmatpush.bf16.msra.mxu0 %v5214
  %8091 = vmatmul.bf16.gmra.mxu0 %v1355
  %v8092 = vpop.f32.mrf.mxu0
  %v8093 = vadd.f32 %v1316, %v8092
  %v8094 = vpop.f32.mrf.mxu0
  %8095 = vdwg.mxu0
  %8096 = vmatpush.bf16.msra.mxu0 %v5514
  %8097 = vmatpush.bf16.msra.mxu0 %v5494
  %8098 = vmatpush.bf16.msra.mxu0 %v5474
  %8099 = vmatpush.bf16.msra.mxu0 %v5454
  %8100 = vmatpush.bf16.msra.mxu0 %v5434
  %8101 = vmatpush.bf16.msra.mxu0 %v5414
  %8102 = vmatpush.bf16.msra.mxu0 %v5394
  %8103 = vmatpush.bf16.msra.mxu0 %v5374
  %8104 = vmatmul.bf16.gmra.mxu0 %v1356
  %v8105 = vpop.f32.mrf.mxu0
  %v8106 = vadd.f32 %v8093, %v8105
  %v8107 = vpop.f32.mrf.mxu0
  %8108 = vdwg.mxu0
  %8109 = vmatpush.bf16.msra.mxu0 %v5674
  %8110 = vmatpush.bf16.msra.mxu0 %v5654
  %8111 = vmatpush.bf16.msra.mxu0 %v5634
  %8112 = vmatpush.bf16.msra.mxu0 %v5614
  %8113 = vmatpush.bf16.msra.mxu0 %v5594
  %8114 = vmatpush.bf16.msra.mxu0 %v5574
  %8115 = vmatpush.bf16.msra.mxu0 %v5554
  %8116 = vmatpush.bf16.msra.mxu0 %v5534
  %8117 = vmatmul.bf16.gmra.mxu0 %v1357
  %v8118 = vpop.f32.mrf.mxu0
  %v8119 = vadd.f32 %v8106, %v8118
  %v8120 = vpop.f32.mrf.mxu0
  %8121 = vdwg.mxu0
  %8122 = vmatpush.bf16.msra.mxu0 %v5834
  %8123 = vmatpush.bf16.msra.mxu0 %v5814
  %8124 = vmatpush.bf16.msra.mxu0 %v5794
  %8125 = vmatpush.bf16.msra.mxu0 %v5774
  %8126 = vmatpush.bf16.msra.mxu0 %v5754
  %8127 = vmatpush.bf16.msra.mxu0 %v5734
  %8128 = vmatpush.bf16.msra.mxu0 %v5714
  %8129 = vmatpush.bf16.msra.mxu0 %v5694
  %8130 = vmatmul.bf16.gmra.mxu0 %v1358
  %v8131 = vpop.f32.mrf.mxu0
  %v8132 = vadd.f32 %v8119, %v8131
  %v8133 = vpop.f32.mrf.mxu0
  %8134 = vdwg.mxu0
  %8135 = vmatpush.bf16.msra.mxu0 %v5994
  %8136 = vmatpush.bf16.msra.mxu0 %v5974
  %8137 = vmatpush.bf16.msra.mxu0 %v5954
  %8138 = vmatpush.bf16.msra.mxu0 %v5934
  %8139 = vmatpush.bf16.msra.mxu0 %v5914
  %8140 = vmatpush.bf16.msra.mxu0 %v5894
  %8141 = vmatpush.bf16.msra.mxu0 %v5874
  %8142 = vmatpush.bf16.msra.mxu0 %v5854
  %8143 = vmatmul.bf16.gmra.mxu0 %v1359
  %v8144 = vpop.f32.mrf.mxu0
  %v8145 = vadd.f32 %v8132, %v8144
  %v8146 = vpop.f32.mrf.mxu0
  %8147 = vdwg.mxu0
  %8148 = vmatpush.bf16.msra.mxu0 %v6154
  %8149 = vmatpush.bf16.msra.mxu0 %v6134
  %8150 = vmatpush.bf16.msra.mxu0 %v6114
  %8151 = vmatpush.bf16.msra.mxu0 %v6094
  %8152 = vmatpush.bf16.msra.mxu0 %v6074
  %8153 = vmatpush.bf16.msra.mxu0 %v6054
  %8154 = vmatpush.bf16.msra.mxu0 %v6034
  %8155 = vmatpush.bf16.msra.mxu0 %v6014
  %8156 = vmatmul.bf16.gmra.mxu0 %v1360
  %v8157 = vpop.f32.mrf.mxu0
  %v8158 = vadd.f32 %v8145, %v8157
  %v8159 = vpop.f32.mrf.mxu0
  %8160 = vdwg.mxu0
  %8161 = vmatpush.bf16.msra.mxu0 %v6314
  %8162 = vmatpush.bf16.msra.mxu0 %v6294
  %8163 = vmatpush.bf16.msra.mxu0 %v6274
  %8164 = vmatpush.bf16.msra.mxu0 %v6254
  %8165 = vmatpush.bf16.msra.mxu0 %v6234
  %8166 = vmatpush.bf16.msra.mxu0 %v6214
  %8167 = vmatpush.bf16.msra.mxu0 %v6194
  %8168 = vmatpush.bf16.msra.mxu0 %v6174
  %8169 = vmatmul.bf16.gmra.mxu0 %v1361
  %v8170 = vpop.f32.mrf.mxu0
  %v8171 = vadd.f32 %v8158, %v8170
  %v8172 = vpop.f32.mrf.mxu0
  %8173 = vdwg.mxu0
  %8174 = vmatpush.bf16.msra.mxu0 %v6474
  %8175 = vmatpush.bf16.msra.mxu0 %v6454
  %8176 = vmatpush.bf16.msra.mxu0 %v6434
  %8177 = vmatpush.bf16.msra.mxu0 %v6414
  %8178 = vmatpush.bf16.msra.mxu0 %v6394
  %8179 = vmatpush.bf16.msra.mxu0 %v6374
  %8180 = vmatpush.bf16.msra.mxu0 %v6354
  %8181 = vmatpush.bf16.msra.mxu0 %v6334
  %8182 = vmatmul.bf16.gmra.mxu0 %v1362
  %v8183 = vpop.f32.mrf.mxu0
  %v8184 = vadd.f32 %v8171, %v8183
  %v8185 = vpop.f32.mrf.mxu0
  %8186 = vdwg.mxu0
  %8187 = vmatpush.bf16.msra.mxu0 %v5355
  %8188 = vmatpush.bf16.msra.mxu0 %v5335
  %8189 = vmatpush.bf16.msra.mxu0 %v5315
  %8190 = vmatpush.bf16.msra.mxu0 %v5295
  %8191 = vmatpush.bf16.msra.mxu0 %v5275
  %8192 = vmatpush.bf16.msra.mxu0 %v5255
  %8193 = vmatpush.bf16.msra.mxu0 %v5235
  %8194 = vmatpush.bf16.msra.mxu0 %v5215
  %8195 = vmatmul.bf16.gmra.mxu0 %v1355
  %v8196 = vpop.f32.mrf.mxu0
  %v8197 = vadd.f32 %v1317, %v8196
  %v8198 = vpop.f32.mrf.mxu0
  %8199 = vdwg.mxu0
  %8200 = vmatpush.bf16.msra.mxu0 %v5515
  %8201 = vmatpush.bf16.msra.mxu0 %v5495
  %8202 = vmatpush.bf16.msra.mxu0 %v5475
  %8203 = vmatpush.bf16.msra.mxu0 %v5455
  %8204 = vmatpush.bf16.msra.mxu0 %v5435
  %8205 = vmatpush.bf16.msra.mxu0 %v5415
  %8206 = vmatpush.bf16.msra.mxu0 %v5395
  %8207 = vmatpush.bf16.msra.mxu0 %v5375
  %8208 = vmatmul.bf16.gmra.mxu0 %v1356
  %v8209 = vpop.f32.mrf.mxu0
  %v8210 = vadd.f32 %v8197, %v8209
  %v8211 = vpop.f32.mrf.mxu0
  %8212 = vdwg.mxu0
  %8213 = vmatpush.bf16.msra.mxu0 %v5675
  %8214 = vmatpush.bf16.msra.mxu0 %v5655
  %8215 = vmatpush.bf16.msra.mxu0 %v5635
  %8216 = vmatpush.bf16.msra.mxu0 %v5615
  %8217 = vmatpush.bf16.msra.mxu0 %v5595
  %8218 = vmatpush.bf16.msra.mxu0 %v5575
  %8219 = vmatpush.bf16.msra.mxu0 %v5555
  %8220 = vmatpush.bf16.msra.mxu0 %v5535
  %8221 = vmatmul.bf16.gmra.mxu0 %v1357
  %v8222 = vpop.f32.mrf.mxu0
  %v8223 = vadd.f32 %v8210, %v8222
  %v8224 = vpop.f32.mrf.mxu0
  %8225 = vdwg.mxu0
  %8226 = vmatpush.bf16.msra.mxu0 %v5835
  %8227 = vmatpush.bf16.msra.mxu0 %v5815
  %8228 = vmatpush.bf16.msra.mxu0 %v5795
  %8229 = vmatpush.bf16.msra.mxu0 %v5775
  %8230 = vmatpush.bf16.msra.mxu0 %v5755
  %8231 = vmatpush.bf16.msra.mxu0 %v5735
  %8232 = vmatpush.bf16.msra.mxu0 %v5715
  %8233 = vmatpush.bf16.msra.mxu0 %v5695
  %8234 = vmatmul.bf16.gmra.mxu0 %v1358
  %v8235 = vpop.f32.mrf.mxu0
  %v8236 = vadd.f32 %v8223, %v8235
  %v8237 = vpop.f32.mrf.mxu0
  %8238 = vdwg.mxu0
  %8239 = vmatpush.bf16.msra.mxu0 %v5995
  %8240 = vmatpush.bf16.msra.mxu0 %v5975
  %8241 = vmatpush.bf16.msra.mxu0 %v5955
  %8242 = vmatpush.bf16.msra.mxu0 %v5935
  %8243 = vmatpush.bf16.msra.mxu0 %v5915
  %8244 = vmatpush.bf16.msra.mxu0 %v5895
  %8245 = vmatpush.bf16.msra.mxu0 %v5875
  %8246 = vmatpush.bf16.msra.mxu0 %v5855
  %8247 = vmatmul.bf16.gmra.mxu0 %v1359
  %v8248 = vpop.f32.mrf.mxu0
  %v8249 = vadd.f32 %v8236, %v8248
  %v8250 = vpop.f32.mrf.mxu0
  %8251 = vdwg.mxu0
  %8252 = vmatpush.bf16.msra.mxu0 %v6155
  %8253 = vmatpush.bf16.msra.mxu0 %v6135
  %8254 = vmatpush.bf16.msra.mxu0 %v6115
  %8255 = vmatpush.bf16.msra.mxu0 %v6095
  %8256 = vmatpush.bf16.msra.mxu0 %v6075
  %8257 = vmatpush.bf16.msra.mxu0 %v6055
  %8258 = vmatpush.bf16.msra.mxu0 %v6035
  %8259 = vmatpush.bf16.msra.mxu0 %v6015
  %8260 = vmatmul.bf16.gmra.mxu0 %v1360
  %v8261 = vpop.f32.mrf.mxu0
  %v8262 = vadd.f32 %v8249, %v8261
  %v8263 = vpop.f32.mrf.mxu0
  %8264 = vdwg.mxu0
  %8265 = vmatpush.bf16.msra.mxu0 %v6315
  %8266 = vmatpush.bf16.msra.mxu0 %v6295
  %8267 = vmatpush.bf16.msra.mxu0 %v6275
  %8268 = vmatpush.bf16.msra.mxu0 %v6255
  %8269 = vmatpush.bf16.msra.mxu0 %v6235
  %8270 = vmatpush.bf16.msra.mxu0 %v6215
  %8271 = vmatpush.bf16.msra.mxu0 %v6195
  %8272 = vmatpush.bf16.msra.mxu0 %v6175
  %8273 = vmatmul.bf16.gmra.mxu0 %v1361
  %v8274 = vpop.f32.mrf.mxu0
  %v8275 = vadd.f32 %v8262, %v8274
  %v8276 = vpop.f32.mrf.mxu0
  %8277 = vdwg.mxu0
  %8278 = vmatpush.bf16.msra.mxu0 %v6475
  %8279 = vmatpush.bf16.msra.mxu0 %v6455
  %8280 = vmatpush.bf16.msra.mxu0 %v6435
  %8281 = vmatpush.bf16.msra.mxu0 %v6415
  %8282 = vmatpush.bf16.msra.mxu0 %v6395
  %8283 = vmatpush.bf16.msra.mxu0 %v6375
  %8284 = vmatpush.bf16.msra.mxu0 %v6355
  %8285 = vmatpush.bf16.msra.mxu0 %v6335
  %8286 = vmatmul.bf16.gmra.mxu0 %v1362
  %v8287 = vpop.f32.mrf.mxu0
  %v8288 = vadd.f32 %v8275, %v8287
  %v8289 = vpop.f32.mrf.mxu0
  %8290 = vdwg.mxu0
  %8291 = vmatpush.bf16.msra.mxu0 %v5356
  %8292 = vmatpush.bf16.msra.mxu0 %v5336
  %8293 = vmatpush.bf16.msra.mxu0 %v5316
  %8294 = vmatpush.bf16.msra.mxu0 %v5296
  %8295 = vmatpush.bf16.msra.mxu0 %v5276
  %8296 = vmatpush.bf16.msra.mxu0 %v5256
  %8297 = vmatpush.bf16.msra.mxu0 %v5236
  %8298 = vmatpush.bf16.msra.mxu0 %v5216
  %8299 = vmatmul.bf16.gmra.mxu0 %v1355
  %v8300 = vpop.f32.mrf.mxu0
  %v8301 = vadd.f32 %v1318, %v8300
  %v8302 = vpop.f32.mrf.mxu0
  %8303 = vdwg.mxu0
  %8304 = vmatpush.bf16.msra.mxu0 %v5516
  %8305 = vmatpush.bf16.msra.mxu0 %v5496
  %8306 = vmatpush.bf16.msra.mxu0 %v5476
  %8307 = vmatpush.bf16.msra.mxu0 %v5456
  %8308 = vmatpush.bf16.msra.mxu0 %v5436
  %8309 = vmatpush.bf16.msra.mxu0 %v5416
  %8310 = vmatpush.bf16.msra.mxu0 %v5396
  %8311 = vmatpush.bf16.msra.mxu0 %v5376
  %8312 = vmatmul.bf16.gmra.mxu0 %v1356
  %v8313 = vpop.f32.mrf.mxu0
  %v8314 = vadd.f32 %v8301, %v8313
  %v8315 = vpop.f32.mrf.mxu0
  %8316 = vdwg.mxu0
  %8317 = vmatpush.bf16.msra.mxu0 %v5676
  %8318 = vmatpush.bf16.msra.mxu0 %v5656
  %8319 = vmatpush.bf16.msra.mxu0 %v5636
  %8320 = vmatpush.bf16.msra.mxu0 %v5616
  %8321 = vmatpush.bf16.msra.mxu0 %v5596
  %8322 = vmatpush.bf16.msra.mxu0 %v5576
  %8323 = vmatpush.bf16.msra.mxu0 %v5556
  %8324 = vmatpush.bf16.msra.mxu0 %v5536
  %8325 = vmatmul.bf16.gmra.mxu0 %v1357
  %v8326 = vpop.f32.mrf.mxu0
  %v8327 = vadd.f32 %v8314, %v8326
  %v8328 = vpop.f32.mrf.mxu0
  %8329 = vdwg.mxu0
  %8330 = vmatpush.bf16.msra.mxu0 %v5836
  %8331 = vmatpush.bf16.msra.mxu0 %v5816
  %8332 = vmatpush.bf16.msra.mxu0 %v5796
  %8333 = vmatpush.bf16.msra.mxu0 %v5776
  %8334 = vmatpush.bf16.msra.mxu0 %v5756
  %8335 = vmatpush.bf16.msra.mxu0 %v5736
  %8336 = vmatpush.bf16.msra.mxu0 %v5716
  %8337 = vmatpush.bf16.msra.mxu0 %v5696
  %8338 = vmatmul.bf16.gmra.mxu0 %v1358
  %v8339 = vpop.f32.mrf.mxu0
  %v8340 = vadd.f32 %v8327, %v8339
  %v8341 = vpop.f32.mrf.mxu0
  %8342 = vdwg.mxu0
  %8343 = vmatpush.bf16.msra.mxu0 %v5996
  %8344 = vmatpush.bf16.msra.mxu0 %v5976
  %8345 = vmatpush.bf16.msra.mxu0 %v5956
  %8346 = vmatpush.bf16.msra.mxu0 %v5936
  %8347 = vmatpush.bf16.msra.mxu0 %v5916
  %8348 = vmatpush.bf16.msra.mxu0 %v5896
  %8349 = vmatpush.bf16.msra.mxu0 %v5876
  %8350 = vmatpush.bf16.msra.mxu0 %v5856
  %8351 = vmatmul.bf16.gmra.mxu0 %v1359
  %v8352 = vpop.f32.mrf.mxu0
  %v8353 = vadd.f32 %v8340, %v8352
  %v8354 = vpop.f32.mrf.mxu0
  %8355 = vdwg.mxu0
  %8356 = vmatpush.bf16.msra.mxu0 %v6156
  %8357 = vmatpush.bf16.msra.mxu0 %v6136
  %8358 = vmatpush.bf16.msra.mxu0 %v6116
  %8359 = vmatpush.bf16.msra.mxu0 %v6096
  %8360 = vmatpush.bf16.msra.mxu0 %v6076
  %8361 = vmatpush.bf16.msra.mxu0 %v6056
  %8362 = vmatpush.bf16.msra.mxu0 %v6036
  %8363 = vmatpush.bf16.msra.mxu0 %v6016
  %8364 = vmatmul.bf16.gmra.mxu0 %v1360
  %v8365 = vpop.f32.mrf.mxu0
  %v8366 = vadd.f32 %v8353, %v8365
  %v8367 = vpop.f32.mrf.mxu0
  %8368 = vdwg.mxu0
  %8369 = vmatpush.bf16.msra.mxu0 %v6316
  %8370 = vmatpush.bf16.msra.mxu0 %v6296
  %8371 = vmatpush.bf16.msra.mxu0 %v6276
  %8372 = vmatpush.bf16.msra.mxu0 %v6256
  %8373 = vmatpush.bf16.msra.mxu0 %v6236
  %8374 = vmatpush.bf16.msra.mxu0 %v6216
  %8375 = vmatpush.bf16.msra.mxu0 %v6196
  %8376 = vmatpush.bf16.msra.mxu0 %v6176
  %8377 = vmatmul.bf16.gmra.mxu0 %v1361
  %v8378 = vpop.f32.mrf.mxu0
  %v8379 = vadd.f32 %v8366, %v8378
  %v8380 = vpop.f32.mrf.mxu0
  %8381 = vdwg.mxu0
  %8382 = vmatpush.bf16.msra.mxu0 %v6476
  %8383 = vmatpush.bf16.msra.mxu0 %v6456
  %8384 = vmatpush.bf16.msra.mxu0 %v6436
  %8385 = vmatpush.bf16.msra.mxu0 %v6416
  %8386 = vmatpush.bf16.msra.mxu0 %v6396
  %8387 = vmatpush.bf16.msra.mxu0 %v6376
  %8388 = vmatpush.bf16.msra.mxu0 %v6356
  %8389 = vmatpush.bf16.msra.mxu0 %v6336
  %8390 = vmatmul.bf16.gmra.mxu0 %v1362
  %v8391 = vpop.f32.mrf.mxu0
  %v8392 = vadd.f32 %v8379, %v8391
  %v8393 = vpop.f32.mrf.mxu0
  %8394 = vdwg.mxu0
  %8395 = vmatpush.bf16.msra.mxu0 %v5357
  %8396 = vmatpush.bf16.msra.mxu0 %v5337
  %8397 = vmatpush.bf16.msra.mxu0 %v5317
  %8398 = vmatpush.bf16.msra.mxu0 %v5297
  %8399 = vmatpush.bf16.msra.mxu0 %v5277
  %8400 = vmatpush.bf16.msra.mxu0 %v5257
  %8401 = vmatpush.bf16.msra.mxu0 %v5237
  %8402 = vmatpush.bf16.msra.mxu0 %v5217
  %8403 = vmatmul.bf16.gmra.mxu0 %v1355
  %v8404 = vpop.f32.mrf.mxu0
  %v8405 = vadd.f32 %v1319, %v8404
  %v8406 = vpop.f32.mrf.mxu0
  %8407 = vdwg.mxu0
  %8408 = vmatpush.bf16.msra.mxu0 %v5517
  %8409 = vmatpush.bf16.msra.mxu0 %v5497
  %8410 = vmatpush.bf16.msra.mxu0 %v5477
  %8411 = vmatpush.bf16.msra.mxu0 %v5457
  %8412 = vmatpush.bf16.msra.mxu0 %v5437
  %8413 = vmatpush.bf16.msra.mxu0 %v5417
  %8414 = vmatpush.bf16.msra.mxu0 %v5397
  %8415 = vmatpush.bf16.msra.mxu0 %v5377
  %8416 = vmatmul.bf16.gmra.mxu0 %v1356
  %v8417 = vpop.f32.mrf.mxu0
  %v8418 = vadd.f32 %v8405, %v8417
  %v8419 = vpop.f32.mrf.mxu0
  %8420 = vdwg.mxu0
  %8421 = vmatpush.bf16.msra.mxu0 %v5677
  %8422 = vmatpush.bf16.msra.mxu0 %v5657
  %8423 = vmatpush.bf16.msra.mxu0 %v5637
  %8424 = vmatpush.bf16.msra.mxu0 %v5617
  %8425 = vmatpush.bf16.msra.mxu0 %v5597
  %8426 = vmatpush.bf16.msra.mxu0 %v5577
  %8427 = vmatpush.bf16.msra.mxu0 %v5557
  %8428 = vmatpush.bf16.msra.mxu0 %v5537
  %8429 = vmatmul.bf16.gmra.mxu0 %v1357
  %v8430 = vpop.f32.mrf.mxu0
  %v8431 = vadd.f32 %v8418, %v8430
  %v8432 = vpop.f32.mrf.mxu0
  %8433 = vdwg.mxu0
  %8434 = vmatpush.bf16.msra.mxu0 %v5837
  %8435 = vmatpush.bf16.msra.mxu0 %v5817
  %8436 = vmatpush.bf16.msra.mxu0 %v5797
  %8437 = vmatpush.bf16.msra.mxu0 %v5777
  %8438 = vmatpush.bf16.msra.mxu0 %v5757
  %8439 = vmatpush.bf16.msra.mxu0 %v5737
  %8440 = vmatpush.bf16.msra.mxu0 %v5717
  %8441 = vmatpush.bf16.msra.mxu0 %v5697
  %8442 = vmatmul.bf16.gmra.mxu0 %v1358
  %v8443 = vpop.f32.mrf.mxu0
  %v8444 = vadd.f32 %v8431, %v8443
  %v8445 = vpop.f32.mrf.mxu0
  %8446 = vdwg.mxu0
  %8447 = vmatpush.bf16.msra.mxu0 %v5997
  %8448 = vmatpush.bf16.msra.mxu0 %v5977
  %8449 = vmatpush.bf16.msra.mxu0 %v5957
  %8450 = vmatpush.bf16.msra.mxu0 %v5937
  %8451 = vmatpush.bf16.msra.mxu0 %v5917
  %8452 = vmatpush.bf16.msra.mxu0 %v5897
  %8453 = vmatpush.bf16.msra.mxu0 %v5877
  %8454 = vmatpush.bf16.msra.mxu0 %v5857
  %8455 = vmatmul.bf16.gmra.mxu0 %v1359
  %v8456 = vpop.f32.mrf.mxu0
  %v8457 = vadd.f32 %v8444, %v8456
  %v8458 = vpop.f32.mrf.mxu0
  %8459 = vdwg.mxu0
  %8460 = vmatpush.bf16.msra.mxu0 %v6157
  %8461 = vmatpush.bf16.msra.mxu0 %v6137
  %8462 = vmatpush.bf16.msra.mxu0 %v6117
  %8463 = vmatpush.bf16.msra.mxu0 %v6097
  %8464 = vmatpush.bf16.msra.mxu0 %v6077
  %8465 = vmatpush.bf16.msra.mxu0 %v6057
  %8466 = vmatpush.bf16.msra.mxu0 %v6037
  %8467 = vmatpush.bf16.msra.mxu0 %v6017
  %8468 = vmatmul.bf16.gmra.mxu0 %v1360
  %v8469 = vpop.f32.mrf.mxu0
  %v8470 = vadd.f32 %v8457, %v8469
  %v8471 = vpop.f32.mrf.mxu0
  %8472 = vdwg.mxu0
  %8473 = vmatpush.bf16.msra.mxu0 %v6317
  %8474 = vmatpush.bf16.msra.mxu0 %v6297
  %8475 = vmatpush.bf16.msra.mxu0 %v6277
  %8476 = vmatpush.bf16.msra.mxu0 %v6257
  %8477 = vmatpush.bf16.msra.mxu0 %v6237
  %8478 = vmatpush.bf16.msra.mxu0 %v6217
  %8479 = vmatpush.bf16.msra.mxu0 %v6197
  %8480 = vmatpush.bf16.msra.mxu0 %v6177
  %8481 = vmatmul.bf16.gmra.mxu0 %v1361
  %v8482 = vpop.f32.mrf.mxu0
  %v8483 = vadd.f32 %v8470, %v8482
  %v8484 = vpop.f32.mrf.mxu0
  %8485 = vdwg.mxu0
  %8486 = vmatpush.bf16.msra.mxu0 %v6477
  %8487 = vmatpush.bf16.msra.mxu0 %v6457
  %8488 = vmatpush.bf16.msra.mxu0 %v6437
  %8489 = vmatpush.bf16.msra.mxu0 %v6417
  %8490 = vmatpush.bf16.msra.mxu0 %v6397
  %8491 = vmatpush.bf16.msra.mxu0 %v6377
  %8492 = vmatpush.bf16.msra.mxu0 %v6357
  %8493 = vmatpush.bf16.msra.mxu0 %v6337
  %8494 = vmatmul.bf16.gmra.mxu0 %v1362
  %v8495 = vpop.f32.mrf.mxu0
  %v8496 = vadd.f32 %v8483, %v8495
  %v8497 = vpop.f32.mrf.mxu0
  %8498 = vdwg.mxu0
  %8499 = vmatpush.bf16.msra.mxu0 %v5358
  %8500 = vmatpush.bf16.msra.mxu0 %v5338
  %8501 = vmatpush.bf16.msra.mxu0 %v5318
  %8502 = vmatpush.bf16.msra.mxu0 %v5298
  %8503 = vmatpush.bf16.msra.mxu0 %v5278
  %8504 = vmatpush.bf16.msra.mxu0 %v5258
  %8505 = vmatpush.bf16.msra.mxu0 %v5238
  %8506 = vmatpush.bf16.msra.mxu0 %v5218
  %8507 = vmatmul.bf16.gmra.mxu0 %v1355
  %v8508 = vpop.f32.mrf.mxu0
  %v8509 = vadd.f32 %v1320, %v8508
  %v8510 = vpop.f32.mrf.mxu0
  %8511 = vdwg.mxu0
  %8512 = vmatpush.bf16.msra.mxu0 %v5518
  %8513 = vmatpush.bf16.msra.mxu0 %v5498
  %8514 = vmatpush.bf16.msra.mxu0 %v5478
  %8515 = vmatpush.bf16.msra.mxu0 %v5458
  %8516 = vmatpush.bf16.msra.mxu0 %v5438
  %8517 = vmatpush.bf16.msra.mxu0 %v5418
  %8518 = vmatpush.bf16.msra.mxu0 %v5398
  %8519 = vmatpush.bf16.msra.mxu0 %v5378
  %8520 = vmatmul.bf16.gmra.mxu0 %v1356
  %v8521 = vpop.f32.mrf.mxu0
  %v8522 = vadd.f32 %v8509, %v8521
  %v8523 = vpop.f32.mrf.mxu0
  %8524 = vdwg.mxu0
  %8525 = vmatpush.bf16.msra.mxu0 %v5678
  %8526 = vmatpush.bf16.msra.mxu0 %v5658
  %8527 = vmatpush.bf16.msra.mxu0 %v5638
  %8528 = vmatpush.bf16.msra.mxu0 %v5618
  %8529 = vmatpush.bf16.msra.mxu0 %v5598
  %8530 = vmatpush.bf16.msra.mxu0 %v5578
  %8531 = vmatpush.bf16.msra.mxu0 %v5558
  %8532 = vmatpush.bf16.msra.mxu0 %v5538
  %8533 = vmatmul.bf16.gmra.mxu0 %v1357
  %v8534 = vpop.f32.mrf.mxu0
  %v8535 = vadd.f32 %v8522, %v8534
  %v8536 = vpop.f32.mrf.mxu0
  %8537 = vdwg.mxu0
  %8538 = vmatpush.bf16.msra.mxu0 %v5838
  %8539 = vmatpush.bf16.msra.mxu0 %v5818
  %8540 = vmatpush.bf16.msra.mxu0 %v5798
  %8541 = vmatpush.bf16.msra.mxu0 %v5778
  %8542 = vmatpush.bf16.msra.mxu0 %v5758
  %8543 = vmatpush.bf16.msra.mxu0 %v5738
  %8544 = vmatpush.bf16.msra.mxu0 %v5718
  %8545 = vmatpush.bf16.msra.mxu0 %v5698
  %8546 = vmatmul.bf16.gmra.mxu0 %v1358
  %v8547 = vpop.f32.mrf.mxu0
  %v8548 = vadd.f32 %v8535, %v8547
  %v8549 = vpop.f32.mrf.mxu0
  %8550 = vdwg.mxu0
  %8551 = vmatpush.bf16.msra.mxu0 %v5998
  %8552 = vmatpush.bf16.msra.mxu0 %v5978
  %8553 = vmatpush.bf16.msra.mxu0 %v5958
  %8554 = vmatpush.bf16.msra.mxu0 %v5938
  %8555 = vmatpush.bf16.msra.mxu0 %v5918
  %8556 = vmatpush.bf16.msra.mxu0 %v5898
  %8557 = vmatpush.bf16.msra.mxu0 %v5878
  %8558 = vmatpush.bf16.msra.mxu0 %v5858
  %8559 = vmatmul.bf16.gmra.mxu0 %v1359
  %v8560 = vpop.f32.mrf.mxu0
  %v8561 = vadd.f32 %v8548, %v8560
  %v8562 = vpop.f32.mrf.mxu0
  %8563 = vdwg.mxu0
  %8564 = vmatpush.bf16.msra.mxu0 %v6158
  %8565 = vmatpush.bf16.msra.mxu0 %v6138
  %8566 = vmatpush.bf16.msra.mxu0 %v6118
  %8567 = vmatpush.bf16.msra.mxu0 %v6098
  %8568 = vmatpush.bf16.msra.mxu0 %v6078
  %8569 = vmatpush.bf16.msra.mxu0 %v6058
  %8570 = vmatpush.bf16.msra.mxu0 %v6038
  %8571 = vmatpush.bf16.msra.mxu0 %v6018
  %8572 = vmatmul.bf16.gmra.mxu0 %v1360
  %v8573 = vpop.f32.mrf.mxu0
  %v8574 = vadd.f32 %v8561, %v8573
  %v8575 = vpop.f32.mrf.mxu0
  %8576 = vdwg.mxu0
  %8577 = vmatpush.bf16.msra.mxu0 %v6318
  %8578 = vmatpush.bf16.msra.mxu0 %v6298
  %8579 = vmatpush.bf16.msra.mxu0 %v6278
  %8580 = vmatpush.bf16.msra.mxu0 %v6258
  %8581 = vmatpush.bf16.msra.mxu0 %v6238
  %8582 = vmatpush.bf16.msra.mxu0 %v6218
  %8583 = vmatpush.bf16.msra.mxu0 %v6198
  %8584 = vmatpush.bf16.msra.mxu0 %v6178
  %8585 = vmatmul.bf16.gmra.mxu0 %v1361
  %v8586 = vpop.f32.mrf.mxu0
  %v8587 = vadd.f32 %v8574, %v8586
  %v8588 = vpop.f32.mrf.mxu0
  %8589 = vdwg.mxu0
  %8590 = vmatpush.bf16.msra.mxu0 %v6478
  %8591 = vmatpush.bf16.msra.mxu0 %v6458
  %8592 = vmatpush.bf16.msra.mxu0 %v6438
  %8593 = vmatpush.bf16.msra.mxu0 %v6418
  %8594 = vmatpush.bf16.msra.mxu0 %v6398
  %8595 = vmatpush.bf16.msra.mxu0 %v6378
  %8596 = vmatpush.bf16.msra.mxu0 %v6358
  %8597 = vmatpush.bf16.msra.mxu0 %v6338
  %8598 = vmatmul.bf16.gmra.mxu0 %v1362
  %v8599 = vpop.f32.mrf.mxu0
  %v8600 = vadd.f32 %v8587, %v8599
  %v8601 = vpop.f32.mrf.mxu0
  %8602 = vdwg.mxu0
  %8603 = vmatpush.bf16.msra.mxu0 %v5359
  %8604 = vmatpush.bf16.msra.mxu0 %v5339
  %8605 = vmatpush.bf16.msra.mxu0 %v5319
  %8606 = vmatpush.bf16.msra.mxu0 %v5299
  %8607 = vmatpush.bf16.msra.mxu0 %v5279
  %8608 = vmatpush.bf16.msra.mxu0 %v5259
  %8609 = vmatpush.bf16.msra.mxu0 %v5239
  %8610 = vmatpush.bf16.msra.mxu0 %v5219
  %8611 = vmatmul.bf16.gmra.mxu0 %v1355
  %v8612 = vpop.f32.mrf.mxu0
  %v8613 = vadd.f32 %v1321, %v8612
  %v8614 = vpop.f32.mrf.mxu0
  %8615 = vdwg.mxu0
  %8616 = vmatpush.bf16.msra.mxu0 %v5519
  %8617 = vmatpush.bf16.msra.mxu0 %v5499
  %8618 = vmatpush.bf16.msra.mxu0 %v5479
  %8619 = vmatpush.bf16.msra.mxu0 %v5459
  %8620 = vmatpush.bf16.msra.mxu0 %v5439
  %8621 = vmatpush.bf16.msra.mxu0 %v5419
  %8622 = vmatpush.bf16.msra.mxu0 %v5399
  %8623 = vmatpush.bf16.msra.mxu0 %v5379
  %8624 = vmatmul.bf16.gmra.mxu0 %v1356
  %v8625 = vpop.f32.mrf.mxu0
  %v8626 = vadd.f32 %v8613, %v8625
  %v8627 = vpop.f32.mrf.mxu0
  %8628 = vdwg.mxu0
  %8629 = vmatpush.bf16.msra.mxu0 %v5679
  %8630 = vmatpush.bf16.msra.mxu0 %v5659
  %8631 = vmatpush.bf16.msra.mxu0 %v5639
  %8632 = vmatpush.bf16.msra.mxu0 %v5619
  %8633 = vmatpush.bf16.msra.mxu0 %v5599
  %8634 = vmatpush.bf16.msra.mxu0 %v5579
  %8635 = vmatpush.bf16.msra.mxu0 %v5559
  %8636 = vmatpush.bf16.msra.mxu0 %v5539
  %8637 = vmatmul.bf16.gmra.mxu0 %v1357
  %v8638 = vpop.f32.mrf.mxu0
  %v8639 = vadd.f32 %v8626, %v8638
  %v8640 = vpop.f32.mrf.mxu0
  %8641 = vdwg.mxu0
  %8642 = vmatpush.bf16.msra.mxu0 %v5839
  %8643 = vmatpush.bf16.msra.mxu0 %v5819
  %8644 = vmatpush.bf16.msra.mxu0 %v5799
  %8645 = vmatpush.bf16.msra.mxu0 %v5779
  %8646 = vmatpush.bf16.msra.mxu0 %v5759
  %8647 = vmatpush.bf16.msra.mxu0 %v5739
  %8648 = vmatpush.bf16.msra.mxu0 %v5719
  %8649 = vmatpush.bf16.msra.mxu0 %v5699
  %8650 = vmatmul.bf16.gmra.mxu0 %v1358
  %v8651 = vpop.f32.mrf.mxu0
  %v8652 = vadd.f32 %v8639, %v8651
  %v8653 = vpop.f32.mrf.mxu0
  %8654 = vdwg.mxu0
  %8655 = vmatpush.bf16.msra.mxu0 %v5999
  %8656 = vmatpush.bf16.msra.mxu0 %v5979
  %8657 = vmatpush.bf16.msra.mxu0 %v5959
  %8658 = vmatpush.bf16.msra.mxu0 %v5939
  %8659 = vmatpush.bf16.msra.mxu0 %v5919
  %8660 = vmatpush.bf16.msra.mxu0 %v5899
  %8661 = vmatpush.bf16.msra.mxu0 %v5879
  %8662 = vmatpush.bf16.msra.mxu0 %v5859
  %8663 = vmatmul.bf16.gmra.mxu0 %v1359
  %v8664 = vpop.f32.mrf.mxu0
  %v8665 = vadd.f32 %v8652, %v8664
  %v8666 = vpop.f32.mrf.mxu0
  %8667 = vdwg.mxu0
  %8668 = vmatpush.bf16.msra.mxu0 %v6159
  %8669 = vmatpush.bf16.msra.mxu0 %v6139
  %8670 = vmatpush.bf16.msra.mxu0 %v6119
  %8671 = vmatpush.bf16.msra.mxu0 %v6099
  %8672 = vmatpush.bf16.msra.mxu0 %v6079
  %8673 = vmatpush.bf16.msra.mxu0 %v6059
  %8674 = vmatpush.bf16.msra.mxu0 %v6039
  %8675 = vmatpush.bf16.msra.mxu0 %v6019
  %8676 = vmatmul.bf16.gmra.mxu0 %v1360
  %v8677 = vpop.f32.mrf.mxu0
  %v8678 = vadd.f32 %v8665, %v8677
  %v8679 = vpop.f32.mrf.mxu0
  %8680 = vdwg.mxu0
  %8681 = vmatpush.bf16.msra.mxu0 %v6319
  %8682 = vmatpush.bf16.msra.mxu0 %v6299
  %8683 = vmatpush.bf16.msra.mxu0 %v6279
  %8684 = vmatpush.bf16.msra.mxu0 %v6259
  %8685 = vmatpush.bf16.msra.mxu0 %v6239
  %8686 = vmatpush.bf16.msra.mxu0 %v6219
  %8687 = vmatpush.bf16.msra.mxu0 %v6199
  %8688 = vmatpush.bf16.msra.mxu0 %v6179
  %8689 = vmatmul.bf16.gmra.mxu0 %v1361
  %v8690 = vpop.f32.mrf.mxu0
  %v8691 = vadd.f32 %v8678, %v8690
  %v8692 = vpop.f32.mrf.mxu0
  %8693 = vdwg.mxu0
  %8694 = vmatpush.bf16.msra.mxu0 %v6479
  %8695 = vmatpush.bf16.msra.mxu0 %v6459
  %8696 = vmatpush.bf16.msra.mxu0 %v6439
  %8697 = vmatpush.bf16.msra.mxu0 %v6419
  %8698 = vmatpush.bf16.msra.mxu0 %v6399
  %8699 = vmatpush.bf16.msra.mxu0 %v6379
  %8700 = vmatpush.bf16.msra.mxu0 %v6359
  %8701 = vmatpush.bf16.msra.mxu0 %v6339
  %8702 = vmatmul.bf16.gmra.mxu0 %v1362
  %v8703 = vpop.f32.mrf.mxu0
  %v8704 = vadd.f32 %v8691, %v8703
  %v8705 = vpop.f32.mrf.mxu0
  %8706 = vdwg.mxu0
  %8707 = vmatpush.bf16.msra.mxu0 %v5360
  %8708 = vmatpush.bf16.msra.mxu0 %v5340
  %8709 = vmatpush.bf16.msra.mxu0 %v5320
  %8710 = vmatpush.bf16.msra.mxu0 %v5300
  %8711 = vmatpush.bf16.msra.mxu0 %v5280
  %8712 = vmatpush.bf16.msra.mxu0 %v5260
  %8713 = vmatpush.bf16.msra.mxu0 %v5240
  %8714 = vmatpush.bf16.msra.mxu0 %v5220
  %8715 = vmatmul.bf16.gmra.mxu0 %v1355
  %v8716 = vpop.f32.mrf.mxu0
  %v8717 = vadd.f32 %v1322, %v8716
  %v8718 = vpop.f32.mrf.mxu0
  %8719 = vdwg.mxu0
  %8720 = vmatpush.bf16.msra.mxu0 %v5520
  %8721 = vmatpush.bf16.msra.mxu0 %v5500
  %8722 = vmatpush.bf16.msra.mxu0 %v5480
  %8723 = vmatpush.bf16.msra.mxu0 %v5460
  %8724 = vmatpush.bf16.msra.mxu0 %v5440
  %8725 = vmatpush.bf16.msra.mxu0 %v5420
  %8726 = vmatpush.bf16.msra.mxu0 %v5400
  %8727 = vmatpush.bf16.msra.mxu0 %v5380
  %8728 = vmatmul.bf16.gmra.mxu0 %v1356
  %v8729 = vpop.f32.mrf.mxu0
  %v8730 = vadd.f32 %v8717, %v8729
  %v8731 = vpop.f32.mrf.mxu0
  %8732 = vdwg.mxu0
  %8733 = vmatpush.bf16.msra.mxu0 %v5680
  %8734 = vmatpush.bf16.msra.mxu0 %v5660
  %8735 = vmatpush.bf16.msra.mxu0 %v5640
  %8736 = vmatpush.bf16.msra.mxu0 %v5620
  %8737 = vmatpush.bf16.msra.mxu0 %v5600
  %8738 = vmatpush.bf16.msra.mxu0 %v5580
  %8739 = vmatpush.bf16.msra.mxu0 %v5560
  %8740 = vmatpush.bf16.msra.mxu0 %v5540
  %8741 = vmatmul.bf16.gmra.mxu0 %v1357
  %v8742 = vpop.f32.mrf.mxu0
  %v8743 = vadd.f32 %v8730, %v8742
  %v8744 = vpop.f32.mrf.mxu0
  %8745 = vdwg.mxu0
  %8746 = vmatpush.bf16.msra.mxu0 %v5840
  %8747 = vmatpush.bf16.msra.mxu0 %v5820
  %8748 = vmatpush.bf16.msra.mxu0 %v5800
  %8749 = vmatpush.bf16.msra.mxu0 %v5780
  %8750 = vmatpush.bf16.msra.mxu0 %v5760
  %8751 = vmatpush.bf16.msra.mxu0 %v5740
  %8752 = vmatpush.bf16.msra.mxu0 %v5720
  %8753 = vmatpush.bf16.msra.mxu0 %v5700
  %8754 = vmatmul.bf16.gmra.mxu0 %v1358
  %v8755 = vpop.f32.mrf.mxu0
  %v8756 = vadd.f32 %v8743, %v8755
  %v8757 = vpop.f32.mrf.mxu0
  %8758 = vdwg.mxu0
  %8759 = vmatpush.bf16.msra.mxu0 %v6000
  %8760 = vmatpush.bf16.msra.mxu0 %v5980
  %8761 = vmatpush.bf16.msra.mxu0 %v5960
  %8762 = vmatpush.bf16.msra.mxu0 %v5940
  %8763 = vmatpush.bf16.msra.mxu0 %v5920
  %8764 = vmatpush.bf16.msra.mxu0 %v5900
  %8765 = vmatpush.bf16.msra.mxu0 %v5880
  %8766 = vmatpush.bf16.msra.mxu0 %v5860
  %8767 = vmatmul.bf16.gmra.mxu0 %v1359
  %v8768 = vpop.f32.mrf.mxu0
  %v8769 = vadd.f32 %v8756, %v8768
  %v8770 = vpop.f32.mrf.mxu0
  %8771 = vdwg.mxu0
  %8772 = vmatpush.bf16.msra.mxu0 %v6160
  %8773 = vmatpush.bf16.msra.mxu0 %v6140
  %8774 = vmatpush.bf16.msra.mxu0 %v6120
  %8775 = vmatpush.bf16.msra.mxu0 %v6100
  %8776 = vmatpush.bf16.msra.mxu0 %v6080
  %8777 = vmatpush.bf16.msra.mxu0 %v6060
  %8778 = vmatpush.bf16.msra.mxu0 %v6040
  %8779 = vmatpush.bf16.msra.mxu0 %v6020
  %8780 = vmatmul.bf16.gmra.mxu0 %v1360
  %v8781 = vpop.f32.mrf.mxu0
  %v8782 = vadd.f32 %v8769, %v8781
  %v8783 = vpop.f32.mrf.mxu0
  %8784 = vdwg.mxu0
  %8785 = vmatpush.bf16.msra.mxu0 %v6320
  %8786 = vmatpush.bf16.msra.mxu0 %v6300
  %8787 = vmatpush.bf16.msra.mxu0 %v6280
  %8788 = vmatpush.bf16.msra.mxu0 %v6260
  %8789 = vmatpush.bf16.msra.mxu0 %v6240
  %8790 = vmatpush.bf16.msra.mxu0 %v6220
  %8791 = vmatpush.bf16.msra.mxu0 %v6200
  %8792 = vmatpush.bf16.msra.mxu0 %v6180
  %8793 = vmatmul.bf16.gmra.mxu0 %v1361
  %v8794 = vpop.f32.mrf.mxu0
  %v8795 = vadd.f32 %v8782, %v8794
  %v8796 = vpop.f32.mrf.mxu0
  %8797 = vdwg.mxu0
  %8798 = vmatpush.bf16.msra.mxu0 %v6480
  %8799 = vmatpush.bf16.msra.mxu0 %v6460
  %8800 = vmatpush.bf16.msra.mxu0 %v6440
  %8801 = vmatpush.bf16.msra.mxu0 %v6420
  %8802 = vmatpush.bf16.msra.mxu0 %v6400
  %8803 = vmatpush.bf16.msra.mxu0 %v6380
  %8804 = vmatpush.bf16.msra.mxu0 %v6360
  %8805 = vmatpush.bf16.msra.mxu0 %v6340
  %8806 = vmatmul.bf16.gmra.mxu0 %v1362
  %v8807 = vpop.f32.mrf.mxu0
  %v8808 = vadd.f32 %v8795, %v8807
  %v8809 = vpop.f32.mrf.mxu0
  %8810 = vdwg.mxu0
  %8811 = vmatpush.bf16.msra.mxu0 %v5361
  %8812 = vmatpush.bf16.msra.mxu0 %v5341
  %8813 = vmatpush.bf16.msra.mxu0 %v5321
  %8814 = vmatpush.bf16.msra.mxu0 %v5301
  %8815 = vmatpush.bf16.msra.mxu0 %v5281
  %8816 = vmatpush.bf16.msra.mxu0 %v5261
  %8817 = vmatpush.bf16.msra.mxu0 %v5241
  %8818 = vmatpush.bf16.msra.mxu0 %v5221
  %8819 = vmatmul.bf16.gmra.mxu0 %v1355
  %v8820 = vpop.f32.mrf.mxu0
  %v8821 = vadd.f32 %v1323, %v8820
  %v8822 = vpop.f32.mrf.mxu0
  %8823 = vdwg.mxu0
  %8824 = vmatpush.bf16.msra.mxu0 %v5521
  %8825 = vmatpush.bf16.msra.mxu0 %v5501
  %8826 = vmatpush.bf16.msra.mxu0 %v5481
  %8827 = vmatpush.bf16.msra.mxu0 %v5461
  %8828 = vmatpush.bf16.msra.mxu0 %v5441
  %8829 = vmatpush.bf16.msra.mxu0 %v5421
  %8830 = vmatpush.bf16.msra.mxu0 %v5401
  %8831 = vmatpush.bf16.msra.mxu0 %v5381
  %8832 = vmatmul.bf16.gmra.mxu0 %v1356
  %v8833 = vpop.f32.mrf.mxu0
  %v8834 = vadd.f32 %v8821, %v8833
  %v8835 = vpop.f32.mrf.mxu0
  %8836 = vdwg.mxu0
  %8837 = vmatpush.bf16.msra.mxu0 %v5681
  %8838 = vmatpush.bf16.msra.mxu0 %v5661
  %8839 = vmatpush.bf16.msra.mxu0 %v5641
  %8840 = vmatpush.bf16.msra.mxu0 %v5621
  %8841 = vmatpush.bf16.msra.mxu0 %v5601
  %8842 = vmatpush.bf16.msra.mxu0 %v5581
  %8843 = vmatpush.bf16.msra.mxu0 %v5561
  %8844 = vmatpush.bf16.msra.mxu0 %v5541
  %8845 = vmatmul.bf16.gmra.mxu0 %v1357
  %v8846 = vpop.f32.mrf.mxu0
  %v8847 = vadd.f32 %v8834, %v8846
  %v8848 = vpop.f32.mrf.mxu0
  %8849 = vdwg.mxu0
  %8850 = vmatpush.bf16.msra.mxu0 %v5841
  %8851 = vmatpush.bf16.msra.mxu0 %v5821
  %8852 = vmatpush.bf16.msra.mxu0 %v5801
  %8853 = vmatpush.bf16.msra.mxu0 %v5781
  %8854 = vmatpush.bf16.msra.mxu0 %v5761
  %8855 = vmatpush.bf16.msra.mxu0 %v5741
  %8856 = vmatpush.bf16.msra.mxu0 %v5721
  %8857 = vmatpush.bf16.msra.mxu0 %v5701
  %8858 = vmatmul.bf16.gmra.mxu0 %v1358
  %v8859 = vpop.f32.mrf.mxu0
  %v8860 = vadd.f32 %v8847, %v8859
  %v8861 = vpop.f32.mrf.mxu0
  %8862 = vdwg.mxu0
  %8863 = vmatpush.bf16.msra.mxu0 %v6001
  %8864 = vmatpush.bf16.msra.mxu0 %v5981
  %8865 = vmatpush.bf16.msra.mxu0 %v5961
  %8866 = vmatpush.bf16.msra.mxu0 %v5941
  %8867 = vmatpush.bf16.msra.mxu0 %v5921
  %8868 = vmatpush.bf16.msra.mxu0 %v5901
  %8869 = vmatpush.bf16.msra.mxu0 %v5881
  %8870 = vmatpush.bf16.msra.mxu0 %v5861
  %8871 = vmatmul.bf16.gmra.mxu0 %v1359
  %v8872 = vpop.f32.mrf.mxu0
  %v8873 = vadd.f32 %v8860, %v8872
  %v8874 = vpop.f32.mrf.mxu0
  %8875 = vdwg.mxu0
  %8876 = vmatpush.bf16.msra.mxu0 %v6161
  %8877 = vmatpush.bf16.msra.mxu0 %v6141
  %8878 = vmatpush.bf16.msra.mxu0 %v6121
  %8879 = vmatpush.bf16.msra.mxu0 %v6101
  %8880 = vmatpush.bf16.msra.mxu0 %v6081
  %8881 = vmatpush.bf16.msra.mxu0 %v6061
  %8882 = vmatpush.bf16.msra.mxu0 %v6041
  %8883 = vmatpush.bf16.msra.mxu0 %v6021
  %8884 = vmatmul.bf16.gmra.mxu0 %v1360
  %v8885 = vpop.f32.mrf.mxu0
  %v8886 = vadd.f32 %v8873, %v8885
  %v8887 = vpop.f32.mrf.mxu0
  %8888 = vdwg.mxu0
  %8889 = vmatpush.bf16.msra.mxu0 %v6321
  %8890 = vmatpush.bf16.msra.mxu0 %v6301
  %8891 = vmatpush.bf16.msra.mxu0 %v6281
  %8892 = vmatpush.bf16.msra.mxu0 %v6261
  %8893 = vmatpush.bf16.msra.mxu0 %v6241
  %8894 = vmatpush.bf16.msra.mxu0 %v6221
  %8895 = vmatpush.bf16.msra.mxu0 %v6201
  %8896 = vmatpush.bf16.msra.mxu0 %v6181
  %8897 = vmatmul.bf16.gmra.mxu0 %v1361
  %v8898 = vpop.f32.mrf.mxu0
  %v8899 = vadd.f32 %v8886, %v8898
  %v8900 = vpop.f32.mrf.mxu0
  %8901 = vdwg.mxu0
  %8902 = vmatpush.bf16.msra.mxu0 %v6481
  %8903 = vmatpush.bf16.msra.mxu0 %v6461
  %8904 = vmatpush.bf16.msra.mxu0 %v6441
  %8905 = vmatpush.bf16.msra.mxu0 %v6421
  %8906 = vmatpush.bf16.msra.mxu0 %v6401
  %8907 = vmatpush.bf16.msra.mxu0 %v6381
  %8908 = vmatpush.bf16.msra.mxu0 %v6361
  %8909 = vmatpush.bf16.msra.mxu0 %v6341
  %8910 = vmatmul.bf16.gmra.mxu0 %v1362
  %v8911 = vpop.f32.mrf.mxu0
  %v8912 = vadd.f32 %v8899, %v8911
  %v8913 = vpop.f32.mrf.mxu0
  %8914 = vdwg.mxu0
  %8915 = vmatpush.bf16.msra.mxu0 %v5362
  %8916 = vmatpush.bf16.msra.mxu0 %v5342
  %8917 = vmatpush.bf16.msra.mxu0 %v5322
  %8918 = vmatpush.bf16.msra.mxu0 %v5302
  %8919 = vmatpush.bf16.msra.mxu0 %v5282
  %8920 = vmatpush.bf16.msra.mxu0 %v5262
  %8921 = vmatpush.bf16.msra.mxu0 %v5242
  %8922 = vmatpush.bf16.msra.mxu0 %v5222
  %8923 = vmatmul.bf16.gmra.mxu0 %v1355
  %v8924 = vpop.f32.mrf.mxu0
  %v8925 = vadd.f32 %v1324, %v8924
  %v8926 = vpop.f32.mrf.mxu0
  %8927 = vdwg.mxu0
  %8928 = vmatpush.bf16.msra.mxu0 %v5522
  %8929 = vmatpush.bf16.msra.mxu0 %v5502
  %8930 = vmatpush.bf16.msra.mxu0 %v5482
  %8931 = vmatpush.bf16.msra.mxu0 %v5462
  %8932 = vmatpush.bf16.msra.mxu0 %v5442
  %8933 = vmatpush.bf16.msra.mxu0 %v5422
  %8934 = vmatpush.bf16.msra.mxu0 %v5402
  %8935 = vmatpush.bf16.msra.mxu0 %v5382
  %8936 = vmatmul.bf16.gmra.mxu0 %v1356
  %v8937 = vpop.f32.mrf.mxu0
  %v8938 = vadd.f32 %v8925, %v8937
  %v8939 = vpop.f32.mrf.mxu0
  %8940 = vdwg.mxu0
  %8941 = vmatpush.bf16.msra.mxu0 %v5682
  %8942 = vmatpush.bf16.msra.mxu0 %v5662
  %8943 = vmatpush.bf16.msra.mxu0 %v5642
  %8944 = vmatpush.bf16.msra.mxu0 %v5622
  %8945 = vmatpush.bf16.msra.mxu0 %v5602
  %8946 = vmatpush.bf16.msra.mxu0 %v5582
  %8947 = vmatpush.bf16.msra.mxu0 %v5562
  %8948 = vmatpush.bf16.msra.mxu0 %v5542
  %8949 = vmatmul.bf16.gmra.mxu0 %v1357
  %v8950 = vpop.f32.mrf.mxu0
  %v8951 = vadd.f32 %v8938, %v8950
  %v8952 = vpop.f32.mrf.mxu0
  %8953 = vdwg.mxu0
  %8954 = vmatpush.bf16.msra.mxu0 %v5842
  %8955 = vmatpush.bf16.msra.mxu0 %v5822
  %8956 = vmatpush.bf16.msra.mxu0 %v5802
  %8957 = vmatpush.bf16.msra.mxu0 %v5782
  %8958 = vmatpush.bf16.msra.mxu0 %v5762
  %8959 = vmatpush.bf16.msra.mxu0 %v5742
  %8960 = vmatpush.bf16.msra.mxu0 %v5722
  %8961 = vmatpush.bf16.msra.mxu0 %v5702
  %8962 = vmatmul.bf16.gmra.mxu0 %v1358
  %v8963 = vpop.f32.mrf.mxu0
  %v8964 = vadd.f32 %v8951, %v8963
  %v8965 = vpop.f32.mrf.mxu0
  %8966 = vdwg.mxu0
  %8967 = vmatpush.bf16.msra.mxu0 %v6002
  %8968 = vmatpush.bf16.msra.mxu0 %v5982
  %8969 = vmatpush.bf16.msra.mxu0 %v5962
  %8970 = vmatpush.bf16.msra.mxu0 %v5942
  %8971 = vmatpush.bf16.msra.mxu0 %v5922
  %8972 = vmatpush.bf16.msra.mxu0 %v5902
  %8973 = vmatpush.bf16.msra.mxu0 %v5882
  %8974 = vmatpush.bf16.msra.mxu0 %v5862
  %8975 = vmatmul.bf16.gmra.mxu0 %v1359
  %v8976 = vpop.f32.mrf.mxu0
  %v8977 = vadd.f32 %v8964, %v8976
  %v8978 = vpop.f32.mrf.mxu0
  %8979 = vdwg.mxu0
  %8980 = vmatpush.bf16.msra.mxu0 %v6162
  %8981 = vmatpush.bf16.msra.mxu0 %v6142
  %8982 = vmatpush.bf16.msra.mxu0 %v6122
  %8983 = vmatpush.bf16.msra.mxu0 %v6102
  %8984 = vmatpush.bf16.msra.mxu0 %v6082
  %8985 = vmatpush.bf16.msra.mxu0 %v6062
  %8986 = vmatpush.bf16.msra.mxu0 %v6042
  %8987 = vmatpush.bf16.msra.mxu0 %v6022
  %8988 = vmatmul.bf16.gmra.mxu0 %v1360
  %v8989 = vpop.f32.mrf.mxu0
  %v8990 = vadd.f32 %v8977, %v8989
  %v8991 = vpop.f32.mrf.mxu0
  %8992 = vdwg.mxu0
  %8993 = vmatpush.bf16.msra.mxu0 %v6322
  %8994 = vmatpush.bf16.msra.mxu0 %v6302
  %8995 = vmatpush.bf16.msra.mxu0 %v6282
  %8996 = vmatpush.bf16.msra.mxu0 %v6262
  %8997 = vmatpush.bf16.msra.mxu0 %v6242
  %8998 = vmatpush.bf16.msra.mxu0 %v6222
  %8999 = vmatpush.bf16.msra.mxu0 %v6202
  %9000 = vmatpush.bf16.msra.mxu0 %v6182
  %9001 = vmatmul.bf16.gmra.mxu0 %v1361
  %v9002 = vpop.f32.mrf.mxu0
  %v9003 = vadd.f32 %v8990, %v9002
  %v9004 = vpop.f32.mrf.mxu0
  %9005 = vdwg.mxu0
  %9006 = vmatpush.bf16.msra.mxu0 %v6482
  %9007 = vmatpush.bf16.msra.mxu0 %v6462
  %9008 = vmatpush.bf16.msra.mxu0 %v6442
  %9009 = vmatpush.bf16.msra.mxu0 %v6422
  %9010 = vmatpush.bf16.msra.mxu0 %v6402
  %9011 = vmatpush.bf16.msra.mxu0 %v6382
  %9012 = vmatpush.bf16.msra.mxu0 %v6362
  %9013 = vmatpush.bf16.msra.mxu0 %v6342
  %9014 = vmatmul.bf16.gmra.mxu0 %v1362
  %v9015 = vpop.f32.mrf.mxu0
  %v9016 = vadd.f32 %v9003, %v9015
  %v9017 = vpop.f32.mrf.mxu0
  %9018 = vdwg.mxu0
  %9019 = vmatpush.bf16.msra.mxu0 %v5363
  %9020 = vmatpush.bf16.msra.mxu0 %v5343
  %9021 = vmatpush.bf16.msra.mxu0 %v5323
  %9022 = vmatpush.bf16.msra.mxu0 %v5303
  %9023 = vmatpush.bf16.msra.mxu0 %v5283
  %9024 = vmatpush.bf16.msra.mxu0 %v5263
  %9025 = vmatpush.bf16.msra.mxu0 %v5243
  %9026 = vmatpush.bf16.msra.mxu0 %v5223
  %9027 = vmatmul.bf16.gmra.mxu0 %v1355
  %v9028 = vpop.f32.mrf.mxu0
  %v9029 = vadd.f32 %v1325, %v9028
  %v9030 = vpop.f32.mrf.mxu0
  %9031 = vdwg.mxu0
  %9032 = vmatpush.bf16.msra.mxu0 %v5523
  %9033 = vmatpush.bf16.msra.mxu0 %v5503
  %9034 = vmatpush.bf16.msra.mxu0 %v5483
  %9035 = vmatpush.bf16.msra.mxu0 %v5463
  %9036 = vmatpush.bf16.msra.mxu0 %v5443
  %9037 = vmatpush.bf16.msra.mxu0 %v5423
  %9038 = vmatpush.bf16.msra.mxu0 %v5403
  %9039 = vmatpush.bf16.msra.mxu0 %v5383
  %9040 = vmatmul.bf16.gmra.mxu0 %v1356
  %v9041 = vpop.f32.mrf.mxu0
  %v9042 = vadd.f32 %v9029, %v9041
  %v9043 = vpop.f32.mrf.mxu0
  %9044 = vdwg.mxu0
  %9045 = vmatpush.bf16.msra.mxu0 %v5683
  %9046 = vmatpush.bf16.msra.mxu0 %v5663
  %9047 = vmatpush.bf16.msra.mxu0 %v5643
  %9048 = vmatpush.bf16.msra.mxu0 %v5623
  %9049 = vmatpush.bf16.msra.mxu0 %v5603
  %9050 = vmatpush.bf16.msra.mxu0 %v5583
  %9051 = vmatpush.bf16.msra.mxu0 %v5563
  %9052 = vmatpush.bf16.msra.mxu0 %v5543
  %9053 = vmatmul.bf16.gmra.mxu0 %v1357
  %v9054 = vpop.f32.mrf.mxu0
  %v9055 = vadd.f32 %v9042, %v9054
  %v9056 = vpop.f32.mrf.mxu0
  %9057 = vdwg.mxu0
  %9058 = vmatpush.bf16.msra.mxu0 %v5843
  %9059 = vmatpush.bf16.msra.mxu0 %v5823
  %9060 = vmatpush.bf16.msra.mxu0 %v5803
  %9061 = vmatpush.bf16.msra.mxu0 %v5783
  %9062 = vmatpush.bf16.msra.mxu0 %v5763
  %9063 = vmatpush.bf16.msra.mxu0 %v5743
  %9064 = vmatpush.bf16.msra.mxu0 %v5723
  %9065 = vmatpush.bf16.msra.mxu0 %v5703
  %9066 = vmatmul.bf16.gmra.mxu0 %v1358
  %v9067 = vpop.f32.mrf.mxu0
  %v9068 = vadd.f32 %v9055, %v9067
  %v9069 = vpop.f32.mrf.mxu0
  %9070 = vdwg.mxu0
  %9071 = vmatpush.bf16.msra.mxu0 %v6003
  %9072 = vmatpush.bf16.msra.mxu0 %v5983
  %9073 = vmatpush.bf16.msra.mxu0 %v5963
  %9074 = vmatpush.bf16.msra.mxu0 %v5943
  %9075 = vmatpush.bf16.msra.mxu0 %v5923
  %9076 = vmatpush.bf16.msra.mxu0 %v5903
  %9077 = vmatpush.bf16.msra.mxu0 %v5883
  %9078 = vmatpush.bf16.msra.mxu0 %v5863
  %9079 = vmatmul.bf16.gmra.mxu0 %v1359
  %v9080 = vpop.f32.mrf.mxu0
  %v9081 = vadd.f32 %v9068, %v9080
  %v9082 = vpop.f32.mrf.mxu0
  %9083 = vdwg.mxu0
  %9084 = vmatpush.bf16.msra.mxu0 %v6163
  %9085 = vmatpush.bf16.msra.mxu0 %v6143
  %9086 = vmatpush.bf16.msra.mxu0 %v6123
  %9087 = vmatpush.bf16.msra.mxu0 %v6103
  %9088 = vmatpush.bf16.msra.mxu0 %v6083
  %9089 = vmatpush.bf16.msra.mxu0 %v6063
  %9090 = vmatpush.bf16.msra.mxu0 %v6043
  %9091 = vmatpush.bf16.msra.mxu0 %v6023
  %9092 = vmatmul.bf16.gmra.mxu0 %v1360
  %v9093 = vpop.f32.mrf.mxu0
  %v9094 = vadd.f32 %v9081, %v9093
  %v9095 = vpop.f32.mrf.mxu0
  %9096 = vdwg.mxu0
  %9097 = vmatpush.bf16.msra.mxu0 %v6323
  %9098 = vmatpush.bf16.msra.mxu0 %v6303
  %9099 = vmatpush.bf16.msra.mxu0 %v6283
  %9100 = vmatpush.bf16.msra.mxu0 %v6263
  %9101 = vmatpush.bf16.msra.mxu0 %v6243
  %9102 = vmatpush.bf16.msra.mxu0 %v6223
  %9103 = vmatpush.bf16.msra.mxu0 %v6203
  %9104 = vmatpush.bf16.msra.mxu0 %v6183
  %9105 = vmatmul.bf16.gmra.mxu0 %v1361
  %v9106 = vpop.f32.mrf.mxu0
  %v9107 = vadd.f32 %v9094, %v9106
  %v9108 = vpop.f32.mrf.mxu0
  %9109 = vdwg.mxu0
  %9110 = vmatpush.bf16.msra.mxu0 %v6483
  %9111 = vmatpush.bf16.msra.mxu0 %v6463
  %9112 = vmatpush.bf16.msra.mxu0 %v6443
  %9113 = vmatpush.bf16.msra.mxu0 %v6423
  %9114 = vmatpush.bf16.msra.mxu0 %v6403
  %9115 = vmatpush.bf16.msra.mxu0 %v6383
  %9116 = vmatpush.bf16.msra.mxu0 %v6363
  %9117 = vmatpush.bf16.msra.mxu0 %v6343
  %9118 = vmatmul.bf16.gmra.mxu0 %v1362
  %v9119 = vpop.f32.mrf.mxu0
  %v9120 = vadd.f32 %v9107, %v9119
  %v9121 = vpop.f32.mrf.mxu0
  %9122 = vdwg.mxu0
  %9123 = vmatpush.bf16.msra.mxu0 %v5364
  %9124 = vmatpush.bf16.msra.mxu0 %v5344
  %9125 = vmatpush.bf16.msra.mxu0 %v5324
  %9126 = vmatpush.bf16.msra.mxu0 %v5304
  %9127 = vmatpush.bf16.msra.mxu0 %v5284
  %9128 = vmatpush.bf16.msra.mxu0 %v5264
  %9129 = vmatpush.bf16.msra.mxu0 %v5244
  %9130 = vmatpush.bf16.msra.mxu0 %v5224
  %9131 = vmatmul.bf16.gmra.mxu0 %v1355
  %v9132 = vpop.f32.mrf.mxu0
  %v9133 = vadd.f32 %v1326, %v9132
  %v9134 = vpop.f32.mrf.mxu0
  %9135 = vdwg.mxu0
  %9136 = vmatpush.bf16.msra.mxu0 %v5524
  %9137 = vmatpush.bf16.msra.mxu0 %v5504
  %9138 = vmatpush.bf16.msra.mxu0 %v5484
  %9139 = vmatpush.bf16.msra.mxu0 %v5464
  %9140 = vmatpush.bf16.msra.mxu0 %v5444
  %9141 = vmatpush.bf16.msra.mxu0 %v5424
  %9142 = vmatpush.bf16.msra.mxu0 %v5404
  %9143 = vmatpush.bf16.msra.mxu0 %v5384
  %9144 = vmatmul.bf16.gmra.mxu0 %v1356
  %v9145 = vpop.f32.mrf.mxu0
  %v9146 = vadd.f32 %v9133, %v9145
  %v9147 = vpop.f32.mrf.mxu0
  %9148 = vdwg.mxu0
  %9149 = vmatpush.bf16.msra.mxu0 %v5684
  %9150 = vmatpush.bf16.msra.mxu0 %v5664
  %9151 = vmatpush.bf16.msra.mxu0 %v5644
  %9152 = vmatpush.bf16.msra.mxu0 %v5624
  %9153 = vmatpush.bf16.msra.mxu0 %v5604
  %9154 = vmatpush.bf16.msra.mxu0 %v5584
  %9155 = vmatpush.bf16.msra.mxu0 %v5564
  %9156 = vmatpush.bf16.msra.mxu0 %v5544
  %9157 = vmatmul.bf16.gmra.mxu0 %v1357
  %v9158 = vpop.f32.mrf.mxu0
  %v9159 = vadd.f32 %v9146, %v9158
  %v9160 = vpop.f32.mrf.mxu0
  %9161 = vdwg.mxu0
  %9162 = vmatpush.bf16.msra.mxu0 %v5844
  %9163 = vmatpush.bf16.msra.mxu0 %v5824
  %9164 = vmatpush.bf16.msra.mxu0 %v5804
  %9165 = vmatpush.bf16.msra.mxu0 %v5784
  %9166 = vmatpush.bf16.msra.mxu0 %v5764
  %9167 = vmatpush.bf16.msra.mxu0 %v5744
  %9168 = vmatpush.bf16.msra.mxu0 %v5724
  %9169 = vmatpush.bf16.msra.mxu0 %v5704
  %9170 = vmatmul.bf16.gmra.mxu0 %v1358
  %v9171 = vpop.f32.mrf.mxu0
  %v9172 = vadd.f32 %v9159, %v9171
  %v9173 = vpop.f32.mrf.mxu0
  %9174 = vdwg.mxu0
  %9175 = vmatpush.bf16.msra.mxu0 %v6004
  %9176 = vmatpush.bf16.msra.mxu0 %v5984
  %9177 = vmatpush.bf16.msra.mxu0 %v5964
  %9178 = vmatpush.bf16.msra.mxu0 %v5944
  %9179 = vmatpush.bf16.msra.mxu0 %v5924
  %9180 = vmatpush.bf16.msra.mxu0 %v5904
  %9181 = vmatpush.bf16.msra.mxu0 %v5884
  %9182 = vmatpush.bf16.msra.mxu0 %v5864
  %9183 = vmatmul.bf16.gmra.mxu0 %v1359
  %v9184 = vpop.f32.mrf.mxu0
  %v9185 = vadd.f32 %v9172, %v9184
  %v9186 = vpop.f32.mrf.mxu0
  %9187 = vdwg.mxu0
  %9188 = vmatpush.bf16.msra.mxu0 %v6164
  %9189 = vmatpush.bf16.msra.mxu0 %v6144
  %9190 = vmatpush.bf16.msra.mxu0 %v6124
  %9191 = vmatpush.bf16.msra.mxu0 %v6104
  %9192 = vmatpush.bf16.msra.mxu0 %v6084
  %9193 = vmatpush.bf16.msra.mxu0 %v6064
  %9194 = vmatpush.bf16.msra.mxu0 %v6044
  %9195 = vmatpush.bf16.msra.mxu0 %v6024
  %9196 = vmatmul.bf16.gmra.mxu0 %v1360
  %v9197 = vpop.f32.mrf.mxu0
  %v9198 = vadd.f32 %v9185, %v9197
  %v9199 = vpop.f32.mrf.mxu0
  %9200 = vdwg.mxu0
  %9201 = vmatpush.bf16.msra.mxu0 %v6324
  %9202 = vmatpush.bf16.msra.mxu0 %v6304
  %9203 = vmatpush.bf16.msra.mxu0 %v6284
  %9204 = vmatpush.bf16.msra.mxu0 %v6264
  %9205 = vmatpush.bf16.msra.mxu0 %v6244
  %9206 = vmatpush.bf16.msra.mxu0 %v6224
  %9207 = vmatpush.bf16.msra.mxu0 %v6204
  %9208 = vmatpush.bf16.msra.mxu0 %v6184
  %9209 = vmatmul.bf16.gmra.mxu0 %v1361
  %v9210 = vpop.f32.mrf.mxu0
  %v9211 = vadd.f32 %v9198, %v9210
  %v9212 = vpop.f32.mrf.mxu0
  %9213 = vdwg.mxu0
  %9214 = vmatpush.bf16.msra.mxu0 %v6484
  %9215 = vmatpush.bf16.msra.mxu0 %v6464
  %9216 = vmatpush.bf16.msra.mxu0 %v6444
  %9217 = vmatpush.bf16.msra.mxu0 %v6424
  %9218 = vmatpush.bf16.msra.mxu0 %v6404
  %9219 = vmatpush.bf16.msra.mxu0 %v6384
  %9220 = vmatpush.bf16.msra.mxu0 %v6364
  %9221 = vmatpush.bf16.msra.mxu0 %v6344
  %9222 = vmatmul.bf16.gmra.mxu0 %v1362
  %v9223 = vpop.f32.mrf.mxu0
  %v9224 = vadd.f32 %v9211, %v9223
  %v9225 = vpop.f32.mrf.mxu0
  %9226 = vdwg.mxu0
  %9227 = vmatpush.bf16.msra.mxu0 %v5365
  %9228 = vmatpush.bf16.msra.mxu0 %v5345
  %9229 = vmatpush.bf16.msra.mxu0 %v5325
  %9230 = vmatpush.bf16.msra.mxu0 %v5305
  %9231 = vmatpush.bf16.msra.mxu0 %v5285
  %9232 = vmatpush.bf16.msra.mxu0 %v5265
  %9233 = vmatpush.bf16.msra.mxu0 %v5245
  %9234 = vmatpush.bf16.msra.mxu0 %v5225
  %9235 = vmatmul.bf16.gmra.mxu0 %v1355
  %v9236 = vpop.f32.mrf.mxu0
  %v9237 = vadd.f32 %v1327, %v9236
  %v9238 = vpop.f32.mrf.mxu0
  %9239 = vdwg.mxu0
  %9240 = vmatpush.bf16.msra.mxu0 %v5525
  %9241 = vmatpush.bf16.msra.mxu0 %v5505
  %9242 = vmatpush.bf16.msra.mxu0 %v5485
  %9243 = vmatpush.bf16.msra.mxu0 %v5465
  %9244 = vmatpush.bf16.msra.mxu0 %v5445
  %9245 = vmatpush.bf16.msra.mxu0 %v5425
  %9246 = vmatpush.bf16.msra.mxu0 %v5405
  %9247 = vmatpush.bf16.msra.mxu0 %v5385
  %9248 = vmatmul.bf16.gmra.mxu0 %v1356
  %v9249 = vpop.f32.mrf.mxu0
  %v9250 = vadd.f32 %v9237, %v9249
  %v9251 = vpop.f32.mrf.mxu0
  %9252 = vdwg.mxu0
  %9253 = vmatpush.bf16.msra.mxu0 %v5685
  %9254 = vmatpush.bf16.msra.mxu0 %v5665
  %9255 = vmatpush.bf16.msra.mxu0 %v5645
  %9256 = vmatpush.bf16.msra.mxu0 %v5625
  %9257 = vmatpush.bf16.msra.mxu0 %v5605
  %9258 = vmatpush.bf16.msra.mxu0 %v5585
  %9259 = vmatpush.bf16.msra.mxu0 %v5565
  %9260 = vmatpush.bf16.msra.mxu0 %v5545
  %9261 = vmatmul.bf16.gmra.mxu0 %v1357
  %v9262 = vpop.f32.mrf.mxu0
  %v9263 = vadd.f32 %v9250, %v9262
  %v9264 = vpop.f32.mrf.mxu0
  %9265 = vdwg.mxu0
  %9266 = vmatpush.bf16.msra.mxu0 %v5845
  %9267 = vmatpush.bf16.msra.mxu0 %v5825
  %9268 = vmatpush.bf16.msra.mxu0 %v5805
  %9269 = vmatpush.bf16.msra.mxu0 %v5785
  %9270 = vmatpush.bf16.msra.mxu0 %v5765
  %9271 = vmatpush.bf16.msra.mxu0 %v5745
  %9272 = vmatpush.bf16.msra.mxu0 %v5725
  %9273 = vmatpush.bf16.msra.mxu0 %v5705
  %9274 = vmatmul.bf16.gmra.mxu0 %v1358
  %v9275 = vpop.f32.mrf.mxu0
  %v9276 = vadd.f32 %v9263, %v9275
  %v9277 = vpop.f32.mrf.mxu0
  %9278 = vdwg.mxu0
  %9279 = vmatpush.bf16.msra.mxu0 %v6005
  %9280 = vmatpush.bf16.msra.mxu0 %v5985
  %9281 = vmatpush.bf16.msra.mxu0 %v5965
  %9282 = vmatpush.bf16.msra.mxu0 %v5945
  %9283 = vmatpush.bf16.msra.mxu0 %v5925
  %9284 = vmatpush.bf16.msra.mxu0 %v5905
  %9285 = vmatpush.bf16.msra.mxu0 %v5885
  %9286 = vmatpush.bf16.msra.mxu0 %v5865
  %9287 = vmatmul.bf16.gmra.mxu0 %v1359
  %v9288 = vpop.f32.mrf.mxu0
  %v9289 = vadd.f32 %v9276, %v9288
  %v9290 = vpop.f32.mrf.mxu0
  %9291 = vdwg.mxu0
  %9292 = vmatpush.bf16.msra.mxu0 %v6165
  %9293 = vmatpush.bf16.msra.mxu0 %v6145
  %9294 = vmatpush.bf16.msra.mxu0 %v6125
  %9295 = vmatpush.bf16.msra.mxu0 %v6105
  %9296 = vmatpush.bf16.msra.mxu0 %v6085
  %9297 = vmatpush.bf16.msra.mxu0 %v6065
  %9298 = vmatpush.bf16.msra.mxu0 %v6045
  %9299 = vmatpush.bf16.msra.mxu0 %v6025
  %9300 = vmatmul.bf16.gmra.mxu0 %v1360
  %v9301 = vpop.f32.mrf.mxu0
  %v9302 = vadd.f32 %v9289, %v9301
  %v9303 = vpop.f32.mrf.mxu0
  %9304 = vdwg.mxu0
  %9305 = vmatpush.bf16.msra.mxu0 %v6325
  %9306 = vmatpush.bf16.msra.mxu0 %v6305
  %9307 = vmatpush.bf16.msra.mxu0 %v6285
  %9308 = vmatpush.bf16.msra.mxu0 %v6265
  %9309 = vmatpush.bf16.msra.mxu0 %v6245
  %9310 = vmatpush.bf16.msra.mxu0 %v6225
  %9311 = vmatpush.bf16.msra.mxu0 %v6205
  %9312 = vmatpush.bf16.msra.mxu0 %v6185
  %9313 = vmatmul.bf16.gmra.mxu0 %v1361
  %v9314 = vpop.f32.mrf.mxu0
  %v9315 = vadd.f32 %v9302, %v9314
  %v9316 = vpop.f32.mrf.mxu0
  %9317 = vdwg.mxu0
  %9318 = vmatpush.bf16.msra.mxu0 %v6485
  %9319 = vmatpush.bf16.msra.mxu0 %v6465
  %9320 = vmatpush.bf16.msra.mxu0 %v6445
  %9321 = vmatpush.bf16.msra.mxu0 %v6425
  %9322 = vmatpush.bf16.msra.mxu0 %v6405
  %9323 = vmatpush.bf16.msra.mxu0 %v6385
  %9324 = vmatpush.bf16.msra.mxu0 %v6365
  %9325 = vmatpush.bf16.msra.mxu0 %v6345
  %9326 = vmatmul.bf16.gmra.mxu0 %v1362
  %v9327 = vpop.f32.mrf.mxu0
  %v9328 = vadd.f32 %v9315, %v9327
  %v9329 = vpop.f32.mrf.mxu0
  %9330 = vdwg.mxu0
  %9331 = vmatpush.bf16.msra.mxu0 %v5366
  %9332 = vmatpush.bf16.msra.mxu0 %v5346
  %9333 = vmatpush.bf16.msra.mxu0 %v5326
  %9334 = vmatpush.bf16.msra.mxu0 %v5306
  %9335 = vmatpush.bf16.msra.mxu0 %v5286
  %9336 = vmatpush.bf16.msra.mxu0 %v5266
  %9337 = vmatpush.bf16.msra.mxu0 %v5246
  %9338 = vmatpush.bf16.msra.mxu0 %v5226
  %9339 = vmatmul.bf16.gmra.mxu0 %v1355
  %v9340 = vpop.f32.mrf.mxu0
  %v9341 = vadd.f32 %v1328, %v9340
  %v9342 = vpop.f32.mrf.mxu0
  %9343 = vdwg.mxu0
  %9344 = vmatpush.bf16.msra.mxu0 %v5526
  %9345 = vmatpush.bf16.msra.mxu0 %v5506
  %9346 = vmatpush.bf16.msra.mxu0 %v5486
  %9347 = vmatpush.bf16.msra.mxu0 %v5466
  %9348 = vmatpush.bf16.msra.mxu0 %v5446
  %9349 = vmatpush.bf16.msra.mxu0 %v5426
  %9350 = vmatpush.bf16.msra.mxu0 %v5406
  %9351 = vmatpush.bf16.msra.mxu0 %v5386
  %9352 = vmatmul.bf16.gmra.mxu0 %v1356
  %v9353 = vpop.f32.mrf.mxu0
  %v9354 = vadd.f32 %v9341, %v9353
  %v9355 = vpop.f32.mrf.mxu0
  %9356 = vdwg.mxu0
  %9357 = vmatpush.bf16.msra.mxu0 %v5686
  %9358 = vmatpush.bf16.msra.mxu0 %v5666
  %9359 = vmatpush.bf16.msra.mxu0 %v5646
  %9360 = vmatpush.bf16.msra.mxu0 %v5626
  %9361 = vmatpush.bf16.msra.mxu0 %v5606
  %9362 = vmatpush.bf16.msra.mxu0 %v5586
  %9363 = vmatpush.bf16.msra.mxu0 %v5566
  %9364 = vmatpush.bf16.msra.mxu0 %v5546
  %9365 = vmatmul.bf16.gmra.mxu0 %v1357
  %v9366 = vpop.f32.mrf.mxu0
  %v9367 = vadd.f32 %v9354, %v9366
  %v9368 = vpop.f32.mrf.mxu0
  %9369 = vdwg.mxu0
  %9370 = vmatpush.bf16.msra.mxu0 %v5846
  %9371 = vmatpush.bf16.msra.mxu0 %v5826
  %9372 = vmatpush.bf16.msra.mxu0 %v5806
  %9373 = vmatpush.bf16.msra.mxu0 %v5786
  %9374 = vmatpush.bf16.msra.mxu0 %v5766
  %9375 = vmatpush.bf16.msra.mxu0 %v5746
  %9376 = vmatpush.bf16.msra.mxu0 %v5726
  %9377 = vmatpush.bf16.msra.mxu0 %v5706
  %9378 = vmatmul.bf16.gmra.mxu0 %v1358
  %v9379 = vpop.f32.mrf.mxu0
  %v9380 = vadd.f32 %v9367, %v9379
  %v9381 = vpop.f32.mrf.mxu0
  %9382 = vdwg.mxu0
  %9383 = vmatpush.bf16.msra.mxu0 %v6006
  %9384 = vmatpush.bf16.msra.mxu0 %v5986
  %9385 = vmatpush.bf16.msra.mxu0 %v5966
  %9386 = vmatpush.bf16.msra.mxu0 %v5946
  %9387 = vmatpush.bf16.msra.mxu0 %v5926
  %9388 = vmatpush.bf16.msra.mxu0 %v5906
  %9389 = vmatpush.bf16.msra.mxu0 %v5886
  %9390 = vmatpush.bf16.msra.mxu0 %v5866
  %9391 = vmatmul.bf16.gmra.mxu0 %v1359
  %v9392 = vpop.f32.mrf.mxu0
  %v9393 = vadd.f32 %v9380, %v9392
  %v9394 = vpop.f32.mrf.mxu0
  %9395 = vdwg.mxu0
  %9396 = vmatpush.bf16.msra.mxu0 %v6166
  %9397 = vmatpush.bf16.msra.mxu0 %v6146
  %9398 = vmatpush.bf16.msra.mxu0 %v6126
  %9399 = vmatpush.bf16.msra.mxu0 %v6106
  %9400 = vmatpush.bf16.msra.mxu0 %v6086
  %9401 = vmatpush.bf16.msra.mxu0 %v6066
  %9402 = vmatpush.bf16.msra.mxu0 %v6046
  %9403 = vmatpush.bf16.msra.mxu0 %v6026
  %9404 = vmatmul.bf16.gmra.mxu0 %v1360
  %v9405 = vpop.f32.mrf.mxu0
  %v9406 = vadd.f32 %v9393, %v9405
  %v9407 = vpop.f32.mrf.mxu0
  %9408 = vdwg.mxu0
  %9409 = vmatpush.bf16.msra.mxu0 %v6326
  %9410 = vmatpush.bf16.msra.mxu0 %v6306
  %9411 = vmatpush.bf16.msra.mxu0 %v6286
  %9412 = vmatpush.bf16.msra.mxu0 %v6266
  %9413 = vmatpush.bf16.msra.mxu0 %v6246
  %9414 = vmatpush.bf16.msra.mxu0 %v6226
  %9415 = vmatpush.bf16.msra.mxu0 %v6206
  %9416 = vmatpush.bf16.msra.mxu0 %v6186
  %9417 = vmatmul.bf16.gmra.mxu0 %v1361
  %v9418 = vpop.f32.mrf.mxu0
  %v9419 = vadd.f32 %v9406, %v9418
  %v9420 = vpop.f32.mrf.mxu0
  %9421 = vdwg.mxu0
  %9422 = vmatpush.bf16.msra.mxu0 %v6486
  %9423 = vmatpush.bf16.msra.mxu0 %v6466
  %9424 = vmatpush.bf16.msra.mxu0 %v6446
  %9425 = vmatpush.bf16.msra.mxu0 %v6426
  %9426 = vmatpush.bf16.msra.mxu0 %v6406
  %9427 = vmatpush.bf16.msra.mxu0 %v6386
  %9428 = vmatpush.bf16.msra.mxu0 %v6366
  %9429 = vmatpush.bf16.msra.mxu0 %v6346
  %9430 = vmatmul.bf16.gmra.mxu0 %v1362
  %v9431 = vpop.f32.mrf.mxu0
  %v9432 = vadd.f32 %v9419, %v9431
  %v9433 = vpop.f32.mrf.mxu0
  %9434 = vdwg.mxu0
  %9435 = vmatpush.bf16.msra.mxu0 %v5367
  %9436 = vmatpush.bf16.msra.mxu0 %v5347
  %9437 = vmatpush.bf16.msra.mxu0 %v5327
  %9438 = vmatpush.bf16.msra.mxu0 %v5307
  %9439 = vmatpush.bf16.msra.mxu0 %v5287
  %9440 = vmatpush.bf16.msra.mxu0 %v5267
  %9441 = vmatpush.bf16.msra.mxu0 %v5247
  %9442 = vmatpush.bf16.msra.mxu0 %v5227
  %9443 = vmatmul.bf16.gmra.mxu0 %v1355
  %v9444 = vpop.f32.mrf.mxu0
  %v9445 = vadd.f32 %v1329, %v9444
  %v9446 = vpop.f32.mrf.mxu0
  %9447 = vdwg.mxu0
  %9448 = vmatpush.bf16.msra.mxu0 %v5527
  %9449 = vmatpush.bf16.msra.mxu0 %v5507
  %9450 = vmatpush.bf16.msra.mxu0 %v5487
  %9451 = vmatpush.bf16.msra.mxu0 %v5467
  %9452 = vmatpush.bf16.msra.mxu0 %v5447
  %9453 = vmatpush.bf16.msra.mxu0 %v5427
  %9454 = vmatpush.bf16.msra.mxu0 %v5407
  %9455 = vmatpush.bf16.msra.mxu0 %v5387
  %9456 = vmatmul.bf16.gmra.mxu0 %v1356
  %v9457 = vpop.f32.mrf.mxu0
  %v9458 = vadd.f32 %v9445, %v9457
  %v9459 = vpop.f32.mrf.mxu0
  %9460 = vdwg.mxu0
  %9461 = vmatpush.bf16.msra.mxu0 %v5687
  %9462 = vmatpush.bf16.msra.mxu0 %v5667
  %9463 = vmatpush.bf16.msra.mxu0 %v5647
  %9464 = vmatpush.bf16.msra.mxu0 %v5627
  %9465 = vmatpush.bf16.msra.mxu0 %v5607
  %9466 = vmatpush.bf16.msra.mxu0 %v5587
  %9467 = vmatpush.bf16.msra.mxu0 %v5567
  %9468 = vmatpush.bf16.msra.mxu0 %v5547
  %9469 = vmatmul.bf16.gmra.mxu0 %v1357
  %v9470 = vpop.f32.mrf.mxu0
  %v9471 = vadd.f32 %v9458, %v9470
  %v9472 = vpop.f32.mrf.mxu0
  %9473 = vdwg.mxu0
  %9474 = vmatpush.bf16.msra.mxu0 %v5847
  %9475 = vmatpush.bf16.msra.mxu0 %v5827
  %9476 = vmatpush.bf16.msra.mxu0 %v5807
  %9477 = vmatpush.bf16.msra.mxu0 %v5787
  %9478 = vmatpush.bf16.msra.mxu0 %v5767
  %9479 = vmatpush.bf16.msra.mxu0 %v5747
  %9480 = vmatpush.bf16.msra.mxu0 %v5727
  %9481 = vmatpush.bf16.msra.mxu0 %v5707
  %9482 = vmatmul.bf16.gmra.mxu0 %v1358
  %v9483 = vpop.f32.mrf.mxu0
  %v9484 = vadd.f32 %v9471, %v9483
  %v9485 = vpop.f32.mrf.mxu0
  %9486 = vdwg.mxu0
  %9487 = vmatpush.bf16.msra.mxu0 %v6007
  %9488 = vmatpush.bf16.msra.mxu0 %v5987
  %9489 = vmatpush.bf16.msra.mxu0 %v5967
  %9490 = vmatpush.bf16.msra.mxu0 %v5947
  %9491 = vmatpush.bf16.msra.mxu0 %v5927
  %9492 = vmatpush.bf16.msra.mxu0 %v5907
  %9493 = vmatpush.bf16.msra.mxu0 %v5887
  %9494 = vmatpush.bf16.msra.mxu0 %v5867
  %9495 = vmatmul.bf16.gmra.mxu0 %v1359
  %v9496 = vpop.f32.mrf.mxu0
  %v9497 = vadd.f32 %v9484, %v9496
  %v9498 = vpop.f32.mrf.mxu0
  %9499 = vdwg.mxu0
  %9500 = vmatpush.bf16.msra.mxu0 %v6167
  %9501 = vmatpush.bf16.msra.mxu0 %v6147
  %9502 = vmatpush.bf16.msra.mxu0 %v6127
  %9503 = vmatpush.bf16.msra.mxu0 %v6107
  %9504 = vmatpush.bf16.msra.mxu0 %v6087
  %9505 = vmatpush.bf16.msra.mxu0 %v6067
  %9506 = vmatpush.bf16.msra.mxu0 %v6047
  %9507 = vmatpush.bf16.msra.mxu0 %v6027
  %9508 = vmatmul.bf16.gmra.mxu0 %v1360
  %v9509 = vpop.f32.mrf.mxu0
  %v9510 = vadd.f32 %v9497, %v9509
  %v9511 = vpop.f32.mrf.mxu0
  %9512 = vdwg.mxu0
  %9513 = vmatpush.bf16.msra.mxu0 %v6327
  %9514 = vmatpush.bf16.msra.mxu0 %v6307
  %9515 = vmatpush.bf16.msra.mxu0 %v6287
  %9516 = vmatpush.bf16.msra.mxu0 %v6267
  %9517 = vmatpush.bf16.msra.mxu0 %v6247
  %9518 = vmatpush.bf16.msra.mxu0 %v6227
  %9519 = vmatpush.bf16.msra.mxu0 %v6207
  %9520 = vmatpush.bf16.msra.mxu0 %v6187
  %9521 = vmatmul.bf16.gmra.mxu0 %v1361
  %v9522 = vpop.f32.mrf.mxu0
  %v9523 = vadd.f32 %v9510, %v9522
  %v9524 = vpop.f32.mrf.mxu0
  %9525 = vdwg.mxu0
  %9526 = vmatpush.bf16.msra.mxu0 %v6487
  %9527 = vmatpush.bf16.msra.mxu0 %v6467
  %9528 = vmatpush.bf16.msra.mxu0 %v6447
  %9529 = vmatpush.bf16.msra.mxu0 %v6427
  %9530 = vmatpush.bf16.msra.mxu0 %v6407
  %9531 = vmatpush.bf16.msra.mxu0 %v6387
  %9532 = vmatpush.bf16.msra.mxu0 %v6367
  %9533 = vmatpush.bf16.msra.mxu0 %v6347
  %9534 = vmatmul.bf16.gmra.mxu0 %v1362
  %v9535 = vpop.f32.mrf.mxu0
  %v9536 = vadd.f32 %v9523, %v9535
  %v9537 = vpop.f32.mrf.mxu0
  %9538 = vdwg.mxu0
  %9539 = vmatpush.bf16.msra.mxu0 %v5368
  %9540 = vmatpush.bf16.msra.mxu0 %v5348
  %9541 = vmatpush.bf16.msra.mxu0 %v5328
  %9542 = vmatpush.bf16.msra.mxu0 %v5308
  %9543 = vmatpush.bf16.msra.mxu0 %v5288
  %9544 = vmatpush.bf16.msra.mxu0 %v5268
  %9545 = vmatpush.bf16.msra.mxu0 %v5248
  %9546 = vmatpush.bf16.msra.mxu0 %v5228
  %9547 = vmatmul.bf16.gmra.mxu0 %v1355
  %v9548 = vpop.f32.mrf.mxu0
  %v9549 = vadd.f32 %v1330, %v9548
  %v9550 = vpop.f32.mrf.mxu0
  %9551 = vdwg.mxu0
  %9552 = vmatpush.bf16.msra.mxu0 %v5528
  %9553 = vmatpush.bf16.msra.mxu0 %v5508
  %9554 = vmatpush.bf16.msra.mxu0 %v5488
  %9555 = vmatpush.bf16.msra.mxu0 %v5468
  %9556 = vmatpush.bf16.msra.mxu0 %v5448
  %9557 = vmatpush.bf16.msra.mxu0 %v5428
  %9558 = vmatpush.bf16.msra.mxu0 %v5408
  %9559 = vmatpush.bf16.msra.mxu0 %v5388
  %9560 = vmatmul.bf16.gmra.mxu0 %v1356
  %v9561 = vpop.f32.mrf.mxu0
  %v9562 = vadd.f32 %v9549, %v9561
  %v9563 = vpop.f32.mrf.mxu0
  %9564 = vdwg.mxu0
  %9565 = vmatpush.bf16.msra.mxu0 %v5688
  %9566 = vmatpush.bf16.msra.mxu0 %v5668
  %9567 = vmatpush.bf16.msra.mxu0 %v5648
  %9568 = vmatpush.bf16.msra.mxu0 %v5628
  %9569 = vmatpush.bf16.msra.mxu0 %v5608
  %9570 = vmatpush.bf16.msra.mxu0 %v5588
  %9571 = vmatpush.bf16.msra.mxu0 %v5568
  %9572 = vmatpush.bf16.msra.mxu0 %v5548
  %9573 = vmatmul.bf16.gmra.mxu0 %v1357
  %v9574 = vpop.f32.mrf.mxu0
  %v9575 = vadd.f32 %v9562, %v9574
  %v9576 = vpop.f32.mrf.mxu0
  %9577 = vdwg.mxu0
  %9578 = vmatpush.bf16.msra.mxu0 %v5848
  %9579 = vmatpush.bf16.msra.mxu0 %v5828
  %9580 = vmatpush.bf16.msra.mxu0 %v5808
  %9581 = vmatpush.bf16.msra.mxu0 %v5788
  %9582 = vmatpush.bf16.msra.mxu0 %v5768
  %9583 = vmatpush.bf16.msra.mxu0 %v5748
  %9584 = vmatpush.bf16.msra.mxu0 %v5728
  %9585 = vmatpush.bf16.msra.mxu0 %v5708
  %9586 = vmatmul.bf16.gmra.mxu0 %v1358
  %v9587 = vpop.f32.mrf.mxu0
  %v9588 = vadd.f32 %v9575, %v9587
  %v9589 = vpop.f32.mrf.mxu0
  %9590 = vdwg.mxu0
  %9591 = vmatpush.bf16.msra.mxu0 %v6008
  %9592 = vmatpush.bf16.msra.mxu0 %v5988
  %9593 = vmatpush.bf16.msra.mxu0 %v5968
  %9594 = vmatpush.bf16.msra.mxu0 %v5948
  %9595 = vmatpush.bf16.msra.mxu0 %v5928
  %9596 = vmatpush.bf16.msra.mxu0 %v5908
  %9597 = vmatpush.bf16.msra.mxu0 %v5888
  %9598 = vmatpush.bf16.msra.mxu0 %v5868
  %9599 = vmatmul.bf16.gmra.mxu0 %v1359
  %v9600 = vpop.f32.mrf.mxu0
  %v9601 = vadd.f32 %v9588, %v9600
  %v9602 = vpop.f32.mrf.mxu0
  %9603 = vdwg.mxu0
  %9604 = vmatpush.bf16.msra.mxu0 %v6168
  %9605 = vmatpush.bf16.msra.mxu0 %v6148
  %9606 = vmatpush.bf16.msra.mxu0 %v6128
  %9607 = vmatpush.bf16.msra.mxu0 %v6108
  %9608 = vmatpush.bf16.msra.mxu0 %v6088
  %9609 = vmatpush.bf16.msra.mxu0 %v6068
  %9610 = vmatpush.bf16.msra.mxu0 %v6048
  %9611 = vmatpush.bf16.msra.mxu0 %v6028
  %9612 = vmatmul.bf16.gmra.mxu0 %v1360
  %v9613 = vpop.f32.mrf.mxu0
  %v9614 = vadd.f32 %v9601, %v9613
  %v9615 = vpop.f32.mrf.mxu0
  %9616 = vdwg.mxu0
  %9617 = vmatpush.bf16.msra.mxu0 %v6328
  %9618 = vmatpush.bf16.msra.mxu0 %v6308
  %9619 = vmatpush.bf16.msra.mxu0 %v6288
  %9620 = vmatpush.bf16.msra.mxu0 %v6268
  %9621 = vmatpush.bf16.msra.mxu0 %v6248
  %9622 = vmatpush.bf16.msra.mxu0 %v6228
  %9623 = vmatpush.bf16.msra.mxu0 %v6208
  %9624 = vmatpush.bf16.msra.mxu0 %v6188
  %9625 = vmatmul.bf16.gmra.mxu0 %v1361
  %v9626 = vpop.f32.mrf.mxu0
  %v9627 = vadd.f32 %v9614, %v9626
  %v9628 = vpop.f32.mrf.mxu0
  %9629 = vdwg.mxu0
  %9630 = vmatpush.bf16.msra.mxu0 %v6488
  %9631 = vmatpush.bf16.msra.mxu0 %v6468
  %9632 = vmatpush.bf16.msra.mxu0 %v6448
  %9633 = vmatpush.bf16.msra.mxu0 %v6428
  %9634 = vmatpush.bf16.msra.mxu0 %v6408
  %9635 = vmatpush.bf16.msra.mxu0 %v6388
  %9636 = vmatpush.bf16.msra.mxu0 %v6368
  %9637 = vmatpush.bf16.msra.mxu0 %v6348
  %9638 = vmatmul.bf16.gmra.mxu0 %v1362
  %v9639 = vpop.f32.mrf.mxu0
  %v9640 = vadd.f32 %v9627, %v9639
  %v9641 = vpop.f32.mrf.mxu0
  %9642 = vdwg.mxu0
  %9643 = vmatpush.bf16.msra.mxu0 %v5369
  %9644 = vmatpush.bf16.msra.mxu0 %v5349
  %9645 = vmatpush.bf16.msra.mxu0 %v5329
  %9646 = vmatpush.bf16.msra.mxu0 %v5309
  %9647 = vmatpush.bf16.msra.mxu0 %v5289
  %9648 = vmatpush.bf16.msra.mxu0 %v5269
  %9649 = vmatpush.bf16.msra.mxu0 %v5249
  %9650 = vmatpush.bf16.msra.mxu0 %v5229
  %9651 = vmatmul.bf16.gmra.mxu0 %v1355
  %v9652 = vpop.f32.mrf.mxu0
  %v9653 = vadd.f32 %v1331, %v9652
  %v9654 = vpop.f32.mrf.mxu0
  %9655 = vdwg.mxu0
  %9656 = vmatpush.bf16.msra.mxu0 %v5529
  %9657 = vmatpush.bf16.msra.mxu0 %v5509
  %9658 = vmatpush.bf16.msra.mxu0 %v5489
  %9659 = vmatpush.bf16.msra.mxu0 %v5469
  %9660 = vmatpush.bf16.msra.mxu0 %v5449
  %9661 = vmatpush.bf16.msra.mxu0 %v5429
  %9662 = vmatpush.bf16.msra.mxu0 %v5409
  %9663 = vmatpush.bf16.msra.mxu0 %v5389
  %9664 = vmatmul.bf16.gmra.mxu0 %v1356
  %v9665 = vpop.f32.mrf.mxu0
  %v9666 = vadd.f32 %v9653, %v9665
  %v9667 = vpop.f32.mrf.mxu0
  %9668 = vdwg.mxu0
  %9669 = vmatpush.bf16.msra.mxu0 %v5689
  %9670 = vmatpush.bf16.msra.mxu0 %v5669
  %9671 = vmatpush.bf16.msra.mxu0 %v5649
  %9672 = vmatpush.bf16.msra.mxu0 %v5629
  %9673 = vmatpush.bf16.msra.mxu0 %v5609
  %9674 = vmatpush.bf16.msra.mxu0 %v5589
  %9675 = vmatpush.bf16.msra.mxu0 %v5569
  %9676 = vmatpush.bf16.msra.mxu0 %v5549
  %9677 = vmatmul.bf16.gmra.mxu0 %v1357
  %v9678 = vpop.f32.mrf.mxu0
  %v9679 = vadd.f32 %v9666, %v9678
  %v9680 = vpop.f32.mrf.mxu0
  %9681 = vdwg.mxu0
  %9682 = vmatpush.bf16.msra.mxu0 %v5849
  %9683 = vmatpush.bf16.msra.mxu0 %v5829
  %9684 = vmatpush.bf16.msra.mxu0 %v5809
  %9685 = vmatpush.bf16.msra.mxu0 %v5789
  %9686 = vmatpush.bf16.msra.mxu0 %v5769
  %9687 = vmatpush.bf16.msra.mxu0 %v5749
  %9688 = vmatpush.bf16.msra.mxu0 %v5729
  %9689 = vmatpush.bf16.msra.mxu0 %v5709
  %9690 = vmatmul.bf16.gmra.mxu0 %v1358
  %v9691 = vpop.f32.mrf.mxu0
  %v9692 = vadd.f32 %v9679, %v9691
  %v9693 = vpop.f32.mrf.mxu0
  %9694 = vdwg.mxu0
  %9695 = vmatpush.bf16.msra.mxu0 %v6009
  %9696 = vmatpush.bf16.msra.mxu0 %v5989
  %9697 = vmatpush.bf16.msra.mxu0 %v5969
  %9698 = vmatpush.bf16.msra.mxu0 %v5949
  %9699 = vmatpush.bf16.msra.mxu0 %v5929
  %9700 = vmatpush.bf16.msra.mxu0 %v5909
  %9701 = vmatpush.bf16.msra.mxu0 %v5889
  %9702 = vmatpush.bf16.msra.mxu0 %v5869
  %9703 = vmatmul.bf16.gmra.mxu0 %v1359
  %v9704 = vpop.f32.mrf.mxu0
  %v9705 = vadd.f32 %v9692, %v9704
  %v9706 = vpop.f32.mrf.mxu0
  %9707 = vdwg.mxu0
  %9708 = vmatpush.bf16.msra.mxu0 %v6169
  %9709 = vmatpush.bf16.msra.mxu0 %v6149
  %9710 = vmatpush.bf16.msra.mxu0 %v6129
  %9711 = vmatpush.bf16.msra.mxu0 %v6109
  %9712 = vmatpush.bf16.msra.mxu0 %v6089
  %9713 = vmatpush.bf16.msra.mxu0 %v6069
  %9714 = vmatpush.bf16.msra.mxu0 %v6049
  %9715 = vmatpush.bf16.msra.mxu0 %v6029
  %9716 = vmatmul.bf16.gmra.mxu0 %v1360
  %v9717 = vpop.f32.mrf.mxu0
  %v9718 = vadd.f32 %v9705, %v9717
  %v9719 = vpop.f32.mrf.mxu0
  %9720 = vdwg.mxu0
  %9721 = vmatpush.bf16.msra.mxu0 %v6329
  %9722 = vmatpush.bf16.msra.mxu0 %v6309
  %9723 = vmatpush.bf16.msra.mxu0 %v6289
  %9724 = vmatpush.bf16.msra.mxu0 %v6269
  %9725 = vmatpush.bf16.msra.mxu0 %v6249
  %9726 = vmatpush.bf16.msra.mxu0 %v6229
  %9727 = vmatpush.bf16.msra.mxu0 %v6209
  %9728 = vmatpush.bf16.msra.mxu0 %v6189
  %9729 = vmatmul.bf16.gmra.mxu0 %v1361
  %v9730 = vpop.f32.mrf.mxu0
  %v9731 = vadd.f32 %v9718, %v9730
  %v9732 = vpop.f32.mrf.mxu0
  %9733 = vdwg.mxu0
  %9734 = vmatpush.bf16.msra.mxu0 %v6489
  %9735 = vmatpush.bf16.msra.mxu0 %v6469
  %9736 = vmatpush.bf16.msra.mxu0 %v6449
  %9737 = vmatpush.bf16.msra.mxu0 %v6429
  %9738 = vmatpush.bf16.msra.mxu0 %v6409
  %9739 = vmatpush.bf16.msra.mxu0 %v6389
  %9740 = vmatpush.bf16.msra.mxu0 %v6369
  %9741 = vmatpush.bf16.msra.mxu0 %v6349
  %9742 = vmatmul.bf16.gmra.mxu0 %v1362
  %v9743 = vpop.f32.mrf.mxu0
  %v9744 = vadd.f32 %v9731, %v9743
  %v9745 = vpop.f32.mrf.mxu0
  %9746 = vdwg.mxu0
  %9747 = vmatpush.bf16.msra.mxu0 %v5370
  %9748 = vmatpush.bf16.msra.mxu0 %v5350
  %9749 = vmatpush.bf16.msra.mxu0 %v5330
  %9750 = vmatpush.bf16.msra.mxu0 %v5310
  %9751 = vmatpush.bf16.msra.mxu0 %v5290
  %9752 = vmatpush.bf16.msra.mxu0 %v5270
  %9753 = vmatpush.bf16.msra.mxu0 %v5250
  %9754 = vmatpush.bf16.msra.mxu0 %v5230
  %9755 = vmatmul.bf16.gmra.mxu0 %v1355
  %v9756 = vpop.f32.mrf.mxu0
  %v9757 = vadd.f32 %v1332, %v9756
  %v9758 = vpop.f32.mrf.mxu0
  %9759 = vdwg.mxu0
  %9760 = vmatpush.bf16.msra.mxu0 %v5530
  %9761 = vmatpush.bf16.msra.mxu0 %v5510
  %9762 = vmatpush.bf16.msra.mxu0 %v5490
  %9763 = vmatpush.bf16.msra.mxu0 %v5470
  %9764 = vmatpush.bf16.msra.mxu0 %v5450
  %9765 = vmatpush.bf16.msra.mxu0 %v5430
  %9766 = vmatpush.bf16.msra.mxu0 %v5410
  %9767 = vmatpush.bf16.msra.mxu0 %v5390
  %9768 = vmatmul.bf16.gmra.mxu0 %v1356
  %v9769 = vpop.f32.mrf.mxu0
  %v9770 = vadd.f32 %v9757, %v9769
  %v9771 = vpop.f32.mrf.mxu0
  %9772 = vdwg.mxu0
  %9773 = vmatpush.bf16.msra.mxu0 %v5690
  %9774 = vmatpush.bf16.msra.mxu0 %v5670
  %9775 = vmatpush.bf16.msra.mxu0 %v5650
  %9776 = vmatpush.bf16.msra.mxu0 %v5630
  %9777 = vmatpush.bf16.msra.mxu0 %v5610
  %9778 = vmatpush.bf16.msra.mxu0 %v5590
  %9779 = vmatpush.bf16.msra.mxu0 %v5570
  %9780 = vmatpush.bf16.msra.mxu0 %v5550
  %9781 = vmatmul.bf16.gmra.mxu0 %v1357
  %v9782 = vpop.f32.mrf.mxu0
  %v9783 = vadd.f32 %v9770, %v9782
  %v9784 = vpop.f32.mrf.mxu0
  %9785 = vdwg.mxu0
  %9786 = vmatpush.bf16.msra.mxu0 %v5850
  %9787 = vmatpush.bf16.msra.mxu0 %v5830
  %9788 = vmatpush.bf16.msra.mxu0 %v5810
  %9789 = vmatpush.bf16.msra.mxu0 %v5790
  %9790 = vmatpush.bf16.msra.mxu0 %v5770
  %9791 = vmatpush.bf16.msra.mxu0 %v5750
  %9792 = vmatpush.bf16.msra.mxu0 %v5730
  %9793 = vmatpush.bf16.msra.mxu0 %v5710
  %9794 = vmatmul.bf16.gmra.mxu0 %v1358
  %v9795 = vpop.f32.mrf.mxu0
  %v9796 = vadd.f32 %v9783, %v9795
  %v9797 = vpop.f32.mrf.mxu0
  %9798 = vdwg.mxu0
  %9799 = vmatpush.bf16.msra.mxu0 %v6010
  %9800 = vmatpush.bf16.msra.mxu0 %v5990
  %9801 = vmatpush.bf16.msra.mxu0 %v5970
  %9802 = vmatpush.bf16.msra.mxu0 %v5950
  %9803 = vmatpush.bf16.msra.mxu0 %v5930
  %9804 = vmatpush.bf16.msra.mxu0 %v5910
  %9805 = vmatpush.bf16.msra.mxu0 %v5890
  %9806 = vmatpush.bf16.msra.mxu0 %v5870
  %9807 = vmatmul.bf16.gmra.mxu0 %v1359
  %v9808 = vpop.f32.mrf.mxu0
  %v9809 = vadd.f32 %v9796, %v9808
  %v9810 = vpop.f32.mrf.mxu0
  %9811 = vdwg.mxu0
  %9812 = vmatpush.bf16.msra.mxu0 %v6170
  %9813 = vmatpush.bf16.msra.mxu0 %v6150
  %9814 = vmatpush.bf16.msra.mxu0 %v6130
  %9815 = vmatpush.bf16.msra.mxu0 %v6110
  %9816 = vmatpush.bf16.msra.mxu0 %v6090
  %9817 = vmatpush.bf16.msra.mxu0 %v6070
  %9818 = vmatpush.bf16.msra.mxu0 %v6050
  %9819 = vmatpush.bf16.msra.mxu0 %v6030
  %9820 = vmatmul.bf16.gmra.mxu0 %v1360
  %v9821 = vpop.f32.mrf.mxu0
  %v9822 = vadd.f32 %v9809, %v9821
  %v9823 = vpop.f32.mrf.mxu0
  %9824 = vdwg.mxu0
  %9825 = vmatpush.bf16.msra.mxu0 %v6330
  %9826 = vmatpush.bf16.msra.mxu0 %v6310
  %9827 = vmatpush.bf16.msra.mxu0 %v6290
  %9828 = vmatpush.bf16.msra.mxu0 %v6270
  %9829 = vmatpush.bf16.msra.mxu0 %v6250
  %9830 = vmatpush.bf16.msra.mxu0 %v6230
  %9831 = vmatpush.bf16.msra.mxu0 %v6210
  %9832 = vmatpush.bf16.msra.mxu0 %v6190
  %9833 = vmatmul.bf16.gmra.mxu0 %v1361
  %v9834 = vpop.f32.mrf.mxu0
  %v9835 = vadd.f32 %v9822, %v9834
  %v9836 = vpop.f32.mrf.mxu0
  %9837 = vdwg.mxu0
  %9838 = vmatpush.bf16.msra.mxu0 %v6490
  %9839 = vmatpush.bf16.msra.mxu0 %v6470
  %9840 = vmatpush.bf16.msra.mxu0 %v6450
  %9841 = vmatpush.bf16.msra.mxu0 %v6430
  %9842 = vmatpush.bf16.msra.mxu0 %v6410
  %9843 = vmatpush.bf16.msra.mxu0 %v6390
  %9844 = vmatpush.bf16.msra.mxu0 %v6370
  %9845 = vmatpush.bf16.msra.mxu0 %v6350
  %9846 = vmatmul.bf16.gmra.mxu0 %v1362
  %v9847 = vpop.f32.mrf.mxu0
  %v9848 = vadd.f32 %v9835, %v9847
  %v9849 = vpop.f32.mrf.mxu0
  %9850 = vdwg.mxu0
  %v9851 = vmax.f32 %v7872, 0.0
  %v9852 = vmax.f32 %v7976, 0.0
  %v9853 = vmax.f32 %v8080, 0.0
  %v9854 = vmax.f32 %v8184, 0.0
  %v9855 = vmax.f32 %v8288, 0.0
  %v9856 = vmax.f32 %v8392, 0.0
  %v9857 = vmax.f32 %v8496, 0.0
  %v9858 = vmax.f32 %v8600, 0.0
  %v9859 = vmax.f32 %v8704, 0.0
  %v9860 = vmax.f32 %v8808, 0.0
  %v9861 = vmax.f32 %v8912, 0.0
  %v9862 = vmax.f32 %v9016, 0.0
  %v9863 = vmax.f32 %v9120, 0.0
  %v9864 = vmax.f32 %v9224, 0.0
  %v9865 = vmax.f32 %v9328, 0.0
  %v9866 = vmax.f32 %v9432, 0.0
  %v9867 = vmax.f32 %v9536, 0.0
  %v9868 = vmax.f32 %v9640, 0.0
  %v9869 = vmax.f32 %v9744, 0.0
  %v9870 = vmax.f32 %v9848, 0.0
  %v9871 = vpack.c.bf16 %v9851, %v9851
  %v9872 = vpack.c.bf16 %v9852, %v9852
  %v9873 = vpack.c.bf16 %v9853, %v9853
  %v9874 = vpack.c.bf16 %v9854, %v9854
  %v9875 = vld [vmem:[%s3] sm:$0xf]
  %v9876 = vld [vmem:[%s3 + $0x4] sm:$0xf]
  %v9877 = vld [vmem:[%s3 + $0x8] sm:$0xf]
  %v9878 = vld [vmem:[%s3 + $0xc] sm:$0xf]
  %v9879 = vld [vmem:[%s3 + $0x10] sm:$0xf]
  %v9880 = vld [vmem:[%s3 + $0x14] sm:$0xf]
  %v9881 = vld [vmem:[%s3 + $0x18] sm:$0xf]
  %v9882 = vld [vmem:[%s3 + $0x1c] sm:$0xf]
  %v9883 = vld [vmem:[%s3 + $0x20] sm:$0xf]
  %v9884 = vld [vmem:[%s3 + $0x24] sm:$0xf]
  %v9885 = vld [vmem:[%s3 + $0x28] sm:$0xf]
  %v9886 = vld [vmem:[%s3 + $0x2c] sm:$0xf]
  %v9887 = vld [vmem:[%s3 + $0x30] sm:$0xf]
  %v9888 = vld [vmem:[%s3 + $0x34] sm:$0xf]
  %v9889 = vld [vmem:[%s3 + $0x38] sm:$0xf]
  %v9890 = vld [vmem:[%s3 + $0x3c] sm:$0xf]
  %v9891 = vld [vmem:[%s3 + $0x40] sm:$0xf]
  %v9892 = vld [vmem:[%s3 + $0x44] sm:$0xf]
  %v9893 = vld [vmem:[%s3 + $0x48] sm:$0xf]
  %v9894 = vld [vmem:[%s3 + $0x4c] sm:$0xf]
  %v9895 = vld [vmem:[%s3 + $0x50] sm:$0xf]
  %v9896 = vld [vmem:[%s3 + $0x54] sm:$0xf]
  %v9897 = vld [vmem:[%s3 + $0x58] sm:$0xf]
  %v9898 = vld [vmem:[%s3 + $0x5c] sm:$0xf]
  %v9899 = vld [vmem:[%s3 + $0x60] sm:$0xf]
  %v9900 = vld [vmem:[%s3 + $0x64] sm:$0xf]
  %v9901 = vld [vmem:[%s3 + $0x68] sm:$0xf]
  %v9902 = vld [vmem:[%s3 + $0x6c] sm:$0xf]
  %v9903 = vld [vmem:[%s3 + $0x70] sm:$0xf]
  %v9904 = vld [vmem:[%s3 + $0x74] sm:$0xf]
  %v9905 = vld [vmem:[%s3 + $0x78] sm:$0xf]
  %v9906 = vld [vmem:[%s3 + $0x7c] sm:$0xf]
  %v9907 = vld [vmem:[%s3 + $0x80] sm:$0xf]
  %v9908 = vld [vmem:[%s3 + $0x84] sm:$0xf]
  %v9909 = vld [vmem:[%s3 + $0x88] sm:$0xf]
  %v9910 = vld [vmem:[%s3 + $0x8c] sm:$0xf]
  %v9911 = vld [vmem:[%s3 + $0x90] sm:$0xf]
  %v9912 = vld [vmem:[%s3 + $0x94] sm:$0xf]
  %v9913 = vld [vmem:[%s3 + $0x98] sm:$0xf]
  %v9914 = vld [vmem:[%s3 + $0x9c] sm:$0xf]
  %v9915 = vld [vmem:[%s3 + $0xa0] sm:$0xf]
  %v9916 = vld [vmem:[%s3 + $0xa4] sm:$0xf]
  %v9917 = vld [vmem:[%s3 + $0xa8] sm:$0xf]
  %v9918 = vld [vmem:[%s3 + $0xac] sm:$0xf]
  %v9919 = vld [vmem:[%s3 + $0xb0] sm:$0xf]
  %v9920 = vld [vmem:[%s3 + $0xb4] sm:$0xf]
  %v9921 = vld [vmem:[%s3 + $0xb8] sm:$0xf]
  %v9922 = vld [vmem:[%s3 + $0xbc] sm:$0xf]
  %v9923 = vld [vmem:[%s3 + $0xc0] sm:$0xf]
  %v9924 = vld [vmem:[%s3 + $0xc4] sm:$0xf]
  %v9925 = vld [vmem:[%s3 + $0xc8] sm:$0xf]
  %v9926 = vld [vmem:[%s3 + $0xcc] sm:$0xf]
  %v9927 = vld [vmem:[%s3 + $0xd0] sm:$0xf]
  %v9928 = vld [vmem:[%s3 + $0xd4] sm:$0xf]
  %v9929 = vld [vmem:[%s3 + $0xd8] sm:$0xf]
  %v9930 = vld [vmem:[%s3 + $0xdc] sm:$0xf]
  %v9931 = vld [vmem:[%s3 + $0xe0] sm:$0xf]
  %v9932 = vld [vmem:[%s3 + $0xe4] sm:$0xf]
  %v9933 = vld [vmem:[%s3 + $0xe8] sm:$0xf]
  %v9934 = vld [vmem:[%s3 + $0xec] sm:$0xf]
  %v9935 = vld [vmem:[%s3 + $0xf0] sm:$0xf]
  %v9936 = vld [vmem:[%s3 + $0xf4] sm:$0xf]
  %v9937 = vld [vmem:[%s3 + $0xf8] sm:$0xf]
  %v9938 = vld [vmem:[%s3 + $0xfc] sm:$0xf]
  %v9939 = vld [vmem:[%s4] sm:$0x1]
  %v9941 = vperm.slane %v9939, 0
  %v10007 = vunpack.c.l.b16 %v9875
  %v10008 = vunpack.c.l.b16 %v9876
  %v10009 = vunpack.c.l.b16 %v9877
  %v10010 = vunpack.c.l.b16 %v9878
  %v10011 = vunpack.c.l.b16 %v9879
  %v10012 = vunpack.c.l.b16 %v9880
  %v10013 = vunpack.c.l.b16 %v9881
  %v10014 = vunpack.c.l.b16 %v9882
  %v10015 = vunpack.c.l.b16 %v9883
  %v10016 = vunpack.c.l.b16 %v9884
  %v10017 = vunpack.c.l.b16 %v9885
  %v10018 = vunpack.c.l.b16 %v9886
  %v10019 = vunpack.c.l.b16 %v9887
  %v10020 = vunpack.c.l.b16 %v9888
  %v10021 = vunpack.c.l.b16 %v9889
  %v10022 = vunpack.c.l.b16 %v9890
  %v10023 = vunpack.c.l.b16 %v9891
  %v10024 = vunpack.c.l.b16 %v9892
  %v10025 = vunpack.c.l.b16 %v9893
  %v10026 = vunpack.c.l.b16 %v9894
  %v10027 = vunpack.c.l.b16 %v9895
  %v10028 = vunpack.c.l.b16 %v9896
  %v10029 = vunpack.c.l.b16 %v9897
  %v10030 = vunpack.c.l.b16 %v9898
  %v10031 = vunpack.c.l.b16 %v9899
  %v10032 = vunpack.c.l.b16 %v9900
  %v10033 = vunpack.c.l.b16 %v9901
  %v10034 = vunpack.c.l.b16 %v9902
  %v10035 = vunpack.c.l.b16 %v9903
  %v10036 = vunpack.c.l.b16 %v9904
  %v10037 = vunpack.c.l.b16 %v9905
  %v10038 = vunpack.c.l.b16 %v9906
  %v10039 = vunpack.c.l.b16 %v9907
  %v10040 = vunpack.c.l.b16 %v9908
  %v10041 = vunpack.c.l.b16 %v9909
  %v10042 = vunpack.c.l.b16 %v9910
  %v10043 = vunpack.c.l.b16 %v9911
  %v10044 = vunpack.c.l.b16 %v9912
  %v10045 = vunpack.c.l.b16 %v9913
  %v10046 = vunpack.c.l.b16 %v9914
  %v10047 = vunpack.c.l.b16 %v9915
  %v10048 = vunpack.c.l.b16 %v9916
  %v10049 = vunpack.c.l.b16 %v9917
  %v10050 = vunpack.c.l.b16 %v9918
  %v10051 = vunpack.c.l.b16 %v9919
  %v10052 = vunpack.c.l.b16 %v9920
  %v10053 = vunpack.c.l.b16 %v9921
  %v10054 = vunpack.c.l.b16 %v9922
  %v10055 = vunpack.c.l.b16 %v9923
  %v10056 = vunpack.c.l.b16 %v9924
  %v10057 = vunpack.c.l.b16 %v9925
  %v10058 = vunpack.c.l.b16 %v9926
  %v10059 = vunpack.c.l.b16 %v9927
  %v10060 = vunpack.c.l.b16 %v9928
  %v10061 = vunpack.c.l.b16 %v9929
  %v10062 = vunpack.c.l.b16 %v9930
  %v10063 = vunpack.c.l.b16 %v9931
  %v10064 = vunpack.c.l.b16 %v9932
  %v10065 = vunpack.c.l.b16 %v9933
  %v10066 = vunpack.c.l.b16 %v9934
  %v10067 = vunpack.c.l.b16 %v9935
  %v10068 = vunpack.c.l.b16 %v9936
  %v10069 = vunpack.c.l.b16 %v9937
  %v10070 = vunpack.c.l.b16 %v9938
  %v10071 = vpack.c.b16 %v10008, %v10007
  %v10072 = vpack.c.b16 %v10010, %v10009
  %v10073 = vpack.c.b16 %v10012, %v10011
  %v10074 = vpack.c.b16 %v10014, %v10013
  %v10075 = vpack.c.b16 %v10016, %v10015
  %v10076 = vpack.c.b16 %v10018, %v10017
  %v10077 = vpack.c.b16 %v10020, %v10019
  %v10078 = vpack.c.b16 %v10022, %v10021
  %v10079 = vpack.c.b16 %v10024, %v10023
  %v10080 = vpack.c.b16 %v10026, %v10025
  %v10081 = vpack.c.b16 %v10028, %v10027
  %v10082 = vpack.c.b16 %v10030, %v10029
  %v10083 = vpack.c.b16 %v10032, %v10031
  %v10084 = vpack.c.b16 %v10034, %v10033
  %v10085 = vpack.c.b16 %v10036, %v10035
  %v10086 = vpack.c.b16 %v10038, %v10037
  %v10087 = vpack.c.b16 %v10040, %v10039
  %v10088 = vpack.c.b16 %v10042, %v10041
  %v10089 = vpack.c.b16 %v10044, %v10043
  %v10090 = vpack.c.b16 %v10046, %v10045
  %v10091 = vpack.c.b16 %v10048, %v10047
  %v10092 = vpack.c.b16 %v10050, %v10049
  %v10093 = vpack.c.b16 %v10052, %v10051
  %v10094 = vpack.c.b16 %v10054, %v10053
  %v10095 = vpack.c.b16 %v10056, %v10055
  %v10096 = vpack.c.b16 %v10058, %v10057
  %v10097 = vpack.c.b16 %v10060, %v10059
  %v10098 = vpack.c.b16 %v10062, %v10061
  %v10099 = vpack.c.b16 %v10064, %v10063
  %v10100 = vpack.c.b16 %v10066, %v10065
  %v10101 = vpack.c.b16 %v10068, %v10067
  %v10102 = vpack.c.b16 %v10070, %v10069
  %10135 = vmatpush.bf16.msra.mxu0 %v10078
  %10136 = vmatpush.bf16.msra.mxu0 %v10077
  %10137 = vmatpush.bf16.msra.mxu0 %v10076
  %10138 = vmatpush.bf16.msra.mxu0 %v10075
  %10139 = vmatpush.bf16.msra.mxu0 %v10074
  %10140 = vmatpush.bf16.msra.mxu0 %v10073
  %10141 = vmatpush.bf16.msra.mxu0 %v10072
  %10142 = vmatpush.bf16.msra.mxu0 %v10071
  %10143 = vmatmul.bf16.gmra.mxu0 %v9871
  %v10144 = vpop.f32.mrf.mxu0
  %v10145 = vadd.f32 %v9941, %v10144
  %v10146 = vpop.f32.mrf.mxu0
  %10147 = vdwg.mxu0
  %10148 = vmatpush.bf16.msra.mxu0 %v10086
  %10149 = vmatpush.bf16.msra.mxu0 %v10085
  %10150 = vmatpush.bf16.msra.mxu0 %v10084
  %10151 = vmatpush.bf16.msra.mxu0 %v10083
  %10152 = vmatpush.bf16.msra.mxu0 %v10082
  %10153 = vmatpush.bf16.msra.mxu0 %v10081
  %10154 = vmatpush.bf16.msra.mxu0 %v10080
  %10155 = vmatpush.bf16.msra.mxu0 %v10079
  %10156 = vmatmul.bf16.gmra.mxu0 %v9872
  %v10157 = vpop.f32.mrf.mxu0
  %v10158 = vadd.f32 %v10145, %v10157
  %v10159 = vpop.f32.mrf.mxu0
  %10160 = vdwg.mxu0
  %10161 = vmatpush.bf16.msra.mxu0 %v10094
  %10162 = vmatpush.bf16.msra.mxu0 %v10093
  %10163 = vmatpush.bf16.msra.mxu0 %v10092
  %10164 = vmatpush.bf16.msra.mxu0 %v10091
  %10165 = vmatpush.bf16.msra.mxu0 %v10090
  %10166 = vmatpush.bf16.msra.mxu0 %v10089
  %10167 = vmatpush.bf16.msra.mxu0 %v10088
  %10168 = vmatpush.bf16.msra.mxu0 %v10087
  %10169 = vmatmul.bf16.gmra.mxu0 %v9873
  %v10170 = vpop.f32.mrf.mxu0
  %v10171 = vadd.f32 %v10158, %v10170
  %v10172 = vpop.f32.mrf.mxu0
  %10173 = vdwg.mxu0
  %10174 = vmatpush.bf16.msra.mxu0 %v10102
  %10175 = vmatpush.bf16.msra.mxu0 %v10101
  %10176 = vmatpush.bf16.msra.mxu0 %v10100
  %10177 = vmatpush.bf16.msra.mxu0 %v10099
  %10178 = vmatpush.bf16.msra.mxu0 %v10098
  %10179 = vmatpush.bf16.msra.mxu0 %v10097
  %10180 = vmatpush.bf16.msra.mxu0 %v10096
  %10181 = vmatpush.bf16.msra.mxu0 %v10095
  %10182 = vmatmul.bf16.gmra.mxu0 %v9874
  %v10183 = vpop.f32.mrf.mxu0
  %v10184 = vadd.f32 %v10171, %v10183
  %v10185 = vpop.f32.mrf.mxu0
  %10186 = vdwg.mxu0
  %v10187 = vmax.f32 %v10184, 0.0
  %v10188 = vpack.c.bf16 %v10187, %v10187
  %v10189 = vld [vmem:[%s5] sm:$0xf]
  %v10190 = vld [vmem:[%s5 + $0x4] sm:$0xf]
  %v10191 = vld [vmem:[%s5 + $0x8] sm:$0xf]
  %v10192 = vld [vmem:[%s5 + $0xc] sm:$0xf]
  %v10193 = vld [vmem:[%s5 + $0x10] sm:$0xf]
  %v10194 = vld [vmem:[%s5 + $0x14] sm:$0xf]
  %v10195 = vld [vmem:[%s5 + $0x18] sm:$0xf]
  %v10196 = vld [vmem:[%s5 + $0x1c] sm:$0xf]
  %v10197 = vld [vmem:[%s5 + $0x20] sm:$0xf]
  %v10198 = vld [vmem:[%s5 + $0x24] sm:$0xf]
  %v10199 = vld [vmem:[%s5 + $0x28] sm:$0xf]
  %v10200 = vld [vmem:[%s5 + $0x2c] sm:$0xf]
  %v10201 = vld [vmem:[%s5 + $0x30] sm:$0xf]
  %v10202 = vld [vmem:[%s5 + $0x34] sm:$0xf]
  %v10203 = vld [vmem:[%s5 + $0x38] sm:$0xf]
  %v10204 = vld [vmem:[%s5 + $0x3c] sm:$0xf]
  %v10205 = vld [vmem:[%s6] sm:$0x1]
  %v10207 = vperm.slane %v10205, 0
  %v10225 = vunpack.c.l.b16 %v10189
  %v10226 = vunpack.c.l.b16 %v10190
  %v10227 = vunpack.c.l.b16 %v10191
  %v10228 = vunpack.c.l.b16 %v10192
  %v10229 = vunpack.c.l.b16 %v10193
  %v10230 = vunpack.c.l.b16 %v10194
  %v10231 = vunpack.c.l.b16 %v10195
  %v10232 = vunpack.c.l.b16 %v10196
  %v10233 = vunpack.c.l.b16 %v10197
  %v10234 = vunpack.c.l.b16 %v10198
  %v10235 = vunpack.c.l.b16 %v10199
  %v10236 = vunpack.c.l.b16 %v10200
  %v10237 = vunpack.c.l.b16 %v10201
  %v10238 = vunpack.c.l.b16 %v10202
  %v10239 = vunpack.c.l.b16 %v10203
  %v10240 = vunpack.c.l.b16 %v10204
  %v10241 = vpack.c.b16 %v10226, %v10225
  %v10242 = vpack.c.b16 %v10228, %v10227
  %v10243 = vpack.c.b16 %v10230, %v10229
  %v10244 = vpack.c.b16 %v10232, %v10231
  %v10245 = vpack.c.b16 %v10234, %v10233
  %v10246 = vpack.c.b16 %v10236, %v10235
  %v10247 = vpack.c.b16 %v10238, %v10237
  %v10248 = vpack.c.b16 %v10240, %v10239
  %10257 = vmatpush.bf16.msra.mxu0 %v10248
  %10258 = vmatpush.bf16.msra.mxu0 %v10247
  %10259 = vmatpush.bf16.msra.mxu0 %v10246
  %10260 = vmatpush.bf16.msra.mxu0 %v10245
  %10261 = vmatpush.bf16.msra.mxu0 %v10244
  %10262 = vmatpush.bf16.msra.mxu0 %v10243
  %10263 = vmatpush.bf16.msra.mxu0 %v10242
  %10264 = vmatpush.bf16.msra.mxu0 %v10241
  %10265 = vmatmul.bf16.gmra.mxu0 %v10188
  %v10266 = vpop.f32.mrf.mxu0
  %v10267 = vadd.f32 %v10207, %v10266
  %v10268 = vpop.f32.mrf.mxu0
  %10269 = vdwg.mxu0
  %vm10270 = vcmask 1041408
  %v10271 = vsel %vm10270, %v10267, -inf
  %10272 = vmax.xlane.f32.xlu0 %v10271
  %v10273 = vpop.xlane.xlu0 %10272
  %v10274 = vsub.f32 %v10267, %v10273
  %v10275 = vmul.f32 %v10274, 1.442695
  %v10276 = vpow.pop %v10275
  %v10277 = vsel %vm10270, %v10276, 0.0
  %10278 = vadd.xlane.f32.xlu0 %v10277
  %v10279 = vpop.xlane.xlu0 %10278
  %v10280 = vrcp.pop %v10279
  %v10281 = vmul.f32 %v10276, %v10280
  %10282 = vst [vmem:[%s7] sm:$0x3] %v10281
  %v10283 = vpack.c.bf16 %v9855, %v9855
  %v10284 = vpack.c.bf16 %v9856, %v9856
  %v10285 = vpack.c.bf16 %v9857, %v9857
  %v10286 = vpack.c.bf16 %v9858, %v9858
  %s10287 = scalar_lea.vmem %s3, 256
  %v10288 = vld [vmem:[%s10287] sm:$0xf]
  %v10289 = vld [vmem:[%s10287 + $0x4] sm:$0xf]
  %v10290 = vld [vmem:[%s10287 + $0x8] sm:$0xf]
  %v10291 = vld [vmem:[%s10287 + $0xc] sm:$0xf]
  %v10292 = vld [vmem:[%s10287 + $0x10] sm:$0xf]
  %v10293 = vld [vmem:[%s10287 + $0x14] sm:$0xf]
  %v10294 = vld [vmem:[%s10287 + $0x18] sm:$0xf]
  %v10295 = vld [vmem:[%s10287 + $0x1c] sm:$0xf]
  %v10296 = vld [vmem:[%s10287 + $0x20] sm:$0xf]
  %v10297 = vld [vmem:[%s10287 + $0x24] sm:$0xf]
  %v10298 = vld [vmem:[%s10287 + $0x28] sm:$0xf]
  %v10299 = vld [vmem:[%s10287 + $0x2c] sm:$0xf]
  %v10300 = vld [vmem:[%s10287 + $0x30] sm:$0xf]
  %v10301 = vld [vmem:[%s10287 + $0x34] sm:$0xf]
  %v10302 = vld [vmem:[%s10287 + $0x38] sm:$0xf]
  %v10303 = vld [vmem:[%s10287 + $0x3c] sm:$0xf]
  %v10304 = vld [vmem:[%s10287 + $0x40] sm:$0xf]
  %v10305 = vld [vmem:[%s10287 + $0x44] sm:$0xf]
  %v10306 = vld [vmem:[%s10287 + $0x48] sm:$0xf]
  %v10307 = vld [vmem:[%s10287 + $0x4c] sm:$0xf]
  %v10308 = vld [vmem:[%s10287 + $0x50] sm:$0xf]
  %v10309 = vld [vmem:[%s10287 + $0x54] sm:$0xf]
  %v10310 = vld [vmem:[%s10287 + $0x58] sm:$0xf]
  %v10311 = vld [vmem:[%s10287 + $0x5c] sm:$0xf]
  %v10312 = vld [vmem:[%s10287 + $0x60] sm:$0xf]
  %v10313 = vld [vmem:[%s10287 + $0x64] sm:$0xf]
  %v10314 = vld [vmem:[%s10287 + $0x68] sm:$0xf]
  %v10315 = vld [vmem:[%s10287 + $0x6c] sm:$0xf]
  %v10316 = vld [vmem:[%s10287 + $0x70] sm:$0xf]
  %v10317 = vld [vmem:[%s10287 + $0x74] sm:$0xf]
  %v10318 = vld [vmem:[%s10287 + $0x78] sm:$0xf]
  %v10319 = vld [vmem:[%s10287 + $0x7c] sm:$0xf]
  %v10320 = vld [vmem:[%s10287 + $0x80] sm:$0xf]
  %v10321 = vld [vmem:[%s10287 + $0x84] sm:$0xf]
  %v10322 = vld [vmem:[%s10287 + $0x88] sm:$0xf]
  %v10323 = vld [vmem:[%s10287 + $0x8c] sm:$0xf]
  %v10324 = vld [vmem:[%s10287 + $0x90] sm:$0xf]
  %v10325 = vld [vmem:[%s10287 + $0x94] sm:$0xf]
  %v10326 = vld [vmem:[%s10287 + $0x98] sm:$0xf]
  %v10327 = vld [vmem:[%s10287 + $0x9c] sm:$0xf]
  %v10328 = vld [vmem:[%s10287 + $0xa0] sm:$0xf]
  %v10329 = vld [vmem:[%s10287 + $0xa4] sm:$0xf]
  %v10330 = vld [vmem:[%s10287 + $0xa8] sm:$0xf]
  %v10331 = vld [vmem:[%s10287 + $0xac] sm:$0xf]
  %v10332 = vld [vmem:[%s10287 + $0xb0] sm:$0xf]
  %v10333 = vld [vmem:[%s10287 + $0xb4] sm:$0xf]
  %v10334 = vld [vmem:[%s10287 + $0xb8] sm:$0xf]
  %v10335 = vld [vmem:[%s10287 + $0xbc] sm:$0xf]
  %v10336 = vld [vmem:[%s10287 + $0xc0] sm:$0xf]
  %v10337 = vld [vmem:[%s10287 + $0xc4] sm:$0xf]
  %v10338 = vld [vmem:[%s10287 + $0xc8] sm:$0xf]
  %v10339 = vld [vmem:[%s10287 + $0xcc] sm:$0xf]
  %v10340 = vld [vmem:[%s10287 + $0xd0] sm:$0xf]
  %v10341 = vld [vmem:[%s10287 + $0xd4] sm:$0xf]
  %v10342 = vld [vmem:[%s10287 + $0xd8] sm:$0xf]
  %v10343 = vld [vmem:[%s10287 + $0xdc] sm:$0xf]
  %v10344 = vld [vmem:[%s10287 + $0xe0] sm:$0xf]
  %v10345 = vld [vmem:[%s10287 + $0xe4] sm:$0xf]
  %v10346 = vld [vmem:[%s10287 + $0xe8] sm:$0xf]
  %v10347 = vld [vmem:[%s10287 + $0xec] sm:$0xf]
  %v10348 = vld [vmem:[%s10287 + $0xf0] sm:$0xf]
  %v10349 = vld [vmem:[%s10287 + $0xf4] sm:$0xf]
  %v10350 = vld [vmem:[%s10287 + $0xf8] sm:$0xf]
  %v10351 = vld [vmem:[%s10287 + $0xfc] sm:$0xf]
  %s10352 = scalar_lea.vmem %s4, 1
  %v10353 = vld [vmem:[%s10352] sm:$0x1]
  %v10355 = vperm.slane %v10353, 0
  %v10421 = vunpack.c.l.b16 %v10288
  %v10422 = vunpack.c.l.b16 %v10289
  %v10423 = vunpack.c.l.b16 %v10290
  %v10424 = vunpack.c.l.b16 %v10291
  %v10425 = vunpack.c.l.b16 %v10292
  %v10426 = vunpack.c.l.b16 %v10293
  %v10427 = vunpack.c.l.b16 %v10294
  %v10428 = vunpack.c.l.b16 %v10295
  %v10429 = vunpack.c.l.b16 %v10296
  %v10430 = vunpack.c.l.b16 %v10297
  %v10431 = vunpack.c.l.b16 %v10298
  %v10432 = vunpack.c.l.b16 %v10299
  %v10433 = vunpack.c.l.b16 %v10300
  %v10434 = vunpack.c.l.b16 %v10301
  %v10435 = vunpack.c.l.b16 %v10302
  %v10436 = vunpack.c.l.b16 %v10303
  %v10437 = vunpack.c.l.b16 %v10304
  %v10438 = vunpack.c.l.b16 %v10305
  %v10439 = vunpack.c.l.b16 %v10306
  %v10440 = vunpack.c.l.b16 %v10307
  %v10441 = vunpack.c.l.b16 %v10308
  %v10442 = vunpack.c.l.b16 %v10309
  %v10443 = vunpack.c.l.b16 %v10310
  %v10444 = vunpack.c.l.b16 %v10311
  %v10445 = vunpack.c.l.b16 %v10312
  %v10446 = vunpack.c.l.b16 %v10313
  %v10447 = vunpack.c.l.b16 %v10314
  %v10448 = vunpack.c.l.b16 %v10315
  %v10449 = vunpack.c.l.b16 %v10316
  %v10450 = vunpack.c.l.b16 %v10317
  %v10451 = vunpack.c.l.b16 %v10318
  %v10452 = vunpack.c.l.b16 %v10319
  %v10453 = vunpack.c.l.b16 %v10320
  %v10454 = vunpack.c.l.b16 %v10321
  %v10455 = vunpack.c.l.b16 %v10322
  %v10456 = vunpack.c.l.b16 %v10323
  %v10457 = vunpack.c.l.b16 %v10324
  %v10458 = vunpack.c.l.b16 %v10325
  %v10459 = vunpack.c.l.b16 %v10326
  %v10460 = vunpack.c.l.b16 %v10327
  %v10461 = vunpack.c.l.b16 %v10328
  %v10462 = vunpack.c.l.b16 %v10329
  %v10463 = vunpack.c.l.b16 %v10330
  %v10464 = vunpack.c.l.b16 %v10331
  %v10465 = vunpack.c.l.b16 %v10332
  %v10466 = vunpack.c.l.b16 %v10333
  %v10467 = vunpack.c.l.b16 %v10334
  %v10468 = vunpack.c.l.b16 %v10335
  %v10469 = vunpack.c.l.b16 %v10336
  %v10470 = vunpack.c.l.b16 %v10337
  %v10471 = vunpack.c.l.b16 %v10338
  %v10472 = vunpack.c.l.b16 %v10339
  %v10473 = vunpack.c.l.b16 %v10340
  %v10474 = vunpack.c.l.b16 %v10341
  %v10475 = vunpack.c.l.b16 %v10342
  %v10476 = vunpack.c.l.b16 %v10343
  %v10477 = vunpack.c.l.b16 %v10344
  %v10478 = vunpack.c.l.b16 %v10345
  %v10479 = vunpack.c.l.b16 %v10346
  %v10480 = vunpack.c.l.b16 %v10347
  %v10481 = vunpack.c.l.b16 %v10348
  %v10482 = vunpack.c.l.b16 %v10349
  %v10483 = vunpack.c.l.b16 %v10350
  %v10484 = vunpack.c.l.b16 %v10351
  %v10485 = vpack.c.b16 %v10422, %v10421
  %v10486 = vpack.c.b16 %v10424, %v10423
  %v10487 = vpack.c.b16 %v10426, %v10425
  %v10488 = vpack.c.b16 %v10428, %v10427
  %v10489 = vpack.c.b16 %v10430, %v10429
  %v10490 = vpack.c.b16 %v10432, %v10431
  %v10491 = vpack.c.b16 %v10434, %v10433
  %v10492 = vpack.c.b16 %v10436, %v10435
  %v10493 = vpack.c.b16 %v10438, %v10437
  %v10494 = vpack.c.b16 %v10440, %v10439
  %v10495 = vpack.c.b16 %v10442, %v10441
  %v10496 = vpack.c.b16 %v10444, %v10443
  %v10497 = vpack.c.b16 %v10446, %v10445
  %v10498 = vpack.c.b16 %v10448, %v10447
  %v10499 = vpack.c.b16 %v10450, %v10449
  %v10500 = vpack.c.b16 %v10452, %v10451
  %v10501 = vpack.c.b16 %v10454, %v10453
  %v10502 = vpack.c.b16 %v10456, %v10455
  %v10503 = vpack.c.b16 %v10458, %v10457
  %v10504 = vpack.c.b16 %v10460, %v10459
  %v10505 = vpack.c.b16 %v10462, %v10461
  %v10506 = vpack.c.b16 %v10464, %v10463
  %v10507 = vpack.c.b16 %v10466, %v10465
  %v10508 = vpack.c.b16 %v10468, %v10467
  %v10509 = vpack.c.b16 %v10470, %v10469
  %v10510 = vpack.c.b16 %v10472, %v10471
  %v10511 = vpack.c.b16 %v10474, %v10473
  %v10512 = vpack.c.b16 %v10476, %v10475
  %v10513 = vpack.c.b16 %v10478, %v10477
  %v10514 = vpack.c.b16 %v10480, %v10479
  %v10515 = vpack.c.b16 %v10482, %v10481
  %v10516 = vpack.c.b16 %v10484, %v10483
  %10549 = vmatpush.bf16.msra.mxu0 %v10492
  %10550 = vmatpush.bf16.msra.mxu0 %v10491
  %10551 = vmatpush.bf16.msra.mxu0 %v10490
  %10552 = vmatpush.bf16.msra.mxu0 %v10489
  %10553 = vmatpush.bf16.msra.mxu0 %v10488
  %10554 = vmatpush.bf16.msra.mxu0 %v10487
  %10555 = vmatpush.bf16.msra.mxu0 %v10486
  %10556 = vmatpush.bf16.msra.mxu0 %v10485
  %10557 = vmatmul.bf16.gmra.mxu0 %v10283
  %v10558 = vpop.f32.mrf.mxu0
  %v10559 = vadd.f32 %v10355, %v10558
  %v10560 = vpop.f32.mrf.mxu0
  %10561 = vdwg.mxu0
  %10562 = vmatpush.bf16.msra.mxu0 %v10500
  %10563 = vmatpush.bf16.msra.mxu0 %v10499
  %10564 = vmatpush.bf16.msra.mxu0 %v10498
  %10565 = vmatpush.bf16.msra.mxu0 %v10497
  %10566 = vmatpush.bf16.msra.mxu0 %v10496
  %10567 = vmatpush.bf16.msra.mxu0 %v10495
  %10568 = vmatpush.bf16.msra.mxu0 %v10494
  %10569 = vmatpush.bf16.msra.mxu0 %v10493
  %10570 = vmatmul.bf16.gmra.mxu0 %v10284
  %v10571 = vpop.f32.mrf.mxu0
  %v10572 = vadd.f32 %v10559, %v10571
  %v10573 = vpop.f32.mrf.mxu0
  %10574 = vdwg.mxu0
  %10575 = vmatpush.bf16.msra.mxu0 %v10508
  %10576 = vmatpush.bf16.msra.mxu0 %v10507
  %10577 = vmatpush.bf16.msra.mxu0 %v10506
  %10578 = vmatpush.bf16.msra.mxu0 %v10505
  %10579 = vmatpush.bf16.msra.mxu0 %v10504
  %10580 = vmatpush.bf16.msra.mxu0 %v10503
  %10581 = vmatpush.bf16.msra.mxu0 %v10502
  %10582 = vmatpush.bf16.msra.mxu0 %v10501
  %10583 = vmatmul.bf16.gmra.mxu0 %v10285
  %v10584 = vpop.f32.mrf.mxu0
  %v10585 = vadd.f32 %v10572, %v10584
  %v10586 = vpop.f32.mrf.mxu0
  %10587 = vdwg.mxu0
  %10588 = vmatpush.bf16.msra.mxu0 %v10516
  %10589 = vmatpush.bf16.msra.mxu0 %v10515
  %10590 = vmatpush.bf16.msra.mxu0 %v10514
  %10591 = vmatpush.bf16.msra.mxu0 %v10513
  %10592 = vmatpush.bf16.msra.mxu0 %v10512
  %10593 = vmatpush.bf16.msra.mxu0 %v10511
  %10594 = vmatpush.bf16.msra.mxu0 %v10510
  %10595 = vmatpush.bf16.msra.mxu0 %v10509
  %10596 = vmatmul.bf16.gmra.mxu0 %v10286
  %v10597 = vpop.f32.mrf.mxu0
  %v10598 = vadd.f32 %v10585, %v10597
  %v10599 = vpop.f32.mrf.mxu0
  %10600 = vdwg.mxu0
  %v10601 = vmax.f32 %v10598, 0.0
  %v10602 = vpack.c.bf16 %v10601, %v10601
  %s10603 = scalar_lea.vmem %s5, 64
  %v10604 = vld [vmem:[%s10603] sm:$0xf]
  %v10605 = vld [vmem:[%s10603 + $0x4] sm:$0xf]
  %v10606 = vld [vmem:[%s10603 + $0x8] sm:$0xf]
  %v10607 = vld [vmem:[%s10603 + $0xc] sm:$0xf]
  %v10608 = vld [vmem:[%s10603 + $0x10] sm:$0xf]
  %v10609 = vld [vmem:[%s10603 + $0x14] sm:$0xf]
  %v10610 = vld [vmem:[%s10603 + $0x18] sm:$0xf]
  %v10611 = vld [vmem:[%s10603 + $0x1c] sm:$0xf]
  %v10612 = vld [vmem:[%s10603 + $0x20] sm:$0xf]
  %v10613 = vld [vmem:[%s10603 + $0x24] sm:$0xf]
  %v10614 = vld [vmem:[%s10603 + $0x28] sm:$0xf]
  %v10615 = vld [vmem:[%s10603 + $0x2c] sm:$0xf]
  %v10616 = vld [vmem:[%s10603 + $0x30] sm:$0xf]
  %v10617 = vld [vmem:[%s10603 + $0x34] sm:$0xf]
  %v10618 = vld [vmem:[%s10603 + $0x38] sm:$0xf]
  %v10619 = vld [vmem:[%s10603 + $0x3c] sm:$0xf]
  %s10620 = scalar_lea.vmem %s6, 1
  %v10621 = vld [vmem:[%s10620] sm:$0x1]
  %v10623 = vperm.slane %v10621, 0
  %v10641 = vunpack.c.l.b16 %v10604
  %v10642 = vunpack.c.l.b16 %v10605
  %v10643 = vunpack.c.l.b16 %v10606
  %v10644 = vunpack.c.l.b16 %v10607
  %v10645 = vunpack.c.l.b16 %v10608
  %v10646 = vunpack.c.l.b16 %v10609
  %v10647 = vunpack.c.l.b16 %v10610
  %v10648 = vunpack.c.l.b16 %v10611
  %v10649 = vunpack.c.l.b16 %v10612
  %v10650 = vunpack.c.l.b16 %v10613
  %v10651 = vunpack.c.l.b16 %v10614
  %v10652 = vunpack.c.l.b16 %v10615
  %v10653 = vunpack.c.l.b16 %v10616
  %v10654 = vunpack.c.l.b16 %v10617
  %v10655 = vunpack.c.l.b16 %v10618
  %v10656 = vunpack.c.l.b16 %v10619
  %v10657 = vpack.c.b16 %v10642, %v10641
  %v10658 = vpack.c.b16 %v10644, %v10643
  %v10659 = vpack.c.b16 %v10646, %v10645
  %v10660 = vpack.c.b16 %v10648, %v10647
  %v10661 = vpack.c.b16 %v10650, %v10649
  %v10662 = vpack.c.b16 %v10652, %v10651
  %v10663 = vpack.c.b16 %v10654, %v10653
  %v10664 = vpack.c.b16 %v10656, %v10655
  %10673 = vmatpush.bf16.msra.mxu0 %v10664
  %10674 = vmatpush.bf16.msra.mxu0 %v10663
  %10675 = vmatpush.bf16.msra.mxu0 %v10662
  %10676 = vmatpush.bf16.msra.mxu0 %v10661
  %10677 = vmatpush.bf16.msra.mxu0 %v10660
  %10678 = vmatpush.bf16.msra.mxu0 %v10659
  %10679 = vmatpush.bf16.msra.mxu0 %v10658
  %10680 = vmatpush.bf16.msra.mxu0 %v10657
  %10681 = vmatmul.bf16.gmra.mxu0 %v10602
  %v10682 = vpop.f32.mrf.mxu0
  %v10683 = vadd.f32 %v10623, %v10682
  %v10684 = vpop.f32.mrf.mxu0
  %10685 = vdwg.mxu0
  %v10686 = vsel %vm10270, %v10683, -inf
  %10687 = vmax.xlane.f32.xlu0 %v10686
  %v10688 = vpop.xlane.xlu0 %10687
  %v10689 = vsub.f32 %v10683, %v10688
  %v10690 = vmul.f32 %v10689, 1.442695
  %v10691 = vpow.pop %v10690
  %v10692 = vsel %vm10270, %v10691, 0.0
  %10693 = vadd.xlane.f32.xlu0 %v10692
  %v10694 = vpop.xlane.xlu0 %10693
  %v10695 = vrcp.pop %v10694
  %v10696 = vmul.f32 %v10691, %v10695
  %10697 = vst [vmem:[%s7 + $0x2] sm:$0x3] %v10696
  %v10698 = vpack.c.bf16 %v9859, %v9859
  %v10699 = vpack.c.bf16 %v9860, %v9860
  %v10700 = vpack.c.bf16 %v9861, %v9861
  %v10701 = vpack.c.bf16 %v9862, %v9862
  %s10702 = scalar_lea.vmem %s3, 512
  %v10703 = vld [vmem:[%s10702] sm:$0xf]
  %v10704 = vld [vmem:[%s10702 + $0x4] sm:$0xf]
  %v10705 = vld [vmem:[%s10702 + $0x8] sm:$0xf]
  %v10706 = vld [vmem:[%s10702 + $0xc] sm:$0xf]
  %v10707 = vld [vmem:[%s10702 + $0x10] sm:$0xf]
  %v10708 = vld [vmem:[%s10702 + $0x14] sm:$0xf]
  %v10709 = vld [vmem:[%s10702 + $0x18] sm:$0xf]
  %v10710 = vld [vmem:[%s10702 + $0x1c] sm:$0xf]
  %v10711 = vld [vmem:[%s10702 + $0x20] sm:$0xf]
  %v10712 = vld [vmem:[%s10702 + $0x24] sm:$0xf]
  %v10713 = vld [vmem:[%s10702 + $0x28] sm:$0xf]
  %v10714 = vld [vmem:[%s10702 + $0x2c] sm:$0xf]
  %v10715 = vld [vmem:[%s10702 + $0x30] sm:$0xf]
  %v10716 = vld [vmem:[%s10702 + $0x34] sm:$0xf]
  %v10717 = vld [vmem:[%s10702 + $0x38] sm:$0xf]
  %v10718 = vld [vmem:[%s10702 + $0x3c] sm:$0xf]
  %v10719 = vld [vmem:[%s10702 + $0x40] sm:$0xf]
  %v10720 = vld [vmem:[%s10702 + $0x44] sm:$0xf]
  %v10721 = vld [vmem:[%s10702 + $0x48] sm:$0xf]
  %v10722 = vld [vmem:[%s10702 + $0x4c] sm:$0xf]
  %v10723 = vld [vmem:[%s10702 + $0x50] sm:$0xf]
  %v10724 = vld [vmem:[%s10702 + $0x54] sm:$0xf]
  %v10725 = vld [vmem:[%s10702 + $0x58] sm:$0xf]
  %v10726 = vld [vmem:[%s10702 + $0x5c] sm:$0xf]
  %v10727 = vld [vmem:[%s10702 + $0x60] sm:$0xf]
  %v10728 = vld [vmem:[%s10702 + $0x64] sm:$0xf]
  %v10729 = vld [vmem:[%s10702 + $0x68] sm:$0xf]
  %v10730 = vld [vmem:[%s10702 + $0x6c] sm:$0xf]
  %v10731 = vld [vmem:[%s10702 + $0x70] sm:$0xf]
  %v10732 = vld [vmem:[%s10702 + $0x74] sm:$0xf]
  %v10733 = vld [vmem:[%s10702 + $0x78] sm:$0xf]
  %v10734 = vld [vmem:[%s10702 + $0x7c] sm:$0xf]
  %v10735 = vld [vmem:[%s10702 + $0x80] sm:$0xf]
  %v10736 = vld [vmem:[%s10702 + $0x84] sm:$0xf]
  %v10737 = vld [vmem:[%s10702 + $0x88] sm:$0xf]
  %v10738 = vld [vmem:[%s10702 + $0x8c] sm:$0xf]
  %v10739 = vld [vmem:[%s10702 + $0x90] sm:$0xf]
  %v10740 = vld [vmem:[%s10702 + $0x94] sm:$0xf]
  %v10741 = vld [vmem:[%s10702 + $0x98] sm:$0xf]
  %v10742 = vld [vmem:[%s10702 + $0x9c] sm:$0xf]
  %v10743 = vld [vmem:[%s10702 + $0xa0] sm:$0xf]
  %v10744 = vld [vmem:[%s10702 + $0xa4] sm:$0xf]
  %v10745 = vld [vmem:[%s10702 + $0xa8] sm:$0xf]
  %v10746 = vld [vmem:[%s10702 + $0xac] sm:$0xf]
  %v10747 = vld [vmem:[%s10702 + $0xb0] sm:$0xf]
  %v10748 = vld [vmem:[%s10702 + $0xb4] sm:$0xf]
  %v10749 = vld [vmem:[%s10702 + $0xb8] sm:$0xf]
  %v10750 = vld [vmem:[%s10702 + $0xbc] sm:$0xf]
  %v10751 = vld [vmem:[%s10702 + $0xc0] sm:$0xf]
  %v10752 = vld [vmem:[%s10702 + $0xc4] sm:$0xf]
  %v10753 = vld [vmem:[%s10702 + $0xc8] sm:$0xf]
  %v10754 = vld [vmem:[%s10702 + $0xcc] sm:$0xf]
  %v10755 = vld [vmem:[%s10702 + $0xd0] sm:$0xf]
  %v10756 = vld [vmem:[%s10702 + $0xd4] sm:$0xf]
  %v10757 = vld [vmem:[%s10702 + $0xd8] sm:$0xf]
  %v10758 = vld [vmem:[%s10702 + $0xdc] sm:$0xf]
  %v10759 = vld [vmem:[%s10702 + $0xe0] sm:$0xf]
  %v10760 = vld [vmem:[%s10702 + $0xe4] sm:$0xf]
  %v10761 = vld [vmem:[%s10702 + $0xe8] sm:$0xf]
  %v10762 = vld [vmem:[%s10702 + $0xec] sm:$0xf]
  %v10763 = vld [vmem:[%s10702 + $0xf0] sm:$0xf]
  %v10764 = vld [vmem:[%s10702 + $0xf4] sm:$0xf]
  %v10765 = vld [vmem:[%s10702 + $0xf8] sm:$0xf]
  %v10766 = vld [vmem:[%s10702 + $0xfc] sm:$0xf]
  %s10767 = scalar_lea.vmem %s4, 2
  %v10768 = vld [vmem:[%s10767] sm:$0x1]
  %v10770 = vperm.slane %v10768, 0
  %v10836 = vunpack.c.l.b16 %v10703
  %v10837 = vunpack.c.l.b16 %v10704
  %v10838 = vunpack.c.l.b16 %v10705
  %v10839 = vunpack.c.l.b16 %v10706
  %v10840 = vunpack.c.l.b16 %v10707
  %v10841 = vunpack.c.l.b16 %v10708
  %v10842 = vunpack.c.l.b16 %v10709
  %v10843 = vunpack.c.l.b16 %v10710
  %v10844 = vunpack.c.l.b16 %v10711
  %v10845 = vunpack.c.l.b16 %v10712
  %v10846 = vunpack.c.l.b16 %v10713
  %v10847 = vunpack.c.l.b16 %v10714
  %v10848 = vunpack.c.l.b16 %v10715
  %v10849 = vunpack.c.l.b16 %v10716
  %v10850 = vunpack.c.l.b16 %v10717
  %v10851 = vunpack.c.l.b16 %v10718
  %v10852 = vunpack.c.l.b16 %v10719
  %v10853 = vunpack.c.l.b16 %v10720
  %v10854 = vunpack.c.l.b16 %v10721
  %v10855 = vunpack.c.l.b16 %v10722
  %v10856 = vunpack.c.l.b16 %v10723
  %v10857 = vunpack.c.l.b16 %v10724
  %v10858 = vunpack.c.l.b16 %v10725
  %v10859 = vunpack.c.l.b16 %v10726
  %v10860 = vunpack.c.l.b16 %v10727
  %v10861 = vunpack.c.l.b16 %v10728
  %v10862 = vunpack.c.l.b16 %v10729
  %v10863 = vunpack.c.l.b16 %v10730
  %v10864 = vunpack.c.l.b16 %v10731
  %v10865 = vunpack.c.l.b16 %v10732
  %v10866 = vunpack.c.l.b16 %v10733
  %v10867 = vunpack.c.l.b16 %v10734
  %v10868 = vunpack.c.l.b16 %v10735
  %v10869 = vunpack.c.l.b16 %v10736
  %v10870 = vunpack.c.l.b16 %v10737
  %v10871 = vunpack.c.l.b16 %v10738
  %v10872 = vunpack.c.l.b16 %v10739
  %v10873 = vunpack.c.l.b16 %v10740
  %v10874 = vunpack.c.l.b16 %v10741
  %v10875 = vunpack.c.l.b16 %v10742
  %v10876 = vunpack.c.l.b16 %v10743
  %v10877 = vunpack.c.l.b16 %v10744
  %v10878 = vunpack.c.l.b16 %v10745
  %v10879 = vunpack.c.l.b16 %v10746
  %v10880 = vunpack.c.l.b16 %v10747
  %v10881 = vunpack.c.l.b16 %v10748
  %v10882 = vunpack.c.l.b16 %v10749
  %v10883 = vunpack.c.l.b16 %v10750
  %v10884 = vunpack.c.l.b16 %v10751
  %v10885 = vunpack.c.l.b16 %v10752
  %v10886 = vunpack.c.l.b16 %v10753
  %v10887 = vunpack.c.l.b16 %v10754
  %v10888 = vunpack.c.l.b16 %v10755
  %v10889 = vunpack.c.l.b16 %v10756
  %v10890 = vunpack.c.l.b16 %v10757
  %v10891 = vunpack.c.l.b16 %v10758
  %v10892 = vunpack.c.l.b16 %v10759
  %v10893 = vunpack.c.l.b16 %v10760
  %v10894 = vunpack.c.l.b16 %v10761
  %v10895 = vunpack.c.l.b16 %v10762
  %v10896 = vunpack.c.l.b16 %v10763
  %v10897 = vunpack.c.l.b16 %v10764
  %v10898 = vunpack.c.l.b16 %v10765
  %v10899 = vunpack.c.l.b16 %v10766
  %v10900 = vpack.c.b16 %v10837, %v10836
  %v10901 = vpack.c.b16 %v10839, %v10838
  %v10902 = vpack.c.b16 %v10841, %v10840
  %v10903 = vpack.c.b16 %v10843, %v10842
  %v10904 = vpack.c.b16 %v10845, %v10844
  %v10905 = vpack.c.b16 %v10847, %v10846
  %v10906 = vpack.c.b16 %v10849, %v10848
  %v10907 = vpack.c.b16 %v10851, %v10850
  %v10908 = vpack.c.b16 %v10853, %v10852
  %v10909 = vpack.c.b16 %v10855, %v10854
  %v10910 = vpack.c.b16 %v10857, %v10856
  %v10911 = vpack.c.b16 %v10859, %v10858
  %v10912 = vpack.c.b16 %v10861, %v10860
  %v10913 = vpack.c.b16 %v10863, %v10862
  %v10914 = vpack.c.b16 %v10865, %v10864
  %v10915 = vpack.c.b16 %v10867, %v10866
  %v10916 = vpack.c.b16 %v10869, %v10868
  %v10917 = vpack.c.b16 %v10871, %v10870
  %v10918 = vpack.c.b16 %v10873, %v10872
  %v10919 = vpack.c.b16 %v10875, %v10874
  %v10920 = vpack.c.b16 %v10877, %v10876
  %v10921 = vpack.c.b16 %v10879, %v10878
  %v10922 = vpack.c.b16 %v10881, %v10880
  %v10923 = vpack.c.b16 %v10883, %v10882
  %v10924 = vpack.c.b16 %v10885, %v10884
  %v10925 = vpack.c.b16 %v10887, %v10886
  %v10926 = vpack.c.b16 %v10889, %v10888
  %v10927 = vpack.c.b16 %v10891, %v10890
  %v10928 = vpack.c.b16 %v10893, %v10892
  %v10929 = vpack.c.b16 %v10895, %v10894
  %v10930 = vpack.c.b16 %v10897, %v10896
  %v10931 = vpack.c.b16 %v10899, %v10898
  %10964 = vmatpush.bf16.msra.mxu0 %v10907
  %10965 = vmatpush.bf16.msra.mxu0 %v10906
  %10966 = vmatpush.bf16.msra.mxu0 %v10905
  %10967 = vmatpush.bf16.msra.mxu0 %v10904
  %10968 = vmatpush.bf16.msra.mxu0 %v10903
  %10969 = vmatpush.bf16.msra.mxu0 %v10902
  %10970 = vmatpush.bf16.msra.mxu0 %v10901
  %10971 = vmatpush.bf16.msra.mxu0 %v10900
  %10972 = vmatmul.bf16.gmra.mxu0 %v10698
  %v10973 = vpop.f32.mrf.mxu0
  %v10974 = vadd.f32 %v10770, %v10973
  %v10975 = vpop.f32.mrf.mxu0
  %10976 = vdwg.mxu0
  %10977 = vmatpush.bf16.msra.mxu0 %v10915
  %10978 = vmatpush.bf16.msra.mxu0 %v10914
  %10979 = vmatpush.bf16.msra.mxu0 %v10913
  %10980 = vmatpush.bf16.msra.mxu0 %v10912
  %10981 = vmatpush.bf16.msra.mxu0 %v10911
  %10982 = vmatpush.bf16.msra.mxu0 %v10910
  %10983 = vmatpush.bf16.msra.mxu0 %v10909
  %10984 = vmatpush.bf16.msra.mxu0 %v10908
  %10985 = vmatmul.bf16.gmra.mxu0 %v10699
  %v10986 = vpop.f32.mrf.mxu0
  %v10987 = vadd.f32 %v10974, %v10986
  %v10988 = vpop.f32.mrf.mxu0
  %10989 = vdwg.mxu0
  %10990 = vmatpush.bf16.msra.mxu0 %v10923
  %10991 = vmatpush.bf16.msra.mxu0 %v10922
  %10992 = vmatpush.bf16.msra.mxu0 %v10921
  %10993 = vmatpush.bf16.msra.mxu0 %v10920
  %10994 = vmatpush.bf16.msra.mxu0 %v10919
  %10995 = vmatpush.bf16.msra.mxu0 %v10918
  %10996 = vmatpush.bf16.msra.mxu0 %v10917
  %10997 = vmatpush.bf16.msra.mxu0 %v10916
  %10998 = vmatmul.bf16.gmra.mxu0 %v10700
  %v10999 = vpop.f32.mrf.mxu0
  %v11000 = vadd.f32 %v10987, %v10999
  %v11001 = vpop.f32.mrf.mxu0
  %11002 = vdwg.mxu0
  %11003 = vmatpush.bf16.msra.mxu0 %v10931
  %11004 = vmatpush.bf16.msra.mxu0 %v10930
  %11005 = vmatpush.bf16.msra.mxu0 %v10929
  %11006 = vmatpush.bf16.msra.mxu0 %v10928
  %11007 = vmatpush.bf16.msra.mxu0 %v10927
  %11008 = vmatpush.bf16.msra.mxu0 %v10926
  %11009 = vmatpush.bf16.msra.mxu0 %v10925
  %11010 = vmatpush.bf16.msra.mxu0 %v10924
  %11011 = vmatmul.bf16.gmra.mxu0 %v10701
  %v11012 = vpop.f32.mrf.mxu0
  %v11013 = vadd.f32 %v11000, %v11012
  %v11014 = vpop.f32.mrf.mxu0
  %11015 = vdwg.mxu0
  %v11016 = vmax.f32 %v11013, 0.0
  %v11017 = vpack.c.bf16 %v11016, %v11016
  %s11018 = scalar_lea.vmem %s5, 128
  %v11019 = vld [vmem:[%s11018] sm:$0xf]
  %v11020 = vld [vmem:[%s11018 + $0x4] sm:$0xf]
  %v11021 = vld [vmem:[%s11018 + $0x8] sm:$0xf]
  %v11022 = vld [vmem:[%s11018 + $0xc] sm:$0xf]
  %v11023 = vld [vmem:[%s11018 + $0x10] sm:$0xf]
  %v11024 = vld [vmem:[%s11018 + $0x14] sm:$0xf]
  %v11025 = vld [vmem:[%s11018 + $0x18] sm:$0xf]
  %v11026 = vld [vmem:[%s11018 + $0x1c] sm:$0xf]
  %v11027 = vld [vmem:[%s11018 + $0x20] sm:$0xf]
  %v11028 = vld [vmem:[%s11018 + $0x24] sm:$0xf]
  %v11029 = vld [vmem:[%s11018 + $0x28] sm:$0xf]
  %v11030 = vld [vmem:[%s11018 + $0x2c] sm:$0xf]
  %v11031 = vld [vmem:[%s11018 + $0x30] sm:$0xf]
  %v11032 = vld [vmem:[%s11018 + $0x34] sm:$0xf]
  %v11033 = vld [vmem:[%s11018 + $0x38] sm:$0xf]
  %v11034 = vld [vmem:[%s11018 + $0x3c] sm:$0xf]
  %s11035 = scalar_lea.vmem %s6, 2
  %v11036 = vld [vmem:[%s11035] sm:$0x1]
  %v11038 = vperm.slane %v11036, 0
  %v11056 = vunpack.c.l.b16 %v11019
  %v11057 = vunpack.c.l.b16 %v11020
  %v11058 = vunpack.c.l.b16 %v11021
  %v11059 = vunpack.c.l.b16 %v11022
  %v11060 = vunpack.c.l.b16 %v11023
  %v11061 = vunpack.c.l.b16 %v11024
  %v11062 = vunpack.c.l.b16 %v11025
  %v11063 = vunpack.c.l.b16 %v11026
  %v11064 = vunpack.c.l.b16 %v11027
  %v11065 = vunpack.c.l.b16 %v11028
  %v11066 = vunpack.c.l.b16 %v11029
  %v11067 = vunpack.c.l.b16 %v11030
  %v11068 = vunpack.c.l.b16 %v11031
  %v11069 = vunpack.c.l.b16 %v11032
  %v11070 = vunpack.c.l.b16 %v11033
  %v11071 = vunpack.c.l.b16 %v11034
  %v11072 = vpack.c.b16 %v11057, %v11056
  %v11073 = vpack.c.b16 %v11059, %v11058
  %v11074 = vpack.c.b16 %v11061, %v11060
  %v11075 = vpack.c.b16 %v11063, %v11062
  %v11076 = vpack.c.b16 %v11065, %v11064
  %v11077 = vpack.c.b16 %v11067, %v11066
  %v11078 = vpack.c.b16 %v11069, %v11068
  %v11079 = vpack.c.b16 %v11071, %v11070
  %11088 = vmatpush.bf16.msra.mxu0 %v11079
  %11089 = vmatpush.bf16.msra.mxu0 %v11078
  %11090 = vmatpush.bf16.msra.mxu0 %v11077
  %11091 = vmatpush.bf16.msra.mxu0 %v11076
  %11092 = vmatpush.bf16.msra.mxu0 %v11075
  %11093 = vmatpush.bf16.msra.mxu0 %v11074
  %11094 = vmatpush.bf16.msra.mxu0 %v11073
  %11095 = vmatpush.bf16.msra.mxu0 %v11072
  %11096 = vmatmul.bf16.gmra.mxu0 %v11017
  %v11097 = vpop.f32.mrf.mxu0
  %v11098 = vadd.f32 %v11038, %v11097
  %v11099 = vpop.f32.mrf.mxu0
  %11100 = vdwg.mxu0
  %v11101 = vsel %vm10270, %v11098, -inf
  %11102 = vmax.xlane.f32.xlu0 %v11101
  %v11103 = vpop.xlane.xlu0 %11102
  %v11104 = vsub.f32 %v11098, %v11103
  %v11105 = vmul.f32 %v11104, 1.442695
  %v11106 = vpow.pop %v11105
  %v11107 = vsel %vm10270, %v11106, 0.0
  %11108 = vadd.xlane.f32.xlu0 %v11107
  %v11109 = vpop.xlane.xlu0 %11108
  %v11110 = vrcp.pop %v11109
  %v11111 = vmul.f32 %v11106, %v11110
  %11112 = vst [vmem:[%s7 + $0x4] sm:$0x3] %v11111
  %v11113 = vpack.c.bf16 %v9863, %v9863
  %v11114 = vpack.c.bf16 %v9864, %v9864
  %v11115 = vpack.c.bf16 %v9865, %v9865
  %v11116 = vpack.c.bf16 %v9866, %v9866
  %s11117 = scalar_lea.vmem %s3, 768
  %v11118 = vld [vmem:[%s11117] sm:$0xf]
  %v11119 = vld [vmem:[%s11117 + $0x4] sm:$0xf]
  %v11120 = vld [vmem:[%s11117 + $0x8] sm:$0xf]
  %v11121 = vld [vmem:[%s11117 + $0xc] sm:$0xf]
  %v11122 = vld [vmem:[%s11117 + $0x10] sm:$0xf]
  %v11123 = vld [vmem:[%s11117 + $0x14] sm:$0xf]
  %v11124 = vld [vmem:[%s11117 + $0x18] sm:$0xf]
  %v11125 = vld [vmem:[%s11117 + $0x1c] sm:$0xf]
  %v11126 = vld [vmem:[%s11117 + $0x20] sm:$0xf]
  %v11127 = vld [vmem:[%s11117 + $0x24] sm:$0xf]
  %v11128 = vld [vmem:[%s11117 + $0x28] sm:$0xf]
  %v11129 = vld [vmem:[%s11117 + $0x2c] sm:$0xf]
  %v11130 = vld [vmem:[%s11117 + $0x30] sm:$0xf]
  %v11131 = vld [vmem:[%s11117 + $0x34] sm:$0xf]
  %v11132 = vld [vmem:[%s11117 + $0x38] sm:$0xf]
  %v11133 = vld [vmem:[%s11117 + $0x3c] sm:$0xf]
  %v11134 = vld [vmem:[%s11117 + $0x40] sm:$0xf]
  %v11135 = vld [vmem:[%s11117 + $0x44] sm:$0xf]
  %v11136 = vld [vmem:[%s11117 + $0x48] sm:$0xf]
  %v11137 = vld [vmem:[%s11117 + $0x4c] sm:$0xf]
  %v11138 = vld [vmem:[%s11117 + $0x50] sm:$0xf]
  %v11139 = vld [vmem:[%s11117 + $0x54] sm:$0xf]
  %v11140 = vld [vmem:[%s11117 + $0x58] sm:$0xf]
  %v11141 = vld [vmem:[%s11117 + $0x5c] sm:$0xf]
  %v11142 = vld [vmem:[%s11117 + $0x60] sm:$0xf]
  %v11143 = vld [vmem:[%s11117 + $0x64] sm:$0xf]
  %v11144 = vld [vmem:[%s11117 + $0x68] sm:$0xf]
  %v11145 = vld [vmem:[%s11117 + $0x6c] sm:$0xf]
  %v11146 = vld [vmem:[%s11117 + $0x70] sm:$0xf]
  %v11147 = vld [vmem:[%s11117 + $0x74] sm:$0xf]
  %v11148 = vld [vmem:[%s11117 + $0x78] sm:$0xf]
  %v11149 = vld [vmem:[%s11117 + $0x7c] sm:$0xf]
  %v11150 = vld [vmem:[%s11117 + $0x80] sm:$0xf]
  %v11151 = vld [vmem:[%s11117 + $0x84] sm:$0xf]
  %v11152 = vld [vmem:[%s11117 + $0x88] sm:$0xf]
  %v11153 = vld [vmem:[%s11117 + $0x8c] sm:$0xf]
  %v11154 = vld [vmem:[%s11117 + $0x90] sm:$0xf]
  %v11155 = vld [vmem:[%s11117 + $0x94] sm:$0xf]
  %v11156 = vld [vmem:[%s11117 + $0x98] sm:$0xf]
  %v11157 = vld [vmem:[%s11117 + $0x9c] sm:$0xf]
  %v11158 = vld [vmem:[%s11117 + $0xa0] sm:$0xf]
  %v11159 = vld [vmem:[%s11117 + $0xa4] sm:$0xf]
  %v11160 = vld [vmem:[%s11117 + $0xa8] sm:$0xf]
  %v11161 = vld [vmem:[%s11117 + $0xac] sm:$0xf]
  %v11162 = vld [vmem:[%s11117 + $0xb0] sm:$0xf]
  %v11163 = vld [vmem:[%s11117 + $0xb4] sm:$0xf]
  %v11164 = vld [vmem:[%s11117 + $0xb8] sm:$0xf]
  %v11165 = vld [vmem:[%s11117 + $0xbc] sm:$0xf]
  %v11166 = vld [vmem:[%s11117 + $0xc0] sm:$0xf]
  %v11167 = vld [vmem:[%s11117 + $0xc4] sm:$0xf]
  %v11168 = vld [vmem:[%s11117 + $0xc8] sm:$0xf]
  %v11169 = vld [vmem:[%s11117 + $0xcc] sm:$0xf]
  %v11170 = vld [vmem:[%s11117 + $0xd0] sm:$0xf]
  %v11171 = vld [vmem:[%s11117 + $0xd4] sm:$0xf]
  %v11172 = vld [vmem:[%s11117 + $0xd8] sm:$0xf]
  %v11173 = vld [vmem:[%s11117 + $0xdc] sm:$0xf]
  %v11174 = vld [vmem:[%s11117 + $0xe0] sm:$0xf]
  %v11175 = vld [vmem:[%s11117 + $0xe4] sm:$0xf]
  %v11176 = vld [vmem:[%s11117 + $0xe8] sm:$0xf]
  %v11177 = vld [vmem:[%s11117 + $0xec] sm:$0xf]
  %v11178 = vld [vmem:[%s11117 + $0xf0] sm:$0xf]
  %v11179 = vld [vmem:[%s11117 + $0xf4] sm:$0xf]
  %v11180 = vld [vmem:[%s11117 + $0xf8] sm:$0xf]
  %v11181 = vld [vmem:[%s11117 + $0xfc] sm:$0xf]
  %s11182 = scalar_lea.vmem %s4, 3
  %v11183 = vld [vmem:[%s11182] sm:$0x1]
  %v11185 = vperm.slane %v11183, 0
  %v11251 = vunpack.c.l.b16 %v11118
  %v11252 = vunpack.c.l.b16 %v11119
  %v11253 = vunpack.c.l.b16 %v11120
  %v11254 = vunpack.c.l.b16 %v11121
  %v11255 = vunpack.c.l.b16 %v11122
  %v11256 = vunpack.c.l.b16 %v11123
  %v11257 = vunpack.c.l.b16 %v11124
  %v11258 = vunpack.c.l.b16 %v11125
  %v11259 = vunpack.c.l.b16 %v11126
  %v11260 = vunpack.c.l.b16 %v11127
  %v11261 = vunpack.c.l.b16 %v11128
  %v11262 = vunpack.c.l.b16 %v11129
  %v11263 = vunpack.c.l.b16 %v11130
  %v11264 = vunpack.c.l.b16 %v11131
  %v11265 = vunpack.c.l.b16 %v11132
  %v11266 = vunpack.c.l.b16 %v11133
  %v11267 = vunpack.c.l.b16 %v11134
  %v11268 = vunpack.c.l.b16 %v11135
  %v11269 = vunpack.c.l.b16 %v11136
  %v11270 = vunpack.c.l.b16 %v11137
  %v11271 = vunpack.c.l.b16 %v11138
  %v11272 = vunpack.c.l.b16 %v11139
  %v11273 = vunpack.c.l.b16 %v11140
  %v11274 = vunpack.c.l.b16 %v11141
  %v11275 = vunpack.c.l.b16 %v11142
  %v11276 = vunpack.c.l.b16 %v11143
  %v11277 = vunpack.c.l.b16 %v11144
  %v11278 = vunpack.c.l.b16 %v11145
  %v11279 = vunpack.c.l.b16 %v11146
  %v11280 = vunpack.c.l.b16 %v11147
  %v11281 = vunpack.c.l.b16 %v11148
  %v11282 = vunpack.c.l.b16 %v11149
  %v11283 = vunpack.c.l.b16 %v11150
  %v11284 = vunpack.c.l.b16 %v11151
  %v11285 = vunpack.c.l.b16 %v11152
  %v11286 = vunpack.c.l.b16 %v11153
  %v11287 = vunpack.c.l.b16 %v11154
  %v11288 = vunpack.c.l.b16 %v11155
  %v11289 = vunpack.c.l.b16 %v11156
  %v11290 = vunpack.c.l.b16 %v11157
  %v11291 = vunpack.c.l.b16 %v11158
  %v11292 = vunpack.c.l.b16 %v11159
  %v11293 = vunpack.c.l.b16 %v11160
  %v11294 = vunpack.c.l.b16 %v11161
  %v11295 = vunpack.c.l.b16 %v11162
  %v11296 = vunpack.c.l.b16 %v11163
  %v11297 = vunpack.c.l.b16 %v11164
  %v11298 = vunpack.c.l.b16 %v11165
  %v11299 = vunpack.c.l.b16 %v11166
  %v11300 = vunpack.c.l.b16 %v11167
  %v11301 = vunpack.c.l.b16 %v11168
  %v11302 = vunpack.c.l.b16 %v11169
  %v11303 = vunpack.c.l.b16 %v11170
  %v11304 = vunpack.c.l.b16 %v11171
  %v11305 = vunpack.c.l.b16 %v11172
  %v11306 = vunpack.c.l.b16 %v11173
  %v11307 = vunpack.c.l.b16 %v11174
  %v11308 = vunpack.c.l.b16 %v11175
  %v11309 = vunpack.c.l.b16 %v11176
  %v11310 = vunpack.c.l.b16 %v11177
  %v11311 = vunpack.c.l.b16 %v11178
  %v11312 = vunpack.c.l.b16 %v11179
  %v11313 = vunpack.c.l.b16 %v11180
  %v11314 = vunpack.c.l.b16 %v11181
  %v11315 = vpack.c.b16 %v11252, %v11251
  %v11316 = vpack.c.b16 %v11254, %v11253
  %v11317 = vpack.c.b16 %v11256, %v11255
  %v11318 = vpack.c.b16 %v11258, %v11257
  %v11319 = vpack.c.b16 %v11260, %v11259
  %v11320 = vpack.c.b16 %v11262, %v11261
  %v11321 = vpack.c.b16 %v11264, %v11263
  %v11322 = vpack.c.b16 %v11266, %v11265
  %v11323 = vpack.c.b16 %v11268, %v11267
  %v11324 = vpack.c.b16 %v11270, %v11269
  %v11325 = vpack.c.b16 %v11272, %v11271
  %v11326 = vpack.c.b16 %v11274, %v11273
  %v11327 = vpack.c.b16 %v11276, %v11275
  %v11328 = vpack.c.b16 %v11278, %v11277
  %v11329 = vpack.c.b16 %v11280, %v11279
  %v11330 = vpack.c.b16 %v11282, %v11281
  %v11331 = vpack.c.b16 %v11284, %v11283
  %v11332 = vpack.c.b16 %v11286, %v11285
  %v11333 = vpack.c.b16 %v11288, %v11287
  %v11334 = vpack.c.b16 %v11290, %v11289
  %v11335 = vpack.c.b16 %v11292, %v11291
  %v11336 = vpack.c.b16 %v11294, %v11293
  %v11337 = vpack.c.b16 %v11296, %v11295
  %v11338 = vpack.c.b16 %v11298, %v11297
  %v11339 = vpack.c.b16 %v11300, %v11299
  %v11340 = vpack.c.b16 %v11302, %v11301
  %v11341 = vpack.c.b16 %v11304, %v11303
  %v11342 = vpack.c.b16 %v11306, %v11305
  %v11343 = vpack.c.b16 %v11308, %v11307
  %v11344 = vpack.c.b16 %v11310, %v11309
  %v11345 = vpack.c.b16 %v11312, %v11311
  %v11346 = vpack.c.b16 %v11314, %v11313
  %11379 = vmatpush.bf16.msra.mxu0 %v11322
  %11380 = vmatpush.bf16.msra.mxu0 %v11321
  %11381 = vmatpush.bf16.msra.mxu0 %v11320
  %11382 = vmatpush.bf16.msra.mxu0 %v11319
  %11383 = vmatpush.bf16.msra.mxu0 %v11318
  %11384 = vmatpush.bf16.msra.mxu0 %v11317
  %11385 = vmatpush.bf16.msra.mxu0 %v11316
  %11386 = vmatpush.bf16.msra.mxu0 %v11315
  %11387 = vmatmul.bf16.gmra.mxu0 %v11113
  %v11388 = vpop.f32.mrf.mxu0
  %v11389 = vadd.f32 %v11185, %v11388
  %v11390 = vpop.f32.mrf.mxu0
  %11391 = vdwg.mxu0
  %11392 = vmatpush.bf16.msra.mxu0 %v11330
  %11393 = vmatpush.bf16.msra.mxu0 %v11329
  %11394 = vmatpush.bf16.msra.mxu0 %v11328
  %11395 = vmatpush.bf16.msra.mxu0 %v11327
  %11396 = vmatpush.bf16.msra.mxu0 %v11326
  %11397 = vmatpush.bf16.msra.mxu0 %v11325
  %11398 = vmatpush.bf16.msra.mxu0 %v11324
  %11399 = vmatpush.bf16.msra.mxu0 %v11323
  %11400 = vmatmul.bf16.gmra.mxu0 %v11114
  %v11401 = vpop.f32.mrf.mxu0
  %v11402 = vadd.f32 %v11389, %v11401
  %v11403 = vpop.f32.mrf.mxu0
  %11404 = vdwg.mxu0
  %11405 = vmatpush.bf16.msra.mxu0 %v11338
  %11406 = vmatpush.bf16.msra.mxu0 %v11337
  %11407 = vmatpush.bf16.msra.mxu0 %v11336
  %11408 = vmatpush.bf16.msra.mxu0 %v11335
  %11409 = vmatpush.bf16.msra.mxu0 %v11334
  %11410 = vmatpush.bf16.msra.mxu0 %v11333
  %11411 = vmatpush.bf16.msra.mxu0 %v11332
  %11412 = vmatpush.bf16.msra.mxu0 %v11331
  %11413 = vmatmul.bf16.gmra.mxu0 %v11115
  %v11414 = vpop.f32.mrf.mxu0
  %v11415 = vadd.f32 %v11402, %v11414
  %v11416 = vpop.f32.mrf.mxu0
  %11417 = vdwg.mxu0
  %11418 = vmatpush.bf16.msra.mxu0 %v11346
  %11419 = vmatpush.bf16.msra.mxu0 %v11345
  %11420 = vmatpush.bf16.msra.mxu0 %v11344
  %11421 = vmatpush.bf16.msra.mxu0 %v11343
  %11422 = vmatpush.bf16.msra.mxu0 %v11342
  %11423 = vmatpush.bf16.msra.mxu0 %v11341
  %11424 = vmatpush.bf16.msra.mxu0 %v11340
  %11425 = vmatpush.bf16.msra.mxu0 %v11339
  %11426 = vmatmul.bf16.gmra.mxu0 %v11116
  %v11427 = vpop.f32.mrf.mxu0
  %v11428 = vadd.f32 %v11415, %v11427
  %v11429 = vpop.f32.mrf.mxu0
  %11430 = vdwg.mxu0
  %v11431 = vmax.f32 %v11428, 0.0
  %v11432 = vpack.c.bf16 %v11431, %v11431
  %s11433 = scalar_lea.vmem %s5, 192
  %v11434 = vld [vmem:[%s11433] sm:$0xf]
  %v11435 = vld [vmem:[%s11433 + $0x4] sm:$0xf]
  %v11436 = vld [vmem:[%s11433 + $0x8] sm:$0xf]
  %v11437 = vld [vmem:[%s11433 + $0xc] sm:$0xf]
  %v11438 = vld [vmem:[%s11433 + $0x10] sm:$0xf]
  %v11439 = vld [vmem:[%s11433 + $0x14] sm:$0xf]
  %v11440 = vld [vmem:[%s11433 + $0x18] sm:$0xf]
  %v11441 = vld [vmem:[%s11433 + $0x1c] sm:$0xf]
  %v11442 = vld [vmem:[%s11433 + $0x20] sm:$0xf]
  %v11443 = vld [vmem:[%s11433 + $0x24] sm:$0xf]
  %v11444 = vld [vmem:[%s11433 + $0x28] sm:$0xf]
  %v11445 = vld [vmem:[%s11433 + $0x2c] sm:$0xf]
  %v11446 = vld [vmem:[%s11433 + $0x30] sm:$0xf]
  %v11447 = vld [vmem:[%s11433 + $0x34] sm:$0xf]
  %v11448 = vld [vmem:[%s11433 + $0x38] sm:$0xf]
  %v11449 = vld [vmem:[%s11433 + $0x3c] sm:$0xf]
  %s11450 = scalar_lea.vmem %s6, 3
  %v11451 = vld [vmem:[%s11450] sm:$0x1]
  %v11453 = vperm.slane %v11451, 0
  %v11471 = vunpack.c.l.b16 %v11434
  %v11472 = vunpack.c.l.b16 %v11435
  %v11473 = vunpack.c.l.b16 %v11436
  %v11474 = vunpack.c.l.b16 %v11437
  %v11475 = vunpack.c.l.b16 %v11438
  %v11476 = vunpack.c.l.b16 %v11439
  %v11477 = vunpack.c.l.b16 %v11440
  %v11478 = vunpack.c.l.b16 %v11441
  %v11479 = vunpack.c.l.b16 %v11442
  %v11480 = vunpack.c.l.b16 %v11443
  %v11481 = vunpack.c.l.b16 %v11444
  %v11482 = vunpack.c.l.b16 %v11445
  %v11483 = vunpack.c.l.b16 %v11446
  %v11484 = vunpack.c.l.b16 %v11447
  %v11485 = vunpack.c.l.b16 %v11448
  %v11486 = vunpack.c.l.b16 %v11449
  %v11487 = vpack.c.b16 %v11472, %v11471
  %v11488 = vpack.c.b16 %v11474, %v11473
  %v11489 = vpack.c.b16 %v11476, %v11475
  %v11490 = vpack.c.b16 %v11478, %v11477
  %v11491 = vpack.c.b16 %v11480, %v11479
  %v11492 = vpack.c.b16 %v11482, %v11481
  %v11493 = vpack.c.b16 %v11484, %v11483
  %v11494 = vpack.c.b16 %v11486, %v11485
  %11503 = vmatpush.bf16.msra.mxu0 %v11494
  %11504 = vmatpush.bf16.msra.mxu0 %v11493
  %11505 = vmatpush.bf16.msra.mxu0 %v11492
  %11506 = vmatpush.bf16.msra.mxu0 %v11491
  %11507 = vmatpush.bf16.msra.mxu0 %v11490
  %11508 = vmatpush.bf16.msra.mxu0 %v11489
  %11509 = vmatpush.bf16.msra.mxu0 %v11488
  %11510 = vmatpush.bf16.msra.mxu0 %v11487
  %11511 = vmatmul.bf16.gmra.mxu0 %v11432
  %v11512 = vpop.f32.mrf.mxu0
  %v11513 = vadd.f32 %v11453, %v11512
  %v11514 = vpop.f32.mrf.mxu0
  %11515 = vdwg.mxu0
  %v11516 = vsel %vm10270, %v11513, -inf
  %11517 = vmax.xlane.f32.xlu0 %v11516
  %v11518 = vpop.xlane.xlu0 %11517
  %v11519 = vsub.f32 %v11513, %v11518
  %v11520 = vmul.f32 %v11519, 1.442695
  %v11521 = vpow.pop %v11520
  %v11522 = vsel %vm10270, %v11521, 0.0
  %11523 = vadd.xlane.f32.xlu0 %v11522
  %v11524 = vpop.xlane.xlu0 %11523
  %v11525 = vrcp.pop %v11524
  %v11526 = vmul.f32 %v11521, %v11525
  %11527 = vst [vmem:[%s7 + $0x6] sm:$0x3] %v11526
  %v11528 = vpack.c.bf16 %v9867, %v9867
  %v11529 = vpack.c.bf16 %v9868, %v9868
  %v11530 = vpack.c.bf16 %v9869, %v9869
  %v11531 = vpack.c.bf16 %v9870, %v9870
  %s11532 = scalar_lea.vmem %s3, 1024
  %v11533 = vld [vmem:[%s11532] sm:$0xf]
  %v11534 = vld [vmem:[%s11532 + $0x4] sm:$0xf]
  %v11535 = vld [vmem:[%s11532 + $0x8] sm:$0xf]
  %v11536 = vld [vmem:[%s11532 + $0xc] sm:$0xf]
  %v11537 = vld [vmem:[%s11532 + $0x10] sm:$0xf]
  %v11538 = vld [vmem:[%s11532 + $0x14] sm:$0xf]
  %v11539 = vld [vmem:[%s11532 + $0x18] sm:$0xf]
  %v11540 = vld [vmem:[%s11532 + $0x1c] sm:$0xf]
  %v11541 = vld [vmem:[%s11532 + $0x20] sm:$0xf]
  %v11542 = vld [vmem:[%s11532 + $0x24] sm:$0xf]
  %v11543 = vld [vmem:[%s11532 + $0x28] sm:$0xf]
  %v11544 = vld [vmem:[%s11532 + $0x2c] sm:$0xf]
  %v11545 = vld [vmem:[%s11532 + $0x30] sm:$0xf]
  %v11546 = vld [vmem:[%s11532 + $0x34] sm:$0xf]
  %v11547 = vld [vmem:[%s11532 + $0x38] sm:$0xf]
  %v11548 = vld [vmem:[%s11532 + $0x3c] sm:$0xf]
  %v11549 = vld [vmem:[%s11532 + $0x40] sm:$0xf]
  %v11550 = vld [vmem:[%s11532 + $0x44] sm:$0xf]
  %v11551 = vld [vmem:[%s11532 + $0x48] sm:$0xf]
  %v11552 = vld [vmem:[%s11532 + $0x4c] sm:$0xf]
  %v11553 = vld [vmem:[%s11532 + $0x50] sm:$0xf]
  %v11554 = vld [vmem:[%s11532 + $0x54] sm:$0xf]
  %v11555 = vld [vmem:[%s11532 + $0x58] sm:$0xf]
  %v11556 = vld [vmem:[%s11532 + $0x5c] sm:$0xf]
  %v11557 = vld [vmem:[%s11532 + $0x60] sm:$0xf]
  %v11558 = vld [vmem:[%s11532 + $0x64] sm:$0xf]
  %v11559 = vld [vmem:[%s11532 + $0x68] sm:$0xf]
  %v11560 = vld [vmem:[%s11532 + $0x6c] sm:$0xf]
  %v11561 = vld [vmem:[%s11532 + $0x70] sm:$0xf]
  %v11562 = vld [vmem:[%s11532 + $0x74] sm:$0xf]
  %v11563 = vld [vmem:[%s11532 + $0x78] sm:$0xf]
  %v11564 = vld [vmem:[%s11532 + $0x7c] sm:$0xf]
  %v11565 = vld [vmem:[%s11532 + $0x80] sm:$0xf]
  %v11566 = vld [vmem:[%s11532 + $0x84] sm:$0xf]
  %v11567 = vld [vmem:[%s11532 + $0x88] sm:$0xf]
  %v11568 = vld [vmem:[%s11532 + $0x8c] sm:$0xf]
  %v11569 = vld [vmem:[%s11532 + $0x90] sm:$0xf]
  %v11570 = vld [vmem:[%s11532 + $0x94] sm:$0xf]
  %v11571 = vld [vmem:[%s11532 + $0x98] sm:$0xf]
  %v11572 = vld [vmem:[%s11532 + $0x9c] sm:$0xf]
  %v11573 = vld [vmem:[%s11532 + $0xa0] sm:$0xf]
  %v11574 = vld [vmem:[%s11532 + $0xa4] sm:$0xf]
  %v11575 = vld [vmem:[%s11532 + $0xa8] sm:$0xf]
  %v11576 = vld [vmem:[%s11532 + $0xac] sm:$0xf]
  %v11577 = vld [vmem:[%s11532 + $0xb0] sm:$0xf]
  %v11578 = vld [vmem:[%s11532 + $0xb4] sm:$0xf]
  %v11579 = vld [vmem:[%s11532 + $0xb8] sm:$0xf]
  %v11580 = vld [vmem:[%s11532 + $0xbc] sm:$0xf]
  %v11581 = vld [vmem:[%s11532 + $0xc0] sm:$0xf]
  %v11582 = vld [vmem:[%s11532 + $0xc4] sm:$0xf]
  %v11583 = vld [vmem:[%s11532 + $0xc8] sm:$0xf]
  %v11584 = vld [vmem:[%s11532 + $0xcc] sm:$0xf]
  %v11585 = vld [vmem:[%s11532 + $0xd0] sm:$0xf]
  %v11586 = vld [vmem:[%s11532 + $0xd4] sm:$0xf]
  %v11587 = vld [vmem:[%s11532 + $0xd8] sm:$0xf]
  %v11588 = vld [vmem:[%s11532 + $0xdc] sm:$0xf]
  %v11589 = vld [vmem:[%s11532 + $0xe0] sm:$0xf]
  %v11590 = vld [vmem:[%s11532 + $0xe4] sm:$0xf]
  %v11591 = vld [vmem:[%s11532 + $0xe8] sm:$0xf]
  %v11592 = vld [vmem:[%s11532 + $0xec] sm:$0xf]
  %v11593 = vld [vmem:[%s11532 + $0xf0] sm:$0xf]
  %v11594 = vld [vmem:[%s11532 + $0xf4] sm:$0xf]
  %v11595 = vld [vmem:[%s11532 + $0xf8] sm:$0xf]
  %v11596 = vld [vmem:[%s11532 + $0xfc] sm:$0xf]
  %s11597 = scalar_lea.vmem %s4, 4
  %v11598 = vld [vmem:[%s11597] sm:$0x1]
  %v11600 = vperm.slane %v11598, 0
  %v11666 = vunpack.c.l.b16 %v11533
  %v11667 = vunpack.c.l.b16 %v11534
  %v11668 = vunpack.c.l.b16 %v11535
  %v11669 = vunpack.c.l.b16 %v11536
  %v11670 = vunpack.c.l.b16 %v11537
  %v11671 = vunpack.c.l.b16 %v11538
  %v11672 = vunpack.c.l.b16 %v11539
  %v11673 = vunpack.c.l.b16 %v11540
  %v11674 = vunpack.c.l.b16 %v11541
  %v11675 = vunpack.c.l.b16 %v11542
  %v11676 = vunpack.c.l.b16 %v11543
  %v11677 = vunpack.c.l.b16 %v11544
  %v11678 = vunpack.c.l.b16 %v11545
  %v11679 = vunpack.c.l.b16 %v11546
  %v11680 = vunpack.c.l.b16 %v11547
  %v11681 = vunpack.c.l.b16 %v11548
  %v11682 = vunpack.c.l.b16 %v11549
  %v11683 = vunpack.c.l.b16 %v11550
  %v11684 = vunpack.c.l.b16 %v11551
  %v11685 = vunpack.c.l.b16 %v11552
  %v11686 = vunpack.c.l.b16 %v11553
  %v11687 = vunpack.c.l.b16 %v11554
  %v11688 = vunpack.c.l.b16 %v11555
  %v11689 = vunpack.c.l.b16 %v11556
  %v11690 = vunpack.c.l.b16 %v11557
  %v11691 = vunpack.c.l.b16 %v11558
  %v11692 = vunpack.c.l.b16 %v11559
  %v11693 = vunpack.c.l.b16 %v11560
  %v11694 = vunpack.c.l.b16 %v11561
  %v11695 = vunpack.c.l.b16 %v11562
  %v11696 = vunpack.c.l.b16 %v11563
  %v11697 = vunpack.c.l.b16 %v11564
  %v11698 = vunpack.c.l.b16 %v11565
  %v11699 = vunpack.c.l.b16 %v11566
  %v11700 = vunpack.c.l.b16 %v11567
  %v11701 = vunpack.c.l.b16 %v11568
  %v11702 = vunpack.c.l.b16 %v11569
  %v11703 = vunpack.c.l.b16 %v11570
  %v11704 = vunpack.c.l.b16 %v11571
  %v11705 = vunpack.c.l.b16 %v11572
  %v11706 = vunpack.c.l.b16 %v11573
  %v11707 = vunpack.c.l.b16 %v11574
  %v11708 = vunpack.c.l.b16 %v11575
  %v11709 = vunpack.c.l.b16 %v11576
  %v11710 = vunpack.c.l.b16 %v11577
  %v11711 = vunpack.c.l.b16 %v11578
  %v11712 = vunpack.c.l.b16 %v11579
  %v11713 = vunpack.c.l.b16 %v11580
  %v11714 = vunpack.c.l.b16 %v11581
  %v11715 = vunpack.c.l.b16 %v11582
  %v11716 = vunpack.c.l.b16 %v11583
  %v11717 = vunpack.c.l.b16 %v11584
  %v11718 = vunpack.c.l.b16 %v11585
  %v11719 = vunpack.c.l.b16 %v11586
  %v11720 = vunpack.c.l.b16 %v11587
  %v11721 = vunpack.c.l.b16 %v11588
  %v11722 = vunpack.c.l.b16 %v11589
  %v11723 = vunpack.c.l.b16 %v11590
  %v11724 = vunpack.c.l.b16 %v11591
  %v11725 = vunpack.c.l.b16 %v11592
  %v11726 = vunpack.c.l.b16 %v11593
  %v11727 = vunpack.c.l.b16 %v11594
  %v11728 = vunpack.c.l.b16 %v11595
  %v11729 = vunpack.c.l.b16 %v11596
  %v11730 = vpack.c.b16 %v11667, %v11666
  %v11731 = vpack.c.b16 %v11669, %v11668
  %v11732 = vpack.c.b16 %v11671, %v11670
  %v11733 = vpack.c.b16 %v11673, %v11672
  %v11734 = vpack.c.b16 %v11675, %v11674
  %v11735 = vpack.c.b16 %v11677, %v11676
  %v11736 = vpack.c.b16 %v11679, %v11678
  %v11737 = vpack.c.b16 %v11681, %v11680
  %v11738 = vpack.c.b16 %v11683, %v11682
  %v11739 = vpack.c.b16 %v11685, %v11684
  %v11740 = vpack.c.b16 %v11687, %v11686
  %v11741 = vpack.c.b16 %v11689, %v11688
  %v11742 = vpack.c.b16 %v11691, %v11690
  %v11743 = vpack.c.b16 %v11693, %v11692
  %v11744 = vpack.c.b16 %v11695, %v11694
  %v11745 = vpack.c.b16 %v11697, %v11696
  %v11746 = vpack.c.b16 %v11699, %v11698
  %v11747 = vpack.c.b16 %v11701, %v11700
  %v11748 = vpack.c.b16 %v11703, %v11702
  %v11749 = vpack.c.b16 %v11705, %v11704
  %v11750 = vpack.c.b16 %v11707, %v11706
  %v11751 = vpack.c.b16 %v11709, %v11708
  %v11752 = vpack.c.b16 %v11711, %v11710
  %v11753 = vpack.c.b16 %v11713, %v11712
  %v11754 = vpack.c.b16 %v11715, %v11714
  %v11755 = vpack.c.b16 %v11717, %v11716
  %v11756 = vpack.c.b16 %v11719, %v11718
  %v11757 = vpack.c.b16 %v11721, %v11720
  %v11758 = vpack.c.b16 %v11723, %v11722
  %v11759 = vpack.c.b16 %v11725, %v11724
  %v11760 = vpack.c.b16 %v11727, %v11726
  %v11761 = vpack.c.b16 %v11729, %v11728
  %11794 = vmatpush.bf16.msra.mxu0 %v11737
  %11795 = vmatpush.bf16.msra.mxu0 %v11736
  %11796 = vmatpush.bf16.msra.mxu0 %v11735
  %11797 = vmatpush.bf16.msra.mxu0 %v11734
  %11798 = vmatpush.bf16.msra.mxu0 %v11733
  %11799 = vmatpush.bf16.msra.mxu0 %v11732
  %11800 = vmatpush.bf16.msra.mxu0 %v11731
  %11801 = vmatpush.bf16.msra.mxu0 %v11730
  %11802 = vmatmul.bf16.gmra.mxu0 %v11528
  %v11803 = vpop.f32.mrf.mxu0
  %v11804 = vadd.f32 %v11600, %v11803
  %v11805 = vpop.f32.mrf.mxu0
  %11806 = vdwg.mxu0
  %11807 = vmatpush.bf16.msra.mxu0 %v11745
  %11808 = vmatpush.bf16.msra.mxu0 %v11744
  %11809 = vmatpush.bf16.msra.mxu0 %v11743
  %11810 = vmatpush.bf16.msra.mxu0 %v11742
  %11811 = vmatpush.bf16.msra.mxu0 %v11741
  %11812 = vmatpush.bf16.msra.mxu0 %v11740
  %11813 = vmatpush.bf16.msra.mxu0 %v11739
  %11814 = vmatpush.bf16.msra.mxu0 %v11738
  %11815 = vmatmul.bf16.gmra.mxu0 %v11529
  %v11816 = vpop.f32.mrf.mxu0
  %v11817 = vadd.f32 %v11804, %v11816
  %v11818 = vpop.f32.mrf.mxu0
  %11819 = vdwg.mxu0
  %11820 = vmatpush.bf16.msra.mxu0 %v11753
  %11821 = vmatpush.bf16.msra.mxu0 %v11752
  %11822 = vmatpush.bf16.msra.mxu0 %v11751
  %11823 = vmatpush.bf16.msra.mxu0 %v11750
  %11824 = vmatpush.bf16.msra.mxu0 %v11749
  %11825 = vmatpush.bf16.msra.mxu0 %v11748
  %11826 = vmatpush.bf16.msra.mxu0 %v11747
  %11827 = vmatpush.bf16.msra.mxu0 %v11746
  %11828 = vmatmul.bf16.gmra.mxu0 %v11530
  %v11829 = vpop.f32.mrf.mxu0
  %v11830 = vadd.f32 %v11817, %v11829
  %v11831 = vpop.f32.mrf.mxu0
  %11832 = vdwg.mxu0
  %11833 = vmatpush.bf16.msra.mxu0 %v11761
  %11834 = vmatpush.bf16.msra.mxu0 %v11760
  %11835 = vmatpush.bf16.msra.mxu0 %v11759
  %11836 = vmatpush.bf16.msra.mxu0 %v11758
  %11837 = vmatpush.bf16.msra.mxu0 %v11757
  %11838 = vmatpush.bf16.msra.mxu0 %v11756
  %11839 = vmatpush.bf16.msra.mxu0 %v11755
  %11840 = vmatpush.bf16.msra.mxu0 %v11754
  %11841 = vmatmul.bf16.gmra.mxu0 %v11531
  %v11842 = vpop.f32.mrf.mxu0
  %v11843 = vadd.f32 %v11830, %v11842
  %v11844 = vpop.f32.mrf.mxu0
  %11845 = vdwg.mxu0
  %v11846 = vmax.f32 %v11843, 0.0
  %v11847 = vpack.c.bf16 %v11846, %v11846
  %s11848 = scalar_lea.vmem %s5, 256
  %v11849 = vld [vmem:[%s11848] sm:$0xf]
  %v11850 = vld [vmem:[%s11848 + $0x4] sm:$0xf]
  %v11851 = vld [vmem:[%s11848 + $0x8] sm:$0xf]
  %v11852 = vld [vmem:[%s11848 + $0xc] sm:$0xf]
  %v11853 = vld [vmem:[%s11848 + $0x10] sm:$0xf]
  %v11854 = vld [vmem:[%s11848 + $0x14] sm:$0xf]
  %v11855 = vld [vmem:[%s11848 + $0x18] sm:$0xf]
  %v11856 = vld [vmem:[%s11848 + $0x1c] sm:$0xf]
  %v11857 = vld [vmem:[%s11848 + $0x20] sm:$0xf]
  %v11858 = vld [vmem:[%s11848 + $0x24] sm:$0xf]
  %v11859 = vld [vmem:[%s11848 + $0x28] sm:$0xf]
  %v11860 = vld [vmem:[%s11848 + $0x2c] sm:$0xf]
  %v11861 = vld [vmem:[%s11848 + $0x30] sm:$0xf]
  %v11862 = vld [vmem:[%s11848 + $0x34] sm:$0xf]
  %v11863 = vld [vmem:[%s11848 + $0x38] sm:$0xf]
  %v11864 = vld [vmem:[%s11848 + $0x3c] sm:$0xf]
  %s11865 = scalar_lea.vmem %s6, 4
  %v11866 = vld [vmem:[%s11865] sm:$0x1]
  %v11868 = vperm.slane %v11866, 0
  %v11886 = vunpack.c.l.b16 %v11849
  %v11887 = vunpack.c.l.b16 %v11850
  %v11888 = vunpack.c.l.b16 %v11851
  %v11889 = vunpack.c.l.b16 %v11852
  %v11890 = vunpack.c.l.b16 %v11853
  %v11891 = vunpack.c.l.b16 %v11854
  %v11892 = vunpack.c.l.b16 %v11855
  %v11893 = vunpack.c.l.b16 %v11856
  %v11894 = vunpack.c.l.b16 %v11857
  %v11895 = vunpack.c.l.b16 %v11858
  %v11896 = vunpack.c.l.b16 %v11859
  %v11897 = vunpack.c.l.b16 %v11860
  %v11898 = vunpack.c.l.b16 %v11861
  %v11899 = vunpack.c.l.b16 %v11862
  %v11900 = vunpack.c.l.b16 %v11863
  %v11901 = vunpack.c.l.b16 %v11864
  %v11902 = vpack.c.b16 %v11887, %v11886
  %v11903 = vpack.c.b16 %v11889, %v11888
  %v11904 = vpack.c.b16 %v11891, %v11890
  %v11905 = vpack.c.b16 %v11893, %v11892
  %v11906 = vpack.c.b16 %v11895, %v11894
  %v11907 = vpack.c.b16 %v11897, %v11896
  %v11908 = vpack.c.b16 %v11899, %v11898
  %v11909 = vpack.c.b16 %v11901, %v11900
  %11918 = vmatpush.bf16.msra.mxu0 %v11909
  %11919 = vmatpush.bf16.msra.mxu0 %v11908
  %11920 = vmatpush.bf16.msra.mxu0 %v11907
  %11921 = vmatpush.bf16.msra.mxu0 %v11906
  %11922 = vmatpush.bf16.msra.mxu0 %v11905
  %11923 = vmatpush.bf16.msra.mxu0 %v11904
  %11924 = vmatpush.bf16.msra.mxu0 %v11903
  %11925 = vmatpush.bf16.msra.mxu0 %v11902
  %11926 = vmatmul.bf16.gmra.mxu0 %v11847
  %v11927 = vpop.f32.mrf.mxu0
  %v11928 = vadd.f32 %v11868, %v11927
  %v11929 = vpop.f32.mrf.mxu0
  %11930 = vdwg.mxu0
  %v11931 = vsel %vm10270, %v11928, -inf
  %11932 = vmax.xlane.f32.xlu0 %v11931
  %v11933 = vpop.xlane.xlu0 %11932
  %v11934 = vsub.f32 %v11928, %v11933
  %v11935 = vmul.f32 %v11934, 1.442695
  %v11936 = vpow.pop %v11935
  %v11937 = vsel %vm10270, %v11936, 0.0
  %11938 = vadd.xlane.f32.xlu0 %v11937
  %v11939 = vpop.xlane.xlu0 %11938
  %v11940 = vrcp.pop %v11939
  %v11941 = vmul.f32 %v11936, %v11940
  %11942 = vst [vmem:[%s7 + $0x8] sm:$0x3] %v11941
  // Predicated region
  $region30: #{_lambda_.9} parent=0 // pred_check
    _
  $region31: #{_lambda_.9} parent=0 // pred_check_branch
    %11944 = sbr.rel (0) target = $region33
  $region32: #{_lambda_.9} parent=0 // pred_region
    _
  $region33: #{_lambda_.9} parent=0 // pred_fallthru
    _
  // Predicated region
  $region34: #{_lambda_.9} parent=0 // pred_check
    _
  $region35: #{_lambda_.9} parent=0 // pred_check_branch
    %11946 = sbr.rel (0) target = $region37
  $region36: #{_lambda_.9} parent=0 // pred_region
    _
  $region37: #{_lambda_.9} parent=0 // pred_fallthru
    _

</llo_original>
